<compile_context>
chip_gen: v7x
topology: tpu7x:2x2x1
jax: 0.10.0
libtpu: 0.0.40
codegen_flags: <defaults>
</compile_context>

<pallas_src>
import jax
import jax.numpy as jnp
from jax import lax
from jax.experimental import pallas as pl
from jax.experimental.pallas import tpu as pltpu

EPS = 1e-5
_VMEM = pl.BlockSpec(memory_space=pltpu.MemorySpace.VMEM)


# ------------------------------ kernel helpers ------------------------------ #

def _bn_scale_shift(mat, gamma, beta):
    """Training-mode BatchNorm folded to per-channel scale/shift: bn(v)=v*s+t.

    mat:   (M, C) f32 -- exactly the values the next op will consume, so the
           statistics are perfectly consistent with the data (unlike the
           previous bf16-stored version).
    gamma/beta: (1, C) f32.  Two-pass mean / biased variance, matching the
    reference BatchNorm2d in train mode with eps=1e-5.
    """
    mean = jnp.mean(mat, axis=0, keepdims=True)                  # (1, C)
    var = jnp.mean((mat - mean) ** 2, axis=0, keepdims=True)     # (1, C)
    s = gamma * lax.rsqrt(var + EPS)
    t = beta - mean * s
    return s, t


def _conv3x3(y, wstack, bias):
    """3x3 'same' (zero padded) conv as ONE tap-stacked MXU matmul.

    y:      (N, H, W, C) f32
    wstack: (9*C, Cout) f32, tap order (ky, kx) channel-minor -- matches the
            column order built here (wrapper does transpose(2,3,1,0).reshape).
    bias:   (1, Cout) f32
    returns (N*H*W, Cout) f32 with bias added.
    """
    n, h, w, c = y.shape
    # Zero border (exact conv padding semantics) -- two concats, no masks.
    zr = jnp.zeros((n, 1, w, c), jnp.float32)
    zc = jnp.zeros((n, h + 2, 1, c), jnp.float32)
    yp = jnp.concatenate([zr, y, zr], axis=1)           # (n, h+2, w,   c)
    yp = jnp.concatenate([zc, yp, zc], axis=2)          # (n, h+2, w+2, c)
    # 9 static-slice taps stacked along the contraction dimension.
    taps = [yp[:, ky:ky + h, kx:kx + w, :] for ky in range(3) for kx in range(3)]
    cols = jnp.concatenate(taps, axis=-1).reshape(n * h * w, 9 * c)
    return jnp.dot(cols, wstack, preferred_element_type=jnp.float32) + bias


# -------------------------------- fused kernel ------------------------------ #

def _fused_kernel(x_ref,
                  g1_ref, b1_ref, w1_ref, c1_ref,
                  g2_ref, b2_ref, w2_ref, c2_ref,
                  g3_ref, b3_ref, w3_ref, c3_ref,
                  out_ref):
    n, h, w, cin = x_ref.shape
    hid = w1_ref.shape[1]
    nout = w3_ref.shape[1]
    m = n * h * w

    # ---- BN1 (stats + normalize), everything resident in VMEM ------------- #
    x = x_ref[...].astype(jnp.float32).reshape(m, cin)
    s1, t1 = _bn_scale_shift(x, g1_ref[...], b1_ref[...])
    y1 = (x * s1 + t1).reshape(n, h, w, cin)

    # ---- Conv2d(nin, hid, 3, padding=1) + bias + ReLU ---------------------- #
    a1 = jnp.maximum(_conv3x3(y1, w1_ref[...], c1_ref[...]), 0.0)   # (m, hid)

    # ---- BN2 + Conv2d(hid, hid, 1) + bias + ReLU --------------------------- #
    s2, t2 = _bn_scale_shift(a1, g2_ref[...], b2_ref[...])
    y2 = a1 * s2 + t2
    a2 = jnp.dot(y2, w2_ref[...], preferred_element_type=jnp.float32) + c2_ref[...]
    a2 = jnp.maximum(a2, 0.0)                                       # (m, hid)

    # ---- BN3 + ReLU + Conv2d(hid, nout, 3, padding=1) + bias --------------- #
    s3, t3 = _bn_scale_shift(a2, g3_ref[...], b3_ref[...])
    y3 = jnp.maximum(a2 * s3 + t3, 0.0).reshape(n, h, w, hid)
    z = _conv3x3(y3, w3_ref[...], c3_ref[...])                      # (m, nout)

    out_ref[...] = z.reshape(n, h, w, nout)


# ------------------------------- JAX wrapper -------------------------------- #

def norm_cnn_forward(x_nchw, p):
    n, cin, h, w = x_nchw.shape
    hid = p["conv1_b"].shape[0]
    nout = p["conv3_b"].shape[0]

    # NCHW -> NHWC with the TRUE channel count (no 128-lane HBM padding).
    x = jnp.transpose(x_nchw, (0, 2, 3, 1)).astype(jnp.float32)

    def w3x3(w_oihw):
        # PyTorch (Cout, Cin, 3, 3) -> (9*Cin, Cout), tap order (ky, kx).
        co, ci = w_oihw.shape[0], w_oihw.shape[1]
        return jnp.transpose(w_oihw, (2, 3, 1, 0)).reshape(9 * ci, co)

    args = (
        x,
        p["bn1_g"].reshape(1, cin), p["bn1_b"].reshape(1, cin),
        w3x3(p["conv1_w"]), p["conv1_b"].reshape(1, hid),
        p["bn2_g"].reshape(1, hid), p["bn2_b"].reshape(1, hid),
        jnp.transpose(p["conv2_w"][:, :, 0, 0], (1, 0)),            # (Cin, Cout)
        p["conv2_b"].reshape(1, hid),
        p["bn3_g"].reshape(1, hid), p["bn3_b"].reshape(1, hid),
        w3x3(p["conv3_w"]), p["conv3_b"].reshape(1, nout),
    )

    # Single fused call; whole problem resident in VMEM (well under the 16/32
    # MiB scoped defaults on every generation, so portable v5e/v6e/v7x).
    # TODO(synk): add a batch-tiled multi-call fallback (per-image convs with
    # stats accumulation) for inputs whose resident footprint exceeds VMEM /
    # to shard across v7x's two TensorCores at large N.
    out_nhwc = pl.pallas_call(
        _fused_kernel,
        in_specs=[_VMEM] * len(args),
        out_specs=_VMEM,
        out_shape=jax.ShapeDtypeStruct((n, h, w, nout), jnp.float32),
        compiler_params=pltpu.CompilerParams(vmem_limit_bytes=32 * 1024 * 1024),
    )(*args)
    return jnp.transpose(out_nhwc, (0, 3, 1, 2))                    # -> NCHW


# ----------------------------- plain-JAX reference -------------------------- #

def _ref_forward(x_nchw, p):
    def bn(x, g, b, relu=False):
        mean = x.mean(axis=(0, 2, 3), keepdims=True)
        var = ((x - mean) ** 2).mean(axis=(0, 2, 3), keepdims=True)
        y = (x - mean) / jnp.sqrt(var + EPS) * g.reshape(1, -1, 1, 1) \
            + b.reshape(1, -1, 1, 1)
        return jnp.maximum(y, 0.0) if relu else y

    def conv(x, w, b, pad):
        y = lax.conv_general_dilated(
            x, w, (1, 1), [(pad, pad), (pad, pad)],
            dimension_numbers=("NCHW", "OIHW", "NCHW"),
            precision=lax.Precision.HIGHEST)
        return y + b.reshape(1, -1, 1, 1)

    a = bn(x_nchw, p["bn1_g"], p["bn1_b"])
    a = jnp.maximum(conv(a, p["conv1_w"], p["conv1_b"], 1), 0.0)
    a = bn(a, p["bn2_g"], p["bn2_b"])
    a = jnp.maximum(conv(a, p["conv2_w"], p["conv2_b"], 0), 0.0)
    a = bn(a, p["bn3_g"], p["bn3_b"], relu=True)
    return conv(a, p["conv3_w"], p["conv3_b"], 1)


# --------------------------------- main -------------------------------------- #

def _init_params(key, nin, nout, hc):
    ks = jax.random.split(key, 10)
    f32 = jnp.float32
    return {
        "bn1_g": 1.0 + 0.1 * jax.random.normal(ks[0], (nin,), f32),
        "bn1_b": 0.1 * jax.random.normal(ks[1], (nin,), f32),
        "conv1_w": 0.1 * jax.random.normal(ks[2], (hc, nin, 3, 3), f32),
        "conv1_b": 0.1 * jax.random.normal(ks[3], (hc,), f32),
        "bn2_g": 1.0 + 0.1 * jax.random.normal(ks[4], (hc,), f32),
        "bn2_b": 0.1 * jax.random.normal(ks[5], (hc,), f32),
        "conv2_w": 0.1 * jax.random.normal(ks[6], (hc, hc, 1, 1), f32),
        "conv2_b": 0.1 * jax.random.normal(ks[7], (hc,), f32),
        "bn3_g": 1.0 + 0.1 * jax.random.normal(ks[8], (hc,), f32),
        "bn3_b": 0.1 * jax.random.normal(ks[9], (hc,), f32),
        "conv3_w": 0.1 * jax.random.normal(jax.random.fold_in(key, 100),
                                           (nout, hc, 3, 3), f32),
        "conv3_b": 0.1 * jax.random.normal(jax.random.fold_in(key, 101),
                                           (nout,), f32),
    }


if __name__ == "__main__":
    nin, nout, hidden = 4, 4, 16
    N, H, W = 2, 16, 16

    key = jax.random.PRNGKey(0)
    kx, kp = jax.random.split(key)
    x = jax.random.normal(kx, (N, nin, H, W), jnp.float32)   # NCHW, like PyTorch
    params = _init_params(kp, nin, nout, hidden)

    out = jax.jit(norm_cnn_forward)(x, params)
    out = jax.block_until_ready(out)

    ref = _ref_forward(x, params)
    assert out.shape == (N, nout, H, W), out.shape
    err = float(jnp.max(jnp.abs(out - ref)))
    assert jnp.allclose(out, ref, atol=1e-2, rtol=1e-2), err

    print("KERNEL_OK")
</pallas_src>

<mosaic_0001>
module attributes {stable_mosaic.version = 11 : i64} {
  func.func @_fused_kernel(%arg0: memref<2x16x16x4xf32, #tpu.memory_space<vmem>>, %arg1: memref<1x4xf32, #tpu.memory_space<vmem>>, %arg2: memref<1x4xf32, #tpu.memory_space<vmem>>, %arg3: memref<36x16xf32, #tpu.memory_space<vmem>>, %arg4: memref<1x16xf32, #tpu.memory_space<vmem>>, %arg5: memref<1x16xf32, #tpu.memory_space<vmem>>, %arg6: memref<1x16xf32, #tpu.memory_space<vmem>>, %arg7: memref<16x16xf32, #tpu.memory_space<vmem>>, %arg8: memref<1x16xf32, #tpu.memory_space<vmem>>, %arg9: memref<1x16xf32, #tpu.memory_space<vmem>>, %arg10: memref<1x16xf32, #tpu.memory_space<vmem>>, %arg11: memref<144x4xf32, #tpu.memory_space<vmem>>, %arg12: memref<1x4xf32, #tpu.memory_space<vmem>>, %arg13: memref<2x16x16x4xf32, #tpu.memory_space<vmem>>) attributes {dimension_semantics = [], scalar_prefetch = 0 : i64, scratch_operands = 0 : i64, tpu.core_type = #tpu.core_type<tc>} {
    %c0 = arith.constant 0 : index
    %c0_0 = arith.constant 0 : index
    %c0_1 = arith.constant 0 : index
    %c0_2 = arith.constant 0 : index
    %0 = vector.load %arg0[%c0, %c0_0, %c0_1, %c0_2] : memref<2x16x16x4xf32, #tpu.memory_space<vmem>>, vector<2x16x16x4xf32>
    %1 = vector.shape_cast %0 : vector<2x16x16x4xf32> to vector<512x4xf32>
    %c0_3 = arith.constant 0 : index
    %c0_4 = arith.constant 0 : index
    %2 = vector.load %arg1[%c0_3, %c0_4] : memref<1x4xf32, #tpu.memory_space<vmem>>, vector<1x4xf32>
    %c0_5 = arith.constant 0 : index
    %c0_6 = arith.constant 0 : index
    %3 = vector.load %arg2[%c0_5, %c0_6] : memref<1x4xf32, #tpu.memory_space<vmem>>, vector<1x4xf32>
    %cst = arith.constant dense<0.000000e+00> : vector<4xf32>
    %4 = vector.multi_reduction <add>, %1, %cst [0] : vector<512x4xf32> to vector<4xf32>
    %5 = vector.shape_cast %4 : vector<4xf32> to vector<1x4xf32>
    %cst_7 = arith.constant 5.120000e+02 : f32
    %6 = vector.broadcast %cst_7 : f32 to vector<1x4xf32>
    %7 = arith.divf %5, %6 : vector<1x4xf32>
    %8 = vector.broadcast %7 : vector<1x4xf32> to vector<512x4xf32>
    %9 = arith.subf %1, %8 : vector<512x4xf32>
    %10 = arith.mulf %9, %9 : vector<512x4xf32>
    %cst_8 = arith.constant dense<0.000000e+00> : vector<4xf32>
    %11 = vector.multi_reduction <add>, %10, %cst_8 [0] : vector<512x4xf32> to vector<4xf32>
    %12 = vector.shape_cast %11 : vector<4xf32> to vector<1x4xf32>
    %cst_9 = arith.constant 5.120000e+02 : f32
    %13 = vector.broadcast %cst_9 : f32 to vector<1x4xf32>
    %14 = arith.divf %12, %13 : vector<1x4xf32>
    %cst_10 = arith.constant 9.99999974E-6 : f32
    %15 = vector.broadcast %cst_10 : f32 to vector<1x4xf32>
    %16 = arith.addf %14, %15 : vector<1x4xf32>
    %17 = math.rsqrt %16 : vector<1x4xf32>
    %18 = arith.mulf %2, %17 : vector<1x4xf32>
    %19 = arith.mulf %7, %18 : vector<1x4xf32>
    %20 = arith.subf %3, %19 : vector<1x4xf32>
    %21 = vector.broadcast %18 : vector<1x4xf32> to vector<512x4xf32>
    %22 = arith.mulf %1, %21 : vector<512x4xf32>
    %23 = vector.broadcast %20 : vector<1x4xf32> to vector<512x4xf32>
    %24 = arith.addf %22, %23 : vector<512x4xf32>
    %25 = vector.shape_cast %24 : vector<512x4xf32> to vector<2x16x16x4xf32>
    %c0_11 = arith.constant 0 : index
    %c0_12 = arith.constant 0 : index
    %26 = vector.load %arg3[%c0_11, %c0_12] : memref<36x16xf32, #tpu.memory_space<vmem>>, vector<36x16xf32>
    %c0_13 = arith.constant 0 : index
    %c0_14 = arith.constant 0 : index
    %27 = vector.load %arg4[%c0_13, %c0_14] : memref<1x16xf32, #tpu.memory_space<vmem>>, vector<1x16xf32>
    %cst_15 = arith.constant 0.000000e+00 : f32
    %28 = vector.broadcast %cst_15 : f32 to vector<2x1x16x4xf32>
    %cst_16 = arith.constant 0.000000e+00 : f32
    %29 = vector.broadcast %cst_16 : f32 to vector<2x18x1x4xf32>
    %30 = tpu.concatenate %28, %25, %28 in 1 : vector<2x1x16x4xf32>, vector<2x16x16x4xf32>, vector<2x1x16x4xf32> -> vector<2x18x16x4xf32>
    %31 = tpu.concatenate %29, %30, %29 in 2 : vector<2x18x1x4xf32>, vector<2x18x16x4xf32>, vector<2x18x1x4xf32> -> vector<2x18x18x4xf32>
    %32 = vector.extract_strided_slice %31 {offsets = [0, 0, 0, 0], sizes = [2, 16, 16, 4], strides = [1, 1, 1, 1]} : vector<2x18x18x4xf32> to vector<2x16x16x4xf32>
    %33 = vector.extract_strided_slice %31 {offsets = [0, 0, 1, 0], sizes = [2, 16, 16, 4], strides = [1, 1, 1, 1]} : vector<2x18x18x4xf32> to vector<2x16x16x4xf32>
    %34 = vector.extract_strided_slice %31 {offsets = [0, 0, 2, 0], sizes = [2, 16, 16, 4], strides = [1, 1, 1, 1]} : vector<2x18x18x4xf32> to vector<2x16x16x4xf32>
    %35 = vector.extract_strided_slice %31 {offsets = [0, 1, 0, 0], sizes = [2, 16, 16, 4], strides = [1, 1, 1, 1]} : vector<2x18x18x4xf32> to vector<2x16x16x4xf32>
    %36 = vector.extract_strided_slice %31 {offsets = [0, 1, 1, 0], sizes = [2, 16, 16, 4], strides = [1, 1, 1, 1]} : vector<2x18x18x4xf32> to vector<2x16x16x4xf32>
    %37 = vector.extract_strided_slice %31 {offsets = [0, 1, 2, 0], sizes = [2, 16, 16, 4], strides = [1, 1, 1, 1]} : vector<2x18x18x4xf32> to vector<2x16x16x4xf32>
    %38 = vector.extract_strided_slice %31 {offsets = [0, 2, 0, 0], sizes = [2, 16, 16, 4], strides = [1, 1, 1, 1]} : vector<2x18x18x4xf32> to vector<2x16x16x4xf32>
    %39 = vector.extract_strided_slice %31 {offsets = [0, 2, 1, 0], sizes = [2, 16, 16, 4], strides = [1, 1, 1, 1]} : vector<2x18x18x4xf32> to vector<2x16x16x4xf32>
    %40 = vector.extract_strided_slice %31 {offsets = [0, 2, 2, 0], sizes = [2, 16, 16, 4], strides = [1, 1, 1, 1]} : vector<2x18x18x4xf32> to vector<2x16x16x4xf32>
    %41 = tpu.concatenate %32, %33, %34, %35, %36, %37, %38, %39, %40 in 3 : vector<2x16x16x4xf32>, vector<2x16x16x4xf32>, vector<2x16x16x4xf32>, vector<2x16x16x4xf32>, vector<2x16x16x4xf32>, vector<2x16x16x4xf32>, vector<2x16x16x4xf32>, vector<2x16x16x4xf32>, vector<2x16x16x4xf32> -> vector<2x16x16x36xf32>
    %42 = vector.shape_cast %41 : vector<2x16x16x36xf32> to vector<512x36xf32>
    %cst_17 = arith.constant dense<0.000000e+00> : vector<512x16xf32>
    %43 = tpu.matmul %42, %26, %cst_17 {dimension_numbers = #tpu.dot_dimension_numbers<[1], [0], [0], [1], [0, 0, 1, 1], [], []>} : vector<512x36xf32>, vector<36x16xf32>, vector<512x16xf32> -> vector<512x16xf32>
    %44 = vector.broadcast %27 : vector<1x16xf32> to vector<512x16xf32>
    %45 = arith.addf %43, %44 : vector<512x16xf32>
    %cst_18 = arith.constant 0.000000e+00 : f32
    %46 = vector.broadcast %cst_18 : f32 to vector<512x16xf32>
    %47 = arith.maximumf %45, %46 : vector<512x16xf32>
    %c0_19 = arith.constant 0 : index
    %c0_20 = arith.constant 0 : index
    %48 = vector.load %arg5[%c0_19, %c0_20] : memref<1x16xf32, #tpu.memory_space<vmem>>, vector<1x16xf32>
    %c0_21 = arith.constant 0 : index
    %c0_22 = arith.constant 0 : index
    %49 = vector.load %arg6[%c0_21, %c0_22] : memref<1x16xf32, #tpu.memory_space<vmem>>, vector<1x16xf32>
    %cst_23 = arith.constant dense<0.000000e+00> : vector<16xf32>
    %50 = vector.multi_reduction <add>, %47, %cst_23 [0] : vector<512x16xf32> to vector<16xf32>
    %51 = vector.shape_cast %50 : vector<16xf32> to vector<1x16xf32>
    %cst_24 = arith.constant 5.120000e+02 : f32
    %52 = vector.broadcast %cst_24 : f32 to vector<1x16xf32>
    %53 = arith.divf %51, %52 : vector<1x16xf32>
    %54 = vector.broadcast %53 : vector<1x16xf32> to vector<512x16xf32>
    %55 = arith.subf %47, %54 : vector<512x16xf32>
    %56 = arith.mulf %55, %55 : vector<512x16xf32>
    %cst_25 = arith.constant dense<0.000000e+00> : vector<16xf32>
    %57 = vector.multi_reduction <add>, %56, %cst_25 [0] : vector<512x16xf32> to vector<16xf32>
    %58 = vector.shape_cast %57 : vector<16xf32> to vector<1x16xf32>
    %cst_26 = arith.constant 5.120000e+02 : f32
    %59 = vector.broadcast %cst_26 : f32 to vector<1x16xf32>
    %60 = arith.divf %58, %59 : vector<1x16xf32>
    %cst_27 = arith.constant 9.99999974E-6 : f32
    %61 = vector.broadcast %cst_27 : f32 to vector<1x16xf32>
    %62 = arith.addf %60, %61 : vector<1x16xf32>
    %63 = math.rsqrt %62 : vector<1x16xf32>
    %64 = arith.mulf %48, %63 : vector<1x16xf32>
    %65 = arith.mulf %53, %64 : vector<1x16xf32>
    %66 = arith.subf %49, %65 : vector<1x16xf32>
    %67 = vector.broadcast %64 : vector<1x16xf32> to vector<512x16xf32>
    %68 = arith.mulf %47, %67 : vector<512x16xf32>
    %69 = vector.broadcast %66 : vector<1x16xf32> to vector<512x16xf32>
    %70 = arith.addf %68, %69 : vector<512x16xf32>
    %c0_28 = arith.constant 0 : index
    %c0_29 = arith.constant 0 : index
    %71 = vector.load %arg7[%c0_28, %c0_29] : memref<16x16xf32, #tpu.memory_space<vmem>>, vector<16x16xf32>
    %cst_30 = arith.constant dense<0.000000e+00> : vector<512x16xf32>
    %72 = tpu.matmul %70, %71, %cst_30 {dimension_numbers = #tpu.dot_dimension_numbers<[1], [0], [0], [1], [0, 0, 1, 1], [], []>} : vector<512x16xf32>, vector<16x16xf32>, vector<512x16xf32> -> vector<512x16xf32>
    %c0_31 = arith.constant 0 : index
    %c0_32 = arith.constant 0 : index
    %73 = vector.load %arg8[%c0_31, %c0_32] : memref<1x16xf32, #tpu.memory_space<vmem>>, vector<1x16xf32>
    %74 = vector.broadcast %73 : vector<1x16xf32> to vector<512x16xf32>
    %75 = arith.addf %72, %74 : vector<512x16xf32>
    %cst_33 = arith.constant 0.000000e+00 : f32
    %76 = vector.broadcast %cst_33 : f32 to vector<512x16xf32>
    %77 = arith.maximumf %75, %76 : vector<512x16xf32>
    %c0_34 = arith.constant 0 : index
    %c0_35 = arith.constant 0 : index
    %78 = vector.load %arg9[%c0_34, %c0_35] : memref<1x16xf32, #tpu.memory_space<vmem>>, vector<1x16xf32>
    %c0_36 = arith.constant 0 : index
    %c0_37 = arith.constant 0 : index
    %79 = vector.load %arg10[%c0_36, %c0_37] : memref<1x16xf32, #tpu.memory_space<vmem>>, vector<1x16xf32>
    %cst_38 = arith.constant dense<0.000000e+00> : vector<16xf32>
    %80 = vector.multi_reduction <add>, %77, %cst_38 [0] : vector<512x16xf32> to vector<16xf32>
    %81 = vector.shape_cast %80 : vector<16xf32> to vector<1x16xf32>
    %cst_39 = arith.constant 5.120000e+02 : f32
    %82 = vector.broadcast %cst_39 : f32 to vector<1x16xf32>
    %83 = arith.divf %81, %82 : vector<1x16xf32>
    %84 = vector.broadcast %83 : vector<1x16xf32> to vector<512x16xf32>
    %85 = arith.subf %77, %84 : vector<512x16xf32>
    %86 = arith.mulf %85, %85 : vector<512x16xf32>
    %cst_40 = arith.constant dense<0.000000e+00> : vector<16xf32>
    %87 = vector.multi_reduction <add>, %86, %cst_40 [0] : vector<512x16xf32> to vector<16xf32>
    %88 = vector.shape_cast %87 : vector<16xf32> to vector<1x16xf32>
    %cst_41 = arith.constant 5.120000e+02 : f32
    %89 = vector.broadcast %cst_41 : f32 to vector<1x16xf32>
    %90 = arith.divf %88, %89 : vector<1x16xf32>
    %cst_42 = arith.constant 9.99999974E-6 : f32
    %91 = vector.broadcast %cst_42 : f32 to vector<1x16xf32>
    %92 = arith.addf %90, %91 : vector<1x16xf32>
    %93 = math.rsqrt %92 : vector<1x16xf32>
    %94 = arith.mulf %78, %93 : vector<1x16xf32>
    %95 = arith.mulf %83, %94 : vector<1x16xf32>
    %96 = arith.subf %79, %95 : vector<1x16xf32>
    %97 = vector.broadcast %94 : vector<1x16xf32> to vector<512x16xf32>
    %98 = arith.mulf %77, %97 : vector<512x16xf32>
    %99 = vector.broadcast %96 : vector<1x16xf32> to vector<512x16xf32>
    %100 = arith.addf %98, %99 : vector<512x16xf32>
    %cst_43 = arith.constant 0.000000e+00 : f32
    %101 = vector.broadcast %cst_43 : f32 to vector<512x16xf32>
    %102 = arith.maximumf %100, %101 : vector<512x16xf32>
    %103 = vector.shape_cast %102 : vector<512x16xf32> to vector<2x16x16x16xf32>
    %c0_44 = arith.constant 0 : index
    %c0_45 = arith.constant 0 : index
    %104 = vector.load %arg11[%c0_44, %c0_45] : memref<144x4xf32, #tpu.memory_space<vmem>>, vector<144x4xf32>
    %c0_46 = arith.constant 0 : index
    %c0_47 = arith.constant 0 : index
    %105 = vector.load %arg12[%c0_46, %c0_47] : memref<1x4xf32, #tpu.memory_space<vmem>>, vector<1x4xf32>
    %cst_48 = arith.constant 0.000000e+00 : f32
    %106 = vector.broadcast %cst_48 : f32 to vector<2x1x16x16xf32>
    %cst_49 = arith.constant 0.000000e+00 : f32
    %107 = vector.broadcast %cst_49 : f32 to vector<2x18x1x16xf32>
    %108 = tpu.concatenate %106, %103, %106 in 1 : vector<2x1x16x16xf32>, vector<2x16x16x16xf32>, vector<2x1x16x16xf32> -> vector<2x18x16x16xf32>
    %109 = tpu.concatenate %107, %108, %107 in 2 : vector<2x18x1x16xf32>, vector<2x18x16x16xf32>, vector<2x18x1x16xf32> -> vector<2x18x18x16xf32>
    %110 = vector.extract_strided_slice %109 {offsets = [0, 0, 0, 0], sizes = [2, 16, 16, 16], strides = [1, 1, 1, 1]} : vector<2x18x18x16xf32> to vector<2x16x16x16xf32>
    %111 = vector.extract_strided_slice %109 {offsets = [0, 0, 1, 0], sizes = [2, 16, 16, 16], strides = [1, 1, 1, 1]} : vector<2x18x18x16xf32> to vector<2x16x16x16xf32>
    %112 = vector.extract_strided_slice %109 {offsets = [0, 0, 2, 0], sizes = [2, 16, 16, 16], strides = [1, 1, 1, 1]} : vector<2x18x18x16xf32> to vector<2x16x16x16xf32>
    %113 = vector.extract_strided_slice %109 {offsets = [0, 1, 0, 0], sizes = [2, 16, 16, 16], strides = [1, 1, 1, 1]} : vector<2x18x18x16xf32> to vector<2x16x16x16xf32>
    %114 = vector.extract_strided_slice %109 {offsets = [0, 1, 1, 0], sizes = [2, 16, 16, 16], strides = [1, 1, 1, 1]} : vector<2x18x18x16xf32> to vector<2x16x16x16xf32>
    %115 = vector.extract_strided_slice %109 {offsets = [0, 1, 2, 0], sizes = [2, 16, 16, 16], strides = [1, 1, 1, 1]} : vector<2x18x18x16xf32> to vector<2x16x16x16xf32>
    %116 = vector.extract_strided_slice %109 {offsets = [0, 2, 0, 0], sizes = [2, 16, 16, 16], strides = [1, 1, 1, 1]} : vector<2x18x18x16xf32> to vector<2x16x16x16xf32>
    %117 = vector.extract_strided_slice %109 {offsets = [0, 2, 1, 0], sizes = [2, 16, 16, 16], strides = [1, 1, 1, 1]} : vector<2x18x18x16xf32> to vector<2x16x16x16xf32>
    %118 = vector.extract_strided_slice %109 {offsets = [0, 2, 2, 0], sizes = [2, 16, 16, 16], strides = [1, 1, 1, 1]} : vector<2x18x18x16xf32> to vector<2x16x16x16xf32>
    %119 = tpu.concatenate %110, %111, %112, %113, %114, %115, %116, %117, %118 in 3 : vector<2x16x16x16xf32>, vector<2x16x16x16xf32>, vector<2x16x16x16xf32>, vector<2x16x16x16xf32>, vector<2x16x16x16xf32>, vector<2x16x16x16xf32>, vector<2x16x16x16xf32>, vector<2x16x16x16xf32>, vector<2x16x16x16xf32> -> vector<2x16x16x144xf32>
    %120 = vector.shape_cast %119 : vector<2x16x16x144xf32> to vector<512x144xf32>
    %cst_50 = arith.constant dense<0.000000e+00> : vector<512x4xf32>
    %121 = tpu.matmul %120, %104, %cst_50 {dimension_numbers = #tpu.dot_dimension_numbers<[1], [0], [0], [1], [0, 0, 1, 1], [], []>} : vector<512x144xf32>, vector<144x4xf32>, vector<512x4xf32> -> vector<512x4xf32>
    %122 = vector.broadcast %105 : vector<1x4xf32> to vector<512x4xf32>
    %123 = arith.addf %121, %122 : vector<512x4xf32>
    %124 = vector.shape_cast %123 : vector<512x4xf32> to vector<2x16x16x4xf32>
    %c0_51 = arith.constant 0 : index
    %c0_52 = arith.constant 0 : index
    %c0_53 = arith.constant 0 : index
    %c0_54 = arith.constant 0 : index
    %125 = vector.load %arg13[%c0_51, %c0_52, %c0_53, %c0_54] : memref<2x16x16x4xf32, #tpu.memory_space<vmem>>, vector<2x16x16x4xf32>
    tpu.vector_store %arg13[%c0_51, %c0_52, %c0_53, %c0_54], %124 {strides = array<i32>} : memref<2x16x16x4xf32, #tpu.memory_space<vmem>>, vector<2x16x16x4xf32>,
    return
  }
}

</mosaic_0001>

<llo_original>
// kernel: norm_cnn_forward.1
$region0: #{norm_cnn_forward.1}
  #allocation0 [shape = 'u32[]', space=smem, size = 0x4, offset = 0x4, fixed_abs, tag = 'smem constant byte address 0x4 - core index']
  #allocation1 [shape = 'u32[144,128]{1,0:T(1,128)}', space=vmem, size = 0x12000, scoped, tag = 'internal scratch']
  %s0 = inlined_call_operand.vmem [shape: f32[2,16,16,4], index: 0, kind: input, shape index: {}]
  %s1 = inlined_call_operand.vmem [shape: f32[1,4], index: 1, kind: input, shape index: {}]
  %s2 = inlined_call_operand.vmem [shape: f32[1,4], index: 2, kind: input, shape index: {}]
  %s3 = inlined_call_operand.vmem [shape: f32[36,16], index: 3, kind: input, shape index: {}]
  %s4 = inlined_call_operand.vmem [shape: f32[1,16], index: 4, kind: input, shape index: {}]
  %s5 = inlined_call_operand.vmem [shape: f32[1,16], index: 5, kind: input, shape index: {}]
  %s6 = inlined_call_operand.vmem [shape: f32[1,16], index: 6, kind: input, shape index: {}]
  %s7 = inlined_call_operand.vmem [shape: f32[16,16], index: 7, kind: input, shape index: {}]
  %s8 = inlined_call_operand.vmem [shape: f32[1,16], index: 8, kind: input, shape index: {}]
  %s9 = inlined_call_operand.vmem [shape: f32[1,16], index: 9, kind: input, shape index: {}]
  %s10 = inlined_call_operand.vmem [shape: f32[1,16], index: 10, kind: input, shape index: {}]
  %s11 = inlined_call_operand.vmem [shape: f32[144,4], index: 11, kind: input, shape index: {}]
  %s12 = inlined_call_operand.vmem [shape: f32[1,4], index: 12, kind: input, shape index: {}]
  %s13 = inlined_call_operand.vmem [shape: f32[2,16,16,4], index: 13, kind: output, shape index: {}]
  %s14 = sld [smem:[#allocation0]]
  $region62: #{norm_cnn_forward.1} parent=0
    _
  %s16 = ssub.s32 1, %s14
  %s17 = scalar_select 0, %s16, %s14
  // Predicated region
  $region2: #{norm_cnn_forward.1} parent=0 // pred_check
    _
  $region3: #{norm_cnn_forward.1} parent=0 // pred_check_branch
    %19 = sbr.rel (0) target = $region5
  $region4: #{norm_cnn_forward.1} parent=0 // pred_region
    _
  $region5: #{norm_cnn_forward.1} parent=0 // pred_fallthru
    _
  // Predicated region
  $region6: #{norm_cnn_forward.1} parent=0 // pred_check
    _
  $region7: #{norm_cnn_forward.1} parent=0 // pred_check_branch
    %21 = sbr.rel (0) target = $region9
  $region8: #{norm_cnn_forward.1} parent=0 // pred_region
    _
  $region9: #{norm_cnn_forward.1} parent=0 // pred_fallthru
    _
  // Predicated region
  $region10: #{norm_cnn_forward.1} parent=0 // pred_check
    _
  $region11: #{norm_cnn_forward.1} parent=0 // pred_check_branch
    %23 = sbr.rel (0) target = $region13
  $region12: #{norm_cnn_forward.1} parent=0 // pred_region
    _
  $region13: #{norm_cnn_forward.1} parent=0 // pred_fallthru
    _
  // Predicated region
  $region14: #{norm_cnn_forward.1} parent=0 // pred_check
    _
  $region15: #{norm_cnn_forward.1} parent=0 // pred_check_branch
    %25 = sbr.rel (0) target = $region17
  $region16: #{norm_cnn_forward.1} parent=0 // pred_region
    _
  $region17: #{norm_cnn_forward.1} parent=0 // pred_fallthru
    _
  // Predicated region
  $region18: #{norm_cnn_forward.1} parent=0 // pred_check
    _
  $region19: #{norm_cnn_forward.1} parent=0 // pred_check_branch
    %27 = sbr.rel (0) target = $region21
  $region20: #{norm_cnn_forward.1} parent=0 // pred_region
    _
  $region21: #{norm_cnn_forward.1} parent=0 // pred_fallthru
    _
  // Predicated region
  $region22: #{norm_cnn_forward.1} parent=0 // pred_check
    _
  $region23: #{norm_cnn_forward.1} parent=0 // pred_check_branch
    %29 = sbr.rel (0) target = $region25
  $region24: #{norm_cnn_forward.1} parent=0 // pred_region
    _
  $region25: #{norm_cnn_forward.1} parent=0 // pred_fallthru
    _
  // Predicated region
  $region26: #{norm_cnn_forward.1} parent=0 // pred_check
    _
  $region27: #{norm_cnn_forward.1} parent=0 // pred_check_branch
    %31 = sbr.rel (0) target = $region29
  $region28: #{norm_cnn_forward.1} parent=0 // pred_region
    _
  $region29: #{norm_cnn_forward.1} parent=0 // pred_fallthru
    _
  // Predicated region
  $region30: #{norm_cnn_forward.1} parent=0 // pred_check
    _
  $region31: #{norm_cnn_forward.1} parent=0 // pred_check_branch
    %33 = sbr.rel (0) target = $region33
  $region32: #{norm_cnn_forward.1} parent=0 // pred_region
    _
  $region33: #{norm_cnn_forward.1} parent=0 // pred_fallthru
    _
  // Predicated region
  $region34: #{norm_cnn_forward.1} parent=0 // pred_check
    _
  $region35: #{norm_cnn_forward.1} parent=0 // pred_check_branch
    %35 = sbr.rel (0) target = $region37
  $region36: #{norm_cnn_forward.1} parent=0 // pred_region
    _
  $region37: #{norm_cnn_forward.1} parent=0 // pred_fallthru
    _
  // Predicated region
  $region38: #{norm_cnn_forward.1} parent=0 // pred_check
    _
  $region39: #{norm_cnn_forward.1} parent=0 // pred_check_branch
    %37 = sbr.rel (0) target = $region41
  $region40: #{norm_cnn_forward.1} parent=0 // pred_region
    _
  $region41: #{norm_cnn_forward.1} parent=0 // pred_fallthru
    _
  // Predicated region
  $region42: #{norm_cnn_forward.1} parent=0 // pred_check
    _
  $region43: #{norm_cnn_forward.1} parent=0 // pred_check_branch
    %39 = sbr.rel (0) target = $region45
  $region44: #{norm_cnn_forward.1} parent=0 // pred_region
    _
  $region45: #{norm_cnn_forward.1} parent=0 // pred_fallthru
    _
  // Predicated region
  $region46: #{norm_cnn_forward.1} parent=0 // pred_check
    _
  $region47: #{norm_cnn_forward.1} parent=0 // pred_check_branch
    %41 = sbr.rel (0) target = $region49
  $region48: #{norm_cnn_forward.1} parent=0 // pred_region
    _
  $region49: #{norm_cnn_forward.1} parent=0 // pred_fallthru
    _
  // Predicated region
  $region50: #{norm_cnn_forward.1} parent=0 // pred_check
    _
  $region51: #{norm_cnn_forward.1} parent=0 // pred_check_branch
    %43 = sbr.rel (0) target = $region53
  $region52: #{norm_cnn_forward.1} parent=0 // pred_region
    _
  $region53: #{norm_cnn_forward.1} parent=0 // pred_fallthru
    _
  %v44 = vld [vmem:[%s0] sm:$0xff]
  %v45 = vld [vmem:[%s0 + $0x8] sm:$0xff]
  %v46 = vld [vmem:[%s0 + $0x10] sm:$0xff]
  %v47 = vld [vmem:[%s0 + $0x18] sm:$0xff]
  %v48 = vld [vmem:[%s0 + $0x20] sm:$0xff]
  %v49 = vld [vmem:[%s0 + $0x28] sm:$0xff]
  %v50 = vld [vmem:[%s0 + $0x30] sm:$0xff]
  %v51 = vld [vmem:[%s0 + $0x38] sm:$0xff]
  %v52 = vld [vmem:[%s0 + $0x40] sm:$0xff]
  %v53 = vld [vmem:[%s0 + $0x48] sm:$0xff]
  %v54 = vld [vmem:[%s0 + $0x50] sm:$0xff]
  %v55 = vld [vmem:[%s0 + $0x58] sm:$0xff]
  %v56 = vld [vmem:[%s0 + $0x60] sm:$0xff]
  %v57 = vld [vmem:[%s0 + $0x68] sm:$0xff]
  %v58 = vld [vmem:[%s0 + $0x70] sm:$0xff]
  %v59 = vld [vmem:[%s0 + $0x78] sm:$0xff]
  %v60 = vld [vmem:[%s0 + $0x80] sm:$0xff]
  %v61 = vld [vmem:[%s0 + $0x88] sm:$0xff]
  %v62 = vld [vmem:[%s0 + $0x90] sm:$0xff]
  %v63 = vld [vmem:[%s0 + $0x98] sm:$0xff]
  %v64 = vld [vmem:[%s0 + $0xa0] sm:$0xff]
  %v65 = vld [vmem:[%s0 + $0xa8] sm:$0xff]
  %v66 = vld [vmem:[%s0 + $0xb0] sm:$0xff]
  %v67 = vld [vmem:[%s0 + $0xb8] sm:$0xff]
  %v68 = vld [vmem:[%s0 + $0xc0] sm:$0xff]
  %v69 = vld [vmem:[%s0 + $0xc8] sm:$0xff]
  %v70 = vld [vmem:[%s0 + $0xd0] sm:$0xff]
  %v71 = vld [vmem:[%s0 + $0xd8] sm:$0xff]
  %v72 = vld [vmem:[%s0 + $0xe0] sm:$0xff]
  %v73 = vld [vmem:[%s0 + $0xe8] sm:$0xff]
  %v74 = vld [vmem:[%s0 + $0xf0] sm:$0xff]
  %v75 = vld [vmem:[%s0 + $0xf8] sm:$0xff]
  %v76 = vld [vmem:[%s0 + $0x100] sm:$0xff]
  %v77 = vld [vmem:[%s0 + $0x108] sm:$0xff]
  %v78 = vld [vmem:[%s0 + $0x110] sm:$0xff]
  %v79 = vld [vmem:[%s0 + $0x118] sm:$0xff]
  %v80 = vld [vmem:[%s0 + $0x120] sm:$0xff]
  %v81 = vld [vmem:[%s0 + $0x128] sm:$0xff]
  %v82 = vld [vmem:[%s0 + $0x130] sm:$0xff]
  %v83 = vld [vmem:[%s0 + $0x138] sm:$0xff]
  %v84 = vld [vmem:[%s0 + $0x140] sm:$0xff]
  %v85 = vld [vmem:[%s0 + $0x148] sm:$0xff]
  %v86 = vld [vmem:[%s0 + $0x150] sm:$0xff]
  %v87 = vld [vmem:[%s0 + $0x158] sm:$0xff]
  %v88 = vld [vmem:[%s0 + $0x160] sm:$0xff]
  %v89 = vld [vmem:[%s0 + $0x168] sm:$0xff]
  %v90 = vld [vmem:[%s0 + $0x170] sm:$0xff]
  %v91 = vld [vmem:[%s0 + $0x178] sm:$0xff]
  %v92 = vld [vmem:[%s0 + $0x180] sm:$0xff]
  %v93 = vld [vmem:[%s0 + $0x188] sm:$0xff]
  %v94 = vld [vmem:[%s0 + $0x190] sm:$0xff]
  %v95 = vld [vmem:[%s0 + $0x198] sm:$0xff]
  %v96 = vld [vmem:[%s0 + $0x1a0] sm:$0xff]
  %v97 = vld [vmem:[%s0 + $0x1a8] sm:$0xff]
  %v98 = vld [vmem:[%s0 + $0x1b0] sm:$0xff]
  %v99 = vld [vmem:[%s0 + $0x1b8] sm:$0xff]
  %v100 = vld [vmem:[%s0 + $0x1c0] sm:$0xff]
  %v101 = vld [vmem:[%s0 + $0x1c8] sm:$0xff]
  %v102 = vld [vmem:[%s0 + $0x1d0] sm:$0xff]
  %v103 = vld [vmem:[%s0 + $0x1d8] sm:$0xff]
  %v104 = vld [vmem:[%s0 + $0x1e0] sm:$0xff]
  %v105 = vld [vmem:[%s0 + $0x1e8] sm:$0xff]
  %v106 = vld [vmem:[%s0 + $0x1f0] sm:$0xff]
  %v107 = vld [vmem:[%s0 + $0x1f8] sm:$0xff]
  %v108 = vld [vmem:[%s1] sm:$0x1]
  %v109 = vld [vmem:[%s2] sm:$0x1]
  %vm110 = vcmask 31744
  %v111 = vsel %vm110, %v44, 0.0
  %v112 = vsel %vm110, %v45, 0.0
  %v113 = vadd.f32 %v111, %v112
  %v114 = vsel %vm110, %v46, 0.0
  %v115 = vadd.f32 %v113, %v114
  %v116 = vsel %vm110, %v47, 0.0
  %v117 = vadd.f32 %v115, %v116
  %v118 = vsel %vm110, %v48, 0.0
  %v119 = vadd.f32 %v117, %v118
  %v120 = vsel %vm110, %v49, 0.0
  %v121 = vadd.f32 %v119, %v120
  %v122 = vsel %vm110, %v50, 0.0
  %v123 = vadd.f32 %v121, %v122
  %v124 = vsel %vm110, %v51, 0.0
  %v125 = vadd.f32 %v123, %v124
  %v126 = vsel %vm110, %v52, 0.0
  %v127 = vadd.f32 %v125, %v126
  %v128 = vsel %vm110, %v53, 0.0
  %v129 = vadd.f32 %v127, %v128
  %v130 = vsel %vm110, %v54, 0.0
  %v131 = vadd.f32 %v129, %v130
  %v132 = vsel %vm110, %v55, 0.0
  %v133 = vadd.f32 %v131, %v132
  %v134 = vsel %vm110, %v56, 0.0
  %v135 = vadd.f32 %v133, %v134
  %v136 = vsel %vm110, %v57, 0.0
  %v137 = vadd.f32 %v135, %v136
  %v138 = vsel %vm110, %v58, 0.0
  %v139 = vadd.f32 %v137, %v138
  %v140 = vsel %vm110, %v59, 0.0
  %v141 = vadd.f32 %v139, %v140
  %v142 = vsel %vm110, %v60, 0.0
  %v143 = vadd.f32 %v141, %v142
  %v144 = vsel %vm110, %v61, 0.0
  %v145 = vadd.f32 %v143, %v144
  %v146 = vsel %vm110, %v62, 0.0
  %v147 = vadd.f32 %v145, %v146
  %v148 = vsel %vm110, %v63, 0.0
  %v149 = vadd.f32 %v147, %v148
  %v150 = vsel %vm110, %v64, 0.0
  %v151 = vadd.f32 %v149, %v150
  %v152 = vsel %vm110, %v65, 0.0
  %v153 = vadd.f32 %v151, %v152
  %v154 = vsel %vm110, %v66, 0.0
  %v155 = vadd.f32 %v153, %v154
  %v156 = vsel %vm110, %v67, 0.0
  %v157 = vadd.f32 %v155, %v156
  %v158 = vsel %vm110, %v68, 0.0
  %v159 = vadd.f32 %v157, %v158
  %v160 = vsel %vm110, %v69, 0.0
  %v161 = vadd.f32 %v159, %v160
  %v162 = vsel %vm110, %v70, 0.0
  %v163 = vadd.f32 %v161, %v162
  %v164 = vsel %vm110, %v71, 0.0
  %v165 = vadd.f32 %v163, %v164
  %v166 = vsel %vm110, %v72, 0.0
  %v167 = vadd.f32 %v165, %v166
  %v168 = vsel %vm110, %v73, 0.0
  %v169 = vadd.f32 %v167, %v168
  %v170 = vsel %vm110, %v74, 0.0
  %v171 = vadd.f32 %v169, %v170
  %v172 = vsel %vm110, %v75, 0.0
  %v173 = vadd.f32 %v171, %v172
  %v174 = vsel %vm110, %v76, 0.0
  %v175 = vadd.f32 %v173, %v174
  %v176 = vsel %vm110, %v77, 0.0
  %v177 = vadd.f32 %v175, %v176
  %v178 = vsel %vm110, %v78, 0.0
  %v179 = vadd.f32 %v177, %v178
  %v180 = vsel %vm110, %v79, 0.0
  %v181 = vadd.f32 %v179, %v180
  %v182 = vsel %vm110, %v80, 0.0
  %v183 = vadd.f32 %v181, %v182
  %v184 = vsel %vm110, %v81, 0.0
  %v185 = vadd.f32 %v183, %v184
  %v186 = vsel %vm110, %v82, 0.0
  %v187 = vadd.f32 %v185, %v186
  %v188 = vsel %vm110, %v83, 0.0
  %v189 = vadd.f32 %v187, %v188
  %v190 = vsel %vm110, %v84, 0.0
  %v191 = vadd.f32 %v189, %v190
  %v192 = vsel %vm110, %v85, 0.0
  %v193 = vadd.f32 %v191, %v192
  %v194 = vsel %vm110, %v86, 0.0
  %v195 = vadd.f32 %v193, %v194
  %v196 = vsel %vm110, %v87, 0.0
  %v197 = vadd.f32 %v195, %v196
  %v198 = vsel %vm110, %v88, 0.0
  %v199 = vadd.f32 %v197, %v198
  %v200 = vsel %vm110, %v89, 0.0
  %v201 = vadd.f32 %v199, %v200
  %v202 = vsel %vm110, %v90, 0.0
  %v203 = vadd.f32 %v201, %v202
  %v204 = vsel %vm110, %v91, 0.0
  %v205 = vadd.f32 %v203, %v204
  %v206 = vsel %vm110, %v92, 0.0
  %v207 = vadd.f32 %v205, %v206
  %v208 = vsel %vm110, %v93, 0.0
  %v209 = vadd.f32 %v207, %v208
  %v210 = vsel %vm110, %v94, 0.0
  %v211 = vadd.f32 %v209, %v210
  %v212 = vsel %vm110, %v95, 0.0
  %v213 = vadd.f32 %v211, %v212
  %v214 = vsel %vm110, %v96, 0.0
  %v215 = vadd.f32 %v213, %v214
  %v216 = vsel %vm110, %v97, 0.0
  %v217 = vadd.f32 %v215, %v216
  %v218 = vsel %vm110, %v98, 0.0
  %v219 = vadd.f32 %v217, %v218
  %v220 = vsel %vm110, %v99, 0.0
  %v221 = vadd.f32 %v219, %v220
  %v222 = vsel %vm110, %v100, 0.0
  %v223 = vadd.f32 %v221, %v222
  %v224 = vsel %vm110, %v101, 0.0
  %v225 = vadd.f32 %v223, %v224
  %v226 = vsel %vm110, %v102, 0.0
  %v227 = vadd.f32 %v225, %v226
  %v228 = vsel %vm110, %v103, 0.0
  %v229 = vadd.f32 %v227, %v228
  %v230 = vsel %vm110, %v104, 0.0
  %v231 = vadd.f32 %v229, %v230
  %v232 = vsel %vm110, %v105, 0.0
  %v233 = vadd.f32 %v231, %v232
  %v234 = vsel %vm110, %v106, 0.0
  %v235 = vadd.f32 %v233, %v234
  %v236 = vsel %vm110, %v107, 0.0
  %v237 = vadd.f32 %v235, %v236
  %v238 = vrot.slane %v237, 4
  %v239 = vadd.f32 %v237, %v238
  %v240 = vrot.slane %v239, 2
  %v241 = vadd.f32 %v239, %v240
  %v242 = vrot.slane %v241, 1
  %v243 = vadd.f32 %v241, %v242
  %v244 = vrcp.pop 512.0
  %v245 = vmul.f32 %v243, %v244
  %v246 = vsub.f32 %v44, %v245
  %v247 = vsub.f32 %v45, %v245
  %v248 = vsub.f32 %v46, %v245
  %v249 = vsub.f32 %v47, %v245
  %v250 = vsub.f32 %v48, %v245
  %v251 = vsub.f32 %v49, %v245
  %v252 = vsub.f32 %v50, %v245
  %v253 = vsub.f32 %v51, %v245
  %v254 = vsub.f32 %v52, %v245
  %v255 = vsub.f32 %v53, %v245
  %v256 = vsub.f32 %v54, %v245
  %v257 = vsub.f32 %v55, %v245
  %v258 = vsub.f32 %v56, %v245
  %v259 = vsub.f32 %v57, %v245
  %v260 = vsub.f32 %v58, %v245
  %v261 = vsub.f32 %v59, %v245
  %v262 = vsub.f32 %v60, %v245
  %v263 = vsub.f32 %v61, %v245
  %v264 = vsub.f32 %v62, %v245
  %v265 = vsub.f32 %v63, %v245
  %v266 = vsub.f32 %v64, %v245
  %v267 = vsub.f32 %v65, %v245
  %v268 = vsub.f32 %v66, %v245
  %v269 = vsub.f32 %v67, %v245
  %v270 = vsub.f32 %v68, %v245
  %v271 = vsub.f32 %v69, %v245
  %v272 = vsub.f32 %v70, %v245
  %v273 = vsub.f32 %v71, %v245
  %v274 = vsub.f32 %v72, %v245
  %v275 = vsub.f32 %v73, %v245
  %v276 = vsub.f32 %v74, %v245
  %v277 = vsub.f32 %v75, %v245
  %v278 = vsub.f32 %v76, %v245
  %v279 = vsub.f32 %v77, %v245
  %v280 = vsub.f32 %v78, %v245
  %v281 = vsub.f32 %v79, %v245
  %v282 = vsub.f32 %v80, %v245
  %v283 = vsub.f32 %v81, %v245
  %v284 = vsub.f32 %v82, %v245
  %v285 = vsub.f32 %v83, %v245
  %v286 = vsub.f32 %v84, %v245
  %v287 = vsub.f32 %v85, %v245
  %v288 = vsub.f32 %v86, %v245
  %v289 = vsub.f32 %v87, %v245
  %v290 = vsub.f32 %v88, %v245
  %v291 = vsub.f32 %v89, %v245
  %v292 = vsub.f32 %v90, %v245
  %v293 = vsub.f32 %v91, %v245
  %v294 = vsub.f32 %v92, %v245
  %v295 = vsub.f32 %v93, %v245
  %v296 = vsub.f32 %v94, %v245
  %v297 = vsub.f32 %v95, %v245
  %v298 = vsub.f32 %v96, %v245
  %v299 = vsub.f32 %v97, %v245
  %v300 = vsub.f32 %v98, %v245
  %v301 = vsub.f32 %v99, %v245
  %v302 = vsub.f32 %v100, %v245
  %v303 = vsub.f32 %v101, %v245
  %v304 = vsub.f32 %v102, %v245
  %v305 = vsub.f32 %v103, %v245
  %v306 = vsub.f32 %v104, %v245
  %v307 = vsub.f32 %v105, %v245
  %v308 = vsub.f32 %v106, %v245
  %v309 = vsub.f32 %v107, %v245
  %v310 = vmul.f32 %v246, %v246
  %v311 = vmul.f32 %v247, %v247
  %v312 = vmul.f32 %v248, %v248
  %v313 = vmul.f32 %v249, %v249
  %v314 = vmul.f32 %v250, %v250
  %v315 = vmul.f32 %v251, %v251
  %v316 = vmul.f32 %v252, %v252
  %v317 = vmul.f32 %v253, %v253
  %v318 = vmul.f32 %v254, %v254
  %v319 = vmul.f32 %v255, %v255
  %v320 = vmul.f32 %v256, %v256
  %v321 = vmul.f32 %v257, %v257
  %v322 = vmul.f32 %v258, %v258
  %v323 = vmul.f32 %v259, %v259
  %v324 = vmul.f32 %v260, %v260
  %v325 = vmul.f32 %v261, %v261
  %v326 = vmul.f32 %v262, %v262
  %v327 = vmul.f32 %v263, %v263
  %v328 = vmul.f32 %v264, %v264
  %v329 = vmul.f32 %v265, %v265
  %v330 = vmul.f32 %v266, %v266
  %v331 = vmul.f32 %v267, %v267
  %v332 = vmul.f32 %v268, %v268
  %v333 = vmul.f32 %v269, %v269
  %v334 = vmul.f32 %v270, %v270
  %v335 = vmul.f32 %v271, %v271
  %v336 = vmul.f32 %v272, %v272
  %v337 = vmul.f32 %v273, %v273
  %v338 = vmul.f32 %v274, %v274
  %v339 = vmul.f32 %v275, %v275
  %v340 = vmul.f32 %v276, %v276
  %v341 = vmul.f32 %v277, %v277
  %v342 = vmul.f32 %v278, %v278
  %v343 = vmul.f32 %v279, %v279
  %v344 = vmul.f32 %v280, %v280
  %v345 = vmul.f32 %v281, %v281
  %v346 = vmul.f32 %v282, %v282
  %v347 = vmul.f32 %v283, %v283
  %v348 = vmul.f32 %v284, %v284
  %v349 = vmul.f32 %v285, %v285
  %v350 = vmul.f32 %v286, %v286
  %v351 = vmul.f32 %v287, %v287
  %v352 = vmul.f32 %v288, %v288
  %v353 = vmul.f32 %v289, %v289
  %v354 = vmul.f32 %v290, %v290
  %v355 = vmul.f32 %v291, %v291
  %v356 = vmul.f32 %v292, %v292
  %v357 = vmul.f32 %v293, %v293
  %v358 = vmul.f32 %v294, %v294
  %v359 = vmul.f32 %v295, %v295
  %v360 = vmul.f32 %v296, %v296
  %v361 = vmul.f32 %v297, %v297
  %v362 = vmul.f32 %v298, %v298
  %v363 = vmul.f32 %v299, %v299
  %v364 = vmul.f32 %v300, %v300
  %v365 = vmul.f32 %v301, %v301
  %v366 = vmul.f32 %v302, %v302
  %v367 = vmul.f32 %v303, %v303
  %v368 = vmul.f32 %v304, %v304
  %v369 = vmul.f32 %v305, %v305
  %v370 = vmul.f32 %v306, %v306
  %v371 = vmul.f32 %v307, %v307
  %v372 = vmul.f32 %v308, %v308
  %v373 = vmul.f32 %v309, %v309
  %v374 = vsel %vm110, %v310, 0.0
  %v375 = vsel %vm110, %v311, 0.0
  %v376 = vadd.f32 %v374, %v375
  %v377 = vsel %vm110, %v312, 0.0
  %v378 = vadd.f32 %v376, %v377
  %v379 = vsel %vm110, %v313, 0.0
  %v380 = vadd.f32 %v378, %v379
  %v381 = vsel %vm110, %v314, 0.0
  %v382 = vadd.f32 %v380, %v381
  %v383 = vsel %vm110, %v315, 0.0
  %v384 = vadd.f32 %v382, %v383
  %v385 = vsel %vm110, %v316, 0.0
  %v386 = vadd.f32 %v384, %v385
  %v387 = vsel %vm110, %v317, 0.0
  %v388 = vadd.f32 %v386, %v387
  %v389 = vsel %vm110, %v318, 0.0
  %v390 = vadd.f32 %v388, %v389
  %v391 = vsel %vm110, %v319, 0.0
  %v392 = vadd.f32 %v390, %v391
  %v393 = vsel %vm110, %v320, 0.0
  %v394 = vadd.f32 %v392, %v393
  %v395 = vsel %vm110, %v321, 0.0
  %v396 = vadd.f32 %v394, %v395
  %v397 = vsel %vm110, %v322, 0.0
  %v398 = vadd.f32 %v396, %v397
  %v399 = vsel %vm110, %v323, 0.0
  %v400 = vadd.f32 %v398, %v399
  %v401 = vsel %vm110, %v324, 0.0
  %v402 = vadd.f32 %v400, %v401
  %v403 = vsel %vm110, %v325, 0.0
  %v404 = vadd.f32 %v402, %v403
  %v405 = vsel %vm110, %v326, 0.0
  %v406 = vadd.f32 %v404, %v405
  %v407 = vsel %vm110, %v327, 0.0
  %v408 = vadd.f32 %v406, %v407
  %v409 = vsel %vm110, %v328, 0.0
  %v410 = vadd.f32 %v408, %v409
  %v411 = vsel %vm110, %v329, 0.0
  %v412 = vadd.f32 %v410, %v411
  %v413 = vsel %vm110, %v330, 0.0
  %v414 = vadd.f32 %v412, %v413
  %v415 = vsel %vm110, %v331, 0.0
  %v416 = vadd.f32 %v414, %v415
  %v417 = vsel %vm110, %v332, 0.0
  %v418 = vadd.f32 %v416, %v417
  %v419 = vsel %vm110, %v333, 0.0
  %v420 = vadd.f32 %v418, %v419
  %v421 = vsel %vm110, %v334, 0.0
  %v422 = vadd.f32 %v420, %v421
  %v423 = vsel %vm110, %v335, 0.0
  %v424 = vadd.f32 %v422, %v423
  %v425 = vsel %vm110, %v336, 0.0
  %v426 = vadd.f32 %v424, %v425
  %v427 = vsel %vm110, %v337, 0.0
  %v428 = vadd.f32 %v426, %v427
  %v429 = vsel %vm110, %v338, 0.0
  %v430 = vadd.f32 %v428, %v429
  %v431 = vsel %vm110, %v339, 0.0
  %v432 = vadd.f32 %v430, %v431
  %v433 = vsel %vm110, %v340, 0.0
  %v434 = vadd.f32 %v432, %v433
  %v435 = vsel %vm110, %v341, 0.0
  %v436 = vadd.f32 %v434, %v435
  %v437 = vsel %vm110, %v342, 0.0
  %v438 = vadd.f32 %v436, %v437
  %v439 = vsel %vm110, %v343, 0.0
  %v440 = vadd.f32 %v438, %v439
  %v441 = vsel %vm110, %v344, 0.0
  %v442 = vadd.f32 %v440, %v441
  %v443 = vsel %vm110, %v345, 0.0
  %v444 = vadd.f32 %v442, %v443
  %v445 = vsel %vm110, %v346, 0.0
  %v446 = vadd.f32 %v444, %v445
  %v447 = vsel %vm110, %v347, 0.0
  %v448 = vadd.f32 %v446, %v447
  %v449 = vsel %vm110, %v348, 0.0
  %v450 = vadd.f32 %v448, %v449
  %v451 = vsel %vm110, %v349, 0.0
  %v452 = vadd.f32 %v450, %v451
  %v453 = vsel %vm110, %v350, 0.0
  %v454 = vadd.f32 %v452, %v453
  %v455 = vsel %vm110, %v351, 0.0
  %v456 = vadd.f32 %v454, %v455
  %v457 = vsel %vm110, %v352, 0.0
  %v458 = vadd.f32 %v456, %v457
  %v459 = vsel %vm110, %v353, 0.0
  %v460 = vadd.f32 %v458, %v459
  %v461 = vsel %vm110, %v354, 0.0
  %v462 = vadd.f32 %v460, %v461
  %v463 = vsel %vm110, %v355, 0.0
  %v464 = vadd.f32 %v462, %v463
  %v465 = vsel %vm110, %v356, 0.0
  %v466 = vadd.f32 %v464, %v465
  %v467 = vsel %vm110, %v357, 0.0
  %v468 = vadd.f32 %v466, %v467
  %v469 = vsel %vm110, %v358, 0.0
  %v470 = vadd.f32 %v468, %v469
  %v471 = vsel %vm110, %v359, 0.0
  %v472 = vadd.f32 %v470, %v471
  %v473 = vsel %vm110, %v360, 0.0
  %v474 = vadd.f32 %v472, %v473
  %v475 = vsel %vm110, %v361, 0.0
  %v476 = vadd.f32 %v474, %v475
  %v477 = vsel %vm110, %v362, 0.0
  %v478 = vadd.f32 %v476, %v477
  %v479 = vsel %vm110, %v363, 0.0
  %v480 = vadd.f32 %v478, %v479
  %v481 = vsel %vm110, %v364, 0.0
  %v482 = vadd.f32 %v480, %v481
  %v483 = vsel %vm110, %v365, 0.0
  %v484 = vadd.f32 %v482, %v483
  %v485 = vsel %vm110, %v366, 0.0
  %v486 = vadd.f32 %v484, %v485
  %v487 = vsel %vm110, %v367, 0.0
  %v488 = vadd.f32 %v486, %v487
  %v489 = vsel %vm110, %v368, 0.0
  %v490 = vadd.f32 %v488, %v489
  %v491 = vsel %vm110, %v369, 0.0
  %v492 = vadd.f32 %v490, %v491
  %v493 = vsel %vm110, %v370, 0.0
  %v494 = vadd.f32 %v492, %v493
  %v495 = vsel %vm110, %v371, 0.0
  %v496 = vadd.f32 %v494, %v495
  %v497 = vsel %vm110, %v372, 0.0
  %v498 = vadd.f32 %v496, %v497
  %v499 = vsel %vm110, %v373, 0.0
  %v500 = vadd.f32 %v498, %v499
  %v501 = vrot.slane %v500, 4
  %v502 = vadd.f32 %v500, %v501
  %v503 = vrot.slane %v502, 2
  %v504 = vadd.f32 %v502, %v503
  %v505 = vrot.slane %v504, 1
  %v506 = vadd.f32 %v504, %v505
  %v507 = vmul.f32 %v506, %v244
  %v508 = vadd.f32 %v507, 1e-05
  %v509 = vrsqrt.pop %v508
  %v510 = vmul.f32 %v108, %v509
  %v511 = vmul.f32 %v245, %v510
  %v512 = vsub.f32 %v109, %v511
  %v514 = vlaneseq
  %v515 = vshrl.u32 %v514, 7
  %v516 = vsub.s32 0, %v515
  %v517 = vrot.slane %v510, %v516
  %v519 = vmul.f32 %v44, %v517
  %v520 = vmul.f32 %v45, %v517
  %v521 = vmul.f32 %v46, %v517
  %v522 = vmul.f32 %v47, %v517
  %v523 = vmul.f32 %v48, %v517
  %v524 = vmul.f32 %v49, %v517
  %v525 = vmul.f32 %v50, %v517
  %v526 = vmul.f32 %v51, %v517
  %v527 = vmul.f32 %v52, %v517
  %v528 = vmul.f32 %v53, %v517
  %v529 = vmul.f32 %v54, %v517
  %v530 = vmul.f32 %v55, %v517
  %v531 = vmul.f32 %v56, %v517
  %v532 = vmul.f32 %v57, %v517
  %v533 = vmul.f32 %v58, %v517
  %v534 = vmul.f32 %v59, %v517
  %v535 = vmul.f32 %v60, %v517
  %v536 = vmul.f32 %v61, %v517
  %v537 = vmul.f32 %v62, %v517
  %v538 = vmul.f32 %v63, %v517
  %v539 = vmul.f32 %v64, %v517
  %v540 = vmul.f32 %v65, %v517
  %v541 = vmul.f32 %v66, %v517
  %v542 = vmul.f32 %v67, %v517
  %v543 = vmul.f32 %v68, %v517
  %v544 = vmul.f32 %v69, %v517
  %v545 = vmul.f32 %v70, %v517
  %v546 = vmul.f32 %v71, %v517
  %v547 = vmul.f32 %v72, %v517
  %v548 = vmul.f32 %v73, %v517
  %v549 = vmul.f32 %v74, %v517
  %v550 = vmul.f32 %v75, %v517
  %v551 = vmul.f32 %v76, %v517
  %v552 = vmul.f32 %v77, %v517
  %v553 = vmul.f32 %v78, %v517
  %v554 = vmul.f32 %v79, %v517
  %v555 = vmul.f32 %v80, %v517
  %v556 = vmul.f32 %v81, %v517
  %v557 = vmul.f32 %v82, %v517
  %v558 = vmul.f32 %v83, %v517
  %v559 = vmul.f32 %v84, %v517
  %v560 = vmul.f32 %v85, %v517
  %v561 = vmul.f32 %v86, %v517
  %v562 = vmul.f32 %v87, %v517
  %v563 = vmul.f32 %v88, %v517
  %v564 = vmul.f32 %v89, %v517
  %v565 = vmul.f32 %v90, %v517
  %v566 = vmul.f32 %v91, %v517
  %v567 = vmul.f32 %v92, %v517
  %v568 = vmul.f32 %v93, %v517
  %v569 = vmul.f32 %v94, %v517
  %v570 = vmul.f32 %v95, %v517
  %v571 = vmul.f32 %v96, %v517
  %v572 = vmul.f32 %v97, %v517
  %v573 = vmul.f32 %v98, %v517
  %v574 = vmul.f32 %v99, %v517
  %v575 = vmul.f32 %v100, %v517
  %v576 = vmul.f32 %v101, %v517
  %v577 = vmul.f32 %v102, %v517
  %v578 = vmul.f32 %v103, %v517
  %v579 = vmul.f32 %v104, %v517
  %v580 = vmul.f32 %v105, %v517
  %v581 = vmul.f32 %v106, %v517
  %v582 = vmul.f32 %v107, %v517
  %v584 = vlaneseq
  %v585 = vshrl.u32 %v584, 7
  %v586 = vsub.s32 0, %v585
  %v587 = vrot.slane %v512, %v586
  %v589 = vadd.f32 %v519, %v587
  %v590 = vadd.f32 %v520, %v587
  %v591 = vadd.f32 %v521, %v587
  %v592 = vadd.f32 %v522, %v587
  %v593 = vadd.f32 %v523, %v587
  %v594 = vadd.f32 %v524, %v587
  %v595 = vadd.f32 %v525, %v587
  %v596 = vadd.f32 %v526, %v587
  %v597 = vadd.f32 %v527, %v587
  %v598 = vadd.f32 %v528, %v587
  %v599 = vadd.f32 %v529, %v587
  %v600 = vadd.f32 %v530, %v587
  %v601 = vadd.f32 %v531, %v587
  %v602 = vadd.f32 %v532, %v587
  %v603 = vadd.f32 %v533, %v587
  %v604 = vadd.f32 %v534, %v587
  %v605 = vadd.f32 %v535, %v587
  %v606 = vadd.f32 %v536, %v587
  %v607 = vadd.f32 %v537, %v587
  %v608 = vadd.f32 %v538, %v587
  %v609 = vadd.f32 %v539, %v587
  %v610 = vadd.f32 %v540, %v587
  %v611 = vadd.f32 %v541, %v587
  %v612 = vadd.f32 %v542, %v587
  %v613 = vadd.f32 %v543, %v587
  %v614 = vadd.f32 %v544, %v587
  %v615 = vadd.f32 %v545, %v587
  %v616 = vadd.f32 %v546, %v587
  %v617 = vadd.f32 %v547, %v587
  %v618 = vadd.f32 %v548, %v587
  %v619 = vadd.f32 %v549, %v587
  %v620 = vadd.f32 %v550, %v587
  %v621 = vadd.f32 %v551, %v587
  %v622 = vadd.f32 %v552, %v587
  %v623 = vadd.f32 %v553, %v587
  %v624 = vadd.f32 %v554, %v587
  %v625 = vadd.f32 %v555, %v587
  %v626 = vadd.f32 %v556, %v587
  %v627 = vadd.f32 %v557, %v587
  %v628 = vadd.f32 %v558, %v587
  %v629 = vadd.f32 %v559, %v587
  %v630 = vadd.f32 %v560, %v587
  %v631 = vadd.f32 %v561, %v587
  %v632 = vadd.f32 %v562, %v587
  %v633 = vadd.f32 %v563, %v587
  %v634 = vadd.f32 %v564, %v587
  %v635 = vadd.f32 %v565, %v587
  %v636 = vadd.f32 %v566, %v587
  %v637 = vadd.f32 %v567, %v587
  %v638 = vadd.f32 %v568, %v587
  %v639 = vadd.f32 %v569, %v587
  %v640 = vadd.f32 %v570, %v587
  %v641 = vadd.f32 %v571, %v587
  %v642 = vadd.f32 %v572, %v587
  %v643 = vadd.f32 %v573, %v587
  %v644 = vadd.f32 %v574, %v587
  %v645 = vadd.f32 %v575, %v587
  %v646 = vadd.f32 %v576, %v587
  %v647 = vadd.f32 %v577, %v587
  %v648 = vadd.f32 %v578, %v587
  %v649 = vadd.f32 %v579, %v587
  %v650 = vadd.f32 %v580, %v587
  %v651 = vadd.f32 %v581, %v587
  %v652 = vadd.f32 %v582, %v587
  %v653 = vld [vmem:[%s3] sm:$0xff]
  %v654 = vld [vmem:[%s3 + $0x8] sm:$0xff]
  %v655 = vld [vmem:[%s3 + $0x10] sm:$0xff]
  %v656 = vld [vmem:[%s3 + $0x18] sm:$0xff]
  %v657 = vld [vmem:[%s3 + $0x20] sm:$0xf]
  %v658 = vld [vmem:[%s4] sm:$0x1]
  %vm724 = vcmask 1040384
  %v725 = vrot.slane 0.0, 7
  %v726 = vsel %vm724, %v725, %v725
  %v727 = vrot.slane %v589, 7
  %v728 = vrot.slane %v590, 7
  %v729 = vsel %vm724, %v727, %v728
  %v730 = vrot.slane %v591, 7
  %v731 = vrot.slane %v592, 7
  %v732 = vsel %vm724, %v730, %v731
  %v733 = vrot.slane %v593, 7
  %v734 = vrot.slane %v594, 7
  %v735 = vsel %vm724, %v733, %v734
  %v736 = vrot.slane %v595, 7
  %v737 = vrot.slane %v596, 7
  %v738 = vsel %vm724, %v736, %v737
  %v739 = vrot.slane %v597, 7
  %v740 = vrot.slane %v598, 7
  %v741 = vsel %vm724, %v739, %v740
  %v742 = vrot.slane %v599, 7
  %v743 = vrot.slane %v600, 7
  %v744 = vsel %vm724, %v742, %v743
  %v745 = vrot.slane %v601, 7
  %v746 = vrot.slane %v602, 7
  %v747 = vsel %vm724, %v745, %v746
  %v748 = vrot.slane %v603, 7
  %v749 = vrot.slane %v604, 7
  %v750 = vsel %vm724, %v748, %v749
  %v751 = vrot.slane %v605, 7
  %v752 = vrot.slane %v606, 7
  %v753 = vsel %vm724, %v751, %v752
  %v754 = vrot.slane %v607, 7
  %v755 = vrot.slane %v608, 7
  %v756 = vsel %vm724, %v754, %v755
  %v757 = vrot.slane %v609, 7
  %v758 = vrot.slane %v610, 7
  %v759 = vsel %vm724, %v757, %v758
  %v760 = vrot.slane %v611, 7
  %v761 = vrot.slane %v612, 7
  %v762 = vsel %vm724, %v760, %v761
  %v763 = vrot.slane %v613, 7
  %v764 = vrot.slane %v614, 7
  %v765 = vsel %vm724, %v763, %v764
  %v766 = vrot.slane %v615, 7
  %v767 = vrot.slane %v616, 7
  %v768 = vsel %vm724, %v766, %v767
  %v769 = vrot.slane %v617, 7
  %v770 = vrot.slane %v618, 7
  %v771 = vsel %vm724, %v769, %v770
  %v772 = vrot.slane %v619, 7
  %v773 = vrot.slane %v620, 7
  %v774 = vsel %vm724, %v772, %v773
  %v775 = vrot.slane %v621, 7
  %v776 = vrot.slane %v622, 7
  %v777 = vsel %vm724, %v775, %v776
  %v778 = vrot.slane %v623, 7
  %v779 = vrot.slane %v624, 7
  %v780 = vsel %vm724, %v778, %v779
  %v781 = vrot.slane %v625, 7
  %v782 = vrot.slane %v626, 7
  %v783 = vsel %vm724, %v781, %v782
  %v784 = vrot.slane %v627, 7
  %v785 = vrot.slane %v628, 7
  %v786 = vsel %vm724, %v784, %v785
  %v787 = vrot.slane %v629, 7
  %v788 = vrot.slane %v630, 7
  %v789 = vsel %vm724, %v787, %v788
  %v790 = vrot.slane %v631, 7
  %v791 = vrot.slane %v632, 7
  %v792 = vsel %vm724, %v790, %v791
  %v793 = vrot.slane %v633, 7
  %v794 = vrot.slane %v634, 7
  %v795 = vsel %vm724, %v793, %v794
  %v796 = vrot.slane %v635, 7
  %v797 = vrot.slane %v636, 7
  %v798 = vsel %vm724, %v796, %v797
  %v799 = vrot.slane %v637, 7
  %v800 = vrot.slane %v638, 7
  %v801 = vsel %vm724, %v799, %v800
  %v802 = vrot.slane %v639, 7
  %v803 = vrot.slane %v640, 7
  %v804 = vsel %vm724, %v802, %v803
  %v805 = vrot.slane %v641, 7
  %v806 = vrot.slane %v642, 7
  %v807 = vsel %vm724, %v805, %v806
  %v808 = vrot.slane %v643, 7
  %v809 = vrot.slane %v644, 7
  %v810 = vsel %vm724, %v808, %v809
  %v811 = vrot.slane %v645, 7
  %v812 = vrot.slane %v646, 7
  %v813 = vsel %vm724, %v811, %v812
  %v814 = vrot.slane %v647, 7
  %v815 = vrot.slane %v648, 7
  %v816 = vsel %vm724, %v814, %v815
  %v817 = vrot.slane %v649, 7
  %v818 = vrot.slane %v650, 7
  %v819 = vsel %vm724, %v817, %v818
  %v820 = vrot.slane %v651, 7
  %v821 = vrot.slane %v652, 7
  %v822 = vsel %vm724, %v820, %v821
  %v919 = vsel %vm724, 0.0, %v725
  %v920 = vsel %vm724, 0.0, %v727
  %v921 = vsel %vm724, 0.0, %v730
  %v922 = vsel %vm724, 0.0, %v733
  %v923 = vsel %vm724, 0.0, %v736
  %v924 = vsel %vm724, 0.0, %v739
  %v925 = vsel %vm724, 0.0, %v742
  %v926 = vsel %vm724, 0.0, %v745
  %v927 = vsel %vm724, 0.0, %v748
  %v928 = vsel %vm724, 0.0, %v751
  %v929 = vsel %vm724, 0.0, %v754
  %v930 = vsel %vm724, 0.0, %v757
  %v931 = vsel %vm724, 0.0, %v760
  %v932 = vsel %vm724, 0.0, %v763
  %v933 = vsel %vm724, 0.0, %v766
  %v934 = vsel %vm724, 0.0, %v769
  %v935 = vsel %vm724, 0.0, %v772
  %v936 = vsel %vm724, 0.0, %v775
  %v937 = vsel %vm724, 0.0, %v778
  %v938 = vsel %vm724, 0.0, %v781
  %v939 = vsel %vm724, 0.0, %v784
  %v940 = vsel %vm724, 0.0, %v787
  %v941 = vsel %vm724, 0.0, %v790
  %v942 = vsel %vm724, 0.0, %v793
  %v943 = vsel %vm724, 0.0, %v796
  %v944 = vsel %vm724, 0.0, %v799
  %v945 = vsel %vm724, 0.0, %v802
  %v946 = vsel %vm724, 0.0, %v805
  %v947 = vsel %vm724, 0.0, %v808
  %v948 = vsel %vm724, 0.0, %v811
  %v949 = vsel %vm724, 0.0, %v814
  %v950 = vsel %vm724, 0.0, %v817
  %v951 = vsel %vm724, 0.0, %v820
  %v952 = vsel %vm724, %v725, 0.0
  %v953 = vsel %vm724, %v728, 0.0
  %v954 = vsel %vm724, %v731, 0.0
  %v955 = vsel %vm724, %v734, 0.0
  %v956 = vsel %vm724, %v737, 0.0
  %v957 = vsel %vm724, %v740, 0.0
  %v958 = vsel %vm724, %v743, 0.0
  %v959 = vsel %vm724, %v746, 0.0
  %v960 = vsel %vm724, %v749, 0.0
  %v961 = vsel %vm724, %v752, 0.0
  %v962 = vsel %vm724, %v755, 0.0
  %v963 = vsel %vm724, %v758, 0.0
  %v964 = vsel %vm724, %v761, 0.0
  %v965 = vsel %vm724, %v764, 0.0
  %v966 = vsel %vm724, %v767, 0.0
  %v967 = vsel %vm724, %v770, 0.0
  %v968 = vsel %vm724, %v773, 0.0
  %v969 = vsel %vm724, %v776, 0.0
  %v970 = vsel %vm724, %v779, 0.0
  %v971 = vsel %vm724, %v782, 0.0
  %v972 = vsel %vm724, %v785, 0.0
  %v973 = vsel %vm724, %v788, 0.0
  %v974 = vsel %vm724, %v791, 0.0
  %v975 = vsel %vm724, %v794, 0.0
  %v976 = vsel %vm724, %v797, 0.0
  %v977 = vsel %vm724, %v800, 0.0
  %v978 = vsel %vm724, %v803, 0.0
  %v979 = vsel %vm724, %v806, 0.0
  %v980 = vsel %vm724, %v809, 0.0
  %v981 = vsel %vm724, %v812, 0.0
  %v982 = vsel %vm724, %v815, 0.0
  %v983 = vsel %vm724, %v818, 0.0
  %v984 = vsel %vm724, %v821, 0.0
  %vm1047 = vcmask 1046528
  %v1048 = vrot.slane %v919, 1
  %v1049 = vrot.slane %v726, 1
  %v1050 = vsel %vm1047, %v1048, %v1049
  %v1051 = vrot.slane %v952, 1
  %v1052 = vsel %vm1047, %v1049, %v1051
  %v1053 = vrot.slane %v920, 1
  %v1054 = vrot.slane %v729, 1
  %v1055 = vsel %vm1047, %v1053, %v1054
  %v1056 = vrot.slane %v953, 1
  %v1057 = vsel %vm1047, %v1054, %v1056
  %v1058 = vrot.slane %v921, 1
  %v1059 = vrot.slane %v732, 1
  %v1060 = vsel %vm1047, %v1058, %v1059
  %v1061 = vrot.slane %v954, 1
  %v1062 = vsel %vm1047, %v1059, %v1061
  %v1063 = vrot.slane %v922, 1
  %v1064 = vrot.slane %v735, 1
  %v1065 = vsel %vm1047, %v1063, %v1064
  %v1066 = vrot.slane %v955, 1
  %v1067 = vsel %vm1047, %v1064, %v1066
  %v1068 = vrot.slane %v923, 1
  %v1069 = vrot.slane %v738, 1
  %v1070 = vsel %vm1047, %v1068, %v1069
  %v1071 = vrot.slane %v956, 1
  %v1072 = vsel %vm1047, %v1069, %v1071
  %v1073 = vrot.slane %v924, 1
  %v1074 = vrot.slane %v741, 1
  %v1075 = vsel %vm1047, %v1073, %v1074
  %v1076 = vrot.slane %v957, 1
  %v1077 = vsel %vm1047, %v1074, %v1076
  %v1078 = vrot.slane %v925, 1
  %v1079 = vrot.slane %v744, 1
  %v1080 = vsel %vm1047, %v1078, %v1079
  %v1081 = vrot.slane %v958, 1
  %v1082 = vsel %vm1047, %v1079, %v1081
  %v1083 = vrot.slane %v926, 1
  %v1084 = vrot.slane %v747, 1
  %v1085 = vsel %vm1047, %v1083, %v1084
  %v1086 = vrot.slane %v959, 1
  %v1087 = vsel %vm1047, %v1084, %v1086
  %v1088 = vrot.slane %v927, 1
  %v1089 = vrot.slane %v750, 1
  %v1090 = vsel %vm1047, %v1088, %v1089
  %v1091 = vrot.slane %v960, 1
  %v1092 = vsel %vm1047, %v1089, %v1091
  %v1093 = vrot.slane %v928, 1
  %v1094 = vrot.slane %v753, 1
  %v1095 = vsel %vm1047, %v1093, %v1094
  %v1096 = vrot.slane %v961, 1
  %v1097 = vsel %vm1047, %v1094, %v1096
  %v1098 = vrot.slane %v929, 1
  %v1099 = vrot.slane %v756, 1
  %v1100 = vsel %vm1047, %v1098, %v1099
  %v1101 = vrot.slane %v962, 1
  %v1102 = vsel %vm1047, %v1099, %v1101
  %v1103 = vrot.slane %v930, 1
  %v1104 = vrot.slane %v759, 1
  %v1105 = vsel %vm1047, %v1103, %v1104
  %v1106 = vrot.slane %v963, 1
  %v1107 = vsel %vm1047, %v1104, %v1106
  %v1108 = vrot.slane %v931, 1
  %v1109 = vrot.slane %v762, 1
  %v1110 = vsel %vm1047, %v1108, %v1109
  %v1111 = vrot.slane %v964, 1
  %v1112 = vsel %vm1047, %v1109, %v1111
  %v1113 = vrot.slane %v932, 1
  %v1114 = vrot.slane %v765, 1
  %v1115 = vsel %vm1047, %v1113, %v1114
  %v1116 = vrot.slane %v965, 1
  %v1117 = vsel %vm1047, %v1114, %v1116
  %v1118 = vrot.slane %v933, 1
  %v1119 = vrot.slane %v768, 1
  %v1120 = vsel %vm1047, %v1118, %v1119
  %v1121 = vrot.slane %v966, 1
  %v1122 = vsel %vm1047, %v1119, %v1121
  %v1123 = vrot.slane %v934, 1
  %v1124 = vrot.slane %v771, 1
  %v1125 = vsel %vm1047, %v1123, %v1124
  %v1126 = vrot.slane %v967, 1
  %v1127 = vsel %vm1047, %v1124, %v1126
  %v1128 = vrot.slane %v936, 1
  %v1129 = vrot.slane %v777, 1
  %v1130 = vsel %vm1047, %v1128, %v1129
  %v1131 = vrot.slane %v969, 1
  %v1132 = vsel %vm1047, %v1129, %v1131
  %v1133 = vrot.slane %v937, 1
  %v1134 = vrot.slane %v780, 1
  %v1135 = vsel %vm1047, %v1133, %v1134
  %v1136 = vrot.slane %v970, 1
  %v1137 = vsel %vm1047, %v1134, %v1136
  %v1138 = vrot.slane %v938, 1
  %v1139 = vrot.slane %v783, 1
  %v1140 = vsel %vm1047, %v1138, %v1139
  %v1141 = vrot.slane %v971, 1
  %v1142 = vsel %vm1047, %v1139, %v1141
  %v1143 = vrot.slane %v939, 1
  %v1144 = vrot.slane %v786, 1
  %v1145 = vsel %vm1047, %v1143, %v1144
  %v1146 = vrot.slane %v972, 1
  %v1147 = vsel %vm1047, %v1144, %v1146
  %v1148 = vrot.slane %v940, 1
  %v1149 = vrot.slane %v789, 1
  %v1150 = vsel %vm1047, %v1148, %v1149
  %v1151 = vrot.slane %v973, 1
  %v1152 = vsel %vm1047, %v1149, %v1151
  %v1153 = vrot.slane %v941, 1
  %v1154 = vrot.slane %v792, 1
  %v1155 = vsel %vm1047, %v1153, %v1154
  %v1156 = vrot.slane %v974, 1
  %v1157 = vsel %vm1047, %v1154, %v1156
  %v1158 = vrot.slane %v942, 1
  %v1159 = vrot.slane %v795, 1
  %v1160 = vsel %vm1047, %v1158, %v1159
  %v1161 = vrot.slane %v975, 1
  %v1162 = vsel %vm1047, %v1159, %v1161
  %v1163 = vrot.slane %v943, 1
  %v1164 = vrot.slane %v798, 1
  %v1165 = vsel %vm1047, %v1163, %v1164
  %v1166 = vrot.slane %v976, 1
  %v1167 = vsel %vm1047, %v1164, %v1166
  %v1168 = vrot.slane %v944, 1
  %v1169 = vrot.slane %v801, 1
  %v1170 = vsel %vm1047, %v1168, %v1169
  %v1171 = vrot.slane %v977, 1
  %v1172 = vsel %vm1047, %v1169, %v1171
  %v1173 = vrot.slane %v945, 1
  %v1174 = vrot.slane %v804, 1
  %v1175 = vsel %vm1047, %v1173, %v1174
  %v1176 = vrot.slane %v978, 1
  %v1177 = vsel %vm1047, %v1174, %v1176
  %v1178 = vrot.slane %v946, 1
  %v1179 = vrot.slane %v807, 1
  %v1180 = vsel %vm1047, %v1178, %v1179
  %v1181 = vrot.slane %v979, 1
  %v1182 = vsel %vm1047, %v1179, %v1181
  %v1183 = vrot.slane %v947, 1
  %v1184 = vrot.slane %v810, 1
  %v1185 = vsel %vm1047, %v1183, %v1184
  %v1186 = vrot.slane %v980, 1
  %v1187 = vsel %vm1047, %v1184, %v1186
  %v1188 = vrot.slane %v948, 1
  %v1189 = vrot.slane %v813, 1
  %v1190 = vsel %vm1047, %v1188, %v1189
  %v1191 = vrot.slane %v981, 1
  %v1192 = vsel %vm1047, %v1189, %v1191
  %v1193 = vrot.slane %v949, 1
  %v1194 = vrot.slane %v816, 1
  %v1195 = vsel %vm1047, %v1193, %v1194
  %v1196 = vrot.slane %v982, 1
  %v1197 = vsel %vm1047, %v1194, %v1196
  %v1198 = vrot.slane %v950, 1
  %v1199 = vrot.slane %v819, 1
  %v1200 = vsel %vm1047, %v1198, %v1199
  %v1201 = vrot.slane %v983, 1
  %v1202 = vsel %vm1047, %v1199, %v1201
  %1203 = vrot.lane.b32.xlu0 %v1050, 4
  %v1204 = vpop.permute.xlu0 %1203
  %1205 = vrot.lane.b32.xlu0 %v1052, 4
  %v1206 = vpop.permute.xlu0 %1205
  %1207 = vrot.lane.b32.xlu0 %v1055, 4
  %v1208 = vpop.permute.xlu0 %1207
  %1209 = vrot.lane.b32.xlu0 %v1057, 4
  %v1210 = vpop.permute.xlu0 %1209
  %1211 = vrot.lane.b32.xlu0 %v1060, 4
  %v1212 = vpop.permute.xlu0 %1211
  %1213 = vrot.lane.b32.xlu0 %v1062, 4
  %v1214 = vpop.permute.xlu0 %1213
  %1215 = vrot.lane.b32.xlu0 %v1065, 4
  %v1216 = vpop.permute.xlu0 %1215
  %1217 = vrot.lane.b32.xlu0 %v1067, 4
  %v1218 = vpop.permute.xlu0 %1217
  %1219 = vrot.lane.b32.xlu0 %v1070, 4
  %v1220 = vpop.permute.xlu0 %1219
  %1221 = vrot.lane.b32.xlu0 %v1072, 4
  %v1222 = vpop.permute.xlu0 %1221
  %1223 = vrot.lane.b32.xlu0 %v1075, 4
  %v1224 = vpop.permute.xlu0 %1223
  %1225 = vrot.lane.b32.xlu0 %v1077, 4
  %v1226 = vpop.permute.xlu0 %1225
  %1227 = vrot.lane.b32.xlu0 %v1080, 4
  %v1228 = vpop.permute.xlu0 %1227
  %1229 = vrot.lane.b32.xlu0 %v1082, 4
  %v1230 = vpop.permute.xlu0 %1229
  %1231 = vrot.lane.b32.xlu0 %v1085, 4
  %v1232 = vpop.permute.xlu0 %1231
  %1233 = vrot.lane.b32.xlu0 %v1087, 4
  %v1234 = vpop.permute.xlu0 %1233
  %1235 = vrot.lane.b32.xlu0 %v1090, 4
  %v1236 = vpop.permute.xlu0 %1235
  %1237 = vrot.lane.b32.xlu0 %v1092, 4
  %v1238 = vpop.permute.xlu0 %1237
  %1239 = vrot.lane.b32.xlu0 %v1095, 4
  %v1240 = vpop.permute.xlu0 %1239
  %1241 = vrot.lane.b32.xlu0 %v1097, 4
  %v1242 = vpop.permute.xlu0 %1241
  %1243 = vrot.lane.b32.xlu0 %v1100, 4
  %v1244 = vpop.permute.xlu0 %1243
  %1245 = vrot.lane.b32.xlu0 %v1102, 4
  %v1246 = vpop.permute.xlu0 %1245
  %1247 = vrot.lane.b32.xlu0 %v1105, 4
  %v1248 = vpop.permute.xlu0 %1247
  %1249 = vrot.lane.b32.xlu0 %v1107, 4
  %v1250 = vpop.permute.xlu0 %1249
  %1251 = vrot.lane.b32.xlu0 %v1110, 4
  %v1252 = vpop.permute.xlu0 %1251
  %1253 = vrot.lane.b32.xlu0 %v1112, 4
  %v1254 = vpop.permute.xlu0 %1253
  %1255 = vrot.lane.b32.xlu0 %v1115, 4
  %v1256 = vpop.permute.xlu0 %1255
  %1257 = vrot.lane.b32.xlu0 %v1117, 4
  %v1258 = vpop.permute.xlu0 %1257
  %1259 = vrot.lane.b32.xlu0 %v1120, 4
  %v1260 = vpop.permute.xlu0 %1259
  %1261 = vrot.lane.b32.xlu0 %v1122, 4
  %v1262 = vpop.permute.xlu0 %1261
  %1263 = vrot.lane.b32.xlu0 %v1125, 4
  %v1264 = vpop.permute.xlu0 %1263
  %1265 = vrot.lane.b32.xlu0 %v1127, 4
  %v1266 = vpop.permute.xlu0 %1265
  %1267 = vrot.lane.b32.xlu0 %v1130, 4
  %v1268 = vpop.permute.xlu0 %1267
  %1269 = vrot.lane.b32.xlu0 %v1132, 4
  %v1270 = vpop.permute.xlu0 %1269
  %1271 = vrot.lane.b32.xlu0 %v1135, 4
  %v1272 = vpop.permute.xlu0 %1271
  %1273 = vrot.lane.b32.xlu0 %v1137, 4
  %v1274 = vpop.permute.xlu0 %1273
  %1275 = vrot.lane.b32.xlu0 %v1140, 4
  %v1276 = vpop.permute.xlu0 %1275
  %1277 = vrot.lane.b32.xlu0 %v1142, 4
  %v1278 = vpop.permute.xlu0 %1277
  %1279 = vrot.lane.b32.xlu0 %v1145, 4
  %v1280 = vpop.permute.xlu0 %1279
  %1281 = vrot.lane.b32.xlu0 %v1147, 4
  %v1282 = vpop.permute.xlu0 %1281
  %1283 = vrot.lane.b32.xlu0 %v1150, 4
  %v1284 = vpop.permute.xlu0 %1283
  %1285 = vrot.lane.b32.xlu0 %v1152, 4
  %v1286 = vpop.permute.xlu0 %1285
  %1287 = vrot.lane.b32.xlu0 %v1155, 4
  %v1288 = vpop.permute.xlu0 %1287
  %1289 = vrot.lane.b32.xlu0 %v1157, 4
  %v1290 = vpop.permute.xlu0 %1289
  %1291 = vrot.lane.b32.xlu0 %v1160, 4
  %v1292 = vpop.permute.xlu0 %1291
  %1293 = vrot.lane.b32.xlu0 %v1162, 4
  %v1294 = vpop.permute.xlu0 %1293
  %1295 = vrot.lane.b32.xlu0 %v1165, 4
  %v1296 = vpop.permute.xlu0 %1295
  %1297 = vrot.lane.b32.xlu0 %v1167, 4
  %v1298 = vpop.permute.xlu0 %1297
  %1299 = vrot.lane.b32.xlu0 %v1170, 4
  %v1300 = vpop.permute.xlu0 %1299
  %1301 = vrot.lane.b32.xlu0 %v1172, 4
  %v1302 = vpop.permute.xlu0 %1301
  %1303 = vrot.lane.b32.xlu0 %v1175, 4
  %v1304 = vpop.permute.xlu0 %1303
  %1305 = vrot.lane.b32.xlu0 %v1177, 4
  %v1306 = vpop.permute.xlu0 %1305
  %1307 = vrot.lane.b32.xlu0 %v1180, 4
  %v1308 = vpop.permute.xlu0 %1307
  %1309 = vrot.lane.b32.xlu0 %v1182, 4
  %v1310 = vpop.permute.xlu0 %1309
  %1311 = vrot.lane.b32.xlu0 %v1185, 4
  %v1312 = vpop.permute.xlu0 %1311
  %1313 = vrot.lane.b32.xlu0 %v1187, 4
  %v1314 = vpop.permute.xlu0 %1313
  %1315 = vrot.lane.b32.xlu0 %v1190, 4
  %v1316 = vpop.permute.xlu0 %1315
  %1317 = vrot.lane.b32.xlu0 %v1192, 4
  %v1318 = vpop.permute.xlu0 %1317
  %1319 = vrot.lane.b32.xlu0 %v1195, 4
  %v1320 = vpop.permute.xlu0 %1319
  %1321 = vrot.lane.b32.xlu0 %v1197, 4
  %v1322 = vpop.permute.xlu0 %1321
  %1323 = vrot.lane.b32.xlu0 %v1200, 4
  %v1324 = vpop.permute.xlu0 %1323
  %1325 = vrot.lane.b32.xlu0 %v1202, 4
  %v1326 = vpop.permute.xlu0 %1325
  %vm1389 = vcmask 1045504
  %v1390 = vrot.slane %v919, 2
  %v1391 = vrot.slane %v726, 2
  %v1392 = vsel %vm1389, %v1390, %v1391
  %v1393 = vrot.slane %v952, 2
  %v1394 = vsel %vm1389, %v1391, %v1393
  %v1395 = vrot.slane %v920, 2
  %v1396 = vrot.slane %v729, 2
  %v1397 = vsel %vm1389, %v1395, %v1396
  %v1398 = vrot.slane %v953, 2
  %v1399 = vsel %vm1389, %v1396, %v1398
  %v1400 = vrot.slane %v921, 2
  %v1401 = vrot.slane %v732, 2
  %v1402 = vsel %vm1389, %v1400, %v1401
  %v1403 = vrot.slane %v954, 2
  %v1404 = vsel %vm1389, %v1401, %v1403
  %v1405 = vrot.slane %v922, 2
  %v1406 = vrot.slane %v735, 2
  %v1407 = vsel %vm1389, %v1405, %v1406
  %v1408 = vrot.slane %v955, 2
  %v1409 = vsel %vm1389, %v1406, %v1408
  %v1410 = vrot.slane %v923, 2
  %v1411 = vrot.slane %v738, 2
  %v1412 = vsel %vm1389, %v1410, %v1411
  %v1413 = vrot.slane %v956, 2
  %v1414 = vsel %vm1389, %v1411, %v1413
  %v1415 = vrot.slane %v924, 2
  %v1416 = vrot.slane %v741, 2
  %v1417 = vsel %vm1389, %v1415, %v1416
  %v1418 = vrot.slane %v957, 2
  %v1419 = vsel %vm1389, %v1416, %v1418
  %v1420 = vrot.slane %v925, 2
  %v1421 = vrot.slane %v744, 2
  %v1422 = vsel %vm1389, %v1420, %v1421
  %v1423 = vrot.slane %v958, 2
  %v1424 = vsel %vm1389, %v1421, %v1423
  %v1425 = vrot.slane %v926, 2
  %v1426 = vrot.slane %v747, 2
  %v1427 = vsel %vm1389, %v1425, %v1426
  %v1428 = vrot.slane %v959, 2
  %v1429 = vsel %vm1389, %v1426, %v1428
  %v1430 = vrot.slane %v927, 2
  %v1431 = vrot.slane %v750, 2
  %v1432 = vsel %vm1389, %v1430, %v1431
  %v1433 = vrot.slane %v960, 2
  %v1434 = vsel %vm1389, %v1431, %v1433
  %v1435 = vrot.slane %v928, 2
  %v1436 = vrot.slane %v753, 2
  %v1437 = vsel %vm1389, %v1435, %v1436
  %v1438 = vrot.slane %v961, 2
  %v1439 = vsel %vm1389, %v1436, %v1438
  %v1440 = vrot.slane %v929, 2
  %v1441 = vrot.slane %v756, 2
  %v1442 = vsel %vm1389, %v1440, %v1441
  %v1443 = vrot.slane %v962, 2
  %v1444 = vsel %vm1389, %v1441, %v1443
  %v1445 = vrot.slane %v930, 2
  %v1446 = vrot.slane %v759, 2
  %v1447 = vsel %vm1389, %v1445, %v1446
  %v1448 = vrot.slane %v963, 2
  %v1449 = vsel %vm1389, %v1446, %v1448
  %v1450 = vrot.slane %v931, 2
  %v1451 = vrot.slane %v762, 2
  %v1452 = vsel %vm1389, %v1450, %v1451
  %v1453 = vrot.slane %v964, 2
  %v1454 = vsel %vm1389, %v1451, %v1453
  %v1455 = vrot.slane %v932, 2
  %v1456 = vrot.slane %v765, 2
  %v1457 = vsel %vm1389, %v1455, %v1456
  %v1458 = vrot.slane %v965, 2
  %v1459 = vsel %vm1389, %v1456, %v1458
  %v1460 = vrot.slane %v933, 2
  %v1461 = vrot.slane %v768, 2
  %v1462 = vsel %vm1389, %v1460, %v1461
  %v1463 = vrot.slane %v966, 2
  %v1464 = vsel %vm1389, %v1461, %v1463
  %v1465 = vrot.slane %v934, 2
  %v1466 = vrot.slane %v771, 2
  %v1467 = vsel %vm1389, %v1465, %v1466
  %v1468 = vrot.slane %v967, 2
  %v1469 = vsel %vm1389, %v1466, %v1468
  %v1470 = vrot.slane %v936, 2
  %v1471 = vrot.slane %v777, 2
  %v1472 = vsel %vm1389, %v1470, %v1471
  %v1473 = vrot.slane %v969, 2
  %v1474 = vsel %vm1389, %v1471, %v1473
  %v1475 = vrot.slane %v937, 2
  %v1476 = vrot.slane %v780, 2
  %v1477 = vsel %vm1389, %v1475, %v1476
  %v1478 = vrot.slane %v970, 2
  %v1479 = vsel %vm1389, %v1476, %v1478
  %v1480 = vrot.slane %v938, 2
  %v1481 = vrot.slane %v783, 2
  %v1482 = vsel %vm1389, %v1480, %v1481
  %v1483 = vrot.slane %v971, 2
  %v1484 = vsel %vm1389, %v1481, %v1483
  %v1485 = vrot.slane %v939, 2
  %v1486 = vrot.slane %v786, 2
  %v1487 = vsel %vm1389, %v1485, %v1486
  %v1488 = vrot.slane %v972, 2
  %v1489 = vsel %vm1389, %v1486, %v1488
  %v1490 = vrot.slane %v940, 2
  %v1491 = vrot.slane %v789, 2
  %v1492 = vsel %vm1389, %v1490, %v1491
  %v1493 = vrot.slane %v973, 2
  %v1494 = vsel %vm1389, %v1491, %v1493
  %v1495 = vrot.slane %v941, 2
  %v1496 = vrot.slane %v792, 2
  %v1497 = vsel %vm1389, %v1495, %v1496
  %v1498 = vrot.slane %v974, 2
  %v1499 = vsel %vm1389, %v1496, %v1498
  %v1500 = vrot.slane %v942, 2
  %v1501 = vrot.slane %v795, 2
  %v1502 = vsel %vm1389, %v1500, %v1501
  %v1503 = vrot.slane %v975, 2
  %v1504 = vsel %vm1389, %v1501, %v1503
  %v1505 = vrot.slane %v943, 2
  %v1506 = vrot.slane %v798, 2
  %v1507 = vsel %vm1389, %v1505, %v1506
  %v1508 = vrot.slane %v976, 2
  %v1509 = vsel %vm1389, %v1506, %v1508
  %v1510 = vrot.slane %v944, 2
  %v1511 = vrot.slane %v801, 2
  %v1512 = vsel %vm1389, %v1510, %v1511
  %v1513 = vrot.slane %v977, 2
  %v1514 = vsel %vm1389, %v1511, %v1513
  %v1515 = vrot.slane %v945, 2
  %v1516 = vrot.slane %v804, 2
  %v1517 = vsel %vm1389, %v1515, %v1516
  %v1518 = vrot.slane %v978, 2
  %v1519 = vsel %vm1389, %v1516, %v1518
  %v1520 = vrot.slane %v946, 2
  %v1521 = vrot.slane %v807, 2
  %v1522 = vsel %vm1389, %v1520, %v1521
  %v1523 = vrot.slane %v979, 2
  %v1524 = vsel %vm1389, %v1521, %v1523
  %v1525 = vrot.slane %v947, 2
  %v1526 = vrot.slane %v810, 2
  %v1527 = vsel %vm1389, %v1525, %v1526
  %v1528 = vrot.slane %v980, 2
  %v1529 = vsel %vm1389, %v1526, %v1528
  %v1530 = vrot.slane %v948, 2
  %v1531 = vrot.slane %v813, 2
  %v1532 = vsel %vm1389, %v1530, %v1531
  %v1533 = vrot.slane %v981, 2
  %v1534 = vsel %vm1389, %v1531, %v1533
  %v1535 = vrot.slane %v949, 2
  %v1536 = vrot.slane %v816, 2
  %v1537 = vsel %vm1389, %v1535, %v1536
  %v1538 = vrot.slane %v982, 2
  %v1539 = vsel %vm1389, %v1536, %v1538
  %v1540 = vrot.slane %v950, 2
  %v1541 = vrot.slane %v819, 2
  %v1542 = vsel %vm1389, %v1540, %v1541
  %v1543 = vrot.slane %v983, 2
  %v1544 = vsel %vm1389, %v1541, %v1543
  %1545 = vrot.lane.b32.xlu0 %v1392, 8
  %v1546 = vpop.permute.xlu0 %1545
  %1547 = vrot.lane.b32.xlu0 %v1394, 8
  %v1548 = vpop.permute.xlu0 %1547
  %1549 = vrot.lane.b32.xlu0 %v1397, 8
  %v1550 = vpop.permute.xlu0 %1549
  %1551 = vrot.lane.b32.xlu0 %v1399, 8
  %v1552 = vpop.permute.xlu0 %1551
  %1553 = vrot.lane.b32.xlu0 %v1402, 8
  %v1554 = vpop.permute.xlu0 %1553
  %1555 = vrot.lane.b32.xlu0 %v1404, 8
  %v1556 = vpop.permute.xlu0 %1555
  %1557 = vrot.lane.b32.xlu0 %v1407, 8
  %v1558 = vpop.permute.xlu0 %1557
  %1559 = vrot.lane.b32.xlu0 %v1409, 8
  %v1560 = vpop.permute.xlu0 %1559
  %1561 = vrot.lane.b32.xlu0 %v1412, 8
  %v1562 = vpop.permute.xlu0 %1561
  %1563 = vrot.lane.b32.xlu0 %v1414, 8
  %v1564 = vpop.permute.xlu0 %1563
  %1565 = vrot.lane.b32.xlu0 %v1417, 8
  %v1566 = vpop.permute.xlu0 %1565
  %1567 = vrot.lane.b32.xlu0 %v1419, 8
  %v1568 = vpop.permute.xlu0 %1567
  %1569 = vrot.lane.b32.xlu0 %v1422, 8
  %v1570 = vpop.permute.xlu0 %1569
  %1571 = vrot.lane.b32.xlu0 %v1424, 8
  %v1572 = vpop.permute.xlu0 %1571
  %1573 = vrot.lane.b32.xlu0 %v1427, 8
  %v1574 = vpop.permute.xlu0 %1573
  %1575 = vrot.lane.b32.xlu0 %v1429, 8
  %v1576 = vpop.permute.xlu0 %1575
  %1577 = vrot.lane.b32.xlu0 %v1432, 8
  %v1578 = vpop.permute.xlu0 %1577
  %1579 = vrot.lane.b32.xlu0 %v1434, 8
  %v1580 = vpop.permute.xlu0 %1579
  %1581 = vrot.lane.b32.xlu0 %v1437, 8
  %v1582 = vpop.permute.xlu0 %1581
  %1583 = vrot.lane.b32.xlu0 %v1439, 8
  %v1584 = vpop.permute.xlu0 %1583
  %1585 = vrot.lane.b32.xlu0 %v1442, 8
  %v1586 = vpop.permute.xlu0 %1585
  %1587 = vrot.lane.b32.xlu0 %v1444, 8
  %v1588 = vpop.permute.xlu0 %1587
  %1589 = vrot.lane.b32.xlu0 %v1447, 8
  %v1590 = vpop.permute.xlu0 %1589
  %1591 = vrot.lane.b32.xlu0 %v1449, 8
  %v1592 = vpop.permute.xlu0 %1591
  %1593 = vrot.lane.b32.xlu0 %v1452, 8
  %v1594 = vpop.permute.xlu0 %1593
  %1595 = vrot.lane.b32.xlu0 %v1454, 8
  %v1596 = vpop.permute.xlu0 %1595
  %1597 = vrot.lane.b32.xlu0 %v1457, 8
  %v1598 = vpop.permute.xlu0 %1597
  %1599 = vrot.lane.b32.xlu0 %v1459, 8
  %v1600 = vpop.permute.xlu0 %1599
  %1601 = vrot.lane.b32.xlu0 %v1462, 8
  %v1602 = vpop.permute.xlu0 %1601
  %1603 = vrot.lane.b32.xlu0 %v1464, 8
  %v1604 = vpop.permute.xlu0 %1603
  %1605 = vrot.lane.b32.xlu0 %v1467, 8
  %v1606 = vpop.permute.xlu0 %1605
  %1607 = vrot.lane.b32.xlu0 %v1469, 8
  %v1608 = vpop.permute.xlu0 %1607
  %1609 = vrot.lane.b32.xlu0 %v1472, 8
  %v1610 = vpop.permute.xlu0 %1609
  %1611 = vrot.lane.b32.xlu0 %v1474, 8
  %v1612 = vpop.permute.xlu0 %1611
  %1613 = vrot.lane.b32.xlu0 %v1477, 8
  %v1614 = vpop.permute.xlu0 %1613
  %1615 = vrot.lane.b32.xlu0 %v1479, 8
  %v1616 = vpop.permute.xlu0 %1615
  %1617 = vrot.lane.b32.xlu0 %v1482, 8
  %v1618 = vpop.permute.xlu0 %1617
  %1619 = vrot.lane.b32.xlu0 %v1484, 8
  %v1620 = vpop.permute.xlu0 %1619
  %1621 = vrot.lane.b32.xlu0 %v1487, 8
  %v1622 = vpop.permute.xlu0 %1621
  %1623 = vrot.lane.b32.xlu0 %v1489, 8
  %v1624 = vpop.permute.xlu0 %1623
  %1625 = vrot.lane.b32.xlu0 %v1492, 8
  %v1626 = vpop.permute.xlu0 %1625
  %1627 = vrot.lane.b32.xlu0 %v1494, 8
  %v1628 = vpop.permute.xlu0 %1627
  %1629 = vrot.lane.b32.xlu0 %v1497, 8
  %v1630 = vpop.permute.xlu0 %1629
  %1631 = vrot.lane.b32.xlu0 %v1499, 8
  %v1632 = vpop.permute.xlu0 %1631
  %1633 = vrot.lane.b32.xlu0 %v1502, 8
  %v1634 = vpop.permute.xlu0 %1633
  %1635 = vrot.lane.b32.xlu0 %v1504, 8
  %v1636 = vpop.permute.xlu0 %1635
  %1637 = vrot.lane.b32.xlu0 %v1507, 8
  %v1638 = vpop.permute.xlu0 %1637
  %1639 = vrot.lane.b32.xlu0 %v1509, 8
  %v1640 = vpop.permute.xlu0 %1639
  %1641 = vrot.lane.b32.xlu0 %v1512, 8
  %v1642 = vpop.permute.xlu0 %1641
  %1643 = vrot.lane.b32.xlu0 %v1514, 8
  %v1644 = vpop.permute.xlu0 %1643
  %1645 = vrot.lane.b32.xlu0 %v1517, 8
  %v1646 = vpop.permute.xlu0 %1645
  %1647 = vrot.lane.b32.xlu0 %v1519, 8
  %v1648 = vpop.permute.xlu0 %1647
  %1649 = vrot.lane.b32.xlu0 %v1522, 8
  %v1650 = vpop.permute.xlu0 %1649
  %1651 = vrot.lane.b32.xlu0 %v1524, 8
  %v1652 = vpop.permute.xlu0 %1651
  %1653 = vrot.lane.b32.xlu0 %v1527, 8
  %v1654 = vpop.permute.xlu0 %1653
  %1655 = vrot.lane.b32.xlu0 %v1529, 8
  %v1656 = vpop.permute.xlu0 %1655
  %1657 = vrot.lane.b32.xlu0 %v1532, 8
  %v1658 = vpop.permute.xlu0 %1657
  %1659 = vrot.lane.b32.xlu0 %v1534, 8
  %v1660 = vpop.permute.xlu0 %1659
  %1661 = vrot.lane.b32.xlu0 %v1537, 8
  %v1662 = vpop.permute.xlu0 %1661
  %1663 = vrot.lane.b32.xlu0 %v1539, 8
  %v1664 = vpop.permute.xlu0 %1663
  %1665 = vrot.lane.b32.xlu0 %v1542, 8
  %v1666 = vpop.permute.xlu0 %1665
  %1667 = vrot.lane.b32.xlu0 %v1544, 8
  %v1668 = vpop.permute.xlu0 %1667
  %1733 = vrot.lane.b32.xlu0 %v920, 12
  %v1734 = vpop.permute.xlu0 %1733
  %1735 = vrot.lane.b32.xlu0 %v729, 12
  %v1736 = vpop.permute.xlu0 %1735
  %1737 = vrot.lane.b32.xlu0 %v921, 12
  %v1738 = vpop.permute.xlu0 %1737
  %1739 = vrot.lane.b32.xlu0 %v732, 12
  %v1740 = vpop.permute.xlu0 %1739
  %1741 = vrot.lane.b32.xlu0 %v922, 12
  %v1742 = vpop.permute.xlu0 %1741
  %1743 = vrot.lane.b32.xlu0 %v735, 12
  %v1744 = vpop.permute.xlu0 %1743
  %1745 = vrot.lane.b32.xlu0 %v923, 12
  %v1746 = vpop.permute.xlu0 %1745
  %1747 = vrot.lane.b32.xlu0 %v738, 12
  %v1748 = vpop.permute.xlu0 %1747
  %1749 = vrot.lane.b32.xlu0 %v924, 12
  %v1750 = vpop.permute.xlu0 %1749
  %1751 = vrot.lane.b32.xlu0 %v741, 12
  %v1752 = vpop.permute.xlu0 %1751
  %1753 = vrot.lane.b32.xlu0 %v925, 12
  %v1754 = vpop.permute.xlu0 %1753
  %1755 = vrot.lane.b32.xlu0 %v744, 12
  %v1756 = vpop.permute.xlu0 %1755
  %1757 = vrot.lane.b32.xlu0 %v926, 12
  %v1758 = vpop.permute.xlu0 %1757
  %1759 = vrot.lane.b32.xlu0 %v747, 12
  %v1760 = vpop.permute.xlu0 %1759
  %1761 = vrot.lane.b32.xlu0 %v927, 12
  %v1762 = vpop.permute.xlu0 %1761
  %1763 = vrot.lane.b32.xlu0 %v750, 12
  %v1764 = vpop.permute.xlu0 %1763
  %1765 = vrot.lane.b32.xlu0 %v928, 12
  %v1766 = vpop.permute.xlu0 %1765
  %1767 = vrot.lane.b32.xlu0 %v753, 12
  %v1768 = vpop.permute.xlu0 %1767
  %1769 = vrot.lane.b32.xlu0 %v929, 12
  %v1770 = vpop.permute.xlu0 %1769
  %1771 = vrot.lane.b32.xlu0 %v756, 12
  %v1772 = vpop.permute.xlu0 %1771
  %1773 = vrot.lane.b32.xlu0 %v930, 12
  %v1774 = vpop.permute.xlu0 %1773
  %1775 = vrot.lane.b32.xlu0 %v759, 12
  %v1776 = vpop.permute.xlu0 %1775
  %1777 = vrot.lane.b32.xlu0 %v931, 12
  %v1778 = vpop.permute.xlu0 %1777
  %1779 = vrot.lane.b32.xlu0 %v762, 12
  %v1780 = vpop.permute.xlu0 %1779
  %1781 = vrot.lane.b32.xlu0 %v932, 12
  %v1782 = vpop.permute.xlu0 %1781
  %1783 = vrot.lane.b32.xlu0 %v765, 12
  %v1784 = vpop.permute.xlu0 %1783
  %1785 = vrot.lane.b32.xlu0 %v933, 12
  %v1786 = vpop.permute.xlu0 %1785
  %1787 = vrot.lane.b32.xlu0 %v768, 12
  %v1788 = vpop.permute.xlu0 %1787
  %1789 = vrot.lane.b32.xlu0 %v934, 12
  %v1790 = vpop.permute.xlu0 %1789
  %1791 = vrot.lane.b32.xlu0 %v771, 12
  %v1792 = vpop.permute.xlu0 %1791
  %1793 = vrot.lane.b32.xlu0 %v935, 12
  %v1794 = vpop.permute.xlu0 %1793
  %1795 = vrot.lane.b32.xlu0 %v774, 12
  %v1796 = vpop.permute.xlu0 %1795
  %1797 = vrot.lane.b32.xlu0 %v936, 12
  %v1798 = vpop.permute.xlu0 %1797
  %1799 = vrot.lane.b32.xlu0 %v777, 12
  %v1800 = vpop.permute.xlu0 %1799
  %1801 = vrot.lane.b32.xlu0 %v937, 12
  %v1802 = vpop.permute.xlu0 %1801
  %1803 = vrot.lane.b32.xlu0 %v780, 12
  %v1804 = vpop.permute.xlu0 %1803
  %1805 = vrot.lane.b32.xlu0 %v938, 12
  %v1806 = vpop.permute.xlu0 %1805
  %1807 = vrot.lane.b32.xlu0 %v783, 12
  %v1808 = vpop.permute.xlu0 %1807
  %1809 = vrot.lane.b32.xlu0 %v939, 12
  %v1810 = vpop.permute.xlu0 %1809
  %1811 = vrot.lane.b32.xlu0 %v786, 12
  %v1812 = vpop.permute.xlu0 %1811
  %1813 = vrot.lane.b32.xlu0 %v940, 12
  %v1814 = vpop.permute.xlu0 %1813
  %1815 = vrot.lane.b32.xlu0 %v789, 12
  %v1816 = vpop.permute.xlu0 %1815
  %1817 = vrot.lane.b32.xlu0 %v941, 12
  %v1818 = vpop.permute.xlu0 %1817
  %1819 = vrot.lane.b32.xlu0 %v792, 12
  %v1820 = vpop.permute.xlu0 %1819
  %1821 = vrot.lane.b32.xlu0 %v942, 12
  %v1822 = vpop.permute.xlu0 %1821
  %1823 = vrot.lane.b32.xlu0 %v795, 12
  %v1824 = vpop.permute.xlu0 %1823
  %1825 = vrot.lane.b32.xlu0 %v943, 12
  %v1826 = vpop.permute.xlu0 %1825
  %1827 = vrot.lane.b32.xlu0 %v798, 12
  %v1828 = vpop.permute.xlu0 %1827
  %1829 = vrot.lane.b32.xlu0 %v944, 12
  %v1830 = vpop.permute.xlu0 %1829
  %1831 = vrot.lane.b32.xlu0 %v801, 12
  %v1832 = vpop.permute.xlu0 %1831
  %1833 = vrot.lane.b32.xlu0 %v945, 12
  %v1834 = vpop.permute.xlu0 %1833
  %1835 = vrot.lane.b32.xlu0 %v804, 12
  %v1836 = vpop.permute.xlu0 %1835
  %1837 = vrot.lane.b32.xlu0 %v946, 12
  %v1838 = vpop.permute.xlu0 %1837
  %1839 = vrot.lane.b32.xlu0 %v807, 12
  %v1840 = vpop.permute.xlu0 %1839
  %1841 = vrot.lane.b32.xlu0 %v947, 12
  %v1842 = vpop.permute.xlu0 %1841
  %1843 = vrot.lane.b32.xlu0 %v810, 12
  %v1844 = vpop.permute.xlu0 %1843
  %1845 = vrot.lane.b32.xlu0 %v948, 12
  %v1846 = vpop.permute.xlu0 %1845
  %1847 = vrot.lane.b32.xlu0 %v813, 12
  %v1848 = vpop.permute.xlu0 %1847
  %1849 = vrot.lane.b32.xlu0 %v949, 12
  %v1850 = vpop.permute.xlu0 %1849
  %1851 = vrot.lane.b32.xlu0 %v816, 12
  %v1852 = vpop.permute.xlu0 %1851
  %1853 = vrot.lane.b32.xlu0 %v950, 12
  %v1854 = vpop.permute.xlu0 %1853
  %1855 = vrot.lane.b32.xlu0 %v819, 12
  %v1856 = vpop.permute.xlu0 %1855
  %1857 = vrot.lane.b32.xlu0 %v951, 12
  %v1858 = vpop.permute.xlu0 %1857
  %1859 = vrot.lane.b32.xlu0 %v822, 12
  %v1860 = vpop.permute.xlu0 %1859
  %v1927 = vrot.slane %v935, 1
  %v1928 = vrot.slane %v774, 1
  %v1929 = vsel %vm1047, %v1927, %v1928
  %v1930 = vrot.slane %v968, 1
  %v1931 = vsel %vm1047, %v1928, %v1930
  %v1932 = vrot.slane %v951, 1
  %v1933 = vrot.slane %v822, 1
  %v1934 = vsel %vm1047, %v1932, %v1933
  %v1935 = vrot.slane %v984, 1
  %v1936 = vsel %vm1047, %v1933, %v1935
  %1937 = vrot.lane.b32.xlu0 %v1055, 16
  %v1938 = vpop.permute.xlu0 %1937
  %1939 = vrot.lane.b32.xlu0 %v1057, 16
  %v1940 = vpop.permute.xlu0 %1939
  %1941 = vrot.lane.b32.xlu0 %v1060, 16
  %v1942 = vpop.permute.xlu0 %1941
  %1943 = vrot.lane.b32.xlu0 %v1062, 16
  %v1944 = vpop.permute.xlu0 %1943
  %1945 = vrot.lane.b32.xlu0 %v1065, 16
  %v1946 = vpop.permute.xlu0 %1945
  %1947 = vrot.lane.b32.xlu0 %v1067, 16
  %v1948 = vpop.permute.xlu0 %1947
  %1949 = vrot.lane.b32.xlu0 %v1070, 16
  %v1950 = vpop.permute.xlu0 %1949
  %1951 = vrot.lane.b32.xlu0 %v1072, 16
  %v1952 = vpop.permute.xlu0 %1951
  %1953 = vrot.lane.b32.xlu0 %v1075, 16
  %v1954 = vpop.permute.xlu0 %1953
  %1955 = vrot.lane.b32.xlu0 %v1077, 16
  %v1956 = vpop.permute.xlu0 %1955
  %1957 = vrot.lane.b32.xlu0 %v1080, 16
  %v1958 = vpop.permute.xlu0 %1957
  %1959 = vrot.lane.b32.xlu0 %v1082, 16
  %v1960 = vpop.permute.xlu0 %1959
  %1961 = vrot.lane.b32.xlu0 %v1085, 16
  %v1962 = vpop.permute.xlu0 %1961
  %1963 = vrot.lane.b32.xlu0 %v1087, 16
  %v1964 = vpop.permute.xlu0 %1963
  %1965 = vrot.lane.b32.xlu0 %v1090, 16
  %v1966 = vpop.permute.xlu0 %1965
  %1967 = vrot.lane.b32.xlu0 %v1092, 16
  %v1968 = vpop.permute.xlu0 %1967
  %1969 = vrot.lane.b32.xlu0 %v1095, 16
  %v1970 = vpop.permute.xlu0 %1969
  %1971 = vrot.lane.b32.xlu0 %v1097, 16
  %v1972 = vpop.permute.xlu0 %1971
  %1973 = vrot.lane.b32.xlu0 %v1100, 16
  %v1974 = vpop.permute.xlu0 %1973
  %1975 = vrot.lane.b32.xlu0 %v1102, 16
  %v1976 = vpop.permute.xlu0 %1975
  %1977 = vrot.lane.b32.xlu0 %v1105, 16
  %v1978 = vpop.permute.xlu0 %1977
  %1979 = vrot.lane.b32.xlu0 %v1107, 16
  %v1980 = vpop.permute.xlu0 %1979
  %1981 = vrot.lane.b32.xlu0 %v1110, 16
  %v1982 = vpop.permute.xlu0 %1981
  %1983 = vrot.lane.b32.xlu0 %v1112, 16
  %v1984 = vpop.permute.xlu0 %1983
  %1985 = vrot.lane.b32.xlu0 %v1115, 16
  %v1986 = vpop.permute.xlu0 %1985
  %1987 = vrot.lane.b32.xlu0 %v1117, 16
  %v1988 = vpop.permute.xlu0 %1987
  %1989 = vrot.lane.b32.xlu0 %v1120, 16
  %v1990 = vpop.permute.xlu0 %1989
  %1991 = vrot.lane.b32.xlu0 %v1122, 16
  %v1992 = vpop.permute.xlu0 %1991
  %1993 = vrot.lane.b32.xlu0 %v1125, 16
  %v1994 = vpop.permute.xlu0 %1993
  %1995 = vrot.lane.b32.xlu0 %v1127, 16
  %v1996 = vpop.permute.xlu0 %1995
  %1997 = vrot.lane.b32.xlu0 %v1929, 16
  %v1998 = vpop.permute.xlu0 %1997
  %1999 = vrot.lane.b32.xlu0 %v1931, 16
  %v2000 = vpop.permute.xlu0 %1999
  %2001 = vrot.lane.b32.xlu0 %v1130, 16
  %v2002 = vpop.permute.xlu0 %2001
  %2003 = vrot.lane.b32.xlu0 %v1132, 16
  %v2004 = vpop.permute.xlu0 %2003
  %2005 = vrot.lane.b32.xlu0 %v1135, 16
  %v2006 = vpop.permute.xlu0 %2005
  %2007 = vrot.lane.b32.xlu0 %v1137, 16
  %v2008 = vpop.permute.xlu0 %2007
  %2009 = vrot.lane.b32.xlu0 %v1140, 16
  %v2010 = vpop.permute.xlu0 %2009
  %2011 = vrot.lane.b32.xlu0 %v1142, 16
  %v2012 = vpop.permute.xlu0 %2011
  %2013 = vrot.lane.b32.xlu0 %v1145, 16
  %v2014 = vpop.permute.xlu0 %2013
  %2015 = vrot.lane.b32.xlu0 %v1147, 16
  %v2016 = vpop.permute.xlu0 %2015
  %2017 = vrot.lane.b32.xlu0 %v1150, 16
  %v2018 = vpop.permute.xlu0 %2017
  %2019 = vrot.lane.b32.xlu0 %v1152, 16
  %v2020 = vpop.permute.xlu0 %2019
  %2021 = vrot.lane.b32.xlu0 %v1155, 16
  %v2022 = vpop.permute.xlu0 %2021
  %2023 = vrot.lane.b32.xlu0 %v1157, 16
  %v2024 = vpop.permute.xlu0 %2023
  %2025 = vrot.lane.b32.xlu0 %v1160, 16
  %v2026 = vpop.permute.xlu0 %2025
  %2027 = vrot.lane.b32.xlu0 %v1162, 16
  %v2028 = vpop.permute.xlu0 %2027
  %2029 = vrot.lane.b32.xlu0 %v1165, 16
  %v2030 = vpop.permute.xlu0 %2029
  %2031 = vrot.lane.b32.xlu0 %v1167, 16
  %v2032 = vpop.permute.xlu0 %2031
  %2033 = vrot.lane.b32.xlu0 %v1170, 16
  %v2034 = vpop.permute.xlu0 %2033
  %2035 = vrot.lane.b32.xlu0 %v1172, 16
  %v2036 = vpop.permute.xlu0 %2035
  %2037 = vrot.lane.b32.xlu0 %v1175, 16
  %v2038 = vpop.permute.xlu0 %2037
  %2039 = vrot.lane.b32.xlu0 %v1177, 16
  %v2040 = vpop.permute.xlu0 %2039
  %2041 = vrot.lane.b32.xlu0 %v1180, 16
  %v2042 = vpop.permute.xlu0 %2041
  %2043 = vrot.lane.b32.xlu0 %v1182, 16
  %v2044 = vpop.permute.xlu0 %2043
  %2045 = vrot.lane.b32.xlu0 %v1185, 16
  %v2046 = vpop.permute.xlu0 %2045
  %2047 = vrot.lane.b32.xlu0 %v1187, 16
  %v2048 = vpop.permute.xlu0 %2047
  %2049 = vrot.lane.b32.xlu0 %v1190, 16
  %v2050 = vpop.permute.xlu0 %2049
  %2051 = vrot.lane.b32.xlu0 %v1192, 16
  %v2052 = vpop.permute.xlu0 %2051
  %2053 = vrot.lane.b32.xlu0 %v1195, 16
  %v2054 = vpop.permute.xlu0 %2053
  %2055 = vrot.lane.b32.xlu0 %v1197, 16
  %v2056 = vpop.permute.xlu0 %2055
  %2057 = vrot.lane.b32.xlu0 %v1200, 16
  %v2058 = vpop.permute.xlu0 %2057
  %2059 = vrot.lane.b32.xlu0 %v1202, 16
  %v2060 = vpop.permute.xlu0 %2059
  %2061 = vrot.lane.b32.xlu0 %v1934, 16
  %v2062 = vpop.permute.xlu0 %2061
  %2063 = vrot.lane.b32.xlu0 %v1936, 16
  %v2064 = vpop.permute.xlu0 %2063
  %v2129 = vrot.slane %v935, 2
  %v2130 = vrot.slane %v774, 2
  %v2131 = vsel %vm1389, %v2129, %v2130
  %v2132 = vrot.slane %v968, 2
  %v2133 = vsel %vm1389, %v2130, %v2132
  %v2134 = vrot.slane %v951, 2
  %v2135 = vrot.slane %v822, 2
  %v2136 = vsel %vm1389, %v2134, %v2135
  %v2137 = vrot.slane %v984, 2
  %v2138 = vsel %vm1389, %v2135, %v2137
  %2139 = vrot.lane.b32.xlu0 %v1397, 20
  %v2140 = vpop.permute.xlu0 %2139
  %2141 = vrot.lane.b32.xlu0 %v1399, 20
  %v2142 = vpop.permute.xlu0 %2141
  %2143 = vrot.lane.b32.xlu0 %v1402, 20
  %v2144 = vpop.permute.xlu0 %2143
  %2145 = vrot.lane.b32.xlu0 %v1404, 20
  %v2146 = vpop.permute.xlu0 %2145
  %2147 = vrot.lane.b32.xlu0 %v1407, 20
  %v2148 = vpop.permute.xlu0 %2147
  %2149 = vrot.lane.b32.xlu0 %v1409, 20
  %v2150 = vpop.permute.xlu0 %2149
  %2151 = vrot.lane.b32.xlu0 %v1412, 20
  %v2152 = vpop.permute.xlu0 %2151
  %2153 = vrot.lane.b32.xlu0 %v1414, 20
  %v2154 = vpop.permute.xlu0 %2153
  %2155 = vrot.lane.b32.xlu0 %v1417, 20
  %v2156 = vpop.permute.xlu0 %2155
  %2157 = vrot.lane.b32.xlu0 %v1419, 20
  %v2158 = vpop.permute.xlu0 %2157
  %2159 = vrot.lane.b32.xlu0 %v1422, 20
  %v2160 = vpop.permute.xlu0 %2159
  %2161 = vrot.lane.b32.xlu0 %v1424, 20
  %v2162 = vpop.permute.xlu0 %2161
  %2163 = vrot.lane.b32.xlu0 %v1427, 20
  %v2164 = vpop.permute.xlu0 %2163
  %2165 = vrot.lane.b32.xlu0 %v1429, 20
  %v2166 = vpop.permute.xlu0 %2165
  %2167 = vrot.lane.b32.xlu0 %v1432, 20
  %v2168 = vpop.permute.xlu0 %2167
  %2169 = vrot.lane.b32.xlu0 %v1434, 20
  %v2170 = vpop.permute.xlu0 %2169
  %2171 = vrot.lane.b32.xlu0 %v1437, 20
  %v2172 = vpop.permute.xlu0 %2171
  %2173 = vrot.lane.b32.xlu0 %v1439, 20
  %v2174 = vpop.permute.xlu0 %2173
  %2175 = vrot.lane.b32.xlu0 %v1442, 20
  %v2176 = vpop.permute.xlu0 %2175
  %2177 = vrot.lane.b32.xlu0 %v1444, 20
  %v2178 = vpop.permute.xlu0 %2177
  %2179 = vrot.lane.b32.xlu0 %v1447, 20
  %v2180 = vpop.permute.xlu0 %2179
  %2181 = vrot.lane.b32.xlu0 %v1449, 20
  %v2182 = vpop.permute.xlu0 %2181
  %2183 = vrot.lane.b32.xlu0 %v1452, 20
  %v2184 = vpop.permute.xlu0 %2183
  %2185 = vrot.lane.b32.xlu0 %v1454, 20
  %v2186 = vpop.permute.xlu0 %2185
  %2187 = vrot.lane.b32.xlu0 %v1457, 20
  %v2188 = vpop.permute.xlu0 %2187
  %2189 = vrot.lane.b32.xlu0 %v1459, 20
  %v2190 = vpop.permute.xlu0 %2189
  %2191 = vrot.lane.b32.xlu0 %v1462, 20
  %v2192 = vpop.permute.xlu0 %2191
  %2193 = vrot.lane.b32.xlu0 %v1464, 20
  %v2194 = vpop.permute.xlu0 %2193
  %2195 = vrot.lane.b32.xlu0 %v1467, 20
  %v2196 = vpop.permute.xlu0 %2195
  %2197 = vrot.lane.b32.xlu0 %v1469, 20
  %v2198 = vpop.permute.xlu0 %2197
  %2199 = vrot.lane.b32.xlu0 %v2131, 20
  %v2200 = vpop.permute.xlu0 %2199
  %2201 = vrot.lane.b32.xlu0 %v2133, 20
  %v2202 = vpop.permute.xlu0 %2201
  %2203 = vrot.lane.b32.xlu0 %v1472, 20
  %v2204 = vpop.permute.xlu0 %2203
  %2205 = vrot.lane.b32.xlu0 %v1474, 20
  %v2206 = vpop.permute.xlu0 %2205
  %2207 = vrot.lane.b32.xlu0 %v1477, 20
  %v2208 = vpop.permute.xlu0 %2207
  %2209 = vrot.lane.b32.xlu0 %v1479, 20
  %v2210 = vpop.permute.xlu0 %2209
  %2211 = vrot.lane.b32.xlu0 %v1482, 20
  %v2212 = vpop.permute.xlu0 %2211
  %2213 = vrot.lane.b32.xlu0 %v1484, 20
  %v2214 = vpop.permute.xlu0 %2213
  %2215 = vrot.lane.b32.xlu0 %v1487, 20
  %v2216 = vpop.permute.xlu0 %2215
  %2217 = vrot.lane.b32.xlu0 %v1489, 20
  %v2218 = vpop.permute.xlu0 %2217
  %2219 = vrot.lane.b32.xlu0 %v1492, 20
  %v2220 = vpop.permute.xlu0 %2219
  %2221 = vrot.lane.b32.xlu0 %v1494, 20
  %v2222 = vpop.permute.xlu0 %2221
  %2223 = vrot.lane.b32.xlu0 %v1497, 20
  %v2224 = vpop.permute.xlu0 %2223
  %2225 = vrot.lane.b32.xlu0 %v1499, 20
  %v2226 = vpop.permute.xlu0 %2225
  %2227 = vrot.lane.b32.xlu0 %v1502, 20
  %v2228 = vpop.permute.xlu0 %2227
  %2229 = vrot.lane.b32.xlu0 %v1504, 20
  %v2230 = vpop.permute.xlu0 %2229
  %2231 = vrot.lane.b32.xlu0 %v1507, 20
  %v2232 = vpop.permute.xlu0 %2231
  %2233 = vrot.lane.b32.xlu0 %v1509, 20
  %v2234 = vpop.permute.xlu0 %2233
  %2235 = vrot.lane.b32.xlu0 %v1512, 20
  %v2236 = vpop.permute.xlu0 %2235
  %2237 = vrot.lane.b32.xlu0 %v1514, 20
  %v2238 = vpop.permute.xlu0 %2237
  %2239 = vrot.lane.b32.xlu0 %v1517, 20
  %v2240 = vpop.permute.xlu0 %2239
  %2241 = vrot.lane.b32.xlu0 %v1519, 20
  %v2242 = vpop.permute.xlu0 %2241
  %2243 = vrot.lane.b32.xlu0 %v1522, 20
  %v2244 = vpop.permute.xlu0 %2243
  %2245 = vrot.lane.b32.xlu0 %v1524, 20
  %v2246 = vpop.permute.xlu0 %2245
  %2247 = vrot.lane.b32.xlu0 %v1527, 20
  %v2248 = vpop.permute.xlu0 %2247
  %2249 = vrot.lane.b32.xlu0 %v1529, 20
  %v2250 = vpop.permute.xlu0 %2249
  %2251 = vrot.lane.b32.xlu0 %v1532, 20
  %v2252 = vpop.permute.xlu0 %2251
  %2253 = vrot.lane.b32.xlu0 %v1534, 20
  %v2254 = vpop.permute.xlu0 %2253
  %2255 = vrot.lane.b32.xlu0 %v1537, 20
  %v2256 = vpop.permute.xlu0 %2255
  %2257 = vrot.lane.b32.xlu0 %v1539, 20
  %v2258 = vpop.permute.xlu0 %2257
  %2259 = vrot.lane.b32.xlu0 %v1542, 20
  %v2260 = vpop.permute.xlu0 %2259
  %2261 = vrot.lane.b32.xlu0 %v1544, 20
  %v2262 = vpop.permute.xlu0 %2261
  %2263 = vrot.lane.b32.xlu0 %v2136, 20
  %v2264 = vpop.permute.xlu0 %2263
  %2265 = vrot.lane.b32.xlu0 %v2138, 20
  %v2266 = vpop.permute.xlu0 %2265
  %2331 = vrot.lane.b32.xlu0 %v921, 24
  %v2332 = vpop.permute.xlu0 %2331
  %2333 = vrot.lane.b32.xlu0 %v732, 24
  %v2334 = vpop.permute.xlu0 %2333
  %2335 = vrot.lane.b32.xlu0 %v922, 24
  %v2336 = vpop.permute.xlu0 %2335
  %2337 = vrot.lane.b32.xlu0 %v735, 24
  %v2338 = vpop.permute.xlu0 %2337
  %2339 = vrot.lane.b32.xlu0 %v923, 24
  %v2340 = vpop.permute.xlu0 %2339
  %2341 = vrot.lane.b32.xlu0 %v738, 24
  %v2342 = vpop.permute.xlu0 %2341
  %2343 = vrot.lane.b32.xlu0 %v924, 24
  %v2344 = vpop.permute.xlu0 %2343
  %2345 = vrot.lane.b32.xlu0 %v741, 24
  %v2346 = vpop.permute.xlu0 %2345
  %2347 = vrot.lane.b32.xlu0 %v925, 24
  %v2348 = vpop.permute.xlu0 %2347
  %2349 = vrot.lane.b32.xlu0 %v744, 24
  %v2350 = vpop.permute.xlu0 %2349
  %2351 = vrot.lane.b32.xlu0 %v926, 24
  %v2352 = vpop.permute.xlu0 %2351
  %2353 = vrot.lane.b32.xlu0 %v747, 24
  %v2354 = vpop.permute.xlu0 %2353
  %2355 = vrot.lane.b32.xlu0 %v927, 24
  %v2356 = vpop.permute.xlu0 %2355
  %2357 = vrot.lane.b32.xlu0 %v750, 24
  %v2358 = vpop.permute.xlu0 %2357
  %2359 = vrot.lane.b32.xlu0 %v928, 24
  %v2360 = vpop.permute.xlu0 %2359
  %2361 = vrot.lane.b32.xlu0 %v753, 24
  %v2362 = vpop.permute.xlu0 %2361
  %2363 = vrot.lane.b32.xlu0 %v929, 24
  %v2364 = vpop.permute.xlu0 %2363
  %2365 = vrot.lane.b32.xlu0 %v756, 24
  %v2366 = vpop.permute.xlu0 %2365
  %2367 = vrot.lane.b32.xlu0 %v930, 24
  %v2368 = vpop.permute.xlu0 %2367
  %2369 = vrot.lane.b32.xlu0 %v759, 24
  %v2370 = vpop.permute.xlu0 %2369
  %2371 = vrot.lane.b32.xlu0 %v931, 24
  %v2372 = vpop.permute.xlu0 %2371
  %2373 = vrot.lane.b32.xlu0 %v762, 24
  %v2374 = vpop.permute.xlu0 %2373
  %2375 = vrot.lane.b32.xlu0 %v932, 24
  %v2376 = vpop.permute.xlu0 %2375
  %2377 = vrot.lane.b32.xlu0 %v765, 24
  %v2378 = vpop.permute.xlu0 %2377
  %2379 = vrot.lane.b32.xlu0 %v933, 24
  %v2380 = vpop.permute.xlu0 %2379
  %2381 = vrot.lane.b32.xlu0 %v768, 24
  %v2382 = vpop.permute.xlu0 %2381
  %2383 = vrot.lane.b32.xlu0 %v934, 24
  %v2384 = vpop.permute.xlu0 %2383
  %2385 = vrot.lane.b32.xlu0 %v771, 24
  %v2386 = vpop.permute.xlu0 %2385
  %2387 = vrot.lane.b32.xlu0 %v935, 24
  %v2388 = vpop.permute.xlu0 %2387
  %2389 = vrot.lane.b32.xlu0 %v774, 24
  %v2390 = vpop.permute.xlu0 %2389
  %2391 = vrot.lane.b32.xlu0 %v919, 24
  %v2392 = vpop.permute.xlu0 %2391
  %2393 = vrot.lane.b32.xlu0 %v726, 24
  %v2394 = vpop.permute.xlu0 %2393
  %2395 = vrot.lane.b32.xlu0 %v937, 24
  %v2396 = vpop.permute.xlu0 %2395
  %2397 = vrot.lane.b32.xlu0 %v780, 24
  %v2398 = vpop.permute.xlu0 %2397
  %2399 = vrot.lane.b32.xlu0 %v938, 24
  %v2400 = vpop.permute.xlu0 %2399
  %2401 = vrot.lane.b32.xlu0 %v783, 24
  %v2402 = vpop.permute.xlu0 %2401
  %2403 = vrot.lane.b32.xlu0 %v939, 24
  %v2404 = vpop.permute.xlu0 %2403
  %2405 = vrot.lane.b32.xlu0 %v786, 24
  %v2406 = vpop.permute.xlu0 %2405
  %2407 = vrot.lane.b32.xlu0 %v940, 24
  %v2408 = vpop.permute.xlu0 %2407
  %2409 = vrot.lane.b32.xlu0 %v789, 24
  %v2410 = vpop.permute.xlu0 %2409
  %2411 = vrot.lane.b32.xlu0 %v941, 24
  %v2412 = vpop.permute.xlu0 %2411
  %2413 = vrot.lane.b32.xlu0 %v792, 24
  %v2414 = vpop.permute.xlu0 %2413
  %2415 = vrot.lane.b32.xlu0 %v942, 24
  %v2416 = vpop.permute.xlu0 %2415
  %2417 = vrot.lane.b32.xlu0 %v795, 24
  %v2418 = vpop.permute.xlu0 %2417
  %2419 = vrot.lane.b32.xlu0 %v943, 24
  %v2420 = vpop.permute.xlu0 %2419
  %2421 = vrot.lane.b32.xlu0 %v798, 24
  %v2422 = vpop.permute.xlu0 %2421
  %2423 = vrot.lane.b32.xlu0 %v944, 24
  %v2424 = vpop.permute.xlu0 %2423
  %2425 = vrot.lane.b32.xlu0 %v801, 24
  %v2426 = vpop.permute.xlu0 %2425
  %2427 = vrot.lane.b32.xlu0 %v945, 24
  %v2428 = vpop.permute.xlu0 %2427
  %2429 = vrot.lane.b32.xlu0 %v804, 24
  %v2430 = vpop.permute.xlu0 %2429
  %2431 = vrot.lane.b32.xlu0 %v946, 24
  %v2432 = vpop.permute.xlu0 %2431
  %2433 = vrot.lane.b32.xlu0 %v807, 24
  %v2434 = vpop.permute.xlu0 %2433
  %2435 = vrot.lane.b32.xlu0 %v947, 24
  %v2436 = vpop.permute.xlu0 %2435
  %2437 = vrot.lane.b32.xlu0 %v810, 24
  %v2438 = vpop.permute.xlu0 %2437
  %2439 = vrot.lane.b32.xlu0 %v948, 24
  %v2440 = vpop.permute.xlu0 %2439
  %2441 = vrot.lane.b32.xlu0 %v813, 24
  %v2442 = vpop.permute.xlu0 %2441
  %2443 = vrot.lane.b32.xlu0 %v949, 24
  %v2444 = vpop.permute.xlu0 %2443
  %2445 = vrot.lane.b32.xlu0 %v816, 24
  %v2446 = vpop.permute.xlu0 %2445
  %2447 = vrot.lane.b32.xlu0 %v950, 24
  %v2448 = vpop.permute.xlu0 %2447
  %2449 = vrot.lane.b32.xlu0 %v819, 24
  %v2450 = vpop.permute.xlu0 %2449
  %2451 = vrot.lane.b32.xlu0 %v951, 24
  %v2452 = vpop.permute.xlu0 %2451
  %2453 = vrot.lane.b32.xlu0 %v822, 24
  %v2454 = vpop.permute.xlu0 %2453
  %2517 = vrot.lane.b32.xlu0 %v1060, 28
  %v2518 = vpop.permute.xlu0 %2517
  %2519 = vrot.lane.b32.xlu0 %v1062, 28
  %v2520 = vpop.permute.xlu0 %2519
  %2521 = vrot.lane.b32.xlu0 %v1065, 28
  %v2522 = vpop.permute.xlu0 %2521
  %2523 = vrot.lane.b32.xlu0 %v1067, 28
  %v2524 = vpop.permute.xlu0 %2523
  %2525 = vrot.lane.b32.xlu0 %v1070, 28
  %v2526 = vpop.permute.xlu0 %2525
  %2527 = vrot.lane.b32.xlu0 %v1072, 28
  %v2528 = vpop.permute.xlu0 %2527
  %2529 = vrot.lane.b32.xlu0 %v1075, 28
  %v2530 = vpop.permute.xlu0 %2529
  %2531 = vrot.lane.b32.xlu0 %v1077, 28
  %v2532 = vpop.permute.xlu0 %2531
  %2533 = vrot.lane.b32.xlu0 %v1080, 28
  %v2534 = vpop.permute.xlu0 %2533
  %2535 = vrot.lane.b32.xlu0 %v1082, 28
  %v2536 = vpop.permute.xlu0 %2535
  %2537 = vrot.lane.b32.xlu0 %v1085, 28
  %v2538 = vpop.permute.xlu0 %2537
  %2539 = vrot.lane.b32.xlu0 %v1087, 28
  %v2540 = vpop.permute.xlu0 %2539
  %2541 = vrot.lane.b32.xlu0 %v1090, 28
  %v2542 = vpop.permute.xlu0 %2541
  %2543 = vrot.lane.b32.xlu0 %v1092, 28
  %v2544 = vpop.permute.xlu0 %2543
  %2545 = vrot.lane.b32.xlu0 %v1095, 28
  %v2546 = vpop.permute.xlu0 %2545
  %2547 = vrot.lane.b32.xlu0 %v1097, 28
  %v2548 = vpop.permute.xlu0 %2547
  %2549 = vrot.lane.b32.xlu0 %v1100, 28
  %v2550 = vpop.permute.xlu0 %2549
  %2551 = vrot.lane.b32.xlu0 %v1102, 28
  %v2552 = vpop.permute.xlu0 %2551
  %2553 = vrot.lane.b32.xlu0 %v1105, 28
  %v2554 = vpop.permute.xlu0 %2553
  %2555 = vrot.lane.b32.xlu0 %v1107, 28
  %v2556 = vpop.permute.xlu0 %2555
  %2557 = vrot.lane.b32.xlu0 %v1110, 28
  %v2558 = vpop.permute.xlu0 %2557
  %2559 = vrot.lane.b32.xlu0 %v1112, 28
  %v2560 = vpop.permute.xlu0 %2559
  %2561 = vrot.lane.b32.xlu0 %v1115, 28
  %v2562 = vpop.permute.xlu0 %2561
  %2563 = vrot.lane.b32.xlu0 %v1117, 28
  %v2564 = vpop.permute.xlu0 %2563
  %2565 = vrot.lane.b32.xlu0 %v1120, 28
  %v2566 = vpop.permute.xlu0 %2565
  %2567 = vrot.lane.b32.xlu0 %v1122, 28
  %v2568 = vpop.permute.xlu0 %2567
  %2569 = vrot.lane.b32.xlu0 %v1125, 28
  %v2570 = vpop.permute.xlu0 %2569
  %2571 = vrot.lane.b32.xlu0 %v1127, 28
  %v2572 = vpop.permute.xlu0 %2571
  %2573 = vrot.lane.b32.xlu0 %v1929, 28
  %v2574 = vpop.permute.xlu0 %2573
  %2575 = vrot.lane.b32.xlu0 %v1931, 28
  %v2576 = vpop.permute.xlu0 %2575
  %2577 = vrot.lane.b32.xlu0 %v1050, 28
  %v2578 = vpop.permute.xlu0 %2577
  %2579 = vrot.lane.b32.xlu0 %v1052, 28
  %v2580 = vpop.permute.xlu0 %2579
  %2581 = vrot.lane.b32.xlu0 %v1135, 28
  %v2582 = vpop.permute.xlu0 %2581
  %2583 = vrot.lane.b32.xlu0 %v1137, 28
  %v2584 = vpop.permute.xlu0 %2583
  %2585 = vrot.lane.b32.xlu0 %v1140, 28
  %v2586 = vpop.permute.xlu0 %2585
  %2587 = vrot.lane.b32.xlu0 %v1142, 28
  %v2588 = vpop.permute.xlu0 %2587
  %2589 = vrot.lane.b32.xlu0 %v1145, 28
  %v2590 = vpop.permute.xlu0 %2589
  %2591 = vrot.lane.b32.xlu0 %v1147, 28
  %v2592 = vpop.permute.xlu0 %2591
  %2593 = vrot.lane.b32.xlu0 %v1150, 28
  %v2594 = vpop.permute.xlu0 %2593
  %2595 = vrot.lane.b32.xlu0 %v1152, 28
  %v2596 = vpop.permute.xlu0 %2595
  %2597 = vrot.lane.b32.xlu0 %v1155, 28
  %v2598 = vpop.permute.xlu0 %2597
  %2599 = vrot.lane.b32.xlu0 %v1157, 28
  %v2600 = vpop.permute.xlu0 %2599
  %2601 = vrot.lane.b32.xlu0 %v1160, 28
  %v2602 = vpop.permute.xlu0 %2601
  %2603 = vrot.lane.b32.xlu0 %v1162, 28
  %v2604 = vpop.permute.xlu0 %2603
  %2605 = vrot.lane.b32.xlu0 %v1165, 28
  %v2606 = vpop.permute.xlu0 %2605
  %2607 = vrot.lane.b32.xlu0 %v1167, 28
  %v2608 = vpop.permute.xlu0 %2607
  %2609 = vrot.lane.b32.xlu0 %v1170, 28
  %v2610 = vpop.permute.xlu0 %2609
  %2611 = vrot.lane.b32.xlu0 %v1172, 28
  %v2612 = vpop.permute.xlu0 %2611
  %2613 = vrot.lane.b32.xlu0 %v1175, 28
  %v2614 = vpop.permute.xlu0 %2613
  %2615 = vrot.lane.b32.xlu0 %v1177, 28
  %v2616 = vpop.permute.xlu0 %2615
  %2617 = vrot.lane.b32.xlu0 %v1180, 28
  %v2618 = vpop.permute.xlu0 %2617
  %2619 = vrot.lane.b32.xlu0 %v1182, 28
  %v2620 = vpop.permute.xlu0 %2619
  %2621 = vrot.lane.b32.xlu0 %v1185, 28
  %v2622 = vpop.permute.xlu0 %2621
  %2623 = vrot.lane.b32.xlu0 %v1187, 28
  %v2624 = vpop.permute.xlu0 %2623
  %2625 = vrot.lane.b32.xlu0 %v1190, 28
  %v2626 = vpop.permute.xlu0 %2625
  %2627 = vrot.lane.b32.xlu0 %v1192, 28
  %v2628 = vpop.permute.xlu0 %2627
  %2629 = vrot.lane.b32.xlu0 %v1195, 28
  %v2630 = vpop.permute.xlu0 %2629
  %2631 = vrot.lane.b32.xlu0 %v1197, 28
  %v2632 = vpop.permute.xlu0 %2631
  %2633 = vrot.lane.b32.xlu0 %v1200, 28
  %v2634 = vpop.permute.xlu0 %2633
  %2635 = vrot.lane.b32.xlu0 %v1202, 28
  %v2636 = vpop.permute.xlu0 %2635
  %2637 = vrot.lane.b32.xlu0 %v1934, 28
  %v2638 = vpop.permute.xlu0 %2637
  %2639 = vrot.lane.b32.xlu0 %v1936, 28
  %v2640 = vpop.permute.xlu0 %2639
  %2703 = vrot.lane.b32.xlu0 %v1402, 32
  %v2704 = vpop.permute.xlu0 %2703
  %2705 = vrot.lane.b32.xlu0 %v1404, 32
  %v2706 = vpop.permute.xlu0 %2705
  %2707 = vrot.lane.b32.xlu0 %v1407, 32
  %v2708 = vpop.permute.xlu0 %2707
  %2709 = vrot.lane.b32.xlu0 %v1409, 32
  %v2710 = vpop.permute.xlu0 %2709
  %2711 = vrot.lane.b32.xlu0 %v1412, 32
  %v2712 = vpop.permute.xlu0 %2711
  %2713 = vrot.lane.b32.xlu0 %v1414, 32
  %v2714 = vpop.permute.xlu0 %2713
  %2715 = vrot.lane.b32.xlu0 %v1417, 32
  %v2716 = vpop.permute.xlu0 %2715
  %2717 = vrot.lane.b32.xlu0 %v1419, 32
  %v2718 = vpop.permute.xlu0 %2717
  %2719 = vrot.lane.b32.xlu0 %v1422, 32
  %v2720 = vpop.permute.xlu0 %2719
  %2721 = vrot.lane.b32.xlu0 %v1424, 32
  %v2722 = vpop.permute.xlu0 %2721
  %2723 = vrot.lane.b32.xlu0 %v1427, 32
  %v2724 = vpop.permute.xlu0 %2723
  %2725 = vrot.lane.b32.xlu0 %v1429, 32
  %v2726 = vpop.permute.xlu0 %2725
  %2727 = vrot.lane.b32.xlu0 %v1432, 32
  %v2728 = vpop.permute.xlu0 %2727
  %2729 = vrot.lane.b32.xlu0 %v1434, 32
  %v2730 = vpop.permute.xlu0 %2729
  %2731 = vrot.lane.b32.xlu0 %v1437, 32
  %v2732 = vpop.permute.xlu0 %2731
  %2733 = vrot.lane.b32.xlu0 %v1439, 32
  %v2734 = vpop.permute.xlu0 %2733
  %2735 = vrot.lane.b32.xlu0 %v1442, 32
  %v2736 = vpop.permute.xlu0 %2735
  %2737 = vrot.lane.b32.xlu0 %v1444, 32
  %v2738 = vpop.permute.xlu0 %2737
  %2739 = vrot.lane.b32.xlu0 %v1447, 32
  %v2740 = vpop.permute.xlu0 %2739
  %2741 = vrot.lane.b32.xlu0 %v1449, 32
  %v2742 = vpop.permute.xlu0 %2741
  %2743 = vrot.lane.b32.xlu0 %v1452, 32
  %v2744 = vpop.permute.xlu0 %2743
  %2745 = vrot.lane.b32.xlu0 %v1454, 32
  %v2746 = vpop.permute.xlu0 %2745
  %2747 = vrot.lane.b32.xlu0 %v1457, 32
  %v2748 = vpop.permute.xlu0 %2747
  %2749 = vrot.lane.b32.xlu0 %v1459, 32
  %v2750 = vpop.permute.xlu0 %2749
  %2751 = vrot.lane.b32.xlu0 %v1462, 32
  %v2752 = vpop.permute.xlu0 %2751
  %2753 = vrot.lane.b32.xlu0 %v1464, 32
  %v2754 = vpop.permute.xlu0 %2753
  %2755 = vrot.lane.b32.xlu0 %v1467, 32
  %v2756 = vpop.permute.xlu0 %2755
  %2757 = vrot.lane.b32.xlu0 %v1469, 32
  %v2758 = vpop.permute.xlu0 %2757
  %2759 = vrot.lane.b32.xlu0 %v2131, 32
  %v2760 = vpop.permute.xlu0 %2759
  %2761 = vrot.lane.b32.xlu0 %v2133, 32
  %v2762 = vpop.permute.xlu0 %2761
  %2763 = vrot.lane.b32.xlu0 %v1392, 32
  %v2764 = vpop.permute.xlu0 %2763
  %2765 = vrot.lane.b32.xlu0 %v1394, 32
  %v2766 = vpop.permute.xlu0 %2765
  %2767 = vrot.lane.b32.xlu0 %v1477, 32
  %v2768 = vpop.permute.xlu0 %2767
  %2769 = vrot.lane.b32.xlu0 %v1479, 32
  %v2770 = vpop.permute.xlu0 %2769
  %2771 = vrot.lane.b32.xlu0 %v1482, 32
  %v2772 = vpop.permute.xlu0 %2771
  %2773 = vrot.lane.b32.xlu0 %v1484, 32
  %v2774 = vpop.permute.xlu0 %2773
  %2775 = vrot.lane.b32.xlu0 %v1487, 32
  %v2776 = vpop.permute.xlu0 %2775
  %2777 = vrot.lane.b32.xlu0 %v1489, 32
  %v2778 = vpop.permute.xlu0 %2777
  %2779 = vrot.lane.b32.xlu0 %v1492, 32
  %v2780 = vpop.permute.xlu0 %2779
  %2781 = vrot.lane.b32.xlu0 %v1494, 32
  %v2782 = vpop.permute.xlu0 %2781
  %2783 = vrot.lane.b32.xlu0 %v1497, 32
  %v2784 = vpop.permute.xlu0 %2783
  %2785 = vrot.lane.b32.xlu0 %v1499, 32
  %v2786 = vpop.permute.xlu0 %2785
  %2787 = vrot.lane.b32.xlu0 %v1502, 32
  %v2788 = vpop.permute.xlu0 %2787
  %2789 = vrot.lane.b32.xlu0 %v1504, 32
  %v2790 = vpop.permute.xlu0 %2789
  %2791 = vrot.lane.b32.xlu0 %v1507, 32
  %v2792 = vpop.permute.xlu0 %2791
  %2793 = vrot.lane.b32.xlu0 %v1509, 32
  %v2794 = vpop.permute.xlu0 %2793
  %2795 = vrot.lane.b32.xlu0 %v1512, 32
  %v2796 = vpop.permute.xlu0 %2795
  %2797 = vrot.lane.b32.xlu0 %v1514, 32
  %v2798 = vpop.permute.xlu0 %2797
  %2799 = vrot.lane.b32.xlu0 %v1517, 32
  %v2800 = vpop.permute.xlu0 %2799
  %2801 = vrot.lane.b32.xlu0 %v1519, 32
  %v2802 = vpop.permute.xlu0 %2801
  %2803 = vrot.lane.b32.xlu0 %v1522, 32
  %v2804 = vpop.permute.xlu0 %2803
  %2805 = vrot.lane.b32.xlu0 %v1524, 32
  %v2806 = vpop.permute.xlu0 %2805
  %2807 = vrot.lane.b32.xlu0 %v1527, 32
  %v2808 = vpop.permute.xlu0 %2807
  %2809 = vrot.lane.b32.xlu0 %v1529, 32
  %v2810 = vpop.permute.xlu0 %2809
  %2811 = vrot.lane.b32.xlu0 %v1532, 32
  %v2812 = vpop.permute.xlu0 %2811
  %2813 = vrot.lane.b32.xlu0 %v1534, 32
  %v2814 = vpop.permute.xlu0 %2813
  %2815 = vrot.lane.b32.xlu0 %v1537, 32
  %v2816 = vpop.permute.xlu0 %2815
  %2817 = vrot.lane.b32.xlu0 %v1539, 32
  %v2818 = vpop.permute.xlu0 %2817
  %2819 = vrot.lane.b32.xlu0 %v1542, 32
  %v2820 = vpop.permute.xlu0 %2819
  %2821 = vrot.lane.b32.xlu0 %v1544, 32
  %v2822 = vpop.permute.xlu0 %2821
  %2823 = vrot.lane.b32.xlu0 %v2136, 32
  %v2824 = vpop.permute.xlu0 %2823
  %2825 = vrot.lane.b32.xlu0 %v2138, 32
  %v2826 = vpop.permute.xlu0 %2825
  %v2889 = vsel %vm110, %v919, %v1204
  %v2890 = vsel %vm110, %v726, %v1206
  %v2891 = vsel %vm110, %v920, %v1208
  %v2892 = vsel %vm110, %v729, %v1210
  %v2893 = vsel %vm110, %v921, %v1212
  %v2894 = vsel %vm110, %v732, %v1214
  %v2895 = vsel %vm110, %v922, %v1216
  %v2896 = vsel %vm110, %v735, %v1218
  %v2897 = vsel %vm110, %v923, %v1220
  %v2898 = vsel %vm110, %v738, %v1222
  %v2899 = vsel %vm110, %v924, %v1224
  %v2900 = vsel %vm110, %v741, %v1226
  %v2901 = vsel %vm110, %v925, %v1228
  %v2902 = vsel %vm110, %v744, %v1230
  %v2903 = vsel %vm110, %v926, %v1232
  %v2904 = vsel %vm110, %v747, %v1234
  %v2905 = vsel %vm110, %v927, %v1236
  %v2906 = vsel %vm110, %v750, %v1238
  %v2907 = vsel %vm110, %v928, %v1240
  %v2908 = vsel %vm110, %v753, %v1242
  %v2909 = vsel %vm110, %v929, %v1244
  %v2910 = vsel %vm110, %v756, %v1246
  %v2911 = vsel %vm110, %v930, %v1248
  %v2912 = vsel %vm110, %v759, %v1250
  %v2913 = vsel %vm110, %v931, %v1252
  %v2914 = vsel %vm110, %v762, %v1254
  %v2915 = vsel %vm110, %v932, %v1256
  %v2916 = vsel %vm110, %v765, %v1258
  %v2917 = vsel %vm110, %v933, %v1260
  %v2918 = vsel %vm110, %v768, %v1262
  %v2919 = vsel %vm110, %v934, %v1264
  %v2920 = vsel %vm110, %v771, %v1266
  %v2921 = vsel %vm110, %v936, %v1268
  %v2922 = vsel %vm110, %v777, %v1270
  %v2923 = vsel %vm110, %v937, %v1272
  %v2924 = vsel %vm110, %v780, %v1274
  %v2925 = vsel %vm110, %v938, %v1276
  %v2926 = vsel %vm110, %v783, %v1278
  %v2927 = vsel %vm110, %v939, %v1280
  %v2928 = vsel %vm110, %v786, %v1282
  %v2929 = vsel %vm110, %v940, %v1284
  %v2930 = vsel %vm110, %v789, %v1286
  %v2931 = vsel %vm110, %v941, %v1288
  %v2932 = vsel %vm110, %v792, %v1290
  %v2933 = vsel %vm110, %v942, %v1292
  %v2934 = vsel %vm110, %v795, %v1294
  %v2935 = vsel %vm110, %v943, %v1296
  %v2936 = vsel %vm110, %v798, %v1298
  %v2937 = vsel %vm110, %v944, %v1300
  %v2938 = vsel %vm110, %v801, %v1302
  %v2939 = vsel %vm110, %v945, %v1304
  %v2940 = vsel %vm110, %v804, %v1306
  %v2941 = vsel %vm110, %v946, %v1308
  %v2942 = vsel %vm110, %v807, %v1310
  %v2943 = vsel %vm110, %v947, %v1312
  %v2944 = vsel %vm110, %v810, %v1314
  %v2945 = vsel %vm110, %v948, %v1316
  %v2946 = vsel %vm110, %v813, %v1318
  %v2947 = vsel %vm110, %v949, %v1320
  %v2948 = vsel %vm110, %v816, %v1322
  %v2949 = vsel %vm110, %v950, %v1324
  %v2950 = vsel %vm110, %v819, %v1326
  %vm2951 = vcmask 64512
  %v2952 = vsel %vm2951, %v2889, %v1546
  %v2953 = vsel %vm2951, %v2890, %v1548
  %v2954 = vsel %vm2951, %v2891, %v1550
  %v2955 = vsel %vm2951, %v2892, %v1552
  %v2956 = vsel %vm2951, %v2893, %v1554
  %v2957 = vsel %vm2951, %v2894, %v1556
  %v2958 = vsel %vm2951, %v2895, %v1558
  %v2959 = vsel %vm2951, %v2896, %v1560
  %v2960 = vsel %vm2951, %v2897, %v1562
  %v2961 = vsel %vm2951, %v2898, %v1564
  %v2962 = vsel %vm2951, %v2899, %v1566
  %v2963 = vsel %vm2951, %v2900, %v1568
  %v2964 = vsel %vm2951, %v2901, %v1570
  %v2965 = vsel %vm2951, %v2902, %v1572
  %v2966 = vsel %vm2951, %v2903, %v1574
  %v2967 = vsel %vm2951, %v2904, %v1576
  %v2968 = vsel %vm2951, %v2905, %v1578
  %v2969 = vsel %vm2951, %v2906, %v1580
  %v2970 = vsel %vm2951, %v2907, %v1582
  %v2971 = vsel %vm2951, %v2908, %v1584
  %v2972 = vsel %vm2951, %v2909, %v1586
  %v2973 = vsel %vm2951, %v2910, %v1588
  %v2974 = vsel %vm2951, %v2911, %v1590
  %v2975 = vsel %vm2951, %v2912, %v1592
  %v2976 = vsel %vm2951, %v2913, %v1594
  %v2977 = vsel %vm2951, %v2914, %v1596
  %v2978 = vsel %vm2951, %v2915, %v1598
  %v2979 = vsel %vm2951, %v2916, %v1600
  %v2980 = vsel %vm2951, %v2917, %v1602
  %v2981 = vsel %vm2951, %v2918, %v1604
  %v2982 = vsel %vm2951, %v2919, %v1606
  %v2983 = vsel %vm2951, %v2920, %v1608
  %v2984 = vsel %vm2951, %v2921, %v1610
  %v2985 = vsel %vm2951, %v2922, %v1612
  %v2986 = vsel %vm2951, %v2923, %v1614
  %v2987 = vsel %vm2951, %v2924, %v1616
  %v2988 = vsel %vm2951, %v2925, %v1618
  %v2989 = vsel %vm2951, %v2926, %v1620
  %v2990 = vsel %vm2951, %v2927, %v1622
  %v2991 = vsel %vm2951, %v2928, %v1624
  %v2992 = vsel %vm2951, %v2929, %v1626
  %v2993 = vsel %vm2951, %v2930, %v1628
  %v2994 = vsel %vm2951, %v2931, %v1630
  %v2995 = vsel %vm2951, %v2932, %v1632
  %v2996 = vsel %vm2951, %v2933, %v1634
  %v2997 = vsel %vm2951, %v2934, %v1636
  %v2998 = vsel %vm2951, %v2935, %v1638
  %v2999 = vsel %vm2951, %v2936, %v1640
  %v3000 = vsel %vm2951, %v2937, %v1642
  %v3001 = vsel %vm2951, %v2938, %v1644
  %v3002 = vsel %vm2951, %v2939, %v1646
  %v3003 = vsel %vm2951, %v2940, %v1648
  %v3004 = vsel %vm2951, %v2941, %v1650
  %v3005 = vsel %vm2951, %v2942, %v1652
  %v3006 = vsel %vm2951, %v2943, %v1654
  %v3007 = vsel %vm2951, %v2944, %v1656
  %v3008 = vsel %vm2951, %v2945, %v1658
  %v3009 = vsel %vm2951, %v2946, %v1660
  %v3010 = vsel %vm2951, %v2947, %v1662
  %v3011 = vsel %vm2951, %v2948, %v1664
  %v3012 = vsel %vm2951, %v2949, %v1666
  %v3013 = vsel %vm2951, %v2950, %v1668
  %vm3014 = vcmask 97280
  %v3015 = vsel %vm3014, %v2952, %v1734
  %v3016 = vsel %vm3014, %v2953, %v1736
  %v3017 = vsel %vm3014, %v2954, %v1738
  %v3018 = vsel %vm3014, %v2955, %v1740
  %v3019 = vsel %vm3014, %v2956, %v1742
  %v3020 = vsel %vm3014, %v2957, %v1744
  %v3021 = vsel %vm3014, %v2958, %v1746
  %v3022 = vsel %vm3014, %v2959, %v1748
  %v3023 = vsel %vm3014, %v2960, %v1750
  %v3024 = vsel %vm3014, %v2961, %v1752
  %v3025 = vsel %vm3014, %v2962, %v1754
  %v3026 = vsel %vm3014, %v2963, %v1756
  %v3027 = vsel %vm3014, %v2964, %v1758
  %v3028 = vsel %vm3014, %v2965, %v1760
  %v3029 = vsel %vm3014, %v2966, %v1762
  %v3030 = vsel %vm3014, %v2967, %v1764
  %v3031 = vsel %vm3014, %v2968, %v1766
  %v3032 = vsel %vm3014, %v2969, %v1768
  %v3033 = vsel %vm3014, %v2970, %v1770
  %v3034 = vsel %vm3014, %v2971, %v1772
  %v3035 = vsel %vm3014, %v2972, %v1774
  %v3036 = vsel %vm3014, %v2973, %v1776
  %v3037 = vsel %vm3014, %v2974, %v1778
  %v3038 = vsel %vm3014, %v2975, %v1780
  %v3039 = vsel %vm3014, %v2976, %v1782
  %v3040 = vsel %vm3014, %v2977, %v1784
  %v3041 = vsel %vm3014, %v2978, %v1786
  %v3042 = vsel %vm3014, %v2979, %v1788
  %v3043 = vsel %vm3014, %v2980, %v1790
  %v3044 = vsel %vm3014, %v2981, %v1792
  %v3045 = vsel %vm3014, %v2982, %v1794
  %v3046 = vsel %vm3014, %v2983, %v1796
  %v3047 = vsel %vm3014, %v2952, %v1798
  %v3048 = vsel %vm3014, %v2953, %v1800
  %v3049 = vsel %vm3014, %v2984, %v1802
  %v3050 = vsel %vm3014, %v2985, %v1804
  %v3051 = vsel %vm3014, %v2986, %v1806
  %v3052 = vsel %vm3014, %v2987, %v1808
  %v3053 = vsel %vm3014, %v2988, %v1810
  %v3054 = vsel %vm3014, %v2989, %v1812
  %v3055 = vsel %vm3014, %v2990, %v1814
  %v3056 = vsel %vm3014, %v2991, %v1816
  %v3057 = vsel %vm3014, %v2992, %v1818
  %v3058 = vsel %vm3014, %v2993, %v1820
  %v3059 = vsel %vm3014, %v2994, %v1822
  %v3060 = vsel %vm3014, %v2995, %v1824
  %v3061 = vsel %vm3014, %v2996, %v1826
  %v3062 = vsel %vm3014, %v2997, %v1828
  %v3063 = vsel %vm3014, %v2998, %v1830
  %v3064 = vsel %vm3014, %v2999, %v1832
  %v3065 = vsel %vm3014, %v3000, %v1834
  %v3066 = vsel %vm3014, %v3001, %v1836
  %v3067 = vsel %vm3014, %v3002, %v1838
  %v3068 = vsel %vm3014, %v3003, %v1840
  %v3069 = vsel %vm3014, %v3004, %v1842
  %v3070 = vsel %vm3014, %v3005, %v1844
  %v3071 = vsel %vm3014, %v3006, %v1846
  %v3072 = vsel %vm3014, %v3007, %v1848
  %v3073 = vsel %vm3014, %v3008, %v1850
  %v3074 = vsel %vm3014, %v3009, %v1852
  %v3075 = vsel %vm3014, %v3010, %v1854
  %v3076 = vsel %vm3014, %v3011, %v1856
  %v3077 = vsel %vm3014, %v3012, %v1858
  %v3078 = vsel %vm3014, %v3013, %v1860
  %vm3079 = vcmask 130048
  %v3080 = vsel %vm3079, %v3015, %v1938
  %v3081 = vsel %vm3079, %v3016, %v1940
  %v3082 = vsel %vm3079, %v3017, %v1942
  %v3083 = vsel %vm3079, %v3018, %v1944
  %v3084 = vsel %vm3079, %v3019, %v1946
  %v3085 = vsel %vm3079, %v3020, %v1948
  %v3086 = vsel %vm3079, %v3021, %v1950
  %v3087 = vsel %vm3079, %v3022, %v1952
  %v3088 = vsel %vm3079, %v3023, %v1954
  %v3089 = vsel %vm3079, %v3024, %v1956
  %v3090 = vsel %vm3079, %v3025, %v1958
  %v3091 = vsel %vm3079, %v3026, %v1960
  %v3092 = vsel %vm3079, %v3027, %v1962
  %v3093 = vsel %vm3079, %v3028, %v1964
  %v3094 = vsel %vm3079, %v3029, %v1966
  %v3095 = vsel %vm3079, %v3030, %v1968
  %v3096 = vsel %vm3079, %v3031, %v1970
  %v3097 = vsel %vm3079, %v3032, %v1972
  %v3098 = vsel %vm3079, %v3033, %v1974
  %v3099 = vsel %vm3079, %v3034, %v1976
  %v3100 = vsel %vm3079, %v3035, %v1978
  %v3101 = vsel %vm3079, %v3036, %v1980
  %v3102 = vsel %vm3079, %v3037, %v1982
  %v3103 = vsel %vm3079, %v3038, %v1984
  %v3104 = vsel %vm3079, %v3039, %v1986
  %v3105 = vsel %vm3079, %v3040, %v1988
  %v3106 = vsel %vm3079, %v3041, %v1990
  %v3107 = vsel %vm3079, %v3042, %v1992
  %v3108 = vsel %vm3079, %v3043, %v1994
  %v3109 = vsel %vm3079, %v3044, %v1996
  %v3110 = vsel %vm3079, %v3045, %v1998
  %v3111 = vsel %vm3079, %v3046, %v2000
  %v3112 = vsel %vm3079, %v3047, %v2002
  %v3113 = vsel %vm3079, %v3048, %v2004
  %v3114 = vsel %vm3079, %v3049, %v2006
  %v3115 = vsel %vm3079, %v3050, %v2008
  %v3116 = vsel %vm3079, %v3051, %v2010
  %v3117 = vsel %vm3079, %v3052, %v2012
  %v3118 = vsel %vm3079, %v3053, %v2014
  %v3119 = vsel %vm3079, %v3054, %v2016
  %v3120 = vsel %vm3079, %v3055, %v2018
  %v3121 = vsel %vm3079, %v3056, %v2020
  %v3122 = vsel %vm3079, %v3057, %v2022
  %v3123 = vsel %vm3079, %v3058, %v2024
  %v3124 = vsel %vm3079, %v3059, %v2026
  %v3125 = vsel %vm3079, %v3060, %v2028
  %v3126 = vsel %vm3079, %v3061, %v2030
  %v3127 = vsel %vm3079, %v3062, %v2032
  %v3128 = vsel %vm3079, %v3063, %v2034
  %v3129 = vsel %vm3079, %v3064, %v2036
  %v3130 = vsel %vm3079, %v3065, %v2038
  %v3131 = vsel %vm3079, %v3066, %v2040
  %v3132 = vsel %vm3079, %v3067, %v2042
  %v3133 = vsel %vm3079, %v3068, %v2044
  %v3134 = vsel %vm3079, %v3069, %v2046
  %v3135 = vsel %vm3079, %v3070, %v2048
  %v3136 = vsel %vm3079, %v3071, %v2050
  %v3137 = vsel %vm3079, %v3072, %v2052
  %v3138 = vsel %vm3079, %v3073, %v2054
  %v3139 = vsel %vm3079, %v3074, %v2056
  %v3140 = vsel %vm3079, %v3075, %v2058
  %v3141 = vsel %vm3079, %v3076, %v2060
  %v3142 = vsel %vm3079, %v3077, %v2062
  %v3143 = vsel %vm3079, %v3078, %v2064
  %vm3144 = vcmask 162816
  %v3145 = vsel %vm3144, %v3080, %v2140
  %v3146 = vsel %vm3144, %v3081, %v2142
  %v3147 = vsel %vm3144, %v3082, %v2144
  %v3148 = vsel %vm3144, %v3083, %v2146
  %v3149 = vsel %vm3144, %v3084, %v2148
  %v3150 = vsel %vm3144, %v3085, %v2150
  %v3151 = vsel %vm3144, %v3086, %v2152
  %v3152 = vsel %vm3144, %v3087, %v2154
  %v3153 = vsel %vm3144, %v3088, %v2156
  %v3154 = vsel %vm3144, %v3089, %v2158
  %v3155 = vsel %vm3144, %v3090, %v2160
  %v3156 = vsel %vm3144, %v3091, %v2162
  %v3157 = vsel %vm3144, %v3092, %v2164
  %v3158 = vsel %vm3144, %v3093, %v2166
  %v3159 = vsel %vm3144, %v3094, %v2168
  %v3160 = vsel %vm3144, %v3095, %v2170
  %v3161 = vsel %vm3144, %v3096, %v2172
  %v3162 = vsel %vm3144, %v3097, %v2174
  %v3163 = vsel %vm3144, %v3098, %v2176
  %v3164 = vsel %vm3144, %v3099, %v2178
  %v3165 = vsel %vm3144, %v3100, %v2180
  %v3166 = vsel %vm3144, %v3101, %v2182
  %v3167 = vsel %vm3144, %v3102, %v2184
  %v3168 = vsel %vm3144, %v3103, %v2186
  %v3169 = vsel %vm3144, %v3104, %v2188
  %v3170 = vsel %vm3144, %v3105, %v2190
  %v3171 = vsel %vm3144, %v3106, %v2192
  %v3172 = vsel %vm3144, %v3107, %v2194
  %v3173 = vsel %vm3144, %v3108, %v2196
  %v3174 = vsel %vm3144, %v3109, %v2198
  %v3175 = vsel %vm3144, %v3110, %v2200
  %v3176 = vsel %vm3144, %v3111, %v2202
  %v3177 = vsel %vm3144, %v3112, %v2204
  %v3178 = vsel %vm3144, %v3113, %v2206
  %v3179 = vsel %vm3144, %v3114, %v2208
  %v3180 = vsel %vm3144, %v3115, %v2210
  %v3181 = vsel %vm3144, %v3116, %v2212
  %v3182 = vsel %vm3144, %v3117, %v2214
  %v3183 = vsel %vm3144, %v3118, %v2216
  %v3184 = vsel %vm3144, %v3119, %v2218
  %v3185 = vsel %vm3144, %v3120, %v2220
  %v3186 = vsel %vm3144, %v3121, %v2222
  %v3187 = vsel %vm3144, %v3122, %v2224
  %v3188 = vsel %vm3144, %v3123, %v2226
  %v3189 = vsel %vm3144, %v3124, %v2228
  %v3190 = vsel %vm3144, %v3125, %v2230
  %v3191 = vsel %vm3144, %v3126, %v2232
  %v3192 = vsel %vm3144, %v3127, %v2234
  %v3193 = vsel %vm3144, %v3128, %v2236
  %v3194 = vsel %vm3144, %v3129, %v2238
  %v3195 = vsel %vm3144, %v3130, %v2240
  %v3196 = vsel %vm3144, %v3131, %v2242
  %v3197 = vsel %vm3144, %v3132, %v2244
  %v3198 = vsel %vm3144, %v3133, %v2246
  %v3199 = vsel %vm3144, %v3134, %v2248
  %v3200 = vsel %vm3144, %v3135, %v2250
  %v3201 = vsel %vm3144, %v3136, %v2252
  %v3202 = vsel %vm3144, %v3137, %v2254
  %v3203 = vsel %vm3144, %v3138, %v2256
  %v3204 = vsel %vm3144, %v3139, %v2258
  %v3205 = vsel %vm3144, %v3140, %v2260
  %v3206 = vsel %vm3144, %v3141, %v2262
  %v3207 = vsel %vm3144, %v3142, %v2264
  %v3208 = vsel %vm3144, %v3143, %v2266
  %vm3209 = vcmask 195584
  %v3210 = vsel %vm3209, %v3145, %v2332
  %v3211 = vsel %vm3209, %v3146, %v2334
  %v3212 = vsel %vm3209, %v3147, %v2336
  %v3213 = vsel %vm3209, %v3148, %v2338
  %v3214 = vsel %vm3209, %v3149, %v2340
  %v3215 = vsel %vm3209, %v3150, %v2342
  %v3216 = vsel %vm3209, %v3151, %v2344
  %v3217 = vsel %vm3209, %v3152, %v2346
  %v3218 = vsel %vm3209, %v3153, %v2348
  %v3219 = vsel %vm3209, %v3154, %v2350
  %v3220 = vsel %vm3209, %v3155, %v2352
  %v3221 = vsel %vm3209, %v3156, %v2354
  %v3222 = vsel %vm3209, %v3157, %v2356
  %v3223 = vsel %vm3209, %v3158, %v2358
  %v3224 = vsel %vm3209, %v3159, %v2360
  %v3225 = vsel %vm3209, %v3160, %v2362
  %v3226 = vsel %vm3209, %v3161, %v2364
  %v3227 = vsel %vm3209, %v3162, %v2366
  %v3228 = vsel %vm3209, %v3163, %v2368
  %v3229 = vsel %vm3209, %v3164, %v2370
  %v3230 = vsel %vm3209, %v3165, %v2372
  %v3231 = vsel %vm3209, %v3166, %v2374
  %v3232 = vsel %vm3209, %v3167, %v2376
  %v3233 = vsel %vm3209, %v3168, %v2378
  %v3234 = vsel %vm3209, %v3169, %v2380
  %v3235 = vsel %vm3209, %v3170, %v2382
  %v3236 = vsel %vm3209, %v3171, %v2384
  %v3237 = vsel %vm3209, %v3172, %v2386
  %v3238 = vsel %vm3209, %v3173, %v2388
  %v3239 = vsel %vm3209, %v3174, %v2390
  %v3240 = vsel %vm3209, %v3175, %v2392
  %v3241 = vsel %vm3209, %v3176, %v2394
  %v3242 = vsel %vm3209, %v3177, %v2396
  %v3243 = vsel %vm3209, %v3178, %v2398
  %v3244 = vsel %vm3209, %v3179, %v2400
  %v3245 = vsel %vm3209, %v3180, %v2402
  %v3246 = vsel %vm3209, %v3181, %v2404
  %v3247 = vsel %vm3209, %v3182, %v2406
  %v3248 = vsel %vm3209, %v3183, %v2408
  %v3249 = vsel %vm3209, %v3184, %v2410
  %v3250 = vsel %vm3209, %v3185, %v2412
  %v3251 = vsel %vm3209, %v3186, %v2414
  %v3252 = vsel %vm3209, %v3187, %v2416
  %v3253 = vsel %vm3209, %v3188, %v2418
  %v3254 = vsel %vm3209, %v3189, %v2420
  %v3255 = vsel %vm3209, %v3190, %v2422
  %v3256 = vsel %vm3209, %v3191, %v2424
  %v3257 = vsel %vm3209, %v3192, %v2426
  %v3258 = vsel %vm3209, %v3193, %v2428
  %v3259 = vsel %vm3209, %v3194, %v2430
  %v3260 = vsel %vm3209, %v3195, %v2432
  %v3261 = vsel %vm3209, %v3196, %v2434
  %v3262 = vsel %vm3209, %v3197, %v2436
  %v3263 = vsel %vm3209, %v3198, %v2438
  %v3264 = vsel %vm3209, %v3199, %v2440
  %v3265 = vsel %vm3209, %v3200, %v2442
  %v3266 = vsel %vm3209, %v3201, %v2444
  %v3267 = vsel %vm3209, %v3202, %v2446
  %v3268 = vsel %vm3209, %v3203, %v2448
  %v3269 = vsel %vm3209, %v3204, %v2450
  %v3270 = vsel %vm3209, %v3205, %v2452
  %v3271 = vsel %vm3209, %v3206, %v2454
  %v3272 = vsel %vm3209, %v3207, %v2392
  %v3273 = vsel %vm3209, %v3208, %v2394
  %vm3274 = vcmask 228352
  %v3275 = vsel %vm3274, %v3210, %v2518
  %v3276 = vsel %vm3274, %v3211, %v2520
  %v3277 = vsel %vm3274, %v3212, %v2522
  %v3278 = vsel %vm3274, %v3213, %v2524
  %v3279 = vsel %vm3274, %v3214, %v2526
  %v3280 = vsel %vm3274, %v3215, %v2528
  %v3281 = vsel %vm3274, %v3216, %v2530
  %v3282 = vsel %vm3274, %v3217, %v2532
  %v3283 = vsel %vm3274, %v3218, %v2534
  %v3284 = vsel %vm3274, %v3219, %v2536
  %v3285 = vsel %vm3274, %v3220, %v2538
  %v3286 = vsel %vm3274, %v3221, %v2540
  %v3287 = vsel %vm3274, %v3222, %v2542
  %v3288 = vsel %vm3274, %v3223, %v2544
  %v3289 = vsel %vm3274, %v3224, %v2546
  %v3290 = vsel %vm3274, %v3225, %v2548
  %v3291 = vsel %vm3274, %v3226, %v2550
  %v3292 = vsel %vm3274, %v3227, %v2552
  %v3293 = vsel %vm3274, %v3228, %v2554
  %v3294 = vsel %vm3274, %v3229, %v2556
  %v3295 = vsel %vm3274, %v3230, %v2558
  %v3296 = vsel %vm3274, %v3231, %v2560
  %v3297 = vsel %vm3274, %v3232, %v2562
  %v3298 = vsel %vm3274, %v3233, %v2564
  %v3299 = vsel %vm3274, %v3234, %v2566
  %v3300 = vsel %vm3274, %v3235, %v2568
  %v3301 = vsel %vm3274, %v3236, %v2570
  %v3302 = vsel %vm3274, %v3237, %v2572
  %v3303 = vsel %vm3274, %v3238, %v2574
  %v3304 = vsel %vm3274, %v3239, %v2576
  %v3305 = vsel %vm3274, %v3240, %v2578
  %v3306 = vsel %vm3274, %v3241, %v2580
  %v3307 = vsel %vm3274, %v3242, %v2582
  %v3308 = vsel %vm3274, %v3243, %v2584
  %v3309 = vsel %vm3274, %v3244, %v2586
  %v3310 = vsel %vm3274, %v3245, %v2588
  %v3311 = vsel %vm3274, %v3246, %v2590
  %v3312 = vsel %vm3274, %v3247, %v2592
  %v3313 = vsel %vm3274, %v3248, %v2594
  %v3314 = vsel %vm3274, %v3249, %v2596
  %v3315 = vsel %vm3274, %v3250, %v2598
  %v3316 = vsel %vm3274, %v3251, %v2600
  %v3317 = vsel %vm3274, %v3252, %v2602
  %v3318 = vsel %vm3274, %v3253, %v2604
  %v3319 = vsel %vm3274, %v3254, %v2606
  %v3320 = vsel %vm3274, %v3255, %v2608
  %v3321 = vsel %vm3274, %v3256, %v2610
  %v3322 = vsel %vm3274, %v3257, %v2612
  %v3323 = vsel %vm3274, %v3258, %v2614
  %v3324 = vsel %vm3274, %v3259, %v2616
  %v3325 = vsel %vm3274, %v3260, %v2618
  %v3326 = vsel %vm3274, %v3261, %v2620
  %v3327 = vsel %vm3274, %v3262, %v2622
  %v3328 = vsel %vm3274, %v3263, %v2624
  %v3329 = vsel %vm3274, %v3264, %v2626
  %v3330 = vsel %vm3274, %v3265, %v2628
  %v3331 = vsel %vm3274, %v3266, %v2630
  %v3332 = vsel %vm3274, %v3267, %v2632
  %v3333 = vsel %vm3274, %v3268, %v2634
  %v3334 = vsel %vm3274, %v3269, %v2636
  %v3335 = vsel %vm3274, %v3270, %v2638
  %v3336 = vsel %vm3274, %v3271, %v2640
  %v3337 = vsel %vm3274, %v3272, %v2578
  %v3338 = vsel %vm3274, %v3273, %v2580
  %vm3339 = vcmask 261120
  %v3340 = vsel %vm3339, %v3275, %v2704
  %v3341 = vsel %vm3339, %v3276, %v2706
  %v3342 = vsel %vm3339, %v3277, %v2708
  %v3343 = vsel %vm3339, %v3278, %v2710
  %v3344 = vsel %vm3339, %v3279, %v2712
  %v3345 = vsel %vm3339, %v3280, %v2714
  %v3346 = vsel %vm3339, %v3281, %v2716
  %v3347 = vsel %vm3339, %v3282, %v2718
  %v3348 = vsel %vm3339, %v3283, %v2720
  %v3349 = vsel %vm3339, %v3284, %v2722
  %v3350 = vsel %vm3339, %v3285, %v2724
  %v3351 = vsel %vm3339, %v3286, %v2726
  %v3352 = vsel %vm3339, %v3287, %v2728
  %v3353 = vsel %vm3339, %v3288, %v2730
  %v3354 = vsel %vm3339, %v3289, %v2732
  %v3355 = vsel %vm3339, %v3290, %v2734
  %v3356 = vsel %vm3339, %v3291, %v2736
  %v3357 = vsel %vm3339, %v3292, %v2738
  %v3358 = vsel %vm3339, %v3293, %v2740
  %v3359 = vsel %vm3339, %v3294, %v2742
  %v3360 = vsel %vm3339, %v3295, %v2744
  %v3361 = vsel %vm3339, %v3296, %v2746
  %v3362 = vsel %vm3339, %v3297, %v2748
  %v3363 = vsel %vm3339, %v3298, %v2750
  %v3364 = vsel %vm3339, %v3299, %v2752
  %v3365 = vsel %vm3339, %v3300, %v2754
  %v3366 = vsel %vm3339, %v3301, %v2756
  %v3367 = vsel %vm3339, %v3302, %v2758
  %v3368 = vsel %vm3339, %v3303, %v2760
  %v3369 = vsel %vm3339, %v3304, %v2762
  %v3370 = vsel %vm3339, %v3305, %v2764
  %v3371 = vsel %vm3339, %v3306, %v2766
  %v3372 = vsel %vm3339, %v3307, %v2768
  %v3373 = vsel %vm3339, %v3308, %v2770
  %v3374 = vsel %vm3339, %v3309, %v2772
  %v3375 = vsel %vm3339, %v3310, %v2774
  %v3376 = vsel %vm3339, %v3311, %v2776
  %v3377 = vsel %vm3339, %v3312, %v2778
  %v3378 = vsel %vm3339, %v3313, %v2780
  %v3379 = vsel %vm3339, %v3314, %v2782
  %v3380 = vsel %vm3339, %v3315, %v2784
  %v3381 = vsel %vm3339, %v3316, %v2786
  %v3382 = vsel %vm3339, %v3317, %v2788
  %v3383 = vsel %vm3339, %v3318, %v2790
  %v3384 = vsel %vm3339, %v3319, %v2792
  %v3385 = vsel %vm3339, %v3320, %v2794
  %v3386 = vsel %vm3339, %v3321, %v2796
  %v3387 = vsel %vm3339, %v3322, %v2798
  %v3388 = vsel %vm3339, %v3323, %v2800
  %v3389 = vsel %vm3339, %v3324, %v2802
  %v3390 = vsel %vm3339, %v3325, %v2804
  %v3391 = vsel %vm3339, %v3326, %v2806
  %v3392 = vsel %vm3339, %v3327, %v2808
  %v3393 = vsel %vm3339, %v3328, %v2810
  %v3394 = vsel %vm3339, %v3329, %v2812
  %v3395 = vsel %vm3339, %v3330, %v2814
  %v3396 = vsel %vm3339, %v3331, %v2816
  %v3397 = vsel %vm3339, %v3332, %v2818
  %v3398 = vsel %vm3339, %v3333, %v2820
  %v3399 = vsel %vm3339, %v3334, %v2822
  %v3400 = vsel %vm3339, %v3335, %v2824
  %v3401 = vsel %vm3339, %v3336, %v2826
  %v3402 = vsel %vm3339, %v3337, %v2764
  %v3403 = vsel %vm3339, %v3338, %v2766
  %v3405 = vlaneseq
  %v3406 = vshrl.u32 %v3405, 7
  %v3407 = vsub.s32 0, %v3406
  %v3408 = vrot.slane %v658, %v3407
  %vm3410 = vcmask 293888
  %v3412 = vsel %vm3410, %v3340, 0
  %v3415 = vsel %vm3410, %v3341, 0
  %v3418 = vsel %vm3410, %v3342, 0
  %v3421 = vsel %vm3410, %v3343, 0
  %v3424 = vsel %vm3410, %v3344, 0
  %v3427 = vsel %vm3410, %v3345, 0
  %v3430 = vsel %vm3410, %v3346, 0
  %v3433 = vsel %vm3410, %v3347, 0
  %v3436 = vsel %vm3410, %v3348, 0
  %v3439 = vsel %vm3410, %v3349, 0
  %v3442 = vsel %vm3410, %v3350, 0
  %v3445 = vsel %vm3410, %v3351, 0
  %v3448 = vsel %vm3410, %v3352, 0
  %v3451 = vsel %vm3410, %v3353, 0
  %v3454 = vsel %vm3410, %v3354, 0
  %v3457 = vsel %vm3410, %v3355, 0
  %v3460 = vsel %vm3410, %v3356, 0
  %v3463 = vsel %vm3410, %v3357, 0
  %v3466 = vsel %vm3410, %v3358, 0
  %v3469 = vsel %vm3410, %v3359, 0
  %v3472 = vsel %vm3410, %v3360, 0
  %v3475 = vsel %vm3410, %v3361, 0
  %v3478 = vsel %vm3410, %v3362, 0
  %v3481 = vsel %vm3410, %v3363, 0
  %v3484 = vsel %vm3410, %v3364, 0
  %v3487 = vsel %vm3410, %v3365, 0
  %v3490 = vsel %vm3410, %v3366, 0
  %v3493 = vsel %vm3410, %v3367, 0
  %v3496 = vsel %vm3410, %v3368, 0
  %v3499 = vsel %vm3410, %v3369, 0
  %v3502 = vsel %vm3410, %v3370, 0
  %v3505 = vsel %vm3410, %v3371, 0
  %v3508 = vsel %vm3410, %v3372, 0
  %v3511 = vsel %vm3410, %v3373, 0
  %v3514 = vsel %vm3410, %v3374, 0
  %v3517 = vsel %vm3410, %v3375, 0
  %v3520 = vsel %vm3410, %v3376, 0
  %v3523 = vsel %vm3410, %v3377, 0
  %v3526 = vsel %vm3410, %v3378, 0
  %v3529 = vsel %vm3410, %v3379, 0
  %v3532 = vsel %vm3410, %v3380, 0
  %v3535 = vsel %vm3410, %v3381, 0
  %v3538 = vsel %vm3410, %v3382, 0
  %v3541 = vsel %vm3410, %v3383, 0
  %v3544 = vsel %vm3410, %v3384, 0
  %v3547 = vsel %vm3410, %v3385, 0
  %v3550 = vsel %vm3410, %v3386, 0
  %v3553 = vsel %vm3410, %v3387, 0
  %v3556 = vsel %vm3410, %v3388, 0
  %v3559 = vsel %vm3410, %v3389, 0
  %v3562 = vsel %vm3410, %v3390, 0
  %v3565 = vsel %vm3410, %v3391, 0
  %v3568 = vsel %vm3410, %v3392, 0
  %v3571 = vsel %vm3410, %v3393, 0
  %v3574 = vsel %vm3410, %v3394, 0
  %v3577 = vsel %vm3410, %v3395, 0
  %v3580 = vsel %vm3410, %v3396, 0
  %v3583 = vsel %vm3410, %v3397, 0
  %v3586 = vsel %vm3410, %v3398, 0
  %v3589 = vsel %vm3410, %v3399, 0
  %v3592 = vsel %vm3410, %v3400, 0
  %v3595 = vsel %vm3410, %v3401, 0
  %v3598 = vsel %vm3410, %v3402, 0
  %v3601 = vsel %vm3410, %v3403, 0
  %vm3603 = vcmask 1043456
  %v3605 = vsel %vm3603, %v657, 0
  %3607 = vmatprep.subr.mxu0 0.0
  %3608 = vmatpush1.msra.mxu0 %v653
  %3609 = vmatprep.subr.mxu0 0.0
  %3610 = vmatpush1.msra.mxu0 %v654
  %3611 = vmatprep.subr.mxu0 0.0
  %3612 = vmatpush1.msra.mxu0 %v655
  %3613 = vmatprep.subr.mxu0 0.0
  %3614 = vmatpush1.msra.mxu0 %v656
  %3615 = vmatprep.subr.mxu0 0.0
  %3616 = vmatpush1.msra.mxu0 %v3605
  %3617 = vmatprep.subr.mxu0 0.0
  %3618 = vmatpush1.msra.mxu0 0.0
  %3619 = vmatprep.subr.mxu0 0.0
  %3620 = vmatpush1.msra.mxu0 0.0
  %3621 = vmatprep.subr.mxu0 0.0
  %3622 = vmatpush1.msra.mxu0 0.0
  %3623 = vmatprep.subr.mxu0 0.0
  %3624 = vmatpush1.msra.mxu0 0.0
  %3625 = vmatprep.subr.mxu0 0.0
  %3626 = vmatpush1.msra.mxu0 0.0
  %3627 = vmatprep.subr.mxu0 0.0
  %3628 = vmatpush1.msra.mxu0 0.0
  %3629 = vmatprep.subr.mxu0 0.0
  %3630 = vmatpush1.msra.mxu0 0.0
  %3631 = vmatprep.subr.mxu0 0.0
  %3632 = vmatpush1.msra.mxu0 0.0
  %3633 = vmatprep.subr.mxu0 0.0
  %3634 = vmatpush1.msra.mxu0 0.0
  %3635 = vmatprep.subr.mxu0 0.0
  %3636 = vmatpush1.msra.mxu0 0.0
  %3637 = vmatprep.subr.mxu0 0.0
  %3638 = vmatpush1.msra.mxu0 0.0
  %3639 = vmatprep.subr.mxu0 0.0
  %3640 = vmatpush1.msra.mxu0 0.0
  %3641 = vmatprep.subr.mxu0 0.0
  %3642 = vmatpush1.msra.mxu0 0.0
  %3643 = vmatprep.subr.mxu0 0.0
  %3644 = vmatpush1.msra.mxu0 0.0
  %3645 = vmatprep.subr.mxu0 0.0
  %3646 = vmatpush1.msra.mxu0 0.0
  %3647 = vmatprep.subr.mxu0 0.0
  %3648 = vmatpush1.msra.mxu0 0.0
  %3649 = vmatprep.subr.mxu0 0.0
  %3650 = vmatpush1.msra.mxu0 0.0
  %3651 = vmatprep.subr.mxu0 0.0
  %3652 = vmatpush1.msra.mxu0 0.0
  %3653 = vmatprep.subr.mxu0 0.0
  %3654 = vmatpush1.msra.mxu0 0.0
  %3655 = vmatprep.subr.mxu0 0.0
  %3656 = vmatpush1.msra.mxu0 0.0
  %3657 = vmatprep.subr.mxu0 0.0
  %3658 = vmatpush1.msra.mxu0 0.0
  %3659 = vmatprep.subr.mxu0 0.0
  %3660 = vmatpush1.msra.mxu0 0.0
  %3661 = vmatprep.subr.mxu0 0.0
  %3662 = vmatpush1.msra.mxu0 0.0
  %3663 = vmatprep.subr.mxu0 0.0
  %3664 = vmatpush1.msra.mxu0 0.0
  %3665 = vmatprep.subr.mxu0 0.0
  %3666 = vmatpush1.msra.mxu0 0.0
  %3667 = vmatprep.subr.mxu0 0.0
  %3668 = vmatpush1.msra.mxu0 0.0
  %3669 = vmatprep.subr.mxu0 0.0
  %3670 = vmatpush1.msra.mxu0 0.0
  %3671 = vmatprep.mubr.f32.mxu0 0.0
  %3672 = vmatmul.mubr.f32.gmra.mrb[0].mxu0 %v3412
  %v3673 = vpop.f32.mrb[0].mxu0
  %v3674 = vadd.f32 %v3408, %v3673
  %v3675 = vpop.f32.mrb[0].mxu0
  %3676 = vmatprep.mubr.f32.mxu0 0.0
  %3677 = vmatmul.mubr.f32.gmra.mrb[0].mxu0 %v3415
  %v3678 = vpop.f32.mrb[0].mxu0
  %v3679 = vadd.f32 %v3408, %v3678
  %v3680 = vpop.f32.mrb[0].mxu0
  %3681 = vmatprep.mubr.f32.mxu0 0.0
  %3682 = vmatmul.mubr.f32.gmra.mrb[0].mxu0 %v3418
  %v3683 = vpop.f32.mrb[0].mxu0
  %v3684 = vadd.f32 %v3408, %v3683
  %v3685 = vpop.f32.mrb[0].mxu0
  %3686 = vmatprep.mubr.f32.mxu0 0.0
  %3687 = vmatmul.mubr.f32.gmra.mrb[0].mxu0 %v3421
  %v3688 = vpop.f32.mrb[0].mxu0
  %v3689 = vadd.f32 %v3408, %v3688
  %v3690 = vpop.f32.mrb[0].mxu0
  %3691 = vmatprep.mubr.f32.mxu0 0.0
  %3692 = vmatmul.mubr.f32.gmra.mrb[0].mxu0 %v3424
  %v3693 = vpop.f32.mrb[0].mxu0
  %v3694 = vadd.f32 %v3408, %v3693
  %v3695 = vpop.f32.mrb[0].mxu0
  %3696 = vmatprep.mubr.f32.mxu0 0.0
  %3697 = vmatmul.mubr.f32.gmra.mrb[0].mxu0 %v3427
  %v3698 = vpop.f32.mrb[0].mxu0
  %v3699 = vadd.f32 %v3408, %v3698
  %v3700 = vpop.f32.mrb[0].mxu0
  %3701 = vmatprep.mubr.f32.mxu0 0.0
  %3702 = vmatmul.mubr.f32.gmra.mrb[0].mxu0 %v3430
  %v3703 = vpop.f32.mrb[0].mxu0
  %v3704 = vadd.f32 %v3408, %v3703
  %v3705 = vpop.f32.mrb[0].mxu0
  %3706 = vmatprep.mubr.f32.mxu0 0.0
  %3707 = vmatmul.mubr.f32.gmra.mrb[0].mxu0 %v3433
  %v3708 = vpop.f32.mrb[0].mxu0
  %v3709 = vadd.f32 %v3408, %v3708
  %v3710 = vpop.f32.mrb[0].mxu0
  %3711 = vmatprep.mubr.f32.mxu0 0.0
  %3712 = vmatmul.mubr.f32.gmra.mrb[0].mxu0 %v3436
  %v3713 = vpop.f32.mrb[0].mxu0
  %v3714 = vadd.f32 %v3408, %v3713
  %v3715 = vpop.f32.mrb[0].mxu0
  %3716 = vmatprep.mubr.f32.mxu0 0.0
  %3717 = vmatmul.mubr.f32.gmra.mrb[0].mxu0 %v3439
  %v3718 = vpop.f32.mrb[0].mxu0
  %v3719 = vadd.f32 %v3408, %v3718
  %v3720 = vpop.f32.mrb[0].mxu0
  %3721 = vmatprep.mubr.f32.mxu0 0.0
  %3722 = vmatmul.mubr.f32.gmra.mrb[0].mxu0 %v3442
  %v3723 = vpop.f32.mrb[0].mxu0
  %v3724 = vadd.f32 %v3408, %v3723
  %v3725 = vpop.f32.mrb[0].mxu0
  %3726 = vmatprep.mubr.f32.mxu0 0.0
  %3727 = vmatmul.mubr.f32.gmra.mrb[0].mxu0 %v3445
  %v3728 = vpop.f32.mrb[0].mxu0
  %v3729 = vadd.f32 %v3408, %v3728
  %v3730 = vpop.f32.mrb[0].mxu0
  %3731 = vmatprep.mubr.f32.mxu0 0.0
  %3732 = vmatmul.mubr.f32.gmra.mrb[0].mxu0 %v3448
  %v3733 = vpop.f32.mrb[0].mxu0
  %v3734 = vadd.f32 %v3408, %v3733
  %v3735 = vpop.f32.mrb[0].mxu0
  %3736 = vmatprep.mubr.f32.mxu0 0.0
  %3737 = vmatmul.mubr.f32.gmra.mrb[0].mxu0 %v3451
  %v3738 = vpop.f32.mrb[0].mxu0
  %v3739 = vadd.f32 %v3408, %v3738
  %v3740 = vpop.f32.mrb[0].mxu0
  %3741 = vmatprep.mubr.f32.mxu0 0.0
  %3742 = vmatmul.mubr.f32.gmra.mrb[0].mxu0 %v3454
  %v3743 = vpop.f32.mrb[0].mxu0
  %v3744 = vadd.f32 %v3408, %v3743
  %v3745 = vpop.f32.mrb[0].mxu0
  %3746 = vmatprep.mubr.f32.mxu0 0.0
  %3747 = vmatmul.mubr.f32.gmra.mrb[0].mxu0 %v3457
  %v3748 = vpop.f32.mrb[0].mxu0
  %v3749 = vadd.f32 %v3408, %v3748
  %v3750 = vpop.f32.mrb[0].mxu0
  %3751 = vmatprep.mubr.f32.mxu0 0.0
  %3752 = vmatmul.mubr.f32.gmra.mrb[0].mxu0 %v3460
  %v3753 = vpop.f32.mrb[0].mxu0
  %v3754 = vadd.f32 %v3408, %v3753
  %v3755 = vpop.f32.mrb[0].mxu0
  %3756 = vmatprep.mubr.f32.mxu0 0.0
  %3757 = vmatmul.mubr.f32.gmra.mrb[0].mxu0 %v3463
  %v3758 = vpop.f32.mrb[0].mxu0
  %v3759 = vadd.f32 %v3408, %v3758
  %v3760 = vpop.f32.mrb[0].mxu0
  %3761 = vmatprep.mubr.f32.mxu0 0.0
  %3762 = vmatmul.mubr.f32.gmra.mrb[0].mxu0 %v3466
  %v3763 = vpop.f32.mrb[0].mxu0
  %v3764 = vadd.f32 %v3408, %v3763
  %v3765 = vpop.f32.mrb[0].mxu0
  %3766 = vmatprep.mubr.f32.mxu0 0.0
  %3767 = vmatmul.mubr.f32.gmra.mrb[0].mxu0 %v3469
  %v3768 = vpop.f32.mrb[0].mxu0
  %v3769 = vadd.f32 %v3408, %v3768
  %v3770 = vpop.f32.mrb[0].mxu0
  %3771 = vmatprep.mubr.f32.mxu0 0.0
  %3772 = vmatmul.mubr.f32.gmra.mrb[0].mxu0 %v3472
  %v3773 = vpop.f32.mrb[0].mxu0
  %v3774 = vadd.f32 %v3408, %v3773
  %v3775 = vpop.f32.mrb[0].mxu0
  %3776 = vmatprep.mubr.f32.mxu0 0.0
  %3777 = vmatmul.mubr.f32.gmra.mrb[0].mxu0 %v3475
  %v3778 = vpop.f32.mrb[0].mxu0
  %v3779 = vadd.f32 %v3408, %v3778
  %v3780 = vpop.f32.mrb[0].mxu0
  %3781 = vmatprep.mubr.f32.mxu0 0.0
  %3782 = vmatmul.mubr.f32.gmra.mrb[0].mxu0 %v3478
  %v3783 = vpop.f32.mrb[0].mxu0
  %v3784 = vadd.f32 %v3408, %v3783
  %v3785 = vpop.f32.mrb[0].mxu0
  %3786 = vmatprep.mubr.f32.mxu0 0.0
  %3787 = vmatmul.mubr.f32.gmra.mrb[0].mxu0 %v3481
  %v3788 = vpop.f32.mrb[0].mxu0
  %v3789 = vadd.f32 %v3408, %v3788
  %v3790 = vpop.f32.mrb[0].mxu0
  %3791 = vmatprep.mubr.f32.mxu0 0.0
  %3792 = vmatmul.mubr.f32.gmra.mrb[0].mxu0 %v3484
  %v3793 = vpop.f32.mrb[0].mxu0
  %v3794 = vadd.f32 %v3408, %v3793
  %v3795 = vpop.f32.mrb[0].mxu0
  %3796 = vmatprep.mubr.f32.mxu0 0.0
  %3797 = vmatmul.mubr.f32.gmra.mrb[0].mxu0 %v3487
  %v3798 = vpop.f32.mrb[0].mxu0
  %v3799 = vadd.f32 %v3408, %v3798
  %v3800 = vpop.f32.mrb[0].mxu0
  %3801 = vmatprep.mubr.f32.mxu0 0.0
  %3802 = vmatmul.mubr.f32.gmra.mrb[0].mxu0 %v3490
  %v3803 = vpop.f32.mrb[0].mxu0
  %v3804 = vadd.f32 %v3408, %v3803
  %v3805 = vpop.f32.mrb[0].mxu0
  %3806 = vmatprep.mubr.f32.mxu0 0.0
  %3807 = vmatmul.mubr.f32.gmra.mrb[0].mxu0 %v3493
  %v3808 = vpop.f32.mrb[0].mxu0
  %v3809 = vadd.f32 %v3408, %v3808
  %v3810 = vpop.f32.mrb[0].mxu0
  %3811 = vmatprep.mubr.f32.mxu0 0.0
  %3812 = vmatmul.mubr.f32.gmra.mrb[0].mxu0 %v3496
  %v3813 = vpop.f32.mrb[0].mxu0
  %v3814 = vadd.f32 %v3408, %v3813
  %v3815 = vpop.f32.mrb[0].mxu0
  %3816 = vmatprep.mubr.f32.mxu0 0.0
  %3817 = vmatmul.mubr.f32.gmra.mrb[0].mxu0 %v3499
  %v3818 = vpop.f32.mrb[0].mxu0
  %v3819 = vadd.f32 %v3408, %v3818
  %v3820 = vpop.f32.mrb[0].mxu0
  %3821 = vmatprep.mubr.f32.mxu0 0.0
  %3822 = vmatmul.mubr.f32.gmra.mrb[0].mxu0 %v3502
  %v3823 = vpop.f32.mrb[0].mxu0
  %v3824 = vadd.f32 %v3408, %v3823
  %v3825 = vpop.f32.mrb[0].mxu0
  %3826 = vmatprep.mubr.f32.mxu0 0.0
  %3827 = vmatmul.mubr.f32.gmra.mrb[0].mxu0 %v3505
  %v3828 = vpop.f32.mrb[0].mxu0
  %v3829 = vadd.f32 %v3408, %v3828
  %v3830 = vpop.f32.mrb[0].mxu0
  %3831 = vmatprep.mubr.f32.mxu0 0.0
  %3832 = vmatmul.mubr.f32.gmra.mrb[0].mxu0 %v3508
  %v3833 = vpop.f32.mrb[0].mxu0
  %v3834 = vadd.f32 %v3408, %v3833
  %v3835 = vpop.f32.mrb[0].mxu0
  %3836 = vmatprep.mubr.f32.mxu0 0.0
  %3837 = vmatmul.mubr.f32.gmra.mrb[0].mxu0 %v3511
  %v3838 = vpop.f32.mrb[0].mxu0
  %v3839 = vadd.f32 %v3408, %v3838
  %v3840 = vpop.f32.mrb[0].mxu0
  %3841 = vmatprep.mubr.f32.mxu0 0.0
  %3842 = vmatmul.mubr.f32.gmra.mrb[0].mxu0 %v3514
  %v3843 = vpop.f32.mrb[0].mxu0
  %v3844 = vadd.f32 %v3408, %v3843
  %v3845 = vpop.f32.mrb[0].mxu0
  %3846 = vmatprep.mubr.f32.mxu0 0.0
  %3847 = vmatmul.mubr.f32.gmra.mrb[0].mxu0 %v3517
  %v3848 = vpop.f32.mrb[0].mxu0
  %v3849 = vadd.f32 %v3408, %v3848
  %v3850 = vpop.f32.mrb[0].mxu0
  %3851 = vmatprep.mubr.f32.mxu0 0.0
  %3852 = vmatmul.mubr.f32.gmra.mrb[0].mxu0 %v3520
  %v3853 = vpop.f32.mrb[0].mxu0
  %v3854 = vadd.f32 %v3408, %v3853
  %v3855 = vpop.f32.mrb[0].mxu0
  %3856 = vmatprep.mubr.f32.mxu0 0.0
  %3857 = vmatmul.mubr.f32.gmra.mrb[0].mxu0 %v3523
  %v3858 = vpop.f32.mrb[0].mxu0
  %v3859 = vadd.f32 %v3408, %v3858
  %v3860 = vpop.f32.mrb[0].mxu0
  %3861 = vmatprep.mubr.f32.mxu0 0.0
  %3862 = vmatmul.mubr.f32.gmra.mrb[0].mxu0 %v3526
  %v3863 = vpop.f32.mrb[0].mxu0
  %v3864 = vadd.f32 %v3408, %v3863
  %v3865 = vpop.f32.mrb[0].mxu0
  %3866 = vmatprep.mubr.f32.mxu0 0.0
  %3867 = vmatmul.mubr.f32.gmra.mrb[0].mxu0 %v3529
  %v3868 = vpop.f32.mrb[0].mxu0
  %v3869 = vadd.f32 %v3408, %v3868
  %v3870 = vpop.f32.mrb[0].mxu0
  %3871 = vmatprep.mubr.f32.mxu0 0.0
  %3872 = vmatmul.mubr.f32.gmra.mrb[0].mxu0 %v3532
  %v3873 = vpop.f32.mrb[0].mxu0
  %v3874 = vadd.f32 %v3408, %v3873
  %v3875 = vpop.f32.mrb[0].mxu0
  %3876 = vmatprep.mubr.f32.mxu0 0.0
  %3877 = vmatmul.mubr.f32.gmra.mrb[0].mxu0 %v3535
  %v3878 = vpop.f32.mrb[0].mxu0
  %v3879 = vadd.f32 %v3408, %v3878
  %v3880 = vpop.f32.mrb[0].mxu0
  %3881 = vmatprep.mubr.f32.mxu0 0.0
  %3882 = vmatmul.mubr.f32.gmra.mrb[0].mxu0 %v3538
  %v3883 = vpop.f32.mrb[0].mxu0
  %v3884 = vadd.f32 %v3408, %v3883
  %v3885 = vpop.f32.mrb[0].mxu0
  %3886 = vmatprep.mubr.f32.mxu0 0.0
  %3887 = vmatmul.mubr.f32.gmra.mrb[0].mxu0 %v3541
  %v3888 = vpop.f32.mrb[0].mxu0
  %v3889 = vadd.f32 %v3408, %v3888
  %v3890 = vpop.f32.mrb[0].mxu0
  %3891 = vmatprep.mubr.f32.mxu0 0.0
  %3892 = vmatmul.mubr.f32.gmra.mrb[0].mxu0 %v3544
  %v3893 = vpop.f32.mrb[0].mxu0
  %v3894 = vadd.f32 %v3408, %v3893
  %v3895 = vpop.f32.mrb[0].mxu0
  %3896 = vmatprep.mubr.f32.mxu0 0.0
  %3897 = vmatmul.mubr.f32.gmra.mrb[0].mxu0 %v3547
  %v3898 = vpop.f32.mrb[0].mxu0
  %v3899 = vadd.f32 %v3408, %v3898
  %v3900 = vpop.f32.mrb[0].mxu0
  %3901 = vmatprep.mubr.f32.mxu0 0.0
  %3902 = vmatmul.mubr.f32.gmra.mrb[0].mxu0 %v3550
  %v3903 = vpop.f32.mrb[0].mxu0
  %v3904 = vadd.f32 %v3408, %v3903
  %v3905 = vpop.f32.mrb[0].mxu0
  %3906 = vmatprep.mubr.f32.mxu0 0.0
  %3907 = vmatmul.mubr.f32.gmra.mrb[0].mxu0 %v3553
  %v3908 = vpop.f32.mrb[0].mxu0
  %v3909 = vadd.f32 %v3408, %v3908
  %v3910 = vpop.f32.mrb[0].mxu0
  %3911 = vmatprep.mubr.f32.mxu0 0.0
  %3912 = vmatmul.mubr.f32.gmra.mrb[0].mxu0 %v3556
  %v3913 = vpop.f32.mrb[0].mxu0
  %v3914 = vadd.f32 %v3408, %v3913
  %v3915 = vpop.f32.mrb[0].mxu0
  %3916 = vmatprep.mubr.f32.mxu0 0.0
  %3917 = vmatmul.mubr.f32.gmra.mrb[0].mxu0 %v3559
  %v3918 = vpop.f32.mrb[0].mxu0
  %v3919 = vadd.f32 %v3408, %v3918
  %v3920 = vpop.f32.mrb[0].mxu0
  %3921 = vmatprep.mubr.f32.mxu0 0.0
  %3922 = vmatmul.mubr.f32.gmra.mrb[0].mxu0 %v3562
  %v3923 = vpop.f32.mrb[0].mxu0
  %v3924 = vadd.f32 %v3408, %v3923
  %v3925 = vpop.f32.mrb[0].mxu0
  %3926 = vmatprep.mubr.f32.mxu0 0.0
  %3927 = vmatmul.mubr.f32.gmra.mrb[0].mxu0 %v3565
  %v3928 = vpop.f32.mrb[0].mxu0
  %v3929 = vadd.f32 %v3408, %v3928
  %v3930 = vpop.f32.mrb[0].mxu0
  %3931 = vmatprep.mubr.f32.mxu0 0.0
  %3932 = vmatmul.mubr.f32.gmra.mrb[0].mxu0 %v3568
  %v3933 = vpop.f32.mrb[0].mxu0
  %v3934 = vadd.f32 %v3408, %v3933
  %v3935 = vpop.f32.mrb[0].mxu0
  %3936 = vmatprep.mubr.f32.mxu0 0.0
  %3937 = vmatmul.mubr.f32.gmra.mrb[0].mxu0 %v3571
  %v3938 = vpop.f32.mrb[0].mxu0
  %v3939 = vadd.f32 %v3408, %v3938
  %v3940 = vpop.f32.mrb[0].mxu0
  %3941 = vmatprep.mubr.f32.mxu0 0.0
  %3942 = vmatmul.mubr.f32.gmra.mrb[0].mxu0 %v3574
  %v3943 = vpop.f32.mrb[0].mxu0
  %v3944 = vadd.f32 %v3408, %v3943
  %v3945 = vpop.f32.mrb[0].mxu0
  %3946 = vmatprep.mubr.f32.mxu0 0.0
  %3947 = vmatmul.mubr.f32.gmra.mrb[0].mxu0 %v3577
  %v3948 = vpop.f32.mrb[0].mxu0
  %v3949 = vadd.f32 %v3408, %v3948
  %v3950 = vpop.f32.mrb[0].mxu0
  %3951 = vmatprep.mubr.f32.mxu0 0.0
  %3952 = vmatmul.mubr.f32.gmra.mrb[0].mxu0 %v3580
  %v3953 = vpop.f32.mrb[0].mxu0
  %v3954 = vadd.f32 %v3408, %v3953
  %v3955 = vpop.f32.mrb[0].mxu0
  %3956 = vmatprep.mubr.f32.mxu0 0.0
  %3957 = vmatmul.mubr.f32.gmra.mrb[0].mxu0 %v3583
  %v3958 = vpop.f32.mrb[0].mxu0
  %v3959 = vadd.f32 %v3408, %v3958
  %v3960 = vpop.f32.mrb[0].mxu0
  %3961 = vmatprep.mubr.f32.mxu0 0.0
  %3962 = vmatmul.mubr.f32.gmra.mrb[0].mxu0 %v3586
  %v3963 = vpop.f32.mrb[0].mxu0
  %v3964 = vadd.f32 %v3408, %v3963
  %v3965 = vpop.f32.mrb[0].mxu0
  %3966 = vmatprep.mubr.f32.mxu0 0.0
  %3967 = vmatmul.mubr.f32.gmra.mrb[0].mxu0 %v3589
  %v3968 = vpop.f32.mrb[0].mxu0
  %v3969 = vadd.f32 %v3408, %v3968
  %v3970 = vpop.f32.mrb[0].mxu0
  %3971 = vmatprep.mubr.f32.mxu0 0.0
  %3972 = vmatmul.mubr.f32.gmra.mrb[0].mxu0 %v3592
  %v3973 = vpop.f32.mrb[0].mxu0
  %v3974 = vadd.f32 %v3408, %v3973
  %v3975 = vpop.f32.mrb[0].mxu0
  %3976 = vmatprep.mubr.f32.mxu0 0.0
  %3977 = vmatmul.mubr.f32.gmra.mrb[0].mxu0 %v3595
  %v3978 = vpop.f32.mrb[0].mxu0
  %v3979 = vadd.f32 %v3408, %v3978
  %v3980 = vpop.f32.mrb[0].mxu0
  %3981 = vmatprep.mubr.f32.mxu0 0.0
  %3982 = vmatmul.mubr.f32.gmra.mrb[0].mxu0 %v3598
  %v3983 = vpop.f32.mrb[0].mxu0
  %v3984 = vadd.f32 %v3408, %v3983
  %v3985 = vpop.f32.mrb[0].mxu0
  %3986 = vmatprep.mubr.f32.mxu0 0.0
  %3987 = vmatmul.mubr.f32.gmra.mrb[0].mxu0 %v3601
  %v3988 = vpop.f32.mrb[0].mxu0
  %v3989 = vadd.f32 %v3408, %v3988
  %v3990 = vpop.f32.mrb[0].mxu0
  %3991 = vdwg.mxu0
  %v3992 = vmax.f32 %v3674, 0.0
  %v3993 = vmax.f32 %v3679, 0.0
  %v3994 = vmax.f32 %v3684, 0.0
  %v3995 = vmax.f32 %v3689, 0.0
  %v3996 = vmax.f32 %v3694, 0.0
  %v3997 = vmax.f32 %v3699, 0.0
  %v3998 = vmax.f32 %v3704, 0.0
  %v3999 = vmax.f32 %v3709, 0.0
  %v4000 = vmax.f32 %v3714, 0.0
  %v4001 = vmax.f32 %v3719, 0.0
  %v4002 = vmax.f32 %v3724, 0.0
  %v4003 = vmax.f32 %v3729, 0.0
  %v4004 = vmax.f32 %v3734, 0.0
  %v4005 = vmax.f32 %v3739, 0.0
  %v4006 = vmax.f32 %v3744, 0.0
  %v4007 = vmax.f32 %v3749, 0.0
  %v4008 = vmax.f32 %v3754, 0.0
  %v4009 = vmax.f32 %v3759, 0.0
  %v4010 = vmax.f32 %v3764, 0.0
  %v4011 = vmax.f32 %v3769, 0.0
  %v4012 = vmax.f32 %v3774, 0.0
  %v4013 = vmax.f32 %v3779, 0.0
  %v4014 = vmax.f32 %v3784, 0.0
  %v4015 = vmax.f32 %v3789, 0.0
  %v4016 = vmax.f32 %v3794, 0.0
  %v4017 = vmax.f32 %v3799, 0.0
  %v4018 = vmax.f32 %v3804, 0.0
  %v4019 = vmax.f32 %v3809, 0.0
  %v4020 = vmax.f32 %v3814, 0.0
  %v4021 = vmax.f32 %v3819, 0.0
  %v4022 = vmax.f32 %v3824, 0.0
  %v4023 = vmax.f32 %v3829, 0.0
  %v4024 = vmax.f32 %v3834, 0.0
  %v4025 = vmax.f32 %v3839, 0.0
  %v4026 = vmax.f32 %v3844, 0.0
  %v4027 = vmax.f32 %v3849, 0.0
  %v4028 = vmax.f32 %v3854, 0.0
  %v4029 = vmax.f32 %v3859, 0.0
  %v4030 = vmax.f32 %v3864, 0.0
  %v4031 = vmax.f32 %v3869, 0.0
  %v4032 = vmax.f32 %v3874, 0.0
  %v4033 = vmax.f32 %v3879, 0.0
  %v4034 = vmax.f32 %v3884, 0.0
  %v4035 = vmax.f32 %v3889, 0.0
  %v4036 = vmax.f32 %v3894, 0.0
  %v4037 = vmax.f32 %v3899, 0.0
  %v4038 = vmax.f32 %v3904, 0.0
  %v4039 = vmax.f32 %v3909, 0.0
  %v4040 = vmax.f32 %v3914, 0.0
  %v4041 = vmax.f32 %v3919, 0.0
  %v4042 = vmax.f32 %v3924, 0.0
  %v4043 = vmax.f32 %v3929, 0.0
  %v4044 = vmax.f32 %v3934, 0.0
  %v4045 = vmax.f32 %v3939, 0.0
  %v4046 = vmax.f32 %v3944, 0.0
  %v4047 = vmax.f32 %v3949, 0.0
  %v4048 = vmax.f32 %v3954, 0.0
  %v4049 = vmax.f32 %v3959, 0.0
  %v4050 = vmax.f32 %v3964, 0.0
  %v4051 = vmax.f32 %v3969, 0.0
  %v4052 = vmax.f32 %v3974, 0.0
  %v4053 = vmax.f32 %v3979, 0.0
  %v4054 = vmax.f32 %v3984, 0.0
  %v4055 = vmax.f32 %v3989, 0.0
  %v4056 = vld [vmem:[%s5] sm:$0x1]
  %v4057 = vld [vmem:[%s6] sm:$0x1]
  %v4058 = vsel %vm3079, %v3992, 0.0
  %v4059 = vsel %vm3079, %v3993, 0.0
  %v4060 = vadd.f32 %v4058, %v4059
  %v4061 = vsel %vm3079, %v3994, 0.0
  %v4062 = vadd.f32 %v4060, %v4061
  %v4063 = vsel %vm3079, %v3995, 0.0
  %v4064 = vadd.f32 %v4062, %v4063
  %v4065 = vsel %vm3079, %v3996, 0.0
  %v4066 = vadd.f32 %v4064, %v4065
  %v4067 = vsel %vm3079, %v3997, 0.0
  %v4068 = vadd.f32 %v4066, %v4067
  %v4069 = vsel %vm3079, %v3998, 0.0
  %v4070 = vadd.f32 %v4068, %v4069
  %v4071 = vsel %vm3079, %v3999, 0.0
  %v4072 = vadd.f32 %v4070, %v4071
  %v4073 = vsel %vm3079, %v4000, 0.0
  %v4074 = vadd.f32 %v4072, %v4073
  %v4075 = vsel %vm3079, %v4001, 0.0
  %v4076 = vadd.f32 %v4074, %v4075
  %v4077 = vsel %vm3079, %v4002, 0.0
  %v4078 = vadd.f32 %v4076, %v4077
  %v4079 = vsel %vm3079, %v4003, 0.0
  %v4080 = vadd.f32 %v4078, %v4079
  %v4081 = vsel %vm3079, %v4004, 0.0
  %v4082 = vadd.f32 %v4080, %v4081
  %v4083 = vsel %vm3079, %v4005, 0.0
  %v4084 = vadd.f32 %v4082, %v4083
  %v4085 = vsel %vm3079, %v4006, 0.0
  %v4086 = vadd.f32 %v4084, %v4085
  %v4087 = vsel %vm3079, %v4007, 0.0
  %v4088 = vadd.f32 %v4086, %v4087
  %v4089 = vsel %vm3079, %v4008, 0.0
  %v4090 = vadd.f32 %v4088, %v4089
  %v4091 = vsel %vm3079, %v4009, 0.0
  %v4092 = vadd.f32 %v4090, %v4091
  %v4093 = vsel %vm3079, %v4010, 0.0
  %v4094 = vadd.f32 %v4092, %v4093
  %v4095 = vsel %vm3079, %v4011, 0.0
  %v4096 = vadd.f32 %v4094, %v4095
  %v4097 = vsel %vm3079, %v4012, 0.0
  %v4098 = vadd.f32 %v4096, %v4097
  %v4099 = vsel %vm3079, %v4013, 0.0
  %v4100 = vadd.f32 %v4098, %v4099
  %v4101 = vsel %vm3079, %v4014, 0.0
  %v4102 = vadd.f32 %v4100, %v4101
  %v4103 = vsel %vm3079, %v4015, 0.0
  %v4104 = vadd.f32 %v4102, %v4103
  %v4105 = vsel %vm3079, %v4016, 0.0
  %v4106 = vadd.f32 %v4104, %v4105
  %v4107 = vsel %vm3079, %v4017, 0.0
  %v4108 = vadd.f32 %v4106, %v4107
  %v4109 = vsel %vm3079, %v4018, 0.0
  %v4110 = vadd.f32 %v4108, %v4109
  %v4111 = vsel %vm3079, %v4019, 0.0
  %v4112 = vadd.f32 %v4110, %v4111
  %v4113 = vsel %vm3079, %v4020, 0.0
  %v4114 = vadd.f32 %v4112, %v4113
  %v4115 = vsel %vm3079, %v4021, 0.0
  %v4116 = vadd.f32 %v4114, %v4115
  %v4117 = vsel %vm3079, %v4022, 0.0
  %v4118 = vadd.f32 %v4116, %v4117
  %v4119 = vsel %vm3079, %v4023, 0.0
  %v4120 = vadd.f32 %v4118, %v4119
  %v4121 = vsel %vm3079, %v4024, 0.0
  %v4122 = vadd.f32 %v4120, %v4121
  %v4123 = vsel %vm3079, %v4025, 0.0
  %v4124 = vadd.f32 %v4122, %v4123
  %v4125 = vsel %vm3079, %v4026, 0.0
  %v4126 = vadd.f32 %v4124, %v4125
  %v4127 = vsel %vm3079, %v4027, 0.0
  %v4128 = vadd.f32 %v4126, %v4127
  %v4129 = vsel %vm3079, %v4028, 0.0
  %v4130 = vadd.f32 %v4128, %v4129
  %v4131 = vsel %vm3079, %v4029, 0.0
  %v4132 = vadd.f32 %v4130, %v4131
  %v4133 = vsel %vm3079, %v4030, 0.0
  %v4134 = vadd.f32 %v4132, %v4133
  %v4135 = vsel %vm3079, %v4031, 0.0
  %v4136 = vadd.f32 %v4134, %v4135
  %v4137 = vsel %vm3079, %v4032, 0.0
  %v4138 = vadd.f32 %v4136, %v4137
  %v4139 = vsel %vm3079, %v4033, 0.0
  %v4140 = vadd.f32 %v4138, %v4139
  %v4141 = vsel %vm3079, %v4034, 0.0
  %v4142 = vadd.f32 %v4140, %v4141
  %v4143 = vsel %vm3079, %v4035, 0.0
  %v4144 = vadd.f32 %v4142, %v4143
  %v4145 = vsel %vm3079, %v4036, 0.0
  %v4146 = vadd.f32 %v4144, %v4145
  %v4147 = vsel %vm3079, %v4037, 0.0
  %v4148 = vadd.f32 %v4146, %v4147
  %v4149 = vsel %vm3079, %v4038, 0.0
  %v4150 = vadd.f32 %v4148, %v4149
  %v4151 = vsel %vm3079, %v4039, 0.0
  %v4152 = vadd.f32 %v4150, %v4151
  %v4153 = vsel %vm3079, %v4040, 0.0
  %v4154 = vadd.f32 %v4152, %v4153
  %v4155 = vsel %vm3079, %v4041, 0.0
  %v4156 = vadd.f32 %v4154, %v4155
  %v4157 = vsel %vm3079, %v4042, 0.0
  %v4158 = vadd.f32 %v4156, %v4157
  %v4159 = vsel %vm3079, %v4043, 0.0
  %v4160 = vadd.f32 %v4158, %v4159
  %v4161 = vsel %vm3079, %v4044, 0.0
  %v4162 = vadd.f32 %v4160, %v4161
  %v4163 = vsel %vm3079, %v4045, 0.0
  %v4164 = vadd.f32 %v4162, %v4163
  %v4165 = vsel %vm3079, %v4046, 0.0
  %v4166 = vadd.f32 %v4164, %v4165
  %v4167 = vsel %vm3079, %v4047, 0.0
  %v4168 = vadd.f32 %v4166, %v4167
  %v4169 = vsel %vm3079, %v4048, 0.0
  %v4170 = vadd.f32 %v4168, %v4169
  %v4171 = vsel %vm3079, %v4049, 0.0
  %v4172 = vadd.f32 %v4170, %v4171
  %v4173 = vsel %vm3079, %v4050, 0.0
  %v4174 = vadd.f32 %v4172, %v4173
  %v4175 = vsel %vm3079, %v4051, 0.0
  %v4176 = vadd.f32 %v4174, %v4175
  %v4177 = vsel %vm3079, %v4052, 0.0
  %v4178 = vadd.f32 %v4176, %v4177
  %v4179 = vsel %vm3079, %v4053, 0.0
  %v4180 = vadd.f32 %v4178, %v4179
  %v4181 = vsel %vm3079, %v4054, 0.0
  %v4182 = vadd.f32 %v4180, %v4181
  %v4183 = vsel %vm3079, %v4055, 0.0
  %v4184 = vadd.f32 %v4182, %v4183
  %v4185 = vrot.slane %v4184, 4
  %v4186 = vadd.f32 %v4184, %v4185
  %v4187 = vrot.slane %v4186, 2
  %v4188 = vadd.f32 %v4186, %v4187
  %v4189 = vrot.slane %v4188, 1
  %v4190 = vadd.f32 %v4188, %v4189
  %v4191 = vmul.f32 %v4190, %v244
  %v4192 = vsub.f32 %v3992, %v4191
  %v4193 = vsub.f32 %v3993, %v4191
  %v4194 = vsub.f32 %v3994, %v4191
  %v4195 = vsub.f32 %v3995, %v4191
  %v4196 = vsub.f32 %v3996, %v4191
  %v4197 = vsub.f32 %v3997, %v4191
  %v4198 = vsub.f32 %v3998, %v4191
  %v4199 = vsub.f32 %v3999, %v4191
  %v4200 = vsub.f32 %v4000, %v4191
  %v4201 = vsub.f32 %v4001, %v4191
  %v4202 = vsub.f32 %v4002, %v4191
  %v4203 = vsub.f32 %v4003, %v4191
  %v4204 = vsub.f32 %v4004, %v4191
  %v4205 = vsub.f32 %v4005, %v4191
  %v4206 = vsub.f32 %v4006, %v4191
  %v4207 = vsub.f32 %v4007, %v4191
  %v4208 = vsub.f32 %v4008, %v4191
  %v4209 = vsub.f32 %v4009, %v4191
  %v4210 = vsub.f32 %v4010, %v4191
  %v4211 = vsub.f32 %v4011, %v4191
  %v4212 = vsub.f32 %v4012, %v4191
  %v4213 = vsub.f32 %v4013, %v4191
  %v4214 = vsub.f32 %v4014, %v4191
  %v4215 = vsub.f32 %v4015, %v4191
  %v4216 = vsub.f32 %v4016, %v4191
  %v4217 = vsub.f32 %v4017, %v4191
  %v4218 = vsub.f32 %v4018, %v4191
  %v4219 = vsub.f32 %v4019, %v4191
  %v4220 = vsub.f32 %v4020, %v4191
  %v4221 = vsub.f32 %v4021, %v4191
  %v4222 = vsub.f32 %v4022, %v4191
  %v4223 = vsub.f32 %v4023, %v4191
  %v4224 = vsub.f32 %v4024, %v4191
  %v4225 = vsub.f32 %v4025, %v4191
  %v4226 = vsub.f32 %v4026, %v4191
  %v4227 = vsub.f32 %v4027, %v4191
  %v4228 = vsub.f32 %v4028, %v4191
  %v4229 = vsub.f32 %v4029, %v4191
  %v4230 = vsub.f32 %v4030, %v4191
  %v4231 = vsub.f32 %v4031, %v4191
  %v4232 = vsub.f32 %v4032, %v4191
  %v4233 = vsub.f32 %v4033, %v4191
  %v4234 = vsub.f32 %v4034, %v4191
  %v4235 = vsub.f32 %v4035, %v4191
  %v4236 = vsub.f32 %v4036, %v4191
  %v4237 = vsub.f32 %v4037, %v4191
  %v4238 = vsub.f32 %v4038, %v4191
  %v4239 = vsub.f32 %v4039, %v4191
  %v4240 = vsub.f32 %v4040, %v4191
  %v4241 = vsub.f32 %v4041, %v4191
  %v4242 = vsub.f32 %v4042, %v4191
  %v4243 = vsub.f32 %v4043, %v4191
  %v4244 = vsub.f32 %v4044, %v4191
  %v4245 = vsub.f32 %v4045, %v4191
  %v4246 = vsub.f32 %v4046, %v4191
  %v4247 = vsub.f32 %v4047, %v4191
  %v4248 = vsub.f32 %v4048, %v4191
  %v4249 = vsub.f32 %v4049, %v4191
  %v4250 = vsub.f32 %v4050, %v4191
  %v4251 = vsub.f32 %v4051, %v4191
  %v4252 = vsub.f32 %v4052, %v4191
  %v4253 = vsub.f32 %v4053, %v4191
  %v4254 = vsub.f32 %v4054, %v4191
  %v4255 = vsub.f32 %v4055, %v4191
  %v4256 = vmul.f32 %v4192, %v4192
  %v4257 = vmul.f32 %v4193, %v4193
  %v4258 = vmul.f32 %v4194, %v4194
  %v4259 = vmul.f32 %v4195, %v4195
  %v4260 = vmul.f32 %v4196, %v4196
  %v4261 = vmul.f32 %v4197, %v4197
  %v4262 = vmul.f32 %v4198, %v4198
  %v4263 = vmul.f32 %v4199, %v4199
  %v4264 = vmul.f32 %v4200, %v4200
  %v4265 = vmul.f32 %v4201, %v4201
  %v4266 = vmul.f32 %v4202, %v4202
  %v4267 = vmul.f32 %v4203, %v4203
  %v4268 = vmul.f32 %v4204, %v4204
  %v4269 = vmul.f32 %v4205, %v4205
  %v4270 = vmul.f32 %v4206, %v4206
  %v4271 = vmul.f32 %v4207, %v4207
  %v4272 = vmul.f32 %v4208, %v4208
  %v4273 = vmul.f32 %v4209, %v4209
  %v4274 = vmul.f32 %v4210, %v4210
  %v4275 = vmul.f32 %v4211, %v4211
  %v4276 = vmul.f32 %v4212, %v4212
  %v4277 = vmul.f32 %v4213, %v4213
  %v4278 = vmul.f32 %v4214, %v4214
  %v4279 = vmul.f32 %v4215, %v4215
  %v4280 = vmul.f32 %v4216, %v4216
  %v4281 = vmul.f32 %v4217, %v4217
  %v4282 = vmul.f32 %v4218, %v4218
  %v4283 = vmul.f32 %v4219, %v4219
  %v4284 = vmul.f32 %v4220, %v4220
  %v4285 = vmul.f32 %v4221, %v4221
  %v4286 = vmul.f32 %v4222, %v4222
  %v4287 = vmul.f32 %v4223, %v4223
  %v4288 = vmul.f32 %v4224, %v4224
  %v4289 = vmul.f32 %v4225, %v4225
  %v4290 = vmul.f32 %v4226, %v4226
  %v4291 = vmul.f32 %v4227, %v4227
  %v4292 = vmul.f32 %v4228, %v4228
  %v4293 = vmul.f32 %v4229, %v4229
  %v4294 = vmul.f32 %v4230, %v4230
  %v4295 = vmul.f32 %v4231, %v4231
  %v4296 = vmul.f32 %v4232, %v4232
  %v4297 = vmul.f32 %v4233, %v4233
  %v4298 = vmul.f32 %v4234, %v4234
  %v4299 = vmul.f32 %v4235, %v4235
  %v4300 = vmul.f32 %v4236, %v4236
  %v4301 = vmul.f32 %v4237, %v4237
  %v4302 = vmul.f32 %v4238, %v4238
  %v4303 = vmul.f32 %v4239, %v4239
  %v4304 = vmul.f32 %v4240, %v4240
  %v4305 = vmul.f32 %v4241, %v4241
  %v4306 = vmul.f32 %v4242, %v4242
  %v4307 = vmul.f32 %v4243, %v4243
  %v4308 = vmul.f32 %v4244, %v4244
  %v4309 = vmul.f32 %v4245, %v4245
  %v4310 = vmul.f32 %v4246, %v4246
  %v4311 = vmul.f32 %v4247, %v4247
  %v4312 = vmul.f32 %v4248, %v4248
  %v4313 = vmul.f32 %v4249, %v4249
  %v4314 = vmul.f32 %v4250, %v4250
  %v4315 = vmul.f32 %v4251, %v4251
  %v4316 = vmul.f32 %v4252, %v4252
  %v4317 = vmul.f32 %v4253, %v4253
  %v4318 = vmul.f32 %v4254, %v4254
  %v4319 = vmul.f32 %v4255, %v4255
  %v4320 = vsel %vm3079, %v4256, 0.0
  %v4321 = vsel %vm3079, %v4257, 0.0
  %v4322 = vadd.f32 %v4320, %v4321
  %v4323 = vsel %vm3079, %v4258, 0.0
  %v4324 = vadd.f32 %v4322, %v4323
  %v4325 = vsel %vm3079, %v4259, 0.0
  %v4326 = vadd.f32 %v4324, %v4325
  %v4327 = vsel %vm3079, %v4260, 0.0
  %v4328 = vadd.f32 %v4326, %v4327
  %v4329 = vsel %vm3079, %v4261, 0.0
  %v4330 = vadd.f32 %v4328, %v4329
  %v4331 = vsel %vm3079, %v4262, 0.0
  %v4332 = vadd.f32 %v4330, %v4331
  %v4333 = vsel %vm3079, %v4263, 0.0
  %v4334 = vadd.f32 %v4332, %v4333
  %v4335 = vsel %vm3079, %v4264, 0.0
  %v4336 = vadd.f32 %v4334, %v4335
  %v4337 = vsel %vm3079, %v4265, 0.0
  %v4338 = vadd.f32 %v4336, %v4337
  %v4339 = vsel %vm3079, %v4266, 0.0
  %v4340 = vadd.f32 %v4338, %v4339
  %v4341 = vsel %vm3079, %v4267, 0.0
  %v4342 = vadd.f32 %v4340, %v4341
  %v4343 = vsel %vm3079, %v4268, 0.0
  %v4344 = vadd.f32 %v4342, %v4343
  %v4345 = vsel %vm3079, %v4269, 0.0
  %v4346 = vadd.f32 %v4344, %v4345
  %v4347 = vsel %vm3079, %v4270, 0.0
  %v4348 = vadd.f32 %v4346, %v4347
  %v4349 = vsel %vm3079, %v4271, 0.0
  %v4350 = vadd.f32 %v4348, %v4349
  %v4351 = vsel %vm3079, %v4272, 0.0
  %v4352 = vadd.f32 %v4350, %v4351
  %v4353 = vsel %vm3079, %v4273, 0.0
  %v4354 = vadd.f32 %v4352, %v4353
  %v4355 = vsel %vm3079, %v4274, 0.0
  %v4356 = vadd.f32 %v4354, %v4355
  %v4357 = vsel %vm3079, %v4275, 0.0
  %v4358 = vadd.f32 %v4356, %v4357
  %v4359 = vsel %vm3079, %v4276, 0.0
  %v4360 = vadd.f32 %v4358, %v4359
  %v4361 = vsel %vm3079, %v4277, 0.0
  %v4362 = vadd.f32 %v4360, %v4361
  %v4363 = vsel %vm3079, %v4278, 0.0
  %v4364 = vadd.f32 %v4362, %v4363
  %v4365 = vsel %vm3079, %v4279, 0.0
  %v4366 = vadd.f32 %v4364, %v4365
  %v4367 = vsel %vm3079, %v4280, 0.0
  %v4368 = vadd.f32 %v4366, %v4367
  %v4369 = vsel %vm3079, %v4281, 0.0
  %v4370 = vadd.f32 %v4368, %v4369
  %v4371 = vsel %vm3079, %v4282, 0.0
  %v4372 = vadd.f32 %v4370, %v4371
  %v4373 = vsel %vm3079, %v4283, 0.0
  %v4374 = vadd.f32 %v4372, %v4373
  %v4375 = vsel %vm3079, %v4284, 0.0
  %v4376 = vadd.f32 %v4374, %v4375
  %v4377 = vsel %vm3079, %v4285, 0.0
  %v4378 = vadd.f32 %v4376, %v4377
  %v4379 = vsel %vm3079, %v4286, 0.0
  %v4380 = vadd.f32 %v4378, %v4379
  %v4381 = vsel %vm3079, %v4287, 0.0
  %v4382 = vadd.f32 %v4380, %v4381
  %v4383 = vsel %vm3079, %v4288, 0.0
  %v4384 = vadd.f32 %v4382, %v4383
  %v4385 = vsel %vm3079, %v4289, 0.0
  %v4386 = vadd.f32 %v4384, %v4385
  %v4387 = vsel %vm3079, %v4290, 0.0
  %v4388 = vadd.f32 %v4386, %v4387
  %v4389 = vsel %vm3079, %v4291, 0.0
  %v4390 = vadd.f32 %v4388, %v4389
  %v4391 = vsel %vm3079, %v4292, 0.0
  %v4392 = vadd.f32 %v4390, %v4391
  %v4393 = vsel %vm3079, %v4293, 0.0
  %v4394 = vadd.f32 %v4392, %v4393
  %v4395 = vsel %vm3079, %v4294, 0.0
  %v4396 = vadd.f32 %v4394, %v4395
  %v4397 = vsel %vm3079, %v4295, 0.0
  %v4398 = vadd.f32 %v4396, %v4397
  %v4399 = vsel %vm3079, %v4296, 0.0
  %v4400 = vadd.f32 %v4398, %v4399
  %v4401 = vsel %vm3079, %v4297, 0.0
  %v4402 = vadd.f32 %v4400, %v4401
  %v4403 = vsel %vm3079, %v4298, 0.0
  %v4404 = vadd.f32 %v4402, %v4403
  %v4405 = vsel %vm3079, %v4299, 0.0
  %v4406 = vadd.f32 %v4404, %v4405
  %v4407 = vsel %vm3079, %v4300, 0.0
  %v4408 = vadd.f32 %v4406, %v4407
  %v4409 = vsel %vm3079, %v4301, 0.0
  %v4410 = vadd.f32 %v4408, %v4409
  %v4411 = vsel %vm3079, %v4302, 0.0
  %v4412 = vadd.f32 %v4410, %v4411
  %v4413 = vsel %vm3079, %v4303, 0.0
  %v4414 = vadd.f32 %v4412, %v4413
  %v4415 = vsel %vm3079, %v4304, 0.0
  %v4416 = vadd.f32 %v4414, %v4415
  %v4417 = vsel %vm3079, %v4305, 0.0
  %v4418 = vadd.f32 %v4416, %v4417
  %v4419 = vsel %vm3079, %v4306, 0.0
  %v4420 = vadd.f32 %v4418, %v4419
  %v4421 = vsel %vm3079, %v4307, 0.0
  %v4422 = vadd.f32 %v4420, %v4421
  %v4423 = vsel %vm3079, %v4308, 0.0
  %v4424 = vadd.f32 %v4422, %v4423
  %v4425 = vsel %vm3079, %v4309, 0.0
  %v4426 = vadd.f32 %v4424, %v4425
  %v4427 = vsel %vm3079, %v4310, 0.0
  %v4428 = vadd.f32 %v4426, %v4427
  %v4429 = vsel %vm3079, %v4311, 0.0
  %v4430 = vadd.f32 %v4428, %v4429
  %v4431 = vsel %vm3079, %v4312, 0.0
  %v4432 = vadd.f32 %v4430, %v4431
  %v4433 = vsel %vm3079, %v4313, 0.0
  %v4434 = vadd.f32 %v4432, %v4433
  %v4435 = vsel %vm3079, %v4314, 0.0
  %v4436 = vadd.f32 %v4434, %v4435
  %v4437 = vsel %vm3079, %v4315, 0.0
  %v4438 = vadd.f32 %v4436, %v4437
  %v4439 = vsel %vm3079, %v4316, 0.0
  %v4440 = vadd.f32 %v4438, %v4439
  %v4441 = vsel %vm3079, %v4317, 0.0
  %v4442 = vadd.f32 %v4440, %v4441
  %v4443 = vsel %vm3079, %v4318, 0.0
  %v4444 = vadd.f32 %v4442, %v4443
  %v4445 = vsel %vm3079, %v4319, 0.0
  %v4446 = vadd.f32 %v4444, %v4445
  %v4447 = vrot.slane %v4446, 4
  %v4448 = vadd.f32 %v4446, %v4447
  %v4449 = vrot.slane %v4448, 2
  %v4450 = vadd.f32 %v4448, %v4449
  %v4451 = vrot.slane %v4450, 1
  %v4452 = vadd.f32 %v4450, %v4451
  %v4453 = vmul.f32 %v4452, %v244
  %v4454 = vadd.f32 %v4453, 1e-05
  %v4455 = vrsqrt.pop %v4454
  %v4456 = vmul.f32 %v4056, %v4455
  %v4457 = vmul.f32 %v4191, %v4456
  %v4458 = vsub.f32 %v4057, %v4457
  %v4460 = vlaneseq
  %v4461 = vshrl.u32 %v4460, 7
  %v4462 = vsub.s32 0, %v4461
  %v4463 = vrot.slane %v4456, %v4462
  %v4465 = vmul.f32 %v3992, %v4463
  %v4466 = vmul.f32 %v3993, %v4463
  %v4467 = vmul.f32 %v3994, %v4463
  %v4468 = vmul.f32 %v3995, %v4463
  %v4469 = vmul.f32 %v3996, %v4463
  %v4470 = vmul.f32 %v3997, %v4463
  %v4471 = vmul.f32 %v3998, %v4463
  %v4472 = vmul.f32 %v3999, %v4463
  %v4473 = vmul.f32 %v4000, %v4463
  %v4474 = vmul.f32 %v4001, %v4463
  %v4475 = vmul.f32 %v4002, %v4463
  %v4476 = vmul.f32 %v4003, %v4463
  %v4477 = vmul.f32 %v4004, %v4463
  %v4478 = vmul.f32 %v4005, %v4463
  %v4479 = vmul.f32 %v4006, %v4463
  %v4480 = vmul.f32 %v4007, %v4463
  %v4481 = vmul.f32 %v4008, %v4463
  %v4482 = vmul.f32 %v4009, %v4463
  %v4483 = vmul.f32 %v4010, %v4463
  %v4484 = vmul.f32 %v4011, %v4463
  %v4485 = vmul.f32 %v4012, %v4463
  %v4486 = vmul.f32 %v4013, %v4463
  %v4487 = vmul.f32 %v4014, %v4463
  %v4488 = vmul.f32 %v4015, %v4463
  %v4489 = vmul.f32 %v4016, %v4463
  %v4490 = vmul.f32 %v4017, %v4463
  %v4491 = vmul.f32 %v4018, %v4463
  %v4492 = vmul.f32 %v4019, %v4463
  %v4493 = vmul.f32 %v4020, %v4463
  %v4494 = vmul.f32 %v4021, %v4463
  %v4495 = vmul.f32 %v4022, %v4463
  %v4496 = vmul.f32 %v4023, %v4463
  %v4497 = vmul.f32 %v4024, %v4463
  %v4498 = vmul.f32 %v4025, %v4463
  %v4499 = vmul.f32 %v4026, %v4463
  %v4500 = vmul.f32 %v4027, %v4463
  %v4501 = vmul.f32 %v4028, %v4463
  %v4502 = vmul.f32 %v4029, %v4463
  %v4503 = vmul.f32 %v4030, %v4463
  %v4504 = vmul.f32 %v4031, %v4463
  %v4505 = vmul.f32 %v4032, %v4463
  %v4506 = vmul.f32 %v4033, %v4463
  %v4507 = vmul.f32 %v4034, %v4463
  %v4508 = vmul.f32 %v4035, %v4463
  %v4509 = vmul.f32 %v4036, %v4463
  %v4510 = vmul.f32 %v4037, %v4463
  %v4511 = vmul.f32 %v4038, %v4463
  %v4512 = vmul.f32 %v4039, %v4463
  %v4513 = vmul.f32 %v4040, %v4463
  %v4514 = vmul.f32 %v4041, %v4463
  %v4515 = vmul.f32 %v4042, %v4463
  %v4516 = vmul.f32 %v4043, %v4463
  %v4517 = vmul.f32 %v4044, %v4463
  %v4518 = vmul.f32 %v4045, %v4463
  %v4519 = vmul.f32 %v4046, %v4463
  %v4520 = vmul.f32 %v4047, %v4463
  %v4521 = vmul.f32 %v4048, %v4463
  %v4522 = vmul.f32 %v4049, %v4463
  %v4523 = vmul.f32 %v4050, %v4463
  %v4524 = vmul.f32 %v4051, %v4463
  %v4525 = vmul.f32 %v4052, %v4463
  %v4526 = vmul.f32 %v4053, %v4463
  %v4527 = vmul.f32 %v4054, %v4463
  %v4528 = vmul.f32 %v4055, %v4463
  %v4530 = vlaneseq
  %v4531 = vshrl.u32 %v4530, 7
  %v4532 = vsub.s32 0, %v4531
  %v4533 = vrot.slane %v4458, %v4532
  %v4535 = vadd.f32 %v4465, %v4533
  %v4536 = vadd.f32 %v4466, %v4533
  %v4537 = vadd.f32 %v4467, %v4533
  %v4538 = vadd.f32 %v4468, %v4533
  %v4539 = vadd.f32 %v4469, %v4533
  %v4540 = vadd.f32 %v4470, %v4533
  %v4541 = vadd.f32 %v4471, %v4533
  %v4542 = vadd.f32 %v4472, %v4533
  %v4543 = vadd.f32 %v4473, %v4533
  %v4544 = vadd.f32 %v4474, %v4533
  %v4545 = vadd.f32 %v4475, %v4533
  %v4546 = vadd.f32 %v4476, %v4533
  %v4547 = vadd.f32 %v4477, %v4533
  %v4548 = vadd.f32 %v4478, %v4533
  %v4549 = vadd.f32 %v4479, %v4533
  %v4550 = vadd.f32 %v4480, %v4533
  %v4551 = vadd.f32 %v4481, %v4533
  %v4552 = vadd.f32 %v4482, %v4533
  %v4553 = vadd.f32 %v4483, %v4533
  %v4554 = vadd.f32 %v4484, %v4533
  %v4555 = vadd.f32 %v4485, %v4533
  %v4556 = vadd.f32 %v4486, %v4533
  %v4557 = vadd.f32 %v4487, %v4533
  %v4558 = vadd.f32 %v4488, %v4533
  %v4559 = vadd.f32 %v4489, %v4533
  %v4560 = vadd.f32 %v4490, %v4533
  %v4561 = vadd.f32 %v4491, %v4533
  %v4562 = vadd.f32 %v4492, %v4533
  %v4563 = vadd.f32 %v4493, %v4533
  %v4564 = vadd.f32 %v4494, %v4533
  %v4565 = vadd.f32 %v4495, %v4533
  %v4566 = vadd.f32 %v4496, %v4533
  %v4567 = vadd.f32 %v4497, %v4533
  %v4568 = vadd.f32 %v4498, %v4533
  %v4569 = vadd.f32 %v4499, %v4533
  %v4570 = vadd.f32 %v4500, %v4533
  %v4571 = vadd.f32 %v4501, %v4533
  %v4572 = vadd.f32 %v4502, %v4533
  %v4573 = vadd.f32 %v4503, %v4533
  %v4574 = vadd.f32 %v4504, %v4533
  %v4575 = vadd.f32 %v4505, %v4533
  %v4576 = vadd.f32 %v4506, %v4533
  %v4577 = vadd.f32 %v4507, %v4533
  %v4578 = vadd.f32 %v4508, %v4533
  %v4579 = vadd.f32 %v4509, %v4533
  %v4580 = vadd.f32 %v4510, %v4533
  %v4581 = vadd.f32 %v4511, %v4533
  %v4582 = vadd.f32 %v4512, %v4533
  %v4583 = vadd.f32 %v4513, %v4533
  %v4584 = vadd.f32 %v4514, %v4533
  %v4585 = vadd.f32 %v4515, %v4533
  %v4586 = vadd.f32 %v4516, %v4533
  %v4587 = vadd.f32 %v4517, %v4533
  %v4588 = vadd.f32 %v4518, %v4533
  %v4589 = vadd.f32 %v4519, %v4533
  %v4590 = vadd.f32 %v4520, %v4533
  %v4591 = vadd.f32 %v4521, %v4533
  %v4592 = vadd.f32 %v4522, %v4533
  %v4593 = vadd.f32 %v4523, %v4533
  %v4594 = vadd.f32 %v4524, %v4533
  %v4595 = vadd.f32 %v4525, %v4533
  %v4596 = vadd.f32 %v4526, %v4533
  %v4597 = vadd.f32 %v4527, %v4533
  %v4598 = vadd.f32 %v4528, %v4533
  %v4599 = vld [vmem:[%s7] sm:$0xff]
  %v4600 = vld [vmem:[%s7 + $0x8] sm:$0xff]
  %v4601 = vld [vmem:[%s8] sm:$0x1]
  %v4603 = vlaneseq
  %v4604 = vshrl.u32 %v4603, 7
  %v4605 = vsub.s32 0, %v4604
  %v4606 = vrot.slane %v4601, %v4605
  %v4609 = vsel %vm3079, %v4535, 0
  %v4612 = vsel %vm3079, %v4536, 0
  %v4615 = vsel %vm3079, %v4537, 0
  %v4618 = vsel %vm3079, %v4538, 0
  %v4621 = vsel %vm3079, %v4539, 0
  %v4624 = vsel %vm3079, %v4540, 0
  %v4627 = vsel %vm3079, %v4541, 0
  %v4630 = vsel %vm3079, %v4542, 0
  %v4633 = vsel %vm3079, %v4543, 0
  %v4636 = vsel %vm3079, %v4544, 0
  %v4639 = vsel %vm3079, %v4545, 0
  %v4642 = vsel %vm3079, %v4546, 0
  %v4645 = vsel %vm3079, %v4547, 0
  %v4648 = vsel %vm3079, %v4548, 0
  %v4651 = vsel %vm3079, %v4549, 0
  %v4654 = vsel %vm3079, %v4550, 0
  %v4657 = vsel %vm3079, %v4551, 0
  %v4660 = vsel %vm3079, %v4552, 0
  %v4663 = vsel %vm3079, %v4553, 0
  %v4666 = vsel %vm3079, %v4554, 0
  %v4669 = vsel %vm3079, %v4555, 0
  %v4672 = vsel %vm3079, %v4556, 0
  %v4675 = vsel %vm3079, %v4557, 0
  %v4678 = vsel %vm3079, %v4558, 0
  %v4681 = vsel %vm3079, %v4559, 0
  %v4684 = vsel %vm3079, %v4560, 0
  %v4687 = vsel %vm3079, %v4561, 0
  %v4690 = vsel %vm3079, %v4562, 0
  %v4693 = vsel %vm3079, %v4563, 0
  %v4696 = vsel %vm3079, %v4564, 0
  %v4699 = vsel %vm3079, %v4565, 0
  %v4702 = vsel %vm3079, %v4566, 0
  %v4705 = vsel %vm3079, %v4567, 0
  %v4708 = vsel %vm3079, %v4568, 0
  %v4711 = vsel %vm3079, %v4569, 0
  %v4714 = vsel %vm3079, %v4570, 0
  %v4717 = vsel %vm3079, %v4571, 0
  %v4720 = vsel %vm3079, %v4572, 0
  %v4723 = vsel %vm3079, %v4573, 0
  %v4726 = vsel %vm3079, %v4574, 0
  %v4729 = vsel %vm3079, %v4575, 0
  %v4732 = vsel %vm3079, %v4576, 0
  %v4735 = vsel %vm3079, %v4577, 0
  %v4738 = vsel %vm3079, %v4578, 0
  %v4741 = vsel %vm3079, %v4579, 0
  %v4744 = vsel %vm3079, %v4580, 0
  %v4747 = vsel %vm3079, %v4581, 0
  %v4750 = vsel %vm3079, %v4582, 0
  %v4753 = vsel %vm3079, %v4583, 0
  %v4756 = vsel %vm3079, %v4584, 0
  %v4759 = vsel %vm3079, %v4585, 0
  %v4762 = vsel %vm3079, %v4586, 0
  %v4765 = vsel %vm3079, %v4587, 0
  %v4768 = vsel %vm3079, %v4588, 0
  %v4771 = vsel %vm3079, %v4589, 0
  %v4774 = vsel %vm3079, %v4590, 0
  %v4777 = vsel %vm3079, %v4591, 0
  %v4780 = vsel %vm3079, %v4592, 0
  %v4783 = vsel %vm3079, %v4593, 0
  %v4786 = vsel %vm3079, %v4594, 0
  %v4789 = vsel %vm3079, %v4595, 0
  %v4792 = vsel %vm3079, %v4596, 0
  %v4795 = vsel %vm3079, %v4597, 0
  %v4798 = vsel %vm3079, %v4598, 0
  %4800 = vmatprep.subr.mxu0 0.0
  %4801 = vmatpush1.msra.mxu0 %v4599
  %4802 = vmatprep.subr.mxu0 0.0
  %4803 = vmatpush1.msra.mxu0 %v4600
  %4804 = vmatprep.subr.mxu0 0.0
  %4805 = vmatpush1.msra.mxu0 0.0
  %4806 = vmatprep.subr.mxu0 0.0
  %4807 = vmatpush1.msra.mxu0 0.0
  %4808 = vmatprep.subr.mxu0 0.0
  %4809 = vmatpush1.msra.mxu0 0.0
  %4810 = vmatprep.subr.mxu0 0.0
  %4811 = vmatpush1.msra.mxu0 0.0
  %4812 = vmatprep.subr.mxu0 0.0
  %4813 = vmatpush1.msra.mxu0 0.0
  %4814 = vmatprep.subr.mxu0 0.0
  %4815 = vmatpush1.msra.mxu0 0.0
  %4816 = vmatprep.subr.mxu0 0.0
  %4817 = vmatpush1.msra.mxu0 0.0
  %4818 = vmatprep.subr.mxu0 0.0
  %4819 = vmatpush1.msra.mxu0 0.0
  %4820 = vmatprep.subr.mxu0 0.0
  %4821 = vmatpush1.msra.mxu0 0.0
  %4822 = vmatprep.subr.mxu0 0.0
  %4823 = vmatpush1.msra.mxu0 0.0
  %4824 = vmatprep.subr.mxu0 0.0
  %4825 = vmatpush1.msra.mxu0 0.0
  %4826 = vmatprep.subr.mxu0 0.0
  %4827 = vmatpush1.msra.mxu0 0.0
  %4828 = vmatprep.subr.mxu0 0.0
  %4829 = vmatpush1.msra.mxu0 0.0
  %4830 = vmatprep.subr.mxu0 0.0
  %4831 = vmatpush1.msra.mxu0 0.0
  %4832 = vmatprep.subr.mxu0 0.0
  %4833 = vmatpush1.msra.mxu0 0.0
  %4834 = vmatprep.subr.mxu0 0.0
  %4835 = vmatpush1.msra.mxu0 0.0
  %4836 = vmatprep.subr.mxu0 0.0
  %4837 = vmatpush1.msra.mxu0 0.0
  %4838 = vmatprep.subr.mxu0 0.0
  %4839 = vmatpush1.msra.mxu0 0.0
  %4840 = vmatprep.subr.mxu0 0.0
  %4841 = vmatpush1.msra.mxu0 0.0
  %4842 = vmatprep.subr.mxu0 0.0
  %4843 = vmatpush1.msra.mxu0 0.0
  %4844 = vmatprep.subr.mxu0 0.0
  %4845 = vmatpush1.msra.mxu0 0.0
  %4846 = vmatprep.subr.mxu0 0.0
  %4847 = vmatpush1.msra.mxu0 0.0
  %4848 = vmatprep.subr.mxu0 0.0
  %4849 = vmatpush1.msra.mxu0 0.0
  %4850 = vmatprep.subr.mxu0 0.0
  %4851 = vmatpush1.msra.mxu0 0.0
  %4852 = vmatprep.subr.mxu0 0.0
  %4853 = vmatpush1.msra.mxu0 0.0
  %4854 = vmatprep.subr.mxu0 0.0
  %4855 = vmatpush1.msra.mxu0 0.0
  %4856 = vmatprep.subr.mxu0 0.0
  %4857 = vmatpush1.msra.mxu0 0.0
  %4858 = vmatprep.subr.mxu0 0.0
  %4859 = vmatpush1.msra.mxu0 0.0
  %4860 = vmatprep.subr.mxu0 0.0
  %4861 = vmatpush1.msra.mxu0 0.0
  %4862 = vmatprep.subr.mxu0 0.0
  %4863 = vmatpush1.msra.mxu0 0.0
  %4864 = vmatprep.mubr.f32.mxu0 0.0
  %4865 = vmatmul.mubr.f32.gmra.mrb[0].mxu0 %v4609
  %v4866 = vpop.f32.mrb[0].mxu0
  %v4867 = vadd.f32 %v4606, %v4866
  %v4868 = vpop.f32.mrb[0].mxu0
  %4869 = vmatprep.mubr.f32.mxu0 0.0
  %4870 = vmatmul.mubr.f32.gmra.mrb[0].mxu0 %v4612
  %v4871 = vpop.f32.mrb[0].mxu0
  %v4872 = vadd.f32 %v4606, %v4871
  %v4873 = vpop.f32.mrb[0].mxu0
  %4874 = vmatprep.mubr.f32.mxu0 0.0
  %4875 = vmatmul.mubr.f32.gmra.mrb[0].mxu0 %v4615
  %v4876 = vpop.f32.mrb[0].mxu0
  %v4877 = vadd.f32 %v4606, %v4876
  %v4878 = vpop.f32.mrb[0].mxu0
  %4879 = vmatprep.mubr.f32.mxu0 0.0
  %4880 = vmatmul.mubr.f32.gmra.mrb[0].mxu0 %v4618
  %v4881 = vpop.f32.mrb[0].mxu0
  %v4882 = vadd.f32 %v4606, %v4881
  %v4883 = vpop.f32.mrb[0].mxu0
  %4884 = vmatprep.mubr.f32.mxu0 0.0
  %4885 = vmatmul.mubr.f32.gmra.mrb[0].mxu0 %v4621
  %v4886 = vpop.f32.mrb[0].mxu0
  %v4887 = vadd.f32 %v4606, %v4886
  %v4888 = vpop.f32.mrb[0].mxu0
  %4889 = vmatprep.mubr.f32.mxu0 0.0
  %4890 = vmatmul.mubr.f32.gmra.mrb[0].mxu0 %v4624
  %v4891 = vpop.f32.mrb[0].mxu0
  %v4892 = vadd.f32 %v4606, %v4891
  %v4893 = vpop.f32.mrb[0].mxu0
  %4894 = vmatprep.mubr.f32.mxu0 0.0
  %4895 = vmatmul.mubr.f32.gmra.mrb[0].mxu0 %v4627
  %v4896 = vpop.f32.mrb[0].mxu0
  %v4897 = vadd.f32 %v4606, %v4896
  %v4898 = vpop.f32.mrb[0].mxu0
  %4899 = vmatprep.mubr.f32.mxu0 0.0
  %4900 = vmatmul.mubr.f32.gmra.mrb[0].mxu0 %v4630
  %v4901 = vpop.f32.mrb[0].mxu0
  %v4902 = vadd.f32 %v4606, %v4901
  %v4903 = vpop.f32.mrb[0].mxu0
  %4904 = vmatprep.mubr.f32.mxu0 0.0
  %4905 = vmatmul.mubr.f32.gmra.mrb[0].mxu0 %v4633
  %v4906 = vpop.f32.mrb[0].mxu0
  %v4907 = vadd.f32 %v4606, %v4906
  %v4908 = vpop.f32.mrb[0].mxu0
  %4909 = vmatprep.mubr.f32.mxu0 0.0
  %4910 = vmatmul.mubr.f32.gmra.mrb[0].mxu0 %v4636
  %v4911 = vpop.f32.mrb[0].mxu0
  %v4912 = vadd.f32 %v4606, %v4911
  %v4913 = vpop.f32.mrb[0].mxu0
  %4914 = vmatprep.mubr.f32.mxu0 0.0
  %4915 = vmatmul.mubr.f32.gmra.mrb[0].mxu0 %v4639
  %v4916 = vpop.f32.mrb[0].mxu0
  %v4917 = vadd.f32 %v4606, %v4916
  %v4918 = vpop.f32.mrb[0].mxu0
  %4919 = vmatprep.mubr.f32.mxu0 0.0
  %4920 = vmatmul.mubr.f32.gmra.mrb[0].mxu0 %v4642
  %v4921 = vpop.f32.mrb[0].mxu0
  %v4922 = vadd.f32 %v4606, %v4921
  %v4923 = vpop.f32.mrb[0].mxu0
  %4924 = vmatprep.mubr.f32.mxu0 0.0
  %4925 = vmatmul.mubr.f32.gmra.mrb[0].mxu0 %v4645
  %v4926 = vpop.f32.mrb[0].mxu0
  %v4927 = vadd.f32 %v4606, %v4926
  %v4928 = vpop.f32.mrb[0].mxu0
  %4929 = vmatprep.mubr.f32.mxu0 0.0
  %4930 = vmatmul.mubr.f32.gmra.mrb[0].mxu0 %v4648
  %v4931 = vpop.f32.mrb[0].mxu0
  %v4932 = vadd.f32 %v4606, %v4931
  %v4933 = vpop.f32.mrb[0].mxu0
  %4934 = vmatprep.mubr.f32.mxu0 0.0
  %4935 = vmatmul.mubr.f32.gmra.mrb[0].mxu0 %v4651
  %v4936 = vpop.f32.mrb[0].mxu0
  %v4937 = vadd.f32 %v4606, %v4936
  %v4938 = vpop.f32.mrb[0].mxu0
  %4939 = vmatprep.mubr.f32.mxu0 0.0
  %4940 = vmatmul.mubr.f32.gmra.mrb[0].mxu0 %v4654
  %v4941 = vpop.f32.mrb[0].mxu0
  %v4942 = vadd.f32 %v4606, %v4941
  %v4943 = vpop.f32.mrb[0].mxu0
  %4944 = vmatprep.mubr.f32.mxu0 0.0
  %4945 = vmatmul.mubr.f32.gmra.mrb[0].mxu0 %v4657
  %v4946 = vpop.f32.mrb[0].mxu0
  %v4947 = vadd.f32 %v4606, %v4946
  %v4948 = vpop.f32.mrb[0].mxu0
  %4949 = vmatprep.mubr.f32.mxu0 0.0
  %4950 = vmatmul.mubr.f32.gmra.mrb[0].mxu0 %v4660
  %v4951 = vpop.f32.mrb[0].mxu0
  %v4952 = vadd.f32 %v4606, %v4951
  %v4953 = vpop.f32.mrb[0].mxu0
  %4954 = vmatprep.mubr.f32.mxu0 0.0
  %4955 = vmatmul.mubr.f32.gmra.mrb[0].mxu0 %v4663
  %v4956 = vpop.f32.mrb[0].mxu0
  %v4957 = vadd.f32 %v4606, %v4956
  %v4958 = vpop.f32.mrb[0].mxu0
  %4959 = vmatprep.mubr.f32.mxu0 0.0
  %4960 = vmatmul.mubr.f32.gmra.mrb[0].mxu0 %v4666
  %v4961 = vpop.f32.mrb[0].mxu0
  %v4962 = vadd.f32 %v4606, %v4961
  %v4963 = vpop.f32.mrb[0].mxu0
  %4964 = vmatprep.mubr.f32.mxu0 0.0
  %4965 = vmatmul.mubr.f32.gmra.mrb[0].mxu0 %v4669
  %v4966 = vpop.f32.mrb[0].mxu0
  %v4967 = vadd.f32 %v4606, %v4966
  %v4968 = vpop.f32.mrb[0].mxu0
  %4969 = vmatprep.mubr.f32.mxu0 0.0
  %4970 = vmatmul.mubr.f32.gmra.mrb[0].mxu0 %v4672
  %v4971 = vpop.f32.mrb[0].mxu0
  %v4972 = vadd.f32 %v4606, %v4971
  %v4973 = vpop.f32.mrb[0].mxu0
  %4974 = vmatprep.mubr.f32.mxu0 0.0
  %4975 = vmatmul.mubr.f32.gmra.mrb[0].mxu0 %v4675
  %v4976 = vpop.f32.mrb[0].mxu0
  %v4977 = vadd.f32 %v4606, %v4976
  %v4978 = vpop.f32.mrb[0].mxu0
  %4979 = vmatprep.mubr.f32.mxu0 0.0
  %4980 = vmatmul.mubr.f32.gmra.mrb[0].mxu0 %v4678
  %v4981 = vpop.f32.mrb[0].mxu0
  %v4982 = vadd.f32 %v4606, %v4981
  %v4983 = vpop.f32.mrb[0].mxu0
  %4984 = vmatprep.mubr.f32.mxu0 0.0
  %4985 = vmatmul.mubr.f32.gmra.mrb[0].mxu0 %v4681
  %v4986 = vpop.f32.mrb[0].mxu0
  %v4987 = vadd.f32 %v4606, %v4986
  %v4988 = vpop.f32.mrb[0].mxu0
  %4989 = vmatprep.mubr.f32.mxu0 0.0
  %4990 = vmatmul.mubr.f32.gmra.mrb[0].mxu0 %v4684
  %v4991 = vpop.f32.mrb[0].mxu0
  %v4992 = vadd.f32 %v4606, %v4991
  %v4993 = vpop.f32.mrb[0].mxu0
  %4994 = vmatprep.mubr.f32.mxu0 0.0
  %4995 = vmatmul.mubr.f32.gmra.mrb[0].mxu0 %v4687
  %v4996 = vpop.f32.mrb[0].mxu0
  %v4997 = vadd.f32 %v4606, %v4996
  %v4998 = vpop.f32.mrb[0].mxu0
  %4999 = vmatprep.mubr.f32.mxu0 0.0
  %5000 = vmatmul.mubr.f32.gmra.mrb[0].mxu0 %v4690
  %v5001 = vpop.f32.mrb[0].mxu0
  %v5002 = vadd.f32 %v4606, %v5001
  %v5003 = vpop.f32.mrb[0].mxu0
  %5004 = vmatprep.mubr.f32.mxu0 0.0
  %5005 = vmatmul.mubr.f32.gmra.mrb[0].mxu0 %v4693
  %v5006 = vpop.f32.mrb[0].mxu0
  %v5007 = vadd.f32 %v4606, %v5006
  %v5008 = vpop.f32.mrb[0].mxu0
  %5009 = vmatprep.mubr.f32.mxu0 0.0
  %5010 = vmatmul.mubr.f32.gmra.mrb[0].mxu0 %v4696
  %v5011 = vpop.f32.mrb[0].mxu0
  %v5012 = vadd.f32 %v4606, %v5011
  %v5013 = vpop.f32.mrb[0].mxu0
  %5014 = vmatprep.mubr.f32.mxu0 0.0
  %5015 = vmatmul.mubr.f32.gmra.mrb[0].mxu0 %v4699
  %v5016 = vpop.f32.mrb[0].mxu0
  %v5017 = vadd.f32 %v4606, %v5016
  %v5018 = vpop.f32.mrb[0].mxu0
  %5019 = vmatprep.mubr.f32.mxu0 0.0
  %5020 = vmatmul.mubr.f32.gmra.mrb[0].mxu0 %v4702
  %v5021 = vpop.f32.mrb[0].mxu0
  %v5022 = vadd.f32 %v4606, %v5021
  %v5023 = vpop.f32.mrb[0].mxu0
  %5024 = vmatprep.mubr.f32.mxu0 0.0
  %5025 = vmatmul.mubr.f32.gmra.mrb[0].mxu0 %v4705
  %v5026 = vpop.f32.mrb[0].mxu0
  %v5027 = vadd.f32 %v4606, %v5026
  %v5028 = vpop.f32.mrb[0].mxu0
  %5029 = vmatprep.mubr.f32.mxu0 0.0
  %5030 = vmatmul.mubr.f32.gmra.mrb[0].mxu0 %v4708
  %v5031 = vpop.f32.mrb[0].mxu0
  %v5032 = vadd.f32 %v4606, %v5031
  %v5033 = vpop.f32.mrb[0].mxu0
  %5034 = vmatprep.mubr.f32.mxu0 0.0
  %5035 = vmatmul.mubr.f32.gmra.mrb[0].mxu0 %v4711
  %v5036 = vpop.f32.mrb[0].mxu0
  %v5037 = vadd.f32 %v4606, %v5036
  %v5038 = vpop.f32.mrb[0].mxu0
  %5039 = vmatprep.mubr.f32.mxu0 0.0
  %5040 = vmatmul.mubr.f32.gmra.mrb[0].mxu0 %v4714
  %v5041 = vpop.f32.mrb[0].mxu0
  %v5042 = vadd.f32 %v4606, %v5041
  %v5043 = vpop.f32.mrb[0].mxu0
  %5044 = vmatprep.mubr.f32.mxu0 0.0
  %5045 = vmatmul.mubr.f32.gmra.mrb[0].mxu0 %v4717
  %v5046 = vpop.f32.mrb[0].mxu0
  %v5047 = vadd.f32 %v4606, %v5046
  %v5048 = vpop.f32.mrb[0].mxu0
  %5049 = vmatprep.mubr.f32.mxu0 0.0
  %5050 = vmatmul.mubr.f32.gmra.mrb[0].mxu0 %v4720
  %v5051 = vpop.f32.mrb[0].mxu0
  %v5052 = vadd.f32 %v4606, %v5051
  %v5053 = vpop.f32.mrb[0].mxu0
  %5054 = vmatprep.mubr.f32.mxu0 0.0
  %5055 = vmatmul.mubr.f32.gmra.mrb[0].mxu0 %v4723
  %v5056 = vpop.f32.mrb[0].mxu0
  %v5057 = vadd.f32 %v4606, %v5056
  %v5058 = vpop.f32.mrb[0].mxu0
  %5059 = vmatprep.mubr.f32.mxu0 0.0
  %5060 = vmatmul.mubr.f32.gmra.mrb[0].mxu0 %v4726
  %v5061 = vpop.f32.mrb[0].mxu0
  %v5062 = vadd.f32 %v4606, %v5061
  %v5063 = vpop.f32.mrb[0].mxu0
  %5064 = vmatprep.mubr.f32.mxu0 0.0
  %5065 = vmatmul.mubr.f32.gmra.mrb[0].mxu0 %v4729
  %v5066 = vpop.f32.mrb[0].mxu0
  %v5067 = vadd.f32 %v4606, %v5066
  %v5068 = vpop.f32.mrb[0].mxu0
  %5069 = vmatprep.mubr.f32.mxu0 0.0
  %5070 = vmatmul.mubr.f32.gmra.mrb[0].mxu0 %v4732
  %v5071 = vpop.f32.mrb[0].mxu0
  %v5072 = vadd.f32 %v4606, %v5071
  %v5073 = vpop.f32.mrb[0].mxu0
  %5074 = vmatprep.mubr.f32.mxu0 0.0
  %5075 = vmatmul.mubr.f32.gmra.mrb[0].mxu0 %v4735
  %v5076 = vpop.f32.mrb[0].mxu0
  %v5077 = vadd.f32 %v4606, %v5076
  %v5078 = vpop.f32.mrb[0].mxu0
  %5079 = vmatprep.mubr.f32.mxu0 0.0
  %5080 = vmatmul.mubr.f32.gmra.mrb[0].mxu0 %v4738
  %v5081 = vpop.f32.mrb[0].mxu0
  %v5082 = vadd.f32 %v4606, %v5081
  %v5083 = vpop.f32.mrb[0].mxu0
  %5084 = vmatprep.mubr.f32.mxu0 0.0
  %5085 = vmatmul.mubr.f32.gmra.mrb[0].mxu0 %v4741
  %v5086 = vpop.f32.mrb[0].mxu0
  %v5087 = vadd.f32 %v4606, %v5086
  %v5088 = vpop.f32.mrb[0].mxu0
  %5089 = vmatprep.mubr.f32.mxu0 0.0
  %5090 = vmatmul.mubr.f32.gmra.mrb[0].mxu0 %v4744
  %v5091 = vpop.f32.mrb[0].mxu0
  %v5092 = vadd.f32 %v4606, %v5091
  %v5093 = vpop.f32.mrb[0].mxu0
  %5094 = vmatprep.mubr.f32.mxu0 0.0
  %5095 = vmatmul.mubr.f32.gmra.mrb[0].mxu0 %v4747
  %v5096 = vpop.f32.mrb[0].mxu0
  %v5097 = vadd.f32 %v4606, %v5096
  %v5098 = vpop.f32.mrb[0].mxu0
  %5099 = vmatprep.mubr.f32.mxu0 0.0
  %5100 = vmatmul.mubr.f32.gmra.mrb[0].mxu0 %v4750
  %v5101 = vpop.f32.mrb[0].mxu0
  %v5102 = vadd.f32 %v4606, %v5101
  %v5103 = vpop.f32.mrb[0].mxu0
  %5104 = vmatprep.mubr.f32.mxu0 0.0
  %5105 = vmatmul.mubr.f32.gmra.mrb[0].mxu0 %v4753
  %v5106 = vpop.f32.mrb[0].mxu0
  %v5107 = vadd.f32 %v4606, %v5106
  %v5108 = vpop.f32.mrb[0].mxu0
  %5109 = vmatprep.mubr.f32.mxu0 0.0
  %5110 = vmatmul.mubr.f32.gmra.mrb[0].mxu0 %v4756
  %v5111 = vpop.f32.mrb[0].mxu0
  %v5112 = vadd.f32 %v4606, %v5111
  %v5113 = vpop.f32.mrb[0].mxu0
  %5114 = vmatprep.mubr.f32.mxu0 0.0
  %5115 = vmatmul.mubr.f32.gmra.mrb[0].mxu0 %v4759
  %v5116 = vpop.f32.mrb[0].mxu0
  %v5117 = vadd.f32 %v4606, %v5116
  %v5118 = vpop.f32.mrb[0].mxu0
  %5119 = vmatprep.mubr.f32.mxu0 0.0
  %5120 = vmatmul.mubr.f32.gmra.mrb[0].mxu0 %v4762
  %v5121 = vpop.f32.mrb[0].mxu0
  %v5122 = vadd.f32 %v4606, %v5121
  %v5123 = vpop.f32.mrb[0].mxu0
  %5124 = vmatprep.mubr.f32.mxu0 0.0
  %5125 = vmatmul.mubr.f32.gmra.mrb[0].mxu0 %v4765
  %v5126 = vpop.f32.mrb[0].mxu0
  %v5127 = vadd.f32 %v4606, %v5126
  %v5128 = vpop.f32.mrb[0].mxu0
  %5129 = vmatprep.mubr.f32.mxu0 0.0
  %5130 = vmatmul.mubr.f32.gmra.mrb[0].mxu0 %v4768
  %v5131 = vpop.f32.mrb[0].mxu0
  %v5132 = vadd.f32 %v4606, %v5131
  %v5133 = vpop.f32.mrb[0].mxu0
  %5134 = vmatprep.mubr.f32.mxu0 0.0
  %5135 = vmatmul.mubr.f32.gmra.mrb[0].mxu0 %v4771
  %v5136 = vpop.f32.mrb[0].mxu0
  %v5137 = vadd.f32 %v4606, %v5136
  %v5138 = vpop.f32.mrb[0].mxu0
  %5139 = vmatprep.mubr.f32.mxu0 0.0
  %5140 = vmatmul.mubr.f32.gmra.mrb[0].mxu0 %v4774
  %v5141 = vpop.f32.mrb[0].mxu0
  %v5142 = vadd.f32 %v4606, %v5141
  %v5143 = vpop.f32.mrb[0].mxu0
  %5144 = vmatprep.mubr.f32.mxu0 0.0
  %5145 = vmatmul.mubr.f32.gmra.mrb[0].mxu0 %v4777
  %v5146 = vpop.f32.mrb[0].mxu0
  %v5147 = vadd.f32 %v4606, %v5146
  %v5148 = vpop.f32.mrb[0].mxu0
  %5149 = vmatprep.mubr.f32.mxu0 0.0
  %5150 = vmatmul.mubr.f32.gmra.mrb[0].mxu0 %v4780
  %v5151 = vpop.f32.mrb[0].mxu0
  %v5152 = vadd.f32 %v4606, %v5151
  %v5153 = vpop.f32.mrb[0].mxu0
  %5154 = vmatprep.mubr.f32.mxu0 0.0
  %5155 = vmatmul.mubr.f32.gmra.mrb[0].mxu0 %v4783
  %v5156 = vpop.f32.mrb[0].mxu0
  %v5157 = vadd.f32 %v4606, %v5156
  %v5158 = vpop.f32.mrb[0].mxu0
  %5159 = vmatprep.mubr.f32.mxu0 0.0
  %5160 = vmatmul.mubr.f32.gmra.mrb[0].mxu0 %v4786
  %v5161 = vpop.f32.mrb[0].mxu0
  %v5162 = vadd.f32 %v4606, %v5161
  %v5163 = vpop.f32.mrb[0].mxu0
  %5164 = vmatprep.mubr.f32.mxu0 0.0
  %5165 = vmatmul.mubr.f32.gmra.mrb[0].mxu0 %v4789
  %v5166 = vpop.f32.mrb[0].mxu0
  %v5167 = vadd.f32 %v4606, %v5166
  %v5168 = vpop.f32.mrb[0].mxu0
  %5169 = vmatprep.mubr.f32.mxu0 0.0
  %5170 = vmatmul.mubr.f32.gmra.mrb[0].mxu0 %v4792
  %v5171 = vpop.f32.mrb[0].mxu0
  %v5172 = vadd.f32 %v4606, %v5171
  %v5173 = vpop.f32.mrb[0].mxu0
  %5174 = vmatprep.mubr.f32.mxu0 0.0
  %5175 = vmatmul.mubr.f32.gmra.mrb[0].mxu0 %v4795
  %v5176 = vpop.f32.mrb[0].mxu0
  %v5177 = vadd.f32 %v4606, %v5176
  %v5178 = vpop.f32.mrb[0].mxu0
  %5179 = vmatprep.mubr.f32.mxu0 0.0
  %5180 = vmatmul.mubr.f32.gmra.mrb[0].mxu0 %v4798
  %v5181 = vpop.f32.mrb[0].mxu0
  %v5182 = vadd.f32 %v4606, %v5181
  %v5183 = vpop.f32.mrb[0].mxu0
  %5184 = vdwg.mxu0
  %v5185 = vmax.f32 %v4867, 0.0
  %v5186 = vmax.f32 %v4872, 0.0
  %v5187 = vmax.f32 %v4877, 0.0
  %v5188 = vmax.f32 %v4882, 0.0
  %v5189 = vmax.f32 %v4887, 0.0
  %v5190 = vmax.f32 %v4892, 0.0
  %v5191 = vmax.f32 %v4897, 0.0
  %v5192 = vmax.f32 %v4902, 0.0
  %v5193 = vmax.f32 %v4907, 0.0
  %v5194 = vmax.f32 %v4912, 0.0
  %v5195 = vmax.f32 %v4917, 0.0
  %v5196 = vmax.f32 %v4922, 0.0
  %v5197 = vmax.f32 %v4927, 0.0
  %v5198 = vmax.f32 %v4932, 0.0
  %v5199 = vmax.f32 %v4937, 0.0
  %v5200 = vmax.f32 %v4942, 0.0
  %v5201 = vmax.f32 %v4947, 0.0
  %v5202 = vmax.f32 %v4952, 0.0
  %v5203 = vmax.f32 %v4957, 0.0
  %v5204 = vmax.f32 %v4962, 0.0
  %v5205 = vmax.f32 %v4967, 0.0
  %v5206 = vmax.f32 %v4972, 0.0
  %v5207 = vmax.f32 %v4977, 0.0
  %v5208 = vmax.f32 %v4982, 0.0
  %v5209 = vmax.f32 %v4987, 0.0
  %v5210 = vmax.f32 %v4992, 0.0
  %v5211 = vmax.f32 %v4997, 0.0
  %v5212 = vmax.f32 %v5002, 0.0
  %v5213 = vmax.f32 %v5007, 0.0
  %v5214 = vmax.f32 %v5012, 0.0
  %v5215 = vmax.f32 %v5017, 0.0
  %v5216 = vmax.f32 %v5022, 0.0
  %v5217 = vmax.f32 %v5027, 0.0
  %v5218 = vmax.f32 %v5032, 0.0
  %v5219 = vmax.f32 %v5037, 0.0
  %v5220 = vmax.f32 %v5042, 0.0
  %v5221 = vmax.f32 %v5047, 0.0
  %v5222 = vmax.f32 %v5052, 0.0
  %v5223 = vmax.f32 %v5057, 0.0
  %v5224 = vmax.f32 %v5062, 0.0
  %v5225 = vmax.f32 %v5067, 0.0
  %v5226 = vmax.f32 %v5072, 0.0
  %v5227 = vmax.f32 %v5077, 0.0
  %v5228 = vmax.f32 %v5082, 0.0
  %v5229 = vmax.f32 %v5087, 0.0
  %v5230 = vmax.f32 %v5092, 0.0
  %v5231 = vmax.f32 %v5097, 0.0
  %v5232 = vmax.f32 %v5102, 0.0
  %v5233 = vmax.f32 %v5107, 0.0
  %v5234 = vmax.f32 %v5112, 0.0
  %v5235 = vmax.f32 %v5117, 0.0
  %v5236 = vmax.f32 %v5122, 0.0
  %v5237 = vmax.f32 %v5127, 0.0
  %v5238 = vmax.f32 %v5132, 0.0
  %v5239 = vmax.f32 %v5137, 0.0
  %v5240 = vmax.f32 %v5142, 0.0
  %v5241 = vmax.f32 %v5147, 0.0
  %v5242 = vmax.f32 %v5152, 0.0
  %v5243 = vmax.f32 %v5157, 0.0
  %v5244 = vmax.f32 %v5162, 0.0
  %v5245 = vmax.f32 %v5167, 0.0
  %v5246 = vmax.f32 %v5172, 0.0
  %v5247 = vmax.f32 %v5177, 0.0
  %v5248 = vmax.f32 %v5182, 0.0
  %v5249 = vld [vmem:[%s9] sm:$0x1]
  %v5250 = vld [vmem:[%s10] sm:$0x1]
  %v5251 = vsel %vm3079, %v5185, 0.0
  %v5252 = vsel %vm3079, %v5186, 0.0
  %v5253 = vadd.f32 %v5251, %v5252
  %v5254 = vsel %vm3079, %v5187, 0.0
  %v5255 = vadd.f32 %v5253, %v5254
  %v5256 = vsel %vm3079, %v5188, 0.0
  %v5257 = vadd.f32 %v5255, %v5256
  %v5258 = vsel %vm3079, %v5189, 0.0
  %v5259 = vadd.f32 %v5257, %v5258
  %v5260 = vsel %vm3079, %v5190, 0.0
  %v5261 = vadd.f32 %v5259, %v5260
  %v5262 = vsel %vm3079, %v5191, 0.0
  %v5263 = vadd.f32 %v5261, %v5262
  %v5264 = vsel %vm3079, %v5192, 0.0
  %v5265 = vadd.f32 %v5263, %v5264
  %v5266 = vsel %vm3079, %v5193, 0.0
  %v5267 = vadd.f32 %v5265, %v5266
  %v5268 = vsel %vm3079, %v5194, 0.0
  %v5269 = vadd.f32 %v5267, %v5268
  %v5270 = vsel %vm3079, %v5195, 0.0
  %v5271 = vadd.f32 %v5269, %v5270
  %v5272 = vsel %vm3079, %v5196, 0.0
  %v5273 = vadd.f32 %v5271, %v5272
  %v5274 = vsel %vm3079, %v5197, 0.0
  %v5275 = vadd.f32 %v5273, %v5274
  %v5276 = vsel %vm3079, %v5198, 0.0
  %v5277 = vadd.f32 %v5275, %v5276
  %v5278 = vsel %vm3079, %v5199, 0.0
  %v5279 = vadd.f32 %v5277, %v5278
  %v5280 = vsel %vm3079, %v5200, 0.0
  %v5281 = vadd.f32 %v5279, %v5280
  %v5282 = vsel %vm3079, %v5201, 0.0
  %v5283 = vadd.f32 %v5281, %v5282
  %v5284 = vsel %vm3079, %v5202, 0.0
  %v5285 = vadd.f32 %v5283, %v5284
  %v5286 = vsel %vm3079, %v5203, 0.0
  %v5287 = vadd.f32 %v5285, %v5286
  %v5288 = vsel %vm3079, %v5204, 0.0
  %v5289 = vadd.f32 %v5287, %v5288
  %v5290 = vsel %vm3079, %v5205, 0.0
  %v5291 = vadd.f32 %v5289, %v5290
  %v5292 = vsel %vm3079, %v5206, 0.0
  %v5293 = vadd.f32 %v5291, %v5292
  %v5294 = vsel %vm3079, %v5207, 0.0
  %v5295 = vadd.f32 %v5293, %v5294
  %v5296 = vsel %vm3079, %v5208, 0.0
  %v5297 = vadd.f32 %v5295, %v5296
  %v5298 = vsel %vm3079, %v5209, 0.0
  %v5299 = vadd.f32 %v5297, %v5298
  %v5300 = vsel %vm3079, %v5210, 0.0
  %v5301 = vadd.f32 %v5299, %v5300
  %v5302 = vsel %vm3079, %v5211, 0.0
  %v5303 = vadd.f32 %v5301, %v5302
  %v5304 = vsel %vm3079, %v5212, 0.0
  %v5305 = vadd.f32 %v5303, %v5304
  %v5306 = vsel %vm3079, %v5213, 0.0
  %v5307 = vadd.f32 %v5305, %v5306
  %v5308 = vsel %vm3079, %v5214, 0.0
  %v5309 = vadd.f32 %v5307, %v5308
  %v5310 = vsel %vm3079, %v5215, 0.0
  %v5311 = vadd.f32 %v5309, %v5310
  %v5312 = vsel %vm3079, %v5216, 0.0
  %v5313 = vadd.f32 %v5311, %v5312
  %v5314 = vsel %vm3079, %v5217, 0.0
  %v5315 = vadd.f32 %v5313, %v5314
  %v5316 = vsel %vm3079, %v5218, 0.0
  %v5317 = vadd.f32 %v5315, %v5316
  %v5318 = vsel %vm3079, %v5219, 0.0
  %v5319 = vadd.f32 %v5317, %v5318
  %v5320 = vsel %vm3079, %v5220, 0.0
  %v5321 = vadd.f32 %v5319, %v5320
  %v5322 = vsel %vm3079, %v5221, 0.0
  %v5323 = vadd.f32 %v5321, %v5322
  %v5324 = vsel %vm3079, %v5222, 0.0
  %v5325 = vadd.f32 %v5323, %v5324
  %v5326 = vsel %vm3079, %v5223, 0.0
  %v5327 = vadd.f32 %v5325, %v5326
  %v5328 = vsel %vm3079, %v5224, 0.0
  %v5329 = vadd.f32 %v5327, %v5328
  %v5330 = vsel %vm3079, %v5225, 0.0
  %v5331 = vadd.f32 %v5329, %v5330
  %v5332 = vsel %vm3079, %v5226, 0.0
  %v5333 = vadd.f32 %v5331, %v5332
  %v5334 = vsel %vm3079, %v5227, 0.0
  %v5335 = vadd.f32 %v5333, %v5334
  %v5336 = vsel %vm3079, %v5228, 0.0
  %v5337 = vadd.f32 %v5335, %v5336
  %v5338 = vsel %vm3079, %v5229, 0.0
  %v5339 = vadd.f32 %v5337, %v5338
  %v5340 = vsel %vm3079, %v5230, 0.0
  %v5341 = vadd.f32 %v5339, %v5340
  %v5342 = vsel %vm3079, %v5231, 0.0
  %v5343 = vadd.f32 %v5341, %v5342
  %v5344 = vsel %vm3079, %v5232, 0.0
  %v5345 = vadd.f32 %v5343, %v5344
  %v5346 = vsel %vm3079, %v5233, 0.0
  %v5347 = vadd.f32 %v5345, %v5346
  %v5348 = vsel %vm3079, %v5234, 0.0
  %v5349 = vadd.f32 %v5347, %v5348
  %v5350 = vsel %vm3079, %v5235, 0.0
  %v5351 = vadd.f32 %v5349, %v5350
  %v5352 = vsel %vm3079, %v5236, 0.0
  %v5353 = vadd.f32 %v5351, %v5352
  %v5354 = vsel %vm3079, %v5237, 0.0
  %v5355 = vadd.f32 %v5353, %v5354
  %v5356 = vsel %vm3079, %v5238, 0.0
  %v5357 = vadd.f32 %v5355, %v5356
  %v5358 = vsel %vm3079, %v5239, 0.0
  %v5359 = vadd.f32 %v5357, %v5358
  %v5360 = vsel %vm3079, %v5240, 0.0
  %v5361 = vadd.f32 %v5359, %v5360
  %v5362 = vsel %vm3079, %v5241, 0.0
  %v5363 = vadd.f32 %v5361, %v5362
  %v5364 = vsel %vm3079, %v5242, 0.0
  %v5365 = vadd.f32 %v5363, %v5364
  %v5366 = vsel %vm3079, %v5243, 0.0
  %v5367 = vadd.f32 %v5365, %v5366
  %v5368 = vsel %vm3079, %v5244, 0.0
  %v5369 = vadd.f32 %v5367, %v5368
  %v5370 = vsel %vm3079, %v5245, 0.0
  %v5371 = vadd.f32 %v5369, %v5370
  %v5372 = vsel %vm3079, %v5246, 0.0
  %v5373 = vadd.f32 %v5371, %v5372
  %v5374 = vsel %vm3079, %v5247, 0.0
  %v5375 = vadd.f32 %v5373, %v5374
  %v5376 = vsel %vm3079, %v5248, 0.0
  %v5377 = vadd.f32 %v5375, %v5376
  %v5378 = vrot.slane %v5377, 4
  %v5379 = vadd.f32 %v5377, %v5378
  %v5380 = vrot.slane %v5379, 2
  %v5381 = vadd.f32 %v5379, %v5380
  %v5382 = vrot.slane %v5381, 1
  %v5383 = vadd.f32 %v5381, %v5382
  %v5384 = vmul.f32 %v5383, %v244
  %v5385 = vsub.f32 %v5185, %v5384
  %v5386 = vsub.f32 %v5186, %v5384
  %v5387 = vsub.f32 %v5187, %v5384
  %v5388 = vsub.f32 %v5188, %v5384
  %v5389 = vsub.f32 %v5189, %v5384
  %v5390 = vsub.f32 %v5190, %v5384
  %v5391 = vsub.f32 %v5191, %v5384
  %v5392 = vsub.f32 %v5192, %v5384
  %v5393 = vsub.f32 %v5193, %v5384
  %v5394 = vsub.f32 %v5194, %v5384
  %v5395 = vsub.f32 %v5195, %v5384
  %v5396 = vsub.f32 %v5196, %v5384
  %v5397 = vsub.f32 %v5197, %v5384
  %v5398 = vsub.f32 %v5198, %v5384
  %v5399 = vsub.f32 %v5199, %v5384
  %v5400 = vsub.f32 %v5200, %v5384
  %v5401 = vsub.f32 %v5201, %v5384
  %v5402 = vsub.f32 %v5202, %v5384
  %v5403 = vsub.f32 %v5203, %v5384
  %v5404 = vsub.f32 %v5204, %v5384
  %v5405 = vsub.f32 %v5205, %v5384
  %v5406 = vsub.f32 %v5206, %v5384
  %v5407 = vsub.f32 %v5207, %v5384
  %v5408 = vsub.f32 %v5208, %v5384
  %v5409 = vsub.f32 %v5209, %v5384
  %v5410 = vsub.f32 %v5210, %v5384
  %v5411 = vsub.f32 %v5211, %v5384
  %v5412 = vsub.f32 %v5212, %v5384
  %v5413 = vsub.f32 %v5213, %v5384
  %v5414 = vsub.f32 %v5214, %v5384
  %v5415 = vsub.f32 %v5215, %v5384
  %v5416 = vsub.f32 %v5216, %v5384
  %v5417 = vsub.f32 %v5217, %v5384
  %v5418 = vsub.f32 %v5218, %v5384
  %v5419 = vsub.f32 %v5219, %v5384
  %v5420 = vsub.f32 %v5220, %v5384
  %v5421 = vsub.f32 %v5221, %v5384
  %v5422 = vsub.f32 %v5222, %v5384
  %v5423 = vsub.f32 %v5223, %v5384
  %v5424 = vsub.f32 %v5224, %v5384
  %v5425 = vsub.f32 %v5225, %v5384
  %v5426 = vsub.f32 %v5226, %v5384
  %v5427 = vsub.f32 %v5227, %v5384
  %v5428 = vsub.f32 %v5228, %v5384
  %v5429 = vsub.f32 %v5229, %v5384
  %v5430 = vsub.f32 %v5230, %v5384
  %v5431 = vsub.f32 %v5231, %v5384
  %v5432 = vsub.f32 %v5232, %v5384
  %v5433 = vsub.f32 %v5233, %v5384
  %v5434 = vsub.f32 %v5234, %v5384
  %v5435 = vsub.f32 %v5235, %v5384
  %v5436 = vsub.f32 %v5236, %v5384
  %v5437 = vsub.f32 %v5237, %v5384
  %v5438 = vsub.f32 %v5238, %v5384
  %v5439 = vsub.f32 %v5239, %v5384
  %v5440 = vsub.f32 %v5240, %v5384
  %v5441 = vsub.f32 %v5241, %v5384
  %v5442 = vsub.f32 %v5242, %v5384
  %v5443 = vsub.f32 %v5243, %v5384
  %v5444 = vsub.f32 %v5244, %v5384
  %v5445 = vsub.f32 %v5245, %v5384
  %v5446 = vsub.f32 %v5246, %v5384
  %v5447 = vsub.f32 %v5247, %v5384
  %v5448 = vsub.f32 %v5248, %v5384
  %v5449 = vmul.f32 %v5385, %v5385
  %v5450 = vmul.f32 %v5386, %v5386
  %v5451 = vmul.f32 %v5387, %v5387
  %v5452 = vmul.f32 %v5388, %v5388
  %v5453 = vmul.f32 %v5389, %v5389
  %v5454 = vmul.f32 %v5390, %v5390
  %v5455 = vmul.f32 %v5391, %v5391
  %v5456 = vmul.f32 %v5392, %v5392
  %v5457 = vmul.f32 %v5393, %v5393
  %v5458 = vmul.f32 %v5394, %v5394
  %v5459 = vmul.f32 %v5395, %v5395
  %v5460 = vmul.f32 %v5396, %v5396
  %v5461 = vmul.f32 %v5397, %v5397
  %v5462 = vmul.f32 %v5398, %v5398
  %v5463 = vmul.f32 %v5399, %v5399
  %v5464 = vmul.f32 %v5400, %v5400
  %v5465 = vmul.f32 %v5401, %v5401
  %v5466 = vmul.f32 %v5402, %v5402
  %v5467 = vmul.f32 %v5403, %v5403
  %v5468 = vmul.f32 %v5404, %v5404
  %v5469 = vmul.f32 %v5405, %v5405
  %v5470 = vmul.f32 %v5406, %v5406
  %v5471 = vmul.f32 %v5407, %v5407
  %v5472 = vmul.f32 %v5408, %v5408
  %v5473 = vmul.f32 %v5409, %v5409
  %v5474 = vmul.f32 %v5410, %v5410
  %v5475 = vmul.f32 %v5411, %v5411
  %v5476 = vmul.f32 %v5412, %v5412
  %v5477 = vmul.f32 %v5413, %v5413
  %v5478 = vmul.f32 %v5414, %v5414
  %v5479 = vmul.f32 %v5415, %v5415
  %v5480 = vmul.f32 %v5416, %v5416
  %v5481 = vmul.f32 %v5417, %v5417
  %v5482 = vmul.f32 %v5418, %v5418
  %v5483 = vmul.f32 %v5419, %v5419
  %v5484 = vmul.f32 %v5420, %v5420
  %v5485 = vmul.f32 %v5421, %v5421
  %v5486 = vmul.f32 %v5422, %v5422
  %v5487 = vmul.f32 %v5423, %v5423
  %v5488 = vmul.f32 %v5424, %v5424
  %v5489 = vmul.f32 %v5425, %v5425
  %v5490 = vmul.f32 %v5426, %v5426
  %v5491 = vmul.f32 %v5427, %v5427
  %v5492 = vmul.f32 %v5428, %v5428
  %v5493 = vmul.f32 %v5429, %v5429
  %v5494 = vmul.f32 %v5430, %v5430
  %v5495 = vmul.f32 %v5431, %v5431
  %v5496 = vmul.f32 %v5432, %v5432
  %v5497 = vmul.f32 %v5433, %v5433
  %v5498 = vmul.f32 %v5434, %v5434
  %v5499 = vmul.f32 %v5435, %v5435
  %v5500 = vmul.f32 %v5436, %v5436
  %v5501 = vmul.f32 %v5437, %v5437
  %v5502 = vmul.f32 %v5438, %v5438
  %v5503 = vmul.f32 %v5439, %v5439
  %v5504 = vmul.f32 %v5440, %v5440
  %v5505 = vmul.f32 %v5441, %v5441
  %v5506 = vmul.f32 %v5442, %v5442
  %v5507 = vmul.f32 %v5443, %v5443
  %v5508 = vmul.f32 %v5444, %v5444
  %v5509 = vmul.f32 %v5445, %v5445
  %v5510 = vmul.f32 %v5446, %v5446
  %v5511 = vmul.f32 %v5447, %v5447
  %v5512 = vmul.f32 %v5448, %v5448
  %v5513 = vsel %vm3079, %v5449, 0.0
  %v5514 = vsel %vm3079, %v5450, 0.0
  %v5515 = vadd.f32 %v5513, %v5514
  %v5516 = vsel %vm3079, %v5451, 0.0
  %v5517 = vadd.f32 %v5515, %v5516
  %v5518 = vsel %vm3079, %v5452, 0.0
  %v5519 = vadd.f32 %v5517, %v5518
  %v5520 = vsel %vm3079, %v5453, 0.0
  %v5521 = vadd.f32 %v5519, %v5520
  %v5522 = vsel %vm3079, %v5454, 0.0
  %v5523 = vadd.f32 %v5521, %v5522
  %v5524 = vsel %vm3079, %v5455, 0.0
  %v5525 = vadd.f32 %v5523, %v5524
  %v5526 = vsel %vm3079, %v5456, 0.0
  %v5527 = vadd.f32 %v5525, %v5526
  %v5528 = vsel %vm3079, %v5457, 0.0
  %v5529 = vadd.f32 %v5527, %v5528
  %v5530 = vsel %vm3079, %v5458, 0.0
  %v5531 = vadd.f32 %v5529, %v5530
  %v5532 = vsel %vm3079, %v5459, 0.0
  %v5533 = vadd.f32 %v5531, %v5532
  %v5534 = vsel %vm3079, %v5460, 0.0
  %v5535 = vadd.f32 %v5533, %v5534
  %v5536 = vsel %vm3079, %v5461, 0.0
  %v5537 = vadd.f32 %v5535, %v5536
  %v5538 = vsel %vm3079, %v5462, 0.0
  %v5539 = vadd.f32 %v5537, %v5538
  %v5540 = vsel %vm3079, %v5463, 0.0
  %v5541 = vadd.f32 %v5539, %v5540
  %v5542 = vsel %vm3079, %v5464, 0.0
  %v5543 = vadd.f32 %v5541, %v5542
  %v5544 = vsel %vm3079, %v5465, 0.0
  %v5545 = vadd.f32 %v5543, %v5544
  %v5546 = vsel %vm3079, %v5466, 0.0
  %v5547 = vadd.f32 %v5545, %v5546
  %v5548 = vsel %vm3079, %v5467, 0.0
  %v5549 = vadd.f32 %v5547, %v5548
  %v5550 = vsel %vm3079, %v5468, 0.0
  %v5551 = vadd.f32 %v5549, %v5550
  %v5552 = vsel %vm3079, %v5469, 0.0
  %v5553 = vadd.f32 %v5551, %v5552
  %v5554 = vsel %vm3079, %v5470, 0.0
  %v5555 = vadd.f32 %v5553, %v5554
  %v5556 = vsel %vm3079, %v5471, 0.0
  %v5557 = vadd.f32 %v5555, %v5556
  %v5558 = vsel %vm3079, %v5472, 0.0
  %v5559 = vadd.f32 %v5557, %v5558
  %v5560 = vsel %vm3079, %v5473, 0.0
  %v5561 = vadd.f32 %v5559, %v5560
  %v5562 = vsel %vm3079, %v5474, 0.0
  %v5563 = vadd.f32 %v5561, %v5562
  %v5564 = vsel %vm3079, %v5475, 0.0
  %v5565 = vadd.f32 %v5563, %v5564
  %v5566 = vsel %vm3079, %v5476, 0.0
  %v5567 = vadd.f32 %v5565, %v5566
  %v5568 = vsel %vm3079, %v5477, 0.0
  %v5569 = vadd.f32 %v5567, %v5568
  %v5570 = vsel %vm3079, %v5478, 0.0
  %v5571 = vadd.f32 %v5569, %v5570
  %v5572 = vsel %vm3079, %v5479, 0.0
  %v5573 = vadd.f32 %v5571, %v5572
  %v5574 = vsel %vm3079, %v5480, 0.0
  %v5575 = vadd.f32 %v5573, %v5574
  %v5576 = vsel %vm3079, %v5481, 0.0
  %v5577 = vadd.f32 %v5575, %v5576
  %v5578 = vsel %vm3079, %v5482, 0.0
  %v5579 = vadd.f32 %v5577, %v5578
  %v5580 = vsel %vm3079, %v5483, 0.0
  %v5581 = vadd.f32 %v5579, %v5580
  %v5582 = vsel %vm3079, %v5484, 0.0
  %v5583 = vadd.f32 %v5581, %v5582
  %v5584 = vsel %vm3079, %v5485, 0.0
  %v5585 = vadd.f32 %v5583, %v5584
  %v5586 = vsel %vm3079, %v5486, 0.0
  %v5587 = vadd.f32 %v5585, %v5586
  %v5588 = vsel %vm3079, %v5487, 0.0
  %v5589 = vadd.f32 %v5587, %v5588
  %v5590 = vsel %vm3079, %v5488, 0.0
  %v5591 = vadd.f32 %v5589, %v5590
  %v5592 = vsel %vm3079, %v5489, 0.0
  %v5593 = vadd.f32 %v5591, %v5592
  %v5594 = vsel %vm3079, %v5490, 0.0
  %v5595 = vadd.f32 %v5593, %v5594
  %v5596 = vsel %vm3079, %v5491, 0.0
  %v5597 = vadd.f32 %v5595, %v5596
  %v5598 = vsel %vm3079, %v5492, 0.0
  %v5599 = vadd.f32 %v5597, %v5598
  %v5600 = vsel %vm3079, %v5493, 0.0
  %v5601 = vadd.f32 %v5599, %v5600
  %v5602 = vsel %vm3079, %v5494, 0.0
  %v5603 = vadd.f32 %v5601, %v5602
  %v5604 = vsel %vm3079, %v5495, 0.0
  %v5605 = vadd.f32 %v5603, %v5604
  %v5606 = vsel %vm3079, %v5496, 0.0
  %v5607 = vadd.f32 %v5605, %v5606
  %v5608 = vsel %vm3079, %v5497, 0.0
  %v5609 = vadd.f32 %v5607, %v5608
  %v5610 = vsel %vm3079, %v5498, 0.0
  %v5611 = vadd.f32 %v5609, %v5610
  %v5612 = vsel %vm3079, %v5499, 0.0
  %v5613 = vadd.f32 %v5611, %v5612
  %v5614 = vsel %vm3079, %v5500, 0.0
  %v5615 = vadd.f32 %v5613, %v5614
  %v5616 = vsel %vm3079, %v5501, 0.0
  %v5617 = vadd.f32 %v5615, %v5616
  %v5618 = vsel %vm3079, %v5502, 0.0
  %v5619 = vadd.f32 %v5617, %v5618
  %v5620 = vsel %vm3079, %v5503, 0.0
  %v5621 = vadd.f32 %v5619, %v5620
  %v5622 = vsel %vm3079, %v5504, 0.0
  %v5623 = vadd.f32 %v5621, %v5622
  %v5624 = vsel %vm3079, %v5505, 0.0
  %v5625 = vadd.f32 %v5623, %v5624
  %v5626 = vsel %vm3079, %v5506, 0.0
  %v5627 = vadd.f32 %v5625, %v5626
  %v5628 = vsel %vm3079, %v5507, 0.0
  %v5629 = vadd.f32 %v5627, %v5628
  %v5630 = vsel %vm3079, %v5508, 0.0
  %v5631 = vadd.f32 %v5629, %v5630
  %v5632 = vsel %vm3079, %v5509, 0.0
  %v5633 = vadd.f32 %v5631, %v5632
  %v5634 = vsel %vm3079, %v5510, 0.0
  %v5635 = vadd.f32 %v5633, %v5634
  %v5636 = vsel %vm3079, %v5511, 0.0
  %v5637 = vadd.f32 %v5635, %v5636
  %v5638 = vsel %vm3079, %v5512, 0.0
  %v5639 = vadd.f32 %v5637, %v5638
  %v5640 = vrot.slane %v5639, 4
  %v5641 = vadd.f32 %v5639, %v5640
  %v5642 = vrot.slane %v5641, 2
  %v5643 = vadd.f32 %v5641, %v5642
  %v5644 = vrot.slane %v5643, 1
  %v5645 = vadd.f32 %v5643, %v5644
  %v5646 = vmul.f32 %v5645, %v244
  %v5647 = vadd.f32 %v5646, 1e-05
  %v5648 = vrsqrt.pop %v5647
  %v5649 = vmul.f32 %v5249, %v5648
  %v5650 = vmul.f32 %v5384, %v5649
  %v5651 = vsub.f32 %v5250, %v5650
  %v5653 = vlaneseq
  %v5654 = vshrl.u32 %v5653, 7
  %v5655 = vsub.s32 0, %v5654
  %v5656 = vrot.slane %v5649, %v5655
  %v5658 = vmul.f32 %v5185, %v5656
  %v5659 = vmul.f32 %v5186, %v5656
  %v5660 = vmul.f32 %v5187, %v5656
  %v5661 = vmul.f32 %v5188, %v5656
  %v5662 = vmul.f32 %v5189, %v5656
  %v5663 = vmul.f32 %v5190, %v5656
  %v5664 = vmul.f32 %v5191, %v5656
  %v5665 = vmul.f32 %v5192, %v5656
  %v5666 = vmul.f32 %v5193, %v5656
  %v5667 = vmul.f32 %v5194, %v5656
  %v5668 = vmul.f32 %v5195, %v5656
  %v5669 = vmul.f32 %v5196, %v5656
  %v5670 = vmul.f32 %v5197, %v5656
  %v5671 = vmul.f32 %v5198, %v5656
  %v5672 = vmul.f32 %v5199, %v5656
  %v5673 = vmul.f32 %v5200, %v5656
  %v5674 = vmul.f32 %v5201, %v5656
  %v5675 = vmul.f32 %v5202, %v5656
  %v5676 = vmul.f32 %v5203, %v5656
  %v5677 = vmul.f32 %v5204, %v5656
  %v5678 = vmul.f32 %v5205, %v5656
  %v5679 = vmul.f32 %v5206, %v5656
  %v5680 = vmul.f32 %v5207, %v5656
  %v5681 = vmul.f32 %v5208, %v5656
  %v5682 = vmul.f32 %v5209, %v5656
  %v5683 = vmul.f32 %v5210, %v5656
  %v5684 = vmul.f32 %v5211, %v5656
  %v5685 = vmul.f32 %v5212, %v5656
  %v5686 = vmul.f32 %v5213, %v5656
  %v5687 = vmul.f32 %v5214, %v5656
  %v5688 = vmul.f32 %v5215, %v5656
  %v5689 = vmul.f32 %v5216, %v5656
  %v5690 = vmul.f32 %v5217, %v5656
  %v5691 = vmul.f32 %v5218, %v5656
  %v5692 = vmul.f32 %v5219, %v5656
  %v5693 = vmul.f32 %v5220, %v5656
  %v5694 = vmul.f32 %v5221, %v5656
  %v5695 = vmul.f32 %v5222, %v5656
  %v5696 = vmul.f32 %v5223, %v5656
  %v5697 = vmul.f32 %v5224, %v5656
  %v5698 = vmul.f32 %v5225, %v5656
  %v5699 = vmul.f32 %v5226, %v5656
  %v5700 = vmul.f32 %v5227, %v5656
  %v5701 = vmul.f32 %v5228, %v5656
  %v5702 = vmul.f32 %v5229, %v5656
  %v5703 = vmul.f32 %v5230, %v5656
  %v5704 = vmul.f32 %v5231, %v5656
  %v5705 = vmul.f32 %v5232, %v5656
  %v5706 = vmul.f32 %v5233, %v5656
  %v5707 = vmul.f32 %v5234, %v5656
  %v5708 = vmul.f32 %v5235, %v5656
  %v5709 = vmul.f32 %v5236, %v5656
  %v5710 = vmul.f32 %v5237, %v5656
  %v5711 = vmul.f32 %v5238, %v5656
  %v5712 = vmul.f32 %v5239, %v5656
  %v5713 = vmul.f32 %v5240, %v5656
  %v5714 = vmul.f32 %v5241, %v5656
  %v5715 = vmul.f32 %v5242, %v5656
  %v5716 = vmul.f32 %v5243, %v5656
  %v5717 = vmul.f32 %v5244, %v5656
  %v5718 = vmul.f32 %v5245, %v5656
  %v5719 = vmul.f32 %v5246, %v5656
  %v5720 = vmul.f32 %v5247, %v5656
  %v5721 = vmul.f32 %v5248, %v5656
  %v5723 = vlaneseq
  %v5724 = vshrl.u32 %v5723, 7
  %v5725 = vsub.s32 0, %v5724
  %v5726 = vrot.slane %v5651, %v5725
  %v5728 = vadd.f32 %v5658, %v5726
  %v5729 = vadd.f32 %v5659, %v5726
  %v5730 = vadd.f32 %v5660, %v5726
  %v5731 = vadd.f32 %v5661, %v5726
  %v5732 = vadd.f32 %v5662, %v5726
  %v5733 = vadd.f32 %v5663, %v5726
  %v5734 = vadd.f32 %v5664, %v5726
  %v5735 = vadd.f32 %v5665, %v5726
  %v5736 = vadd.f32 %v5666, %v5726
  %v5737 = vadd.f32 %v5667, %v5726
  %v5738 = vadd.f32 %v5668, %v5726
  %v5739 = vadd.f32 %v5669, %v5726
  %v5740 = vadd.f32 %v5670, %v5726
  %v5741 = vadd.f32 %v5671, %v5726
  %v5742 = vadd.f32 %v5672, %v5726
  %v5743 = vadd.f32 %v5673, %v5726
  %v5744 = vadd.f32 %v5674, %v5726
  %v5745 = vadd.f32 %v5675, %v5726
  %v5746 = vadd.f32 %v5676, %v5726
  %v5747 = vadd.f32 %v5677, %v5726
  %v5748 = vadd.f32 %v5678, %v5726
  %v5749 = vadd.f32 %v5679, %v5726
  %v5750 = vadd.f32 %v5680, %v5726
  %v5751 = vadd.f32 %v5681, %v5726
  %v5752 = vadd.f32 %v5682, %v5726
  %v5753 = vadd.f32 %v5683, %v5726
  %v5754 = vadd.f32 %v5684, %v5726
  %v5755 = vadd.f32 %v5685, %v5726
  %v5756 = vadd.f32 %v5686, %v5726
  %v5757 = vadd.f32 %v5687, %v5726
  %v5758 = vadd.f32 %v5688, %v5726
  %v5759 = vadd.f32 %v5689, %v5726
  %v5760 = vadd.f32 %v5690, %v5726
  %v5761 = vadd.f32 %v5691, %v5726
  %v5762 = vadd.f32 %v5692, %v5726
  %v5763 = vadd.f32 %v5693, %v5726
  %v5764 = vadd.f32 %v5694, %v5726
  %v5765 = vadd.f32 %v5695, %v5726
  %v5766 = vadd.f32 %v5696, %v5726
  %v5767 = vadd.f32 %v5697, %v5726
  %v5768 = vadd.f32 %v5698, %v5726
  %v5769 = vadd.f32 %v5699, %v5726
  %v5770 = vadd.f32 %v5700, %v5726
  %v5771 = vadd.f32 %v5701, %v5726
  %v5772 = vadd.f32 %v5702, %v5726
  %v5773 = vadd.f32 %v5703, %v5726
  %v5774 = vadd.f32 %v5704, %v5726
  %v5775 = vadd.f32 %v5705, %v5726
  %v5776 = vadd.f32 %v5706, %v5726
  %v5777 = vadd.f32 %v5707, %v5726
  %v5778 = vadd.f32 %v5708, %v5726
  %v5779 = vadd.f32 %v5709, %v5726
  %v5780 = vadd.f32 %v5710, %v5726
  %v5781 = vadd.f32 %v5711, %v5726
  %v5782 = vadd.f32 %v5712, %v5726
  %v5783 = vadd.f32 %v5713, %v5726
  %v5784 = vadd.f32 %v5714, %v5726
  %v5785 = vadd.f32 %v5715, %v5726
  %v5786 = vadd.f32 %v5716, %v5726
  %v5787 = vadd.f32 %v5717, %v5726
  %v5788 = vadd.f32 %v5718, %v5726
  %v5789 = vadd.f32 %v5719, %v5726
  %v5790 = vadd.f32 %v5720, %v5726
  %v5791 = vadd.f32 %v5721, %v5726
  %v5792 = vmax.f32 %v5728, 0.0
  %v5793 = vmax.f32 %v5729, 0.0
  %v5794 = vmax.f32 %v5730, 0.0
  %v5795 = vmax.f32 %v5731, 0.0
  %v5796 = vmax.f32 %v5732, 0.0
  %v5797 = vmax.f32 %v5733, 0.0
  %v5798 = vmax.f32 %v5734, 0.0
  %v5799 = vmax.f32 %v5735, 0.0
  %v5800 = vmax.f32 %v5736, 0.0
  %v5801 = vmax.f32 %v5737, 0.0
  %v5802 = vmax.f32 %v5738, 0.0
  %v5803 = vmax.f32 %v5739, 0.0
  %v5804 = vmax.f32 %v5740, 0.0
  %v5805 = vmax.f32 %v5741, 0.0
  %v5806 = vmax.f32 %v5742, 0.0
  %v5807 = vmax.f32 %v5743, 0.0
  %v5808 = vmax.f32 %v5744, 0.0
  %v5809 = vmax.f32 %v5745, 0.0
  %v5810 = vmax.f32 %v5746, 0.0
  %v5811 = vmax.f32 %v5747, 0.0
  %v5812 = vmax.f32 %v5748, 0.0
  %v5813 = vmax.f32 %v5749, 0.0
  %v5814 = vmax.f32 %v5750, 0.0
  %v5815 = vmax.f32 %v5751, 0.0
  %v5816 = vmax.f32 %v5752, 0.0
  %v5817 = vmax.f32 %v5753, 0.0
  %v5818 = vmax.f32 %v5754, 0.0
  %v5819 = vmax.f32 %v5755, 0.0
  %v5820 = vmax.f32 %v5756, 0.0
  %v5821 = vmax.f32 %v5757, 0.0
  %v5822 = vmax.f32 %v5758, 0.0
  %v5823 = vmax.f32 %v5759, 0.0
  %v5824 = vmax.f32 %v5760, 0.0
  %v5825 = vmax.f32 %v5761, 0.0
  %v5826 = vmax.f32 %v5762, 0.0
  %v5827 = vmax.f32 %v5763, 0.0
  %v5828 = vmax.f32 %v5764, 0.0
  %v5829 = vmax.f32 %v5765, 0.0
  %v5830 = vmax.f32 %v5766, 0.0
  %v5831 = vmax.f32 %v5767, 0.0
  %v5832 = vmax.f32 %v5768, 0.0
  %v5833 = vmax.f32 %v5769, 0.0
  %v5834 = vmax.f32 %v5770, 0.0
  %v5835 = vmax.f32 %v5771, 0.0
  %v5836 = vmax.f32 %v5772, 0.0
  %v5837 = vmax.f32 %v5773, 0.0
  %v5838 = vmax.f32 %v5774, 0.0
  %v5839 = vmax.f32 %v5775, 0.0
  %v5840 = vmax.f32 %v5776, 0.0
  %v5841 = vmax.f32 %v5777, 0.0
  %v5842 = vmax.f32 %v5778, 0.0
  %v5843 = vmax.f32 %v5779, 0.0
  %v5844 = vmax.f32 %v5780, 0.0
  %v5845 = vmax.f32 %v5781, 0.0
  %v5846 = vmax.f32 %v5782, 0.0
  %v5847 = vmax.f32 %v5783, 0.0
  %v5848 = vmax.f32 %v5784, 0.0
  %v5849 = vmax.f32 %v5785, 0.0
  %v5850 = vmax.f32 %v5786, 0.0
  %v5851 = vmax.f32 %v5787, 0.0
  %v5852 = vmax.f32 %v5788, 0.0
  %v5853 = vmax.f32 %v5789, 0.0
  %v5854 = vmax.f32 %v5790, 0.0
  %v5855 = vmax.f32 %v5791, 0.0
  %v5856 = vld [vmem:[%s11] sm:$0xff]
  %v5857 = vld [vmem:[%s11 + $0x8] sm:$0xff]
  %v5858 = vld [vmem:[%s11 + $0x10] sm:$0xff]
  %v5859 = vld [vmem:[%s11 + $0x18] sm:$0xff]
  %v5860 = vld [vmem:[%s11 + $0x20] sm:$0xff]
  %v5861 = vld [vmem:[%s11 + $0x28] sm:$0xff]
  %v5862 = vld [vmem:[%s11 + $0x30] sm:$0xff]
  %v5863 = vld [vmem:[%s11 + $0x38] sm:$0xff]
  %v5864 = vld [vmem:[%s11 + $0x40] sm:$0xff]
  %v5865 = vld [vmem:[%s11 + $0x48] sm:$0xff]
  %v5866 = vld [vmem:[%s11 + $0x50] sm:$0xff]
  %v5867 = vld [vmem:[%s11 + $0x58] sm:$0xff]
  %v5868 = vld [vmem:[%s11 + $0x60] sm:$0xff]
  %v5869 = vld [vmem:[%s11 + $0x68] sm:$0xff]
  %v5870 = vld [vmem:[%s11 + $0x70] sm:$0xff]
  %v5871 = vld [vmem:[%s11 + $0x78] sm:$0xff]
  %v5872 = vld [vmem:[%s11 + $0x80] sm:$0xff]
  %v5873 = vld [vmem:[%s11 + $0x88] sm:$0xff]
  %v5874 = vld [vmem:[%s12] sm:$0x1]
  %v5939 = vrot.slane %v5792, 7
  %v5940 = vrot.slane %v5793, 7
  %v5941 = vsel %vm724, %v5939, %v5940
  %v5942 = vrot.slane %v5794, 7
  %v5943 = vrot.slane %v5795, 7
  %v5944 = vsel %vm724, %v5942, %v5943
  %v5945 = vrot.slane %v5796, 7
  %v5946 = vrot.slane %v5797, 7
  %v5947 = vsel %vm724, %v5945, %v5946
  %v5948 = vrot.slane %v5798, 7
  %v5949 = vrot.slane %v5799, 7
  %v5950 = vsel %vm724, %v5948, %v5949
  %v5951 = vrot.slane %v5800, 7
  %v5952 = vrot.slane %v5801, 7
  %v5953 = vsel %vm724, %v5951, %v5952
  %v5954 = vrot.slane %v5802, 7
  %v5955 = vrot.slane %v5803, 7
  %v5956 = vsel %vm724, %v5954, %v5955
  %v5957 = vrot.slane %v5804, 7
  %v5958 = vrot.slane %v5805, 7
  %v5959 = vsel %vm724, %v5957, %v5958
  %v5960 = vrot.slane %v5806, 7
  %v5961 = vrot.slane %v5807, 7
  %v5962 = vsel %vm724, %v5960, %v5961
  %v5963 = vrot.slane %v5808, 7
  %v5964 = vrot.slane %v5809, 7
  %v5965 = vsel %vm724, %v5963, %v5964
  %v5966 = vrot.slane %v5810, 7
  %v5967 = vrot.slane %v5811, 7
  %v5968 = vsel %vm724, %v5966, %v5967
  %v5969 = vrot.slane %v5812, 7
  %v5970 = vrot.slane %v5813, 7
  %v5971 = vsel %vm724, %v5969, %v5970
  %v5972 = vrot.slane %v5814, 7
  %v5973 = vrot.slane %v5815, 7
  %v5974 = vsel %vm724, %v5972, %v5973
  %v5975 = vrot.slane %v5816, 7
  %v5976 = vrot.slane %v5817, 7
  %v5977 = vsel %vm724, %v5975, %v5976
  %v5978 = vrot.slane %v5818, 7
  %v5979 = vrot.slane %v5819, 7
  %v5980 = vsel %vm724, %v5978, %v5979
  %v5981 = vrot.slane %v5820, 7
  %v5982 = vrot.slane %v5821, 7
  %v5983 = vsel %vm724, %v5981, %v5982
  %v5984 = vrot.slane %v5822, 7
  %v5985 = vrot.slane %v5823, 7
  %v5986 = vsel %vm724, %v5984, %v5985
  %v5987 = vrot.slane %v5824, 7
  %v5988 = vrot.slane %v5825, 7
  %v5989 = vsel %vm724, %v5987, %v5988
  %v5990 = vrot.slane %v5826, 7
  %v5991 = vrot.slane %v5827, 7
  %v5992 = vsel %vm724, %v5990, %v5991
  %v5993 = vrot.slane %v5828, 7
  %v5994 = vrot.slane %v5829, 7
  %v5995 = vsel %vm724, %v5993, %v5994
  %v5996 = vrot.slane %v5830, 7
  %v5997 = vrot.slane %v5831, 7
  %v5998 = vsel %vm724, %v5996, %v5997
  %v5999 = vrot.slane %v5832, 7
  %v6000 = vrot.slane %v5833, 7
  %v6001 = vsel %vm724, %v5999, %v6000
  %v6002 = vrot.slane %v5834, 7
  %v6003 = vrot.slane %v5835, 7
  %v6004 = vsel %vm724, %v6002, %v6003
  %v6005 = vrot.slane %v5836, 7
  %v6006 = vrot.slane %v5837, 7
  %v6007 = vsel %vm724, %v6005, %v6006
  %v6008 = vrot.slane %v5838, 7
  %v6009 = vrot.slane %v5839, 7
  %v6010 = vsel %vm724, %v6008, %v6009
  %v6011 = vrot.slane %v5840, 7
  %v6012 = vrot.slane %v5841, 7
  %v6013 = vsel %vm724, %v6011, %v6012
  %v6014 = vrot.slane %v5842, 7
  %v6015 = vrot.slane %v5843, 7
  %v6016 = vsel %vm724, %v6014, %v6015
  %v6017 = vrot.slane %v5844, 7
  %v6018 = vrot.slane %v5845, 7
  %v6019 = vsel %vm724, %v6017, %v6018
  %v6020 = vrot.slane %v5846, 7
  %v6021 = vrot.slane %v5847, 7
  %v6022 = vsel %vm724, %v6020, %v6021
  %v6023 = vrot.slane %v5848, 7
  %v6024 = vrot.slane %v5849, 7
  %v6025 = vsel %vm724, %v6023, %v6024
  %v6026 = vrot.slane %v5850, 7
  %v6027 = vrot.slane %v5851, 7
  %v6028 = vsel %vm724, %v6026, %v6027
  %v6029 = vrot.slane %v5852, 7
  %v6030 = vrot.slane %v5853, 7
  %v6031 = vsel %vm724, %v6029, %v6030
  %v6032 = vrot.slane %v5854, 7
  %v6033 = vrot.slane %v5855, 7
  %v6034 = vsel %vm724, %v6032, %v6033
  %v6129 = vsel %vm724, 0.0, %v5939
  %v6130 = vsel %vm724, 0.0, %v5942
  %v6131 = vsel %vm724, 0.0, %v5945
  %v6132 = vsel %vm724, 0.0, %v5948
  %v6133 = vsel %vm724, 0.0, %v5951
  %v6134 = vsel %vm724, 0.0, %v5954
  %v6135 = vsel %vm724, 0.0, %v5957
  %v6136 = vsel %vm724, 0.0, %v5960
  %v6137 = vsel %vm724, 0.0, %v5963
  %v6138 = vsel %vm724, 0.0, %v5966
  %v6139 = vsel %vm724, 0.0, %v5969
  %v6140 = vsel %vm724, 0.0, %v5972
  %v6141 = vsel %vm724, 0.0, %v5975
  %v6142 = vsel %vm724, 0.0, %v5978
  %v6143 = vsel %vm724, 0.0, %v5981
  %v6144 = vsel %vm724, 0.0, %v5984
  %v6145 = vsel %vm724, 0.0, %v5987
  %v6146 = vsel %vm724, 0.0, %v5990
  %v6147 = vsel %vm724, 0.0, %v5993
  %v6148 = vsel %vm724, 0.0, %v5996
  %v6149 = vsel %vm724, 0.0, %v5999
  %v6150 = vsel %vm724, 0.0, %v6002
  %v6151 = vsel %vm724, 0.0, %v6005
  %v6152 = vsel %vm724, 0.0, %v6008
  %v6153 = vsel %vm724, 0.0, %v6011
  %v6154 = vsel %vm724, 0.0, %v6014
  %v6155 = vsel %vm724, 0.0, %v6017
  %v6156 = vsel %vm724, 0.0, %v6020
  %v6157 = vsel %vm724, 0.0, %v6023
  %v6158 = vsel %vm724, 0.0, %v6026
  %v6159 = vsel %vm724, 0.0, %v6029
  %v6160 = vsel %vm724, 0.0, %v6032
  %v6161 = vsel %vm724, %v5940, 0.0
  %v6162 = vsel %vm724, %v5943, 0.0
  %v6163 = vsel %vm724, %v5946, 0.0
  %v6164 = vsel %vm724, %v5949, 0.0
  %v6165 = vsel %vm724, %v5952, 0.0
  %v6166 = vsel %vm724, %v5955, 0.0
  %v6167 = vsel %vm724, %v5958, 0.0
  %v6168 = vsel %vm724, %v5961, 0.0
  %v6169 = vsel %vm724, %v5964, 0.0
  %v6170 = vsel %vm724, %v5967, 0.0
  %v6171 = vsel %vm724, %v5970, 0.0
  %v6172 = vsel %vm724, %v5973, 0.0
  %v6173 = vsel %vm724, %v5976, 0.0
  %v6174 = vsel %vm724, %v5979, 0.0
  %v6175 = vsel %vm724, %v5982, 0.0
  %v6176 = vsel %vm724, %v5985, 0.0
  %v6177 = vsel %vm724, %v5988, 0.0
  %v6178 = vsel %vm724, %v5991, 0.0
  %v6179 = vsel %vm724, %v5994, 0.0
  %v6180 = vsel %vm724, %v5997, 0.0
  %v6181 = vsel %vm724, %v6000, 0.0
  %v6182 = vsel %vm724, %v6003, 0.0
  %v6183 = vsel %vm724, %v6006, 0.0
  %v6184 = vsel %vm724, %v6009, 0.0
  %v6185 = vsel %vm724, %v6012, 0.0
  %v6186 = vsel %vm724, %v6015, 0.0
  %v6187 = vsel %vm724, %v6018, 0.0
  %v6188 = vsel %vm724, %v6021, 0.0
  %v6189 = vsel %vm724, %v6024, 0.0
  %v6190 = vsel %vm724, %v6027, 0.0
  %v6191 = vsel %vm724, %v6030, 0.0
  %v6192 = vsel %vm724, %v6033, 0.0
  %v6253 = vrot.slane %v6129, 1
  %v6254 = vrot.slane %v5941, 1
  %v6255 = vsel %vm1047, %v6253, %v6254
  %v6256 = vrot.slane %v6161, 1
  %v6257 = vsel %vm1047, %v6254, %v6256
  %v6258 = vrot.slane %v6130, 1
  %v6259 = vrot.slane %v5944, 1
  %v6260 = vsel %vm1047, %v6258, %v6259
  %v6261 = vrot.slane %v6162, 1
  %v6262 = vsel %vm1047, %v6259, %v6261
  %v6263 = vrot.slane %v6131, 1
  %v6264 = vrot.slane %v5947, 1
  %v6265 = vsel %vm1047, %v6263, %v6264
  %v6266 = vrot.slane %v6163, 1
  %v6267 = vsel %vm1047, %v6264, %v6266
  %v6268 = vrot.slane %v6132, 1
  %v6269 = vrot.slane %v5950, 1
  %v6270 = vsel %vm1047, %v6268, %v6269
  %v6271 = vrot.slane %v6164, 1
  %v6272 = vsel %vm1047, %v6269, %v6271
  %v6273 = vrot.slane %v6133, 1
  %v6274 = vrot.slane %v5953, 1
  %v6275 = vsel %vm1047, %v6273, %v6274
  %v6276 = vrot.slane %v6165, 1
  %v6277 = vsel %vm1047, %v6274, %v6276
  %v6278 = vrot.slane %v6134, 1
  %v6279 = vrot.slane %v5956, 1
  %v6280 = vsel %vm1047, %v6278, %v6279
  %v6281 = vrot.slane %v6166, 1
  %v6282 = vsel %vm1047, %v6279, %v6281
  %v6283 = vrot.slane %v6135, 1
  %v6284 = vrot.slane %v5959, 1
  %v6285 = vsel %vm1047, %v6283, %v6284
  %v6286 = vrot.slane %v6167, 1
  %v6287 = vsel %vm1047, %v6284, %v6286
  %v6288 = vrot.slane %v6136, 1
  %v6289 = vrot.slane %v5962, 1
  %v6290 = vsel %vm1047, %v6288, %v6289
  %v6291 = vrot.slane %v6168, 1
  %v6292 = vsel %vm1047, %v6289, %v6291
  %v6293 = vrot.slane %v6137, 1
  %v6294 = vrot.slane %v5965, 1
  %v6295 = vsel %vm1047, %v6293, %v6294
  %v6296 = vrot.slane %v6169, 1
  %v6297 = vsel %vm1047, %v6294, %v6296
  %v6298 = vrot.slane %v6138, 1
  %v6299 = vrot.slane %v5968, 1
  %v6300 = vsel %vm1047, %v6298, %v6299
  %v6301 = vrot.slane %v6170, 1
  %v6302 = vsel %vm1047, %v6299, %v6301
  %v6303 = vrot.slane %v6139, 1
  %v6304 = vrot.slane %v5971, 1
  %v6305 = vsel %vm1047, %v6303, %v6304
  %v6306 = vrot.slane %v6171, 1
  %v6307 = vsel %vm1047, %v6304, %v6306
  %v6308 = vrot.slane %v6140, 1
  %v6309 = vrot.slane %v5974, 1
  %v6310 = vsel %vm1047, %v6308, %v6309
  %v6311 = vrot.slane %v6172, 1
  %v6312 = vsel %vm1047, %v6309, %v6311
  %v6313 = vrot.slane %v6141, 1
  %v6314 = vrot.slane %v5977, 1
  %v6315 = vsel %vm1047, %v6313, %v6314
  %v6316 = vrot.slane %v6173, 1
  %v6317 = vsel %vm1047, %v6314, %v6316
  %v6318 = vrot.slane %v6142, 1
  %v6319 = vrot.slane %v5980, 1
  %v6320 = vsel %vm1047, %v6318, %v6319
  %v6321 = vrot.slane %v6174, 1
  %v6322 = vsel %vm1047, %v6319, %v6321
  %v6323 = vrot.slane %v6143, 1
  %v6324 = vrot.slane %v5983, 1
  %v6325 = vsel %vm1047, %v6323, %v6324
  %v6326 = vrot.slane %v6175, 1
  %v6327 = vsel %vm1047, %v6324, %v6326
  %v6328 = vrot.slane %v6145, 1
  %v6329 = vrot.slane %v5989, 1
  %v6330 = vsel %vm1047, %v6328, %v6329
  %v6331 = vrot.slane %v6177, 1
  %v6332 = vsel %vm1047, %v6329, %v6331
  %v6333 = vrot.slane %v6146, 1
  %v6334 = vrot.slane %v5992, 1
  %v6335 = vsel %vm1047, %v6333, %v6334
  %v6336 = vrot.slane %v6178, 1
  %v6337 = vsel %vm1047, %v6334, %v6336
  %v6338 = vrot.slane %v6147, 1
  %v6339 = vrot.slane %v5995, 1
  %v6340 = vsel %vm1047, %v6338, %v6339
  %v6341 = vrot.slane %v6179, 1
  %v6342 = vsel %vm1047, %v6339, %v6341
  %v6343 = vrot.slane %v6148, 1
  %v6344 = vrot.slane %v5998, 1
  %v6345 = vsel %vm1047, %v6343, %v6344
  %v6346 = vrot.slane %v6180, 1
  %v6347 = vsel %vm1047, %v6344, %v6346
  %v6348 = vrot.slane %v6149, 1
  %v6349 = vrot.slane %v6001, 1
  %v6350 = vsel %vm1047, %v6348, %v6349
  %v6351 = vrot.slane %v6181, 1
  %v6352 = vsel %vm1047, %v6349, %v6351
  %v6353 = vrot.slane %v6150, 1
  %v6354 = vrot.slane %v6004, 1
  %v6355 = vsel %vm1047, %v6353, %v6354
  %v6356 = vrot.slane %v6182, 1
  %v6357 = vsel %vm1047, %v6354, %v6356
  %v6358 = vrot.slane %v6151, 1
  %v6359 = vrot.slane %v6007, 1
  %v6360 = vsel %vm1047, %v6358, %v6359
  %v6361 = vrot.slane %v6183, 1
  %v6362 = vsel %vm1047, %v6359, %v6361
  %v6363 = vrot.slane %v6152, 1
  %v6364 = vrot.slane %v6010, 1
  %v6365 = vsel %vm1047, %v6363, %v6364
  %v6366 = vrot.slane %v6184, 1
  %v6367 = vsel %vm1047, %v6364, %v6366
  %v6368 = vrot.slane %v6153, 1
  %v6369 = vrot.slane %v6013, 1
  %v6370 = vsel %vm1047, %v6368, %v6369
  %v6371 = vrot.slane %v6185, 1
  %v6372 = vsel %vm1047, %v6369, %v6371
  %v6373 = vrot.slane %v6154, 1
  %v6374 = vrot.slane %v6016, 1
  %v6375 = vsel %vm1047, %v6373, %v6374
  %v6376 = vrot.slane %v6186, 1
  %v6377 = vsel %vm1047, %v6374, %v6376
  %v6378 = vrot.slane %v6155, 1
  %v6379 = vrot.slane %v6019, 1
  %v6380 = vsel %vm1047, %v6378, %v6379
  %v6381 = vrot.slane %v6187, 1
  %v6382 = vsel %vm1047, %v6379, %v6381
  %v6383 = vrot.slane %v6156, 1
  %v6384 = vrot.slane %v6022, 1
  %v6385 = vsel %vm1047, %v6383, %v6384
  %v6386 = vrot.slane %v6188, 1
  %v6387 = vsel %vm1047, %v6384, %v6386
  %v6388 = vrot.slane %v6157, 1
  %v6389 = vrot.slane %v6025, 1
  %v6390 = vsel %vm1047, %v6388, %v6389
  %v6391 = vrot.slane %v6189, 1
  %v6392 = vsel %vm1047, %v6389, %v6391
  %v6393 = vrot.slane %v6158, 1
  %v6394 = vrot.slane %v6028, 1
  %v6395 = vsel %vm1047, %v6393, %v6394
  %v6396 = vrot.slane %v6190, 1
  %v6397 = vsel %vm1047, %v6394, %v6396
  %v6398 = vrot.slane %v6159, 1
  %v6399 = vrot.slane %v6031, 1
  %v6400 = vsel %vm1047, %v6398, %v6399
  %v6401 = vrot.slane %v6191, 1
  %v6402 = vsel %vm1047, %v6399, %v6401
  %6403 = vrot.lane.b32.xlu0 %v1050, 16
  %v6404 = vpop.permute.xlu0 %6403
  %6405 = vrot.lane.b32.xlu0 %v1052, 16
  %v6406 = vpop.permute.xlu0 %6405
  %6407 = vrot.lane.b32.xlu0 %v6255, 16
  %v6408 = vpop.permute.xlu0 %6407
  %6409 = vrot.lane.b32.xlu0 %v6257, 16
  %v6410 = vpop.permute.xlu0 %6409
  %6411 = vrot.lane.b32.xlu0 %v6260, 16
  %v6412 = vpop.permute.xlu0 %6411
  %6413 = vrot.lane.b32.xlu0 %v6262, 16
  %v6414 = vpop.permute.xlu0 %6413
  %6415 = vrot.lane.b32.xlu0 %v6265, 16
  %v6416 = vpop.permute.xlu0 %6415
  %6417 = vrot.lane.b32.xlu0 %v6267, 16
  %v6418 = vpop.permute.xlu0 %6417
  %6419 = vrot.lane.b32.xlu0 %v6270, 16
  %v6420 = vpop.permute.xlu0 %6419
  %6421 = vrot.lane.b32.xlu0 %v6272, 16
  %v6422 = vpop.permute.xlu0 %6421
  %6423 = vrot.lane.b32.xlu0 %v6275, 16
  %v6424 = vpop.permute.xlu0 %6423
  %6425 = vrot.lane.b32.xlu0 %v6277, 16
  %v6426 = vpop.permute.xlu0 %6425
  %6427 = vrot.lane.b32.xlu0 %v6280, 16
  %v6428 = vpop.permute.xlu0 %6427
  %6429 = vrot.lane.b32.xlu0 %v6282, 16
  %v6430 = vpop.permute.xlu0 %6429
  %6431 = vrot.lane.b32.xlu0 %v6285, 16
  %v6432 = vpop.permute.xlu0 %6431
  %6433 = vrot.lane.b32.xlu0 %v6287, 16
  %v6434 = vpop.permute.xlu0 %6433
  %6435 = vrot.lane.b32.xlu0 %v6290, 16
  %v6436 = vpop.permute.xlu0 %6435
  %6437 = vrot.lane.b32.xlu0 %v6292, 16
  %v6438 = vpop.permute.xlu0 %6437
  %6439 = vrot.lane.b32.xlu0 %v6295, 16
  %v6440 = vpop.permute.xlu0 %6439
  %6441 = vrot.lane.b32.xlu0 %v6297, 16
  %v6442 = vpop.permute.xlu0 %6441
  %6443 = vrot.lane.b32.xlu0 %v6300, 16
  %v6444 = vpop.permute.xlu0 %6443
  %6445 = vrot.lane.b32.xlu0 %v6302, 16
  %v6446 = vpop.permute.xlu0 %6445
  %6447 = vrot.lane.b32.xlu0 %v6305, 16
  %v6448 = vpop.permute.xlu0 %6447
  %6449 = vrot.lane.b32.xlu0 %v6307, 16
  %v6450 = vpop.permute.xlu0 %6449
  %6451 = vrot.lane.b32.xlu0 %v6310, 16
  %v6452 = vpop.permute.xlu0 %6451
  %6453 = vrot.lane.b32.xlu0 %v6312, 16
  %v6454 = vpop.permute.xlu0 %6453
  %6455 = vrot.lane.b32.xlu0 %v6315, 16
  %v6456 = vpop.permute.xlu0 %6455
  %6457 = vrot.lane.b32.xlu0 %v6317, 16
  %v6458 = vpop.permute.xlu0 %6457
  %6459 = vrot.lane.b32.xlu0 %v6320, 16
  %v6460 = vpop.permute.xlu0 %6459
  %6461 = vrot.lane.b32.xlu0 %v6322, 16
  %v6462 = vpop.permute.xlu0 %6461
  %6463 = vrot.lane.b32.xlu0 %v6325, 16
  %v6464 = vpop.permute.xlu0 %6463
  %6465 = vrot.lane.b32.xlu0 %v6327, 16
  %v6466 = vpop.permute.xlu0 %6465
  %6467 = vrot.lane.b32.xlu0 %v6330, 16
  %v6468 = vpop.permute.xlu0 %6467
  %6469 = vrot.lane.b32.xlu0 %v6332, 16
  %v6470 = vpop.permute.xlu0 %6469
  %6471 = vrot.lane.b32.xlu0 %v6335, 16
  %v6472 = vpop.permute.xlu0 %6471
  %6473 = vrot.lane.b32.xlu0 %v6337, 16
  %v6474 = vpop.permute.xlu0 %6473
  %6475 = vrot.lane.b32.xlu0 %v6340, 16
  %v6476 = vpop.permute.xlu0 %6475
  %6477 = vrot.lane.b32.xlu0 %v6342, 16
  %v6478 = vpop.permute.xlu0 %6477
  %6479 = vrot.lane.b32.xlu0 %v6345, 16
  %v6480 = vpop.permute.xlu0 %6479
  %6481 = vrot.lane.b32.xlu0 %v6347, 16
  %v6482 = vpop.permute.xlu0 %6481
  %6483 = vrot.lane.b32.xlu0 %v6350, 16
  %v6484 = vpop.permute.xlu0 %6483
  %6485 = vrot.lane.b32.xlu0 %v6352, 16
  %v6486 = vpop.permute.xlu0 %6485
  %6487 = vrot.lane.b32.xlu0 %v6355, 16
  %v6488 = vpop.permute.xlu0 %6487
  %6489 = vrot.lane.b32.xlu0 %v6357, 16
  %v6490 = vpop.permute.xlu0 %6489
  %6491 = vrot.lane.b32.xlu0 %v6360, 16
  %v6492 = vpop.permute.xlu0 %6491
  %6493 = vrot.lane.b32.xlu0 %v6362, 16
  %v6494 = vpop.permute.xlu0 %6493
  %6495 = vrot.lane.b32.xlu0 %v6365, 16
  %v6496 = vpop.permute.xlu0 %6495
  %6497 = vrot.lane.b32.xlu0 %v6367, 16
  %v6498 = vpop.permute.xlu0 %6497
  %6499 = vrot.lane.b32.xlu0 %v6370, 16
  %v6500 = vpop.permute.xlu0 %6499
  %6501 = vrot.lane.b32.xlu0 %v6372, 16
  %v6502 = vpop.permute.xlu0 %6501
  %6503 = vrot.lane.b32.xlu0 %v6375, 16
  %v6504 = vpop.permute.xlu0 %6503
  %6505 = vrot.lane.b32.xlu0 %v6377, 16
  %v6506 = vpop.permute.xlu0 %6505
  %6507 = vrot.lane.b32.xlu0 %v6380, 16
  %v6508 = vpop.permute.xlu0 %6507
  %6509 = vrot.lane.b32.xlu0 %v6382, 16
  %v6510 = vpop.permute.xlu0 %6509
  %6511 = vrot.lane.b32.xlu0 %v6385, 16
  %v6512 = vpop.permute.xlu0 %6511
  %6513 = vrot.lane.b32.xlu0 %v6387, 16
  %v6514 = vpop.permute.xlu0 %6513
  %6515 = vrot.lane.b32.xlu0 %v6390, 16
  %v6516 = vpop.permute.xlu0 %6515
  %6517 = vrot.lane.b32.xlu0 %v6392, 16
  %v6518 = vpop.permute.xlu0 %6517
  %6519 = vrot.lane.b32.xlu0 %v6395, 16
  %v6520 = vpop.permute.xlu0 %6519
  %6521 = vrot.lane.b32.xlu0 %v6397, 16
  %v6522 = vpop.permute.xlu0 %6521
  %6523 = vrot.lane.b32.xlu0 %v6400, 16
  %v6524 = vpop.permute.xlu0 %6523
  %6525 = vrot.lane.b32.xlu0 %v6402, 16
  %v6526 = vpop.permute.xlu0 %6525
  %v6589 = vrot.slane %v6129, 2
  %v6590 = vrot.slane %v5941, 2
  %v6591 = vsel %vm1389, %v6589, %v6590
  %v6592 = vrot.slane %v6161, 2
  %v6593 = vsel %vm1389, %v6590, %v6592
  %v6594 = vrot.slane %v6130, 2
  %v6595 = vrot.slane %v5944, 2
  %v6596 = vsel %vm1389, %v6594, %v6595
  %v6597 = vrot.slane %v6162, 2
  %v6598 = vsel %vm1389, %v6595, %v6597
  %v6599 = vrot.slane %v6131, 2
  %v6600 = vrot.slane %v5947, 2
  %v6601 = vsel %vm1389, %v6599, %v6600
  %v6602 = vrot.slane %v6163, 2
  %v6603 = vsel %vm1389, %v6600, %v6602
  %v6604 = vrot.slane %v6132, 2
  %v6605 = vrot.slane %v5950, 2
  %v6606 = vsel %vm1389, %v6604, %v6605
  %v6607 = vrot.slane %v6164, 2
  %v6608 = vsel %vm1389, %v6605, %v6607
  %v6609 = vrot.slane %v6133, 2
  %v6610 = vrot.slane %v5953, 2
  %v6611 = vsel %vm1389, %v6609, %v6610
  %v6612 = vrot.slane %v6165, 2
  %v6613 = vsel %vm1389, %v6610, %v6612
  %v6614 = vrot.slane %v6134, 2
  %v6615 = vrot.slane %v5956, 2
  %v6616 = vsel %vm1389, %v6614, %v6615
  %v6617 = vrot.slane %v6166, 2
  %v6618 = vsel %vm1389, %v6615, %v6617
  %v6619 = vrot.slane %v6135, 2
  %v6620 = vrot.slane %v5959, 2
  %v6621 = vsel %vm1389, %v6619, %v6620
  %v6622 = vrot.slane %v6167, 2
  %v6623 = vsel %vm1389, %v6620, %v6622
  %v6624 = vrot.slane %v6136, 2
  %v6625 = vrot.slane %v5962, 2
  %v6626 = vsel %vm1389, %v6624, %v6625
  %v6627 = vrot.slane %v6168, 2
  %v6628 = vsel %vm1389, %v6625, %v6627
  %v6629 = vrot.slane %v6137, 2
  %v6630 = vrot.slane %v5965, 2
  %v6631 = vsel %vm1389, %v6629, %v6630
  %v6632 = vrot.slane %v6169, 2
  %v6633 = vsel %vm1389, %v6630, %v6632
  %v6634 = vrot.slane %v6138, 2
  %v6635 = vrot.slane %v5968, 2
  %v6636 = vsel %vm1389, %v6634, %v6635
  %v6637 = vrot.slane %v6170, 2
  %v6638 = vsel %vm1389, %v6635, %v6637
  %v6639 = vrot.slane %v6139, 2
  %v6640 = vrot.slane %v5971, 2
  %v6641 = vsel %vm1389, %v6639, %v6640
  %v6642 = vrot.slane %v6171, 2
  %v6643 = vsel %vm1389, %v6640, %v6642
  %v6644 = vrot.slane %v6140, 2
  %v6645 = vrot.slane %v5974, 2
  %v6646 = vsel %vm1389, %v6644, %v6645
  %v6647 = vrot.slane %v6172, 2
  %v6648 = vsel %vm1389, %v6645, %v6647
  %v6649 = vrot.slane %v6141, 2
  %v6650 = vrot.slane %v5977, 2
  %v6651 = vsel %vm1389, %v6649, %v6650
  %v6652 = vrot.slane %v6173, 2
  %v6653 = vsel %vm1389, %v6650, %v6652
  %v6654 = vrot.slane %v6142, 2
  %v6655 = vrot.slane %v5980, 2
  %v6656 = vsel %vm1389, %v6654, %v6655
  %v6657 = vrot.slane %v6174, 2
  %v6658 = vsel %vm1389, %v6655, %v6657
  %v6659 = vrot.slane %v6143, 2
  %v6660 = vrot.slane %v5983, 2
  %v6661 = vsel %vm1389, %v6659, %v6660
  %v6662 = vrot.slane %v6175, 2
  %v6663 = vsel %vm1389, %v6660, %v6662
  %v6664 = vrot.slane %v6145, 2
  %v6665 = vrot.slane %v5989, 2
  %v6666 = vsel %vm1389, %v6664, %v6665
  %v6667 = vrot.slane %v6177, 2
  %v6668 = vsel %vm1389, %v6665, %v6667
  %v6669 = vrot.slane %v6146, 2
  %v6670 = vrot.slane %v5992, 2
  %v6671 = vsel %vm1389, %v6669, %v6670
  %v6672 = vrot.slane %v6178, 2
  %v6673 = vsel %vm1389, %v6670, %v6672
  %v6674 = vrot.slane %v6147, 2
  %v6675 = vrot.slane %v5995, 2
  %v6676 = vsel %vm1389, %v6674, %v6675
  %v6677 = vrot.slane %v6179, 2
  %v6678 = vsel %vm1389, %v6675, %v6677
  %v6679 = vrot.slane %v6148, 2
  %v6680 = vrot.slane %v5998, 2
  %v6681 = vsel %vm1389, %v6679, %v6680
  %v6682 = vrot.slane %v6180, 2
  %v6683 = vsel %vm1389, %v6680, %v6682
  %v6684 = vrot.slane %v6149, 2
  %v6685 = vrot.slane %v6001, 2
  %v6686 = vsel %vm1389, %v6684, %v6685
  %v6687 = vrot.slane %v6181, 2
  %v6688 = vsel %vm1389, %v6685, %v6687
  %v6689 = vrot.slane %v6150, 2
  %v6690 = vrot.slane %v6004, 2
  %v6691 = vsel %vm1389, %v6689, %v6690
  %v6692 = vrot.slane %v6182, 2
  %v6693 = vsel %vm1389, %v6690, %v6692
  %v6694 = vrot.slane %v6151, 2
  %v6695 = vrot.slane %v6007, 2
  %v6696 = vsel %vm1389, %v6694, %v6695
  %v6697 = vrot.slane %v6183, 2
  %v6698 = vsel %vm1389, %v6695, %v6697
  %v6699 = vrot.slane %v6152, 2
  %v6700 = vrot.slane %v6010, 2
  %v6701 = vsel %vm1389, %v6699, %v6700
  %v6702 = vrot.slane %v6184, 2
  %v6703 = vsel %vm1389, %v6700, %v6702
  %v6704 = vrot.slane %v6153, 2
  %v6705 = vrot.slane %v6013, 2
  %v6706 = vsel %vm1389, %v6704, %v6705
  %v6707 = vrot.slane %v6185, 2
  %v6708 = vsel %vm1389, %v6705, %v6707
  %v6709 = vrot.slane %v6154, 2
  %v6710 = vrot.slane %v6016, 2
  %v6711 = vsel %vm1389, %v6709, %v6710
  %v6712 = vrot.slane %v6186, 2
  %v6713 = vsel %vm1389, %v6710, %v6712
  %v6714 = vrot.slane %v6155, 2
  %v6715 = vrot.slane %v6019, 2
  %v6716 = vsel %vm1389, %v6714, %v6715
  %v6717 = vrot.slane %v6187, 2
  %v6718 = vsel %vm1389, %v6715, %v6717
  %v6719 = vrot.slane %v6156, 2
  %v6720 = vrot.slane %v6022, 2
  %v6721 = vsel %vm1389, %v6719, %v6720
  %v6722 = vrot.slane %v6188, 2
  %v6723 = vsel %vm1389, %v6720, %v6722
  %v6724 = vrot.slane %v6157, 2
  %v6725 = vrot.slane %v6025, 2
  %v6726 = vsel %vm1389, %v6724, %v6725
  %v6727 = vrot.slane %v6189, 2
  %v6728 = vsel %vm1389, %v6725, %v6727
  %v6729 = vrot.slane %v6158, 2
  %v6730 = vrot.slane %v6028, 2
  %v6731 = vsel %vm1389, %v6729, %v6730
  %v6732 = vrot.slane %v6190, 2
  %v6733 = vsel %vm1389, %v6730, %v6732
  %v6734 = vrot.slane %v6159, 2
  %v6735 = vrot.slane %v6031, 2
  %v6736 = vsel %vm1389, %v6734, %v6735
  %v6737 = vrot.slane %v6191, 2
  %v6738 = vsel %vm1389, %v6735, %v6737
  %6739 = vrot.lane.b32.xlu0 %v6591, 32
  %v6740 = vpop.permute.xlu0 %6739
  %6741 = vrot.lane.b32.xlu0 %v6593, 32
  %v6742 = vpop.permute.xlu0 %6741
  %6743 = vrot.lane.b32.xlu0 %v6596, 32
  %v6744 = vpop.permute.xlu0 %6743
  %6745 = vrot.lane.b32.xlu0 %v6598, 32
  %v6746 = vpop.permute.xlu0 %6745
  %6747 = vrot.lane.b32.xlu0 %v6601, 32
  %v6748 = vpop.permute.xlu0 %6747
  %6749 = vrot.lane.b32.xlu0 %v6603, 32
  %v6750 = vpop.permute.xlu0 %6749
  %6751 = vrot.lane.b32.xlu0 %v6606, 32
  %v6752 = vpop.permute.xlu0 %6751
  %6753 = vrot.lane.b32.xlu0 %v6608, 32
  %v6754 = vpop.permute.xlu0 %6753
  %6755 = vrot.lane.b32.xlu0 %v6611, 32
  %v6756 = vpop.permute.xlu0 %6755
  %6757 = vrot.lane.b32.xlu0 %v6613, 32
  %v6758 = vpop.permute.xlu0 %6757
  %6759 = vrot.lane.b32.xlu0 %v6616, 32
  %v6760 = vpop.permute.xlu0 %6759
  %6761 = vrot.lane.b32.xlu0 %v6618, 32
  %v6762 = vpop.permute.xlu0 %6761
  %6763 = vrot.lane.b32.xlu0 %v6621, 32
  %v6764 = vpop.permute.xlu0 %6763
  %6765 = vrot.lane.b32.xlu0 %v6623, 32
  %v6766 = vpop.permute.xlu0 %6765
  %6767 = vrot.lane.b32.xlu0 %v6626, 32
  %v6768 = vpop.permute.xlu0 %6767
  %6769 = vrot.lane.b32.xlu0 %v6628, 32
  %v6770 = vpop.permute.xlu0 %6769
  %6771 = vrot.lane.b32.xlu0 %v6631, 32
  %v6772 = vpop.permute.xlu0 %6771
  %6773 = vrot.lane.b32.xlu0 %v6633, 32
  %v6774 = vpop.permute.xlu0 %6773
  %6775 = vrot.lane.b32.xlu0 %v6636, 32
  %v6776 = vpop.permute.xlu0 %6775
  %6777 = vrot.lane.b32.xlu0 %v6638, 32
  %v6778 = vpop.permute.xlu0 %6777
  %6779 = vrot.lane.b32.xlu0 %v6641, 32
  %v6780 = vpop.permute.xlu0 %6779
  %6781 = vrot.lane.b32.xlu0 %v6643, 32
  %v6782 = vpop.permute.xlu0 %6781
  %6783 = vrot.lane.b32.xlu0 %v6646, 32
  %v6784 = vpop.permute.xlu0 %6783
  %6785 = vrot.lane.b32.xlu0 %v6648, 32
  %v6786 = vpop.permute.xlu0 %6785
  %6787 = vrot.lane.b32.xlu0 %v6651, 32
  %v6788 = vpop.permute.xlu0 %6787
  %6789 = vrot.lane.b32.xlu0 %v6653, 32
  %v6790 = vpop.permute.xlu0 %6789
  %6791 = vrot.lane.b32.xlu0 %v6656, 32
  %v6792 = vpop.permute.xlu0 %6791
  %6793 = vrot.lane.b32.xlu0 %v6658, 32
  %v6794 = vpop.permute.xlu0 %6793
  %6795 = vrot.lane.b32.xlu0 %v6661, 32
  %v6796 = vpop.permute.xlu0 %6795
  %6797 = vrot.lane.b32.xlu0 %v6663, 32
  %v6798 = vpop.permute.xlu0 %6797
  %6799 = vrot.lane.b32.xlu0 %v6666, 32
  %v6800 = vpop.permute.xlu0 %6799
  %6801 = vrot.lane.b32.xlu0 %v6668, 32
  %v6802 = vpop.permute.xlu0 %6801
  %6803 = vrot.lane.b32.xlu0 %v6671, 32
  %v6804 = vpop.permute.xlu0 %6803
  %6805 = vrot.lane.b32.xlu0 %v6673, 32
  %v6806 = vpop.permute.xlu0 %6805
  %6807 = vrot.lane.b32.xlu0 %v6676, 32
  %v6808 = vpop.permute.xlu0 %6807
  %6809 = vrot.lane.b32.xlu0 %v6678, 32
  %v6810 = vpop.permute.xlu0 %6809
  %6811 = vrot.lane.b32.xlu0 %v6681, 32
  %v6812 = vpop.permute.xlu0 %6811
  %6813 = vrot.lane.b32.xlu0 %v6683, 32
  %v6814 = vpop.permute.xlu0 %6813
  %6815 = vrot.lane.b32.xlu0 %v6686, 32
  %v6816 = vpop.permute.xlu0 %6815
  %6817 = vrot.lane.b32.xlu0 %v6688, 32
  %v6818 = vpop.permute.xlu0 %6817
  %6819 = vrot.lane.b32.xlu0 %v6691, 32
  %v6820 = vpop.permute.xlu0 %6819
  %6821 = vrot.lane.b32.xlu0 %v6693, 32
  %v6822 = vpop.permute.xlu0 %6821
  %6823 = vrot.lane.b32.xlu0 %v6696, 32
  %v6824 = vpop.permute.xlu0 %6823
  %6825 = vrot.lane.b32.xlu0 %v6698, 32
  %v6826 = vpop.permute.xlu0 %6825
  %6827 = vrot.lane.b32.xlu0 %v6701, 32
  %v6828 = vpop.permute.xlu0 %6827
  %6829 = vrot.lane.b32.xlu0 %v6703, 32
  %v6830 = vpop.permute.xlu0 %6829
  %6831 = vrot.lane.b32.xlu0 %v6706, 32
  %v6832 = vpop.permute.xlu0 %6831
  %6833 = vrot.lane.b32.xlu0 %v6708, 32
  %v6834 = vpop.permute.xlu0 %6833
  %6835 = vrot.lane.b32.xlu0 %v6711, 32
  %v6836 = vpop.permute.xlu0 %6835
  %6837 = vrot.lane.b32.xlu0 %v6713, 32
  %v6838 = vpop.permute.xlu0 %6837
  %6839 = vrot.lane.b32.xlu0 %v6716, 32
  %v6840 = vpop.permute.xlu0 %6839
  %6841 = vrot.lane.b32.xlu0 %v6718, 32
  %v6842 = vpop.permute.xlu0 %6841
  %6843 = vrot.lane.b32.xlu0 %v6721, 32
  %v6844 = vpop.permute.xlu0 %6843
  %6845 = vrot.lane.b32.xlu0 %v6723, 32
  %v6846 = vpop.permute.xlu0 %6845
  %6847 = vrot.lane.b32.xlu0 %v6726, 32
  %v6848 = vpop.permute.xlu0 %6847
  %6849 = vrot.lane.b32.xlu0 %v6728, 32
  %v6850 = vpop.permute.xlu0 %6849
  %6851 = vrot.lane.b32.xlu0 %v6731, 32
  %v6852 = vpop.permute.xlu0 %6851
  %6853 = vrot.lane.b32.xlu0 %v6733, 32
  %v6854 = vpop.permute.xlu0 %6853
  %6855 = vrot.lane.b32.xlu0 %v6736, 32
  %v6856 = vpop.permute.xlu0 %6855
  %6857 = vrot.lane.b32.xlu0 %v6738, 32
  %v6858 = vpop.permute.xlu0 %6857
  %6921 = vrot.lane.b32.xlu0 %v6129, 48
  %v6922 = vpop.permute.xlu0 %6921
  %6923 = vrot.lane.b32.xlu0 %v5941, 48
  %v6924 = vpop.permute.xlu0 %6923
  %6925 = vrot.lane.b32.xlu0 %v6130, 48
  %v6926 = vpop.permute.xlu0 %6925
  %6927 = vrot.lane.b32.xlu0 %v5944, 48
  %v6928 = vpop.permute.xlu0 %6927
  %6929 = vrot.lane.b32.xlu0 %v6131, 48
  %v6930 = vpop.permute.xlu0 %6929
  %6931 = vrot.lane.b32.xlu0 %v5947, 48
  %v6932 = vpop.permute.xlu0 %6931
  %6933 = vrot.lane.b32.xlu0 %v6132, 48
  %v6934 = vpop.permute.xlu0 %6933
  %6935 = vrot.lane.b32.xlu0 %v5950, 48
  %v6936 = vpop.permute.xlu0 %6935
  %6937 = vrot.lane.b32.xlu0 %v6133, 48
  %v6938 = vpop.permute.xlu0 %6937
  %6939 = vrot.lane.b32.xlu0 %v5953, 48
  %v6940 = vpop.permute.xlu0 %6939
  %6941 = vrot.lane.b32.xlu0 %v6134, 48
  %v6942 = vpop.permute.xlu0 %6941
  %6943 = vrot.lane.b32.xlu0 %v5956, 48
  %v6944 = vpop.permute.xlu0 %6943
  %6945 = vrot.lane.b32.xlu0 %v6135, 48
  %v6946 = vpop.permute.xlu0 %6945
  %6947 = vrot.lane.b32.xlu0 %v5959, 48
  %v6948 = vpop.permute.xlu0 %6947
  %6949 = vrot.lane.b32.xlu0 %v6136, 48
  %v6950 = vpop.permute.xlu0 %6949
  %6951 = vrot.lane.b32.xlu0 %v5962, 48
  %v6952 = vpop.permute.xlu0 %6951
  %6953 = vrot.lane.b32.xlu0 %v6137, 48
  %v6954 = vpop.permute.xlu0 %6953
  %6955 = vrot.lane.b32.xlu0 %v5965, 48
  %v6956 = vpop.permute.xlu0 %6955
  %6957 = vrot.lane.b32.xlu0 %v6138, 48
  %v6958 = vpop.permute.xlu0 %6957
  %6959 = vrot.lane.b32.xlu0 %v5968, 48
  %v6960 = vpop.permute.xlu0 %6959
  %6961 = vrot.lane.b32.xlu0 %v6139, 48
  %v6962 = vpop.permute.xlu0 %6961
  %6963 = vrot.lane.b32.xlu0 %v5971, 48
  %v6964 = vpop.permute.xlu0 %6963
  %6965 = vrot.lane.b32.xlu0 %v6140, 48
  %v6966 = vpop.permute.xlu0 %6965
  %6967 = vrot.lane.b32.xlu0 %v5974, 48
  %v6968 = vpop.permute.xlu0 %6967
  %6969 = vrot.lane.b32.xlu0 %v6141, 48
  %v6970 = vpop.permute.xlu0 %6969
  %6971 = vrot.lane.b32.xlu0 %v5977, 48
  %v6972 = vpop.permute.xlu0 %6971
  %6973 = vrot.lane.b32.xlu0 %v6142, 48
  %v6974 = vpop.permute.xlu0 %6973
  %6975 = vrot.lane.b32.xlu0 %v5980, 48
  %v6976 = vpop.permute.xlu0 %6975
  %6977 = vrot.lane.b32.xlu0 %v6143, 48
  %v6978 = vpop.permute.xlu0 %6977
  %6979 = vrot.lane.b32.xlu0 %v5983, 48
  %v6980 = vpop.permute.xlu0 %6979
  %6981 = vrot.lane.b32.xlu0 %v6144, 48
  %v6982 = vpop.permute.xlu0 %6981
  %6983 = vrot.lane.b32.xlu0 %v5986, 48
  %v6984 = vpop.permute.xlu0 %6983
  %6985 = vrot.lane.b32.xlu0 %v6145, 48
  %v6986 = vpop.permute.xlu0 %6985
  %6987 = vrot.lane.b32.xlu0 %v5989, 48
  %v6988 = vpop.permute.xlu0 %6987
  %6989 = vrot.lane.b32.xlu0 %v6146, 48
  %v6990 = vpop.permute.xlu0 %6989
  %6991 = vrot.lane.b32.xlu0 %v5992, 48
  %v6992 = vpop.permute.xlu0 %6991
  %6993 = vrot.lane.b32.xlu0 %v6147, 48
  %v6994 = vpop.permute.xlu0 %6993
  %6995 = vrot.lane.b32.xlu0 %v5995, 48
  %v6996 = vpop.permute.xlu0 %6995
  %6997 = vrot.lane.b32.xlu0 %v6148, 48
  %v6998 = vpop.permute.xlu0 %6997
  %6999 = vrot.lane.b32.xlu0 %v5998, 48
  %v7000 = vpop.permute.xlu0 %6999
  %7001 = vrot.lane.b32.xlu0 %v6149, 48
  %v7002 = vpop.permute.xlu0 %7001
  %7003 = vrot.lane.b32.xlu0 %v6001, 48
  %v7004 = vpop.permute.xlu0 %7003
  %7005 = vrot.lane.b32.xlu0 %v6150, 48
  %v7006 = vpop.permute.xlu0 %7005
  %7007 = vrot.lane.b32.xlu0 %v6004, 48
  %v7008 = vpop.permute.xlu0 %7007
  %7009 = vrot.lane.b32.xlu0 %v6151, 48
  %v7010 = vpop.permute.xlu0 %7009
  %7011 = vrot.lane.b32.xlu0 %v6007, 48
  %v7012 = vpop.permute.xlu0 %7011
  %7013 = vrot.lane.b32.xlu0 %v6152, 48
  %v7014 = vpop.permute.xlu0 %7013
  %7015 = vrot.lane.b32.xlu0 %v6010, 48
  %v7016 = vpop.permute.xlu0 %7015
  %7017 = vrot.lane.b32.xlu0 %v6153, 48
  %v7018 = vpop.permute.xlu0 %7017
  %7019 = vrot.lane.b32.xlu0 %v6013, 48
  %v7020 = vpop.permute.xlu0 %7019
  %7021 = vrot.lane.b32.xlu0 %v6154, 48
  %v7022 = vpop.permute.xlu0 %7021
  %7023 = vrot.lane.b32.xlu0 %v6016, 48
  %v7024 = vpop.permute.xlu0 %7023
  %7025 = vrot.lane.b32.xlu0 %v6155, 48
  %v7026 = vpop.permute.xlu0 %7025
  %7027 = vrot.lane.b32.xlu0 %v6019, 48
  %v7028 = vpop.permute.xlu0 %7027
  %7029 = vrot.lane.b32.xlu0 %v6156, 48
  %v7030 = vpop.permute.xlu0 %7029
  %7031 = vrot.lane.b32.xlu0 %v6022, 48
  %v7032 = vpop.permute.xlu0 %7031
  %7033 = vrot.lane.b32.xlu0 %v6157, 48
  %v7034 = vpop.permute.xlu0 %7033
  %7035 = vrot.lane.b32.xlu0 %v6025, 48
  %v7036 = vpop.permute.xlu0 %7035
  %7037 = vrot.lane.b32.xlu0 %v6158, 48
  %v7038 = vpop.permute.xlu0 %7037
  %7039 = vrot.lane.b32.xlu0 %v6028, 48
  %v7040 = vpop.permute.xlu0 %7039
  %7041 = vrot.lane.b32.xlu0 %v6159, 48
  %v7042 = vpop.permute.xlu0 %7041
  %7043 = vrot.lane.b32.xlu0 %v6031, 48
  %v7044 = vpop.permute.xlu0 %7043
  %7045 = vrot.lane.b32.xlu0 %v6160, 48
  %v7046 = vpop.permute.xlu0 %7045
  %7047 = vrot.lane.b32.xlu0 %v6034, 48
  %v7048 = vpop.permute.xlu0 %7047
  %v7115 = vrot.slane %v6144, 1
  %v7116 = vrot.slane %v5986, 1
  %v7117 = vsel %vm1047, %v7115, %v7116
  %v7118 = vrot.slane %v6176, 1
  %v7119 = vsel %vm1047, %v7116, %v7118
  %v7120 = vrot.slane %v6160, 1
  %v7121 = vrot.slane %v6034, 1
  %v7122 = vsel %vm1047, %v7120, %v7121
  %v7123 = vrot.slane %v6192, 1
  %v7124 = vsel %vm1047, %v7121, %v7123
  %7125 = vrot.lane.b32.xlu0 %v6255, 64
  %v7126 = vpop.permute.xlu0 %7125
  %7127 = vrot.lane.b32.xlu0 %v6257, 64
  %v7128 = vpop.permute.xlu0 %7127
  %7129 = vrot.lane.b32.xlu0 %v6260, 64
  %v7130 = vpop.permute.xlu0 %7129
  %7131 = vrot.lane.b32.xlu0 %v6262, 64
  %v7132 = vpop.permute.xlu0 %7131
  %7133 = vrot.lane.b32.xlu0 %v6265, 64
  %v7134 = vpop.permute.xlu0 %7133
  %7135 = vrot.lane.b32.xlu0 %v6267, 64
  %v7136 = vpop.permute.xlu0 %7135
  %7137 = vrot.lane.b32.xlu0 %v6270, 64
  %v7138 = vpop.permute.xlu0 %7137
  %7139 = vrot.lane.b32.xlu0 %v6272, 64
  %v7140 = vpop.permute.xlu0 %7139
  %7141 = vrot.lane.b32.xlu0 %v6275, 64
  %v7142 = vpop.permute.xlu0 %7141
  %7143 = vrot.lane.b32.xlu0 %v6277, 64
  %v7144 = vpop.permute.xlu0 %7143
  %7145 = vrot.lane.b32.xlu0 %v6280, 64
  %v7146 = vpop.permute.xlu0 %7145
  %7147 = vrot.lane.b32.xlu0 %v6282, 64
  %v7148 = vpop.permute.xlu0 %7147
  %7149 = vrot.lane.b32.xlu0 %v6285, 64
  %v7150 = vpop.permute.xlu0 %7149
  %7151 = vrot.lane.b32.xlu0 %v6287, 64
  %v7152 = vpop.permute.xlu0 %7151
  %7153 = vrot.lane.b32.xlu0 %v6290, 64
  %v7154 = vpop.permute.xlu0 %7153
  %7155 = vrot.lane.b32.xlu0 %v6292, 64
  %v7156 = vpop.permute.xlu0 %7155
  %7157 = vrot.lane.b32.xlu0 %v6295, 64
  %v7158 = vpop.permute.xlu0 %7157
  %7159 = vrot.lane.b32.xlu0 %v6297, 64
  %v7160 = vpop.permute.xlu0 %7159
  %7161 = vrot.lane.b32.xlu0 %v6300, 64
  %v7162 = vpop.permute.xlu0 %7161
  %7163 = vrot.lane.b32.xlu0 %v6302, 64
  %v7164 = vpop.permute.xlu0 %7163
  %7165 = vrot.lane.b32.xlu0 %v6305, 64
  %v7166 = vpop.permute.xlu0 %7165
  %7167 = vrot.lane.b32.xlu0 %v6307, 64
  %v7168 = vpop.permute.xlu0 %7167
  %7169 = vrot.lane.b32.xlu0 %v6310, 64
  %v7170 = vpop.permute.xlu0 %7169
  %7171 = vrot.lane.b32.xlu0 %v6312, 64
  %v7172 = vpop.permute.xlu0 %7171
  %7173 = vrot.lane.b32.xlu0 %v6315, 64
  %v7174 = vpop.permute.xlu0 %7173
  %7175 = vrot.lane.b32.xlu0 %v6317, 64
  %v7176 = vpop.permute.xlu0 %7175
  %7177 = vrot.lane.b32.xlu0 %v6320, 64
  %v7178 = vpop.permute.xlu0 %7177
  %7179 = vrot.lane.b32.xlu0 %v6322, 64
  %v7180 = vpop.permute.xlu0 %7179
  %7181 = vrot.lane.b32.xlu0 %v6325, 64
  %v7182 = vpop.permute.xlu0 %7181
  %7183 = vrot.lane.b32.xlu0 %v6327, 64
  %v7184 = vpop.permute.xlu0 %7183
  %7185 = vrot.lane.b32.xlu0 %v7117, 64
  %v7186 = vpop.permute.xlu0 %7185
  %7187 = vrot.lane.b32.xlu0 %v7119, 64
  %v7188 = vpop.permute.xlu0 %7187
  %7189 = vrot.lane.b32.xlu0 %v6330, 64
  %v7190 = vpop.permute.xlu0 %7189
  %7191 = vrot.lane.b32.xlu0 %v6332, 64
  %v7192 = vpop.permute.xlu0 %7191
  %7193 = vrot.lane.b32.xlu0 %v6335, 64
  %v7194 = vpop.permute.xlu0 %7193
  %7195 = vrot.lane.b32.xlu0 %v6337, 64
  %v7196 = vpop.permute.xlu0 %7195
  %7197 = vrot.lane.b32.xlu0 %v6340, 64
  %v7198 = vpop.permute.xlu0 %7197
  %7199 = vrot.lane.b32.xlu0 %v6342, 64
  %v7200 = vpop.permute.xlu0 %7199
  %7201 = vrot.lane.b32.xlu0 %v6345, 64
  %v7202 = vpop.permute.xlu0 %7201
  %7203 = vrot.lane.b32.xlu0 %v6347, 64
  %v7204 = vpop.permute.xlu0 %7203
  %7205 = vrot.lane.b32.xlu0 %v6350, 64
  %v7206 = vpop.permute.xlu0 %7205
  %7207 = vrot.lane.b32.xlu0 %v6352, 64
  %v7208 = vpop.permute.xlu0 %7207
  %7209 = vrot.lane.b32.xlu0 %v6355, 64
  %v7210 = vpop.permute.xlu0 %7209
  %7211 = vrot.lane.b32.xlu0 %v6357, 64
  %v7212 = vpop.permute.xlu0 %7211
  %7213 = vrot.lane.b32.xlu0 %v6360, 64
  %v7214 = vpop.permute.xlu0 %7213
  %7215 = vrot.lane.b32.xlu0 %v6362, 64
  %v7216 = vpop.permute.xlu0 %7215
  %7217 = vrot.lane.b32.xlu0 %v6365, 64
  %v7218 = vpop.permute.xlu0 %7217
  %7219 = vrot.lane.b32.xlu0 %v6367, 64
  %v7220 = vpop.permute.xlu0 %7219
  %7221 = vrot.lane.b32.xlu0 %v6370, 64
  %v7222 = vpop.permute.xlu0 %7221
  %7223 = vrot.lane.b32.xlu0 %v6372, 64
  %v7224 = vpop.permute.xlu0 %7223
  %7225 = vrot.lane.b32.xlu0 %v6375, 64
  %v7226 = vpop.permute.xlu0 %7225
  %7227 = vrot.lane.b32.xlu0 %v6377, 64
  %v7228 = vpop.permute.xlu0 %7227
  %7229 = vrot.lane.b32.xlu0 %v6380, 64
  %v7230 = vpop.permute.xlu0 %7229
  %7231 = vrot.lane.b32.xlu0 %v6382, 64
  %v7232 = vpop.permute.xlu0 %7231
  %7233 = vrot.lane.b32.xlu0 %v6385, 64
  %v7234 = vpop.permute.xlu0 %7233
  %7235 = vrot.lane.b32.xlu0 %v6387, 64
  %v7236 = vpop.permute.xlu0 %7235
  %7237 = vrot.lane.b32.xlu0 %v6390, 64
  %v7238 = vpop.permute.xlu0 %7237
  %7239 = vrot.lane.b32.xlu0 %v6392, 64
  %v7240 = vpop.permute.xlu0 %7239
  %7241 = vrot.lane.b32.xlu0 %v6395, 64
  %v7242 = vpop.permute.xlu0 %7241
  %7243 = vrot.lane.b32.xlu0 %v6397, 64
  %v7244 = vpop.permute.xlu0 %7243
  %7245 = vrot.lane.b32.xlu0 %v6400, 64
  %v7246 = vpop.permute.xlu0 %7245
  %7247 = vrot.lane.b32.xlu0 %v6402, 64
  %v7248 = vpop.permute.xlu0 %7247
  %7249 = vrot.lane.b32.xlu0 %v7122, 64
  %v7250 = vpop.permute.xlu0 %7249
  %7251 = vrot.lane.b32.xlu0 %v7124, 64
  %v7252 = vpop.permute.xlu0 %7251
  %v7317 = vrot.slane %v6144, 2
  %v7318 = vrot.slane %v5986, 2
  %v7319 = vsel %vm1389, %v7317, %v7318
  %v7320 = vrot.slane %v6176, 2
  %v7321 = vsel %vm1389, %v7318, %v7320
  %v7322 = vrot.slane %v6160, 2
  %v7323 = vrot.slane %v6034, 2
  %v7324 = vsel %vm1389, %v7322, %v7323
  %v7325 = vrot.slane %v6192, 2
  %v7326 = vsel %vm1389, %v7323, %v7325
  %7327 = vrot.lane.b32.xlu0 %v6591, 80
  %v7328 = vpop.permute.xlu0 %7327
  %7329 = vrot.lane.b32.xlu0 %v6593, 80
  %v7330 = vpop.permute.xlu0 %7329
  %7331 = vrot.lane.b32.xlu0 %v6596, 80
  %v7332 = vpop.permute.xlu0 %7331
  %7333 = vrot.lane.b32.xlu0 %v6598, 80
  %v7334 = vpop.permute.xlu0 %7333
  %7335 = vrot.lane.b32.xlu0 %v6601, 80
  %v7336 = vpop.permute.xlu0 %7335
  %7337 = vrot.lane.b32.xlu0 %v6603, 80
  %v7338 = vpop.permute.xlu0 %7337
  %7339 = vrot.lane.b32.xlu0 %v6606, 80
  %v7340 = vpop.permute.xlu0 %7339
  %7341 = vrot.lane.b32.xlu0 %v6608, 80
  %v7342 = vpop.permute.xlu0 %7341
  %7343 = vrot.lane.b32.xlu0 %v6611, 80
  %v7344 = vpop.permute.xlu0 %7343
  %7345 = vrot.lane.b32.xlu0 %v6613, 80
  %v7346 = vpop.permute.xlu0 %7345
  %7347 = vrot.lane.b32.xlu0 %v6616, 80
  %v7348 = vpop.permute.xlu0 %7347
  %7349 = vrot.lane.b32.xlu0 %v6618, 80
  %v7350 = vpop.permute.xlu0 %7349
  %7351 = vrot.lane.b32.xlu0 %v6621, 80
  %v7352 = vpop.permute.xlu0 %7351
  %7353 = vrot.lane.b32.xlu0 %v6623, 80
  %v7354 = vpop.permute.xlu0 %7353
  %7355 = vrot.lane.b32.xlu0 %v6626, 80
  %v7356 = vpop.permute.xlu0 %7355
  %7357 = vrot.lane.b32.xlu0 %v6628, 80
  %v7358 = vpop.permute.xlu0 %7357
  %7359 = vrot.lane.b32.xlu0 %v6631, 80
  %v7360 = vpop.permute.xlu0 %7359
  %7361 = vrot.lane.b32.xlu0 %v6633, 80
  %v7362 = vpop.permute.xlu0 %7361
  %7363 = vrot.lane.b32.xlu0 %v6636, 80
  %v7364 = vpop.permute.xlu0 %7363
  %7365 = vrot.lane.b32.xlu0 %v6638, 80
  %v7366 = vpop.permute.xlu0 %7365
  %7367 = vrot.lane.b32.xlu0 %v6641, 80
  %v7368 = vpop.permute.xlu0 %7367
  %7369 = vrot.lane.b32.xlu0 %v6643, 80
  %v7370 = vpop.permute.xlu0 %7369
  %7371 = vrot.lane.b32.xlu0 %v6646, 80
  %v7372 = vpop.permute.xlu0 %7371
  %7373 = vrot.lane.b32.xlu0 %v6648, 80
  %v7374 = vpop.permute.xlu0 %7373
  %7375 = vrot.lane.b32.xlu0 %v6651, 80
  %v7376 = vpop.permute.xlu0 %7375
  %7377 = vrot.lane.b32.xlu0 %v6653, 80
  %v7378 = vpop.permute.xlu0 %7377
  %7379 = vrot.lane.b32.xlu0 %v6656, 80
  %v7380 = vpop.permute.xlu0 %7379
  %7381 = vrot.lane.b32.xlu0 %v6658, 80
  %v7382 = vpop.permute.xlu0 %7381
  %7383 = vrot.lane.b32.xlu0 %v6661, 80
  %v7384 = vpop.permute.xlu0 %7383
  %7385 = vrot.lane.b32.xlu0 %v6663, 80
  %v7386 = vpop.permute.xlu0 %7385
  %7387 = vrot.lane.b32.xlu0 %v7319, 80
  %v7388 = vpop.permute.xlu0 %7387
  %7389 = vrot.lane.b32.xlu0 %v7321, 80
  %v7390 = vpop.permute.xlu0 %7389
  %7391 = vrot.lane.b32.xlu0 %v6666, 80
  %v7392 = vpop.permute.xlu0 %7391
  %7393 = vrot.lane.b32.xlu0 %v6668, 80
  %v7394 = vpop.permute.xlu0 %7393
  %7395 = vrot.lane.b32.xlu0 %v6671, 80
  %v7396 = vpop.permute.xlu0 %7395
  %7397 = vrot.lane.b32.xlu0 %v6673, 80
  %v7398 = vpop.permute.xlu0 %7397
  %7399 = vrot.lane.b32.xlu0 %v6676, 80
  %v7400 = vpop.permute.xlu0 %7399
  %7401 = vrot.lane.b32.xlu0 %v6678, 80
  %v7402 = vpop.permute.xlu0 %7401
  %7403 = vrot.lane.b32.xlu0 %v6681, 80
  %v7404 = vpop.permute.xlu0 %7403
  %7405 = vrot.lane.b32.xlu0 %v6683, 80
  %v7406 = vpop.permute.xlu0 %7405
  %7407 = vrot.lane.b32.xlu0 %v6686, 80
  %v7408 = vpop.permute.xlu0 %7407
  %7409 = vrot.lane.b32.xlu0 %v6688, 80
  %v7410 = vpop.permute.xlu0 %7409
  %7411 = vrot.lane.b32.xlu0 %v6691, 80
  %v7412 = vpop.permute.xlu0 %7411
  %7413 = vrot.lane.b32.xlu0 %v6693, 80
  %v7414 = vpop.permute.xlu0 %7413
  %7415 = vrot.lane.b32.xlu0 %v6696, 80
  %v7416 = vpop.permute.xlu0 %7415
  %7417 = vrot.lane.b32.xlu0 %v6698, 80
  %v7418 = vpop.permute.xlu0 %7417
  %7419 = vrot.lane.b32.xlu0 %v6701, 80
  %v7420 = vpop.permute.xlu0 %7419
  %7421 = vrot.lane.b32.xlu0 %v6703, 80
  %v7422 = vpop.permute.xlu0 %7421
  %7423 = vrot.lane.b32.xlu0 %v6706, 80
  %v7424 = vpop.permute.xlu0 %7423
  %7425 = vrot.lane.b32.xlu0 %v6708, 80
  %v7426 = vpop.permute.xlu0 %7425
  %7427 = vrot.lane.b32.xlu0 %v6711, 80
  %v7428 = vpop.permute.xlu0 %7427
  %7429 = vrot.lane.b32.xlu0 %v6713, 80
  %v7430 = vpop.permute.xlu0 %7429
  %7431 = vrot.lane.b32.xlu0 %v6716, 80
  %v7432 = vpop.permute.xlu0 %7431
  %7433 = vrot.lane.b32.xlu0 %v6718, 80
  %v7434 = vpop.permute.xlu0 %7433
  %7435 = vrot.lane.b32.xlu0 %v6721, 80
  %v7436 = vpop.permute.xlu0 %7435
  %7437 = vrot.lane.b32.xlu0 %v6723, 80
  %v7438 = vpop.permute.xlu0 %7437
  %7439 = vrot.lane.b32.xlu0 %v6726, 80
  %v7440 = vpop.permute.xlu0 %7439
  %7441 = vrot.lane.b32.xlu0 %v6728, 80
  %v7442 = vpop.permute.xlu0 %7441
  %7443 = vrot.lane.b32.xlu0 %v6731, 80
  %v7444 = vpop.permute.xlu0 %7443
  %7445 = vrot.lane.b32.xlu0 %v6733, 80
  %v7446 = vpop.permute.xlu0 %7445
  %7447 = vrot.lane.b32.xlu0 %v6736, 80
  %v7448 = vpop.permute.xlu0 %7447
  %7449 = vrot.lane.b32.xlu0 %v6738, 80
  %v7450 = vpop.permute.xlu0 %7449
  %7451 = vrot.lane.b32.xlu0 %v7324, 80
  %v7452 = vpop.permute.xlu0 %7451
  %7453 = vrot.lane.b32.xlu0 %v7326, 80
  %v7454 = vpop.permute.xlu0 %7453
  %7519 = vrot.lane.b32.xlu0 %v6130, 96
  %v7520 = vpop.permute.xlu0 %7519
  %7521 = vrot.lane.b32.xlu0 %v5944, 96
  %v7522 = vpop.permute.xlu0 %7521
  %7523 = vrot.lane.b32.xlu0 %v6131, 96
  %v7524 = vpop.permute.xlu0 %7523
  %7525 = vrot.lane.b32.xlu0 %v5947, 96
  %v7526 = vpop.permute.xlu0 %7525
  %7527 = vrot.lane.b32.xlu0 %v6132, 96
  %v7528 = vpop.permute.xlu0 %7527
  %7529 = vrot.lane.b32.xlu0 %v5950, 96
  %v7530 = vpop.permute.xlu0 %7529
  %7531 = vrot.lane.b32.xlu0 %v6133, 96
  %v7532 = vpop.permute.xlu0 %7531
  %7533 = vrot.lane.b32.xlu0 %v5953, 96
  %v7534 = vpop.permute.xlu0 %7533
  %7535 = vrot.lane.b32.xlu0 %v6134, 96
  %v7536 = vpop.permute.xlu0 %7535
  %7537 = vrot.lane.b32.xlu0 %v5956, 96
  %v7538 = vpop.permute.xlu0 %7537
  %7539 = vrot.lane.b32.xlu0 %v6135, 96
  %v7540 = vpop.permute.xlu0 %7539
  %7541 = vrot.lane.b32.xlu0 %v5959, 96
  %v7542 = vpop.permute.xlu0 %7541
  %7543 = vrot.lane.b32.xlu0 %v6136, 96
  %v7544 = vpop.permute.xlu0 %7543
  %7545 = vrot.lane.b32.xlu0 %v5962, 96
  %v7546 = vpop.permute.xlu0 %7545
  %7547 = vrot.lane.b32.xlu0 %v6137, 96
  %v7548 = vpop.permute.xlu0 %7547
  %7549 = vrot.lane.b32.xlu0 %v5965, 96
  %v7550 = vpop.permute.xlu0 %7549
  %7551 = vrot.lane.b32.xlu0 %v6138, 96
  %v7552 = vpop.permute.xlu0 %7551
  %7553 = vrot.lane.b32.xlu0 %v5968, 96
  %v7554 = vpop.permute.xlu0 %7553
  %7555 = vrot.lane.b32.xlu0 %v6139, 96
  %v7556 = vpop.permute.xlu0 %7555
  %7557 = vrot.lane.b32.xlu0 %v5971, 96
  %v7558 = vpop.permute.xlu0 %7557
  %7559 = vrot.lane.b32.xlu0 %v6140, 96
  %v7560 = vpop.permute.xlu0 %7559
  %7561 = vrot.lane.b32.xlu0 %v5974, 96
  %v7562 = vpop.permute.xlu0 %7561
  %7563 = vrot.lane.b32.xlu0 %v6141, 96
  %v7564 = vpop.permute.xlu0 %7563
  %7565 = vrot.lane.b32.xlu0 %v5977, 96
  %v7566 = vpop.permute.xlu0 %7565
  %7567 = vrot.lane.b32.xlu0 %v6142, 96
  %v7568 = vpop.permute.xlu0 %7567
  %7569 = vrot.lane.b32.xlu0 %v5980, 96
  %v7570 = vpop.permute.xlu0 %7569
  %7571 = vrot.lane.b32.xlu0 %v6143, 96
  %v7572 = vpop.permute.xlu0 %7571
  %7573 = vrot.lane.b32.xlu0 %v5983, 96
  %v7574 = vpop.permute.xlu0 %7573
  %7575 = vrot.lane.b32.xlu0 %v6144, 96
  %v7576 = vpop.permute.xlu0 %7575
  %7577 = vrot.lane.b32.xlu0 %v5986, 96
  %v7578 = vpop.permute.xlu0 %7577
  %7579 = vrot.lane.b32.xlu0 %v919, 96
  %v7580 = vpop.permute.xlu0 %7579
  %7581 = vrot.lane.b32.xlu0 %v726, 96
  %v7582 = vpop.permute.xlu0 %7581
  %7583 = vrot.lane.b32.xlu0 %v6146, 96
  %v7584 = vpop.permute.xlu0 %7583
  %7585 = vrot.lane.b32.xlu0 %v5992, 96
  %v7586 = vpop.permute.xlu0 %7585
  %7587 = vrot.lane.b32.xlu0 %v6147, 96
  %v7588 = vpop.permute.xlu0 %7587
  %7589 = vrot.lane.b32.xlu0 %v5995, 96
  %v7590 = vpop.permute.xlu0 %7589
  %7591 = vrot.lane.b32.xlu0 %v6148, 96
  %v7592 = vpop.permute.xlu0 %7591
  %7593 = vrot.lane.b32.xlu0 %v5998, 96
  %v7594 = vpop.permute.xlu0 %7593
  %7595 = vrot.lane.b32.xlu0 %v6149, 96
  %v7596 = vpop.permute.xlu0 %7595
  %7597 = vrot.lane.b32.xlu0 %v6001, 96
  %v7598 = vpop.permute.xlu0 %7597
  %7599 = vrot.lane.b32.xlu0 %v6150, 96
  %v7600 = vpop.permute.xlu0 %7599
  %7601 = vrot.lane.b32.xlu0 %v6004, 96
  %v7602 = vpop.permute.xlu0 %7601
  %7603 = vrot.lane.b32.xlu0 %v6151, 96
  %v7604 = vpop.permute.xlu0 %7603
  %7605 = vrot.lane.b32.xlu0 %v6007, 96
  %v7606 = vpop.permute.xlu0 %7605
  %7607 = vrot.lane.b32.xlu0 %v6152, 96
  %v7608 = vpop.permute.xlu0 %7607
  %7609 = vrot.lane.b32.xlu0 %v6010, 96
  %v7610 = vpop.permute.xlu0 %7609
  %7611 = vrot.lane.b32.xlu0 %v6153, 96
  %v7612 = vpop.permute.xlu0 %7611
  %7613 = vrot.lane.b32.xlu0 %v6013, 96
  %v7614 = vpop.permute.xlu0 %7613
  %7615 = vrot.lane.b32.xlu0 %v6154, 96
  %v7616 = vpop.permute.xlu0 %7615
  %7617 = vrot.lane.b32.xlu0 %v6016, 96
  %v7618 = vpop.permute.xlu0 %7617
  %7619 = vrot.lane.b32.xlu0 %v6155, 96
  %v7620 = vpop.permute.xlu0 %7619
  %7621 = vrot.lane.b32.xlu0 %v6019, 96
  %v7622 = vpop.permute.xlu0 %7621
  %7623 = vrot.lane.b32.xlu0 %v6156, 96
  %v7624 = vpop.permute.xlu0 %7623
  %7625 = vrot.lane.b32.xlu0 %v6022, 96
  %v7626 = vpop.permute.xlu0 %7625
  %7627 = vrot.lane.b32.xlu0 %v6157, 96
  %v7628 = vpop.permute.xlu0 %7627
  %7629 = vrot.lane.b32.xlu0 %v6025, 96
  %v7630 = vpop.permute.xlu0 %7629
  %7631 = vrot.lane.b32.xlu0 %v6158, 96
  %v7632 = vpop.permute.xlu0 %7631
  %7633 = vrot.lane.b32.xlu0 %v6028, 96
  %v7634 = vpop.permute.xlu0 %7633
  %7635 = vrot.lane.b32.xlu0 %v6159, 96
  %v7636 = vpop.permute.xlu0 %7635
  %7637 = vrot.lane.b32.xlu0 %v6031, 96
  %v7638 = vpop.permute.xlu0 %7637
  %7639 = vrot.lane.b32.xlu0 %v6160, 96
  %v7640 = vpop.permute.xlu0 %7639
  %7641 = vrot.lane.b32.xlu0 %v6034, 96
  %v7642 = vpop.permute.xlu0 %7641
  %7705 = vrot.lane.b32.xlu0 %v6260, 112
  %v7706 = vpop.permute.xlu0 %7705
  %7707 = vrot.lane.b32.xlu0 %v6262, 112
  %v7708 = vpop.permute.xlu0 %7707
  %7709 = vrot.lane.b32.xlu0 %v6265, 112
  %v7710 = vpop.permute.xlu0 %7709
  %7711 = vrot.lane.b32.xlu0 %v6267, 112
  %v7712 = vpop.permute.xlu0 %7711
  %7713 = vrot.lane.b32.xlu0 %v6270, 112
  %v7714 = vpop.permute.xlu0 %7713
  %7715 = vrot.lane.b32.xlu0 %v6272, 112
  %v7716 = vpop.permute.xlu0 %7715
  %7717 = vrot.lane.b32.xlu0 %v6275, 112
  %v7718 = vpop.permute.xlu0 %7717
  %7719 = vrot.lane.b32.xlu0 %v6277, 112
  %v7720 = vpop.permute.xlu0 %7719
  %7721 = vrot.lane.b32.xlu0 %v6280, 112
  %v7722 = vpop.permute.xlu0 %7721
  %7723 = vrot.lane.b32.xlu0 %v6282, 112
  %v7724 = vpop.permute.xlu0 %7723
  %7725 = vrot.lane.b32.xlu0 %v6285, 112
  %v7726 = vpop.permute.xlu0 %7725
  %7727 = vrot.lane.b32.xlu0 %v6287, 112
  %v7728 = vpop.permute.xlu0 %7727
  %7729 = vrot.lane.b32.xlu0 %v6290, 112
  %v7730 = vpop.permute.xlu0 %7729
  %7731 = vrot.lane.b32.xlu0 %v6292, 112
  %v7732 = vpop.permute.xlu0 %7731
  %7733 = vrot.lane.b32.xlu0 %v6295, 112
  %v7734 = vpop.permute.xlu0 %7733
  %7735 = vrot.lane.b32.xlu0 %v6297, 112
  %v7736 = vpop.permute.xlu0 %7735
  %7737 = vrot.lane.b32.xlu0 %v6300, 112
  %v7738 = vpop.permute.xlu0 %7737
  %7739 = vrot.lane.b32.xlu0 %v6302, 112
  %v7740 = vpop.permute.xlu0 %7739
  %7741 = vrot.lane.b32.xlu0 %v6305, 112
  %v7742 = vpop.permute.xlu0 %7741
  %7743 = vrot.lane.b32.xlu0 %v6307, 112
  %v7744 = vpop.permute.xlu0 %7743
  %7745 = vrot.lane.b32.xlu0 %v6310, 112
  %v7746 = vpop.permute.xlu0 %7745
  %7747 = vrot.lane.b32.xlu0 %v6312, 112
  %v7748 = vpop.permute.xlu0 %7747
  %7749 = vrot.lane.b32.xlu0 %v6315, 112
  %v7750 = vpop.permute.xlu0 %7749
  %7751 = vrot.lane.b32.xlu0 %v6317, 112
  %v7752 = vpop.permute.xlu0 %7751
  %7753 = vrot.lane.b32.xlu0 %v6320, 112
  %v7754 = vpop.permute.xlu0 %7753
  %7755 = vrot.lane.b32.xlu0 %v6322, 112
  %v7756 = vpop.permute.xlu0 %7755
  %7757 = vrot.lane.b32.xlu0 %v6325, 112
  %v7758 = vpop.permute.xlu0 %7757
  %7759 = vrot.lane.b32.xlu0 %v6327, 112
  %v7760 = vpop.permute.xlu0 %7759
  %7761 = vrot.lane.b32.xlu0 %v7117, 112
  %v7762 = vpop.permute.xlu0 %7761
  %7763 = vrot.lane.b32.xlu0 %v7119, 112
  %v7764 = vpop.permute.xlu0 %7763
  %7765 = vrot.lane.b32.xlu0 %v1050, 112
  %v7766 = vpop.permute.xlu0 %7765
  %7767 = vrot.lane.b32.xlu0 %v1052, 112
  %v7768 = vpop.permute.xlu0 %7767
  %7769 = vrot.lane.b32.xlu0 %v6335, 112
  %v7770 = vpop.permute.xlu0 %7769
  %7771 = vrot.lane.b32.xlu0 %v6337, 112
  %v7772 = vpop.permute.xlu0 %7771
  %7773 = vrot.lane.b32.xlu0 %v6340, 112
  %v7774 = vpop.permute.xlu0 %7773
  %7775 = vrot.lane.b32.xlu0 %v6342, 112
  %v7776 = vpop.permute.xlu0 %7775
  %7777 = vrot.lane.b32.xlu0 %v6345, 112
  %v7778 = vpop.permute.xlu0 %7777
  %7779 = vrot.lane.b32.xlu0 %v6347, 112
  %v7780 = vpop.permute.xlu0 %7779
  %7781 = vrot.lane.b32.xlu0 %v6350, 112
  %v7782 = vpop.permute.xlu0 %7781
  %7783 = vrot.lane.b32.xlu0 %v6352, 112
  %v7784 = vpop.permute.xlu0 %7783
  %7785 = vrot.lane.b32.xlu0 %v6355, 112
  %v7786 = vpop.permute.xlu0 %7785
  %7787 = vrot.lane.b32.xlu0 %v6357, 112
  %v7788 = vpop.permute.xlu0 %7787
  %7789 = vrot.lane.b32.xlu0 %v6360, 112
  %v7790 = vpop.permute.xlu0 %7789
  %7791 = vrot.lane.b32.xlu0 %v6362, 112
  %v7792 = vpop.permute.xlu0 %7791
  %7793 = vrot.lane.b32.xlu0 %v6365, 112
  %v7794 = vpop.permute.xlu0 %7793
  %7795 = vrot.lane.b32.xlu0 %v6367, 112
  %v7796 = vpop.permute.xlu0 %7795
  %7797 = vrot.lane.b32.xlu0 %v6370, 112
  %v7798 = vpop.permute.xlu0 %7797
  %7799 = vrot.lane.b32.xlu0 %v6372, 112
  %v7800 = vpop.permute.xlu0 %7799
  %7801 = vrot.lane.b32.xlu0 %v6375, 112
  %v7802 = vpop.permute.xlu0 %7801
  %7803 = vrot.lane.b32.xlu0 %v6377, 112
  %v7804 = vpop.permute.xlu0 %7803
  %7805 = vrot.lane.b32.xlu0 %v6380, 112
  %v7806 = vpop.permute.xlu0 %7805
  %7807 = vrot.lane.b32.xlu0 %v6382, 112
  %v7808 = vpop.permute.xlu0 %7807
  %7809 = vrot.lane.b32.xlu0 %v6385, 112
  %v7810 = vpop.permute.xlu0 %7809
  %7811 = vrot.lane.b32.xlu0 %v6387, 112
  %v7812 = vpop.permute.xlu0 %7811
  %7813 = vrot.lane.b32.xlu0 %v6390, 112
  %v7814 = vpop.permute.xlu0 %7813
  %7815 = vrot.lane.b32.xlu0 %v6392, 112
  %v7816 = vpop.permute.xlu0 %7815
  %7817 = vrot.lane.b32.xlu0 %v6395, 112
  %v7818 = vpop.permute.xlu0 %7817
  %7819 = vrot.lane.b32.xlu0 %v6397, 112
  %v7820 = vpop.permute.xlu0 %7819
  %7821 = vrot.lane.b32.xlu0 %v6400, 112
  %v7822 = vpop.permute.xlu0 %7821
  %7823 = vrot.lane.b32.xlu0 %v6402, 112
  %v7824 = vpop.permute.xlu0 %7823
  %7825 = vrot.lane.b32.xlu0 %v7122, 112
  %v7826 = vpop.permute.xlu0 %7825
  %7827 = vrot.lane.b32.xlu0 %v7124, 112
  %v7828 = vpop.permute.xlu0 %7827
  %v7891 = vsel %vm3079, %v919, %v6404
  %v7892 = vsel %vm3079, %v726, %v6406
  %v7893 = vsel %vm3079, %v6129, %v6408
  %v7894 = vsel %vm3079, %v5941, %v6410
  %v7895 = vsel %vm3079, %v6130, %v6412
  %v7896 = vsel %vm3079, %v5944, %v6414
  %v7897 = vsel %vm3079, %v6131, %v6416
  %v7898 = vsel %vm3079, %v5947, %v6418
  %v7899 = vsel %vm3079, %v6132, %v6420
  %v7900 = vsel %vm3079, %v5950, %v6422
  %v7901 = vsel %vm3079, %v6133, %v6424
  %v7902 = vsel %vm3079, %v5953, %v6426
  %v7903 = vsel %vm3079, %v6134, %v6428
  %v7904 = vsel %vm3079, %v5956, %v6430
  %v7905 = vsel %vm3079, %v6135, %v6432
  %v7906 = vsel %vm3079, %v5959, %v6434
  %v7907 = vsel %vm3079, %v6136, %v6436
  %v7908 = vsel %vm3079, %v5962, %v6438
  %v7909 = vsel %vm3079, %v6137, %v6440
  %v7910 = vsel %vm3079, %v5965, %v6442
  %v7911 = vsel %vm3079, %v6138, %v6444
  %v7912 = vsel %vm3079, %v5968, %v6446
  %v7913 = vsel %vm3079, %v6139, %v6448
  %v7914 = vsel %vm3079, %v5971, %v6450
  %v7915 = vsel %vm3079, %v6140, %v6452
  %v7916 = vsel %vm3079, %v5974, %v6454
  %v7917 = vsel %vm3079, %v6141, %v6456
  %v7918 = vsel %vm3079, %v5977, %v6458
  %v7919 = vsel %vm3079, %v6142, %v6460
  %v7920 = vsel %vm3079, %v5980, %v6462
  %v7921 = vsel %vm3079, %v6143, %v6464
  %v7922 = vsel %vm3079, %v5983, %v6466
  %v7923 = vsel %vm3079, %v6145, %v6468
  %v7924 = vsel %vm3079, %v5989, %v6470
  %v7925 = vsel %vm3079, %v6146, %v6472
  %v7926 = vsel %vm3079, %v5992, %v6474
  %v7927 = vsel %vm3079, %v6147, %v6476
  %v7928 = vsel %vm3079, %v5995, %v6478
  %v7929 = vsel %vm3079, %v6148, %v6480
  %v7930 = vsel %vm3079, %v5998, %v6482
  %v7931 = vsel %vm3079, %v6149, %v6484
  %v7932 = vsel %vm3079, %v6001, %v6486
  %v7933 = vsel %vm3079, %v6150, %v6488
  %v7934 = vsel %vm3079, %v6004, %v6490
  %v7935 = vsel %vm3079, %v6151, %v6492
  %v7936 = vsel %vm3079, %v6007, %v6494
  %v7937 = vsel %vm3079, %v6152, %v6496
  %v7938 = vsel %vm3079, %v6010, %v6498
  %v7939 = vsel %vm3079, %v6153, %v6500
  %v7940 = vsel %vm3079, %v6013, %v6502
  %v7941 = vsel %vm3079, %v6154, %v6504
  %v7942 = vsel %vm3079, %v6016, %v6506
  %v7943 = vsel %vm3079, %v6155, %v6508
  %v7944 = vsel %vm3079, %v6019, %v6510
  %v7945 = vsel %vm3079, %v6156, %v6512
  %v7946 = vsel %vm3079, %v6022, %v6514
  %v7947 = vsel %vm3079, %v6157, %v6516
  %v7948 = vsel %vm3079, %v6025, %v6518
  %v7949 = vsel %vm3079, %v6158, %v6520
  %v7950 = vsel %vm3079, %v6028, %v6522
  %v7951 = vsel %vm3079, %v6159, %v6524
  %v7952 = vsel %vm3079, %v6031, %v6526
  %v7953 = vsel %vm3339, %v7891, %v2764
  %v7954 = vsel %vm3339, %v7892, %v2766
  %v7955 = vsel %vm3339, %v7893, %v6740
  %v7956 = vsel %vm3339, %v7894, %v6742
  %v7957 = vsel %vm3339, %v7895, %v6744
  %v7958 = vsel %vm3339, %v7896, %v6746
  %v7959 = vsel %vm3339, %v7897, %v6748
  %v7960 = vsel %vm3339, %v7898, %v6750
  %v7961 = vsel %vm3339, %v7899, %v6752
  %v7962 = vsel %vm3339, %v7900, %v6754
  %v7963 = vsel %vm3339, %v7901, %v6756
  %v7964 = vsel %vm3339, %v7902, %v6758
  %v7965 = vsel %vm3339, %v7903, %v6760
  %v7966 = vsel %vm3339, %v7904, %v6762
  %v7967 = vsel %vm3339, %v7905, %v6764
  %v7968 = vsel %vm3339, %v7906, %v6766
  %v7969 = vsel %vm3339, %v7907, %v6768
  %v7970 = vsel %vm3339, %v7908, %v6770
  %v7971 = vsel %vm3339, %v7909, %v6772
  %v7972 = vsel %vm3339, %v7910, %v6774
  %v7973 = vsel %vm3339, %v7911, %v6776
  %v7974 = vsel %vm3339, %v7912, %v6778
  %v7975 = vsel %vm3339, %v7913, %v6780
  %v7976 = vsel %vm3339, %v7914, %v6782
  %v7977 = vsel %vm3339, %v7915, %v6784
  %v7978 = vsel %vm3339, %v7916, %v6786
  %v7979 = vsel %vm3339, %v7917, %v6788
  %v7980 = vsel %vm3339, %v7918, %v6790
  %v7981 = vsel %vm3339, %v7919, %v6792
  %v7982 = vsel %vm3339, %v7920, %v6794
  %v7983 = vsel %vm3339, %v7921, %v6796
  %v7984 = vsel %vm3339, %v7922, %v6798
  %v7985 = vsel %vm3339, %v7923, %v6800
  %v7986 = vsel %vm3339, %v7924, %v6802
  %v7987 = vsel %vm3339, %v7925, %v6804
  %v7988 = vsel %vm3339, %v7926, %v6806
  %v7989 = vsel %vm3339, %v7927, %v6808
  %v7990 = vsel %vm3339, %v7928, %v6810
  %v7991 = vsel %vm3339, %v7929, %v6812
  %v7992 = vsel %vm3339, %v7930, %v6814
  %v7993 = vsel %vm3339, %v7931, %v6816
  %v7994 = vsel %vm3339, %v7932, %v6818
  %v7995 = vsel %vm3339, %v7933, %v6820
  %v7996 = vsel %vm3339, %v7934, %v6822
  %v7997 = vsel %vm3339, %v7935, %v6824
  %v7998 = vsel %vm3339, %v7936, %v6826
  %v7999 = vsel %vm3339, %v7937, %v6828
  %v8000 = vsel %vm3339, %v7938, %v6830
  %v8001 = vsel %vm3339, %v7939, %v6832
  %v8002 = vsel %vm3339, %v7940, %v6834
  %v8003 = vsel %vm3339, %v7941, %v6836
  %v8004 = vsel %vm3339, %v7942, %v6838
  %v8005 = vsel %vm3339, %v7943, %v6840
  %v8006 = vsel %vm3339, %v7944, %v6842
  %v8007 = vsel %vm3339, %v7945, %v6844
  %v8008 = vsel %vm3339, %v7946, %v6846
  %v8009 = vsel %vm3339, %v7947, %v6848
  %v8010 = vsel %vm3339, %v7948, %v6850
  %v8011 = vsel %vm3339, %v7949, %v6852
  %v8012 = vsel %vm3339, %v7950, %v6854
  %v8013 = vsel %vm3339, %v7951, %v6856
  %v8014 = vsel %vm3339, %v7952, %v6858
  %vm8015 = vcmask 392192
  %v8016 = vsel %vm8015, %v7953, %v6922
  %v8017 = vsel %vm8015, %v7954, %v6924
  %v8018 = vsel %vm8015, %v7955, %v6926
  %v8019 = vsel %vm8015, %v7956, %v6928
  %v8020 = vsel %vm8015, %v7957, %v6930
  %v8021 = vsel %vm8015, %v7958, %v6932
  %v8022 = vsel %vm8015, %v7959, %v6934
  %v8023 = vsel %vm8015, %v7960, %v6936
  %v8024 = vsel %vm8015, %v7961, %v6938
  %v8025 = vsel %vm8015, %v7962, %v6940
  %v8026 = vsel %vm8015, %v7963, %v6942
  %v8027 = vsel %vm8015, %v7964, %v6944
  %v8028 = vsel %vm8015, %v7965, %v6946
  %v8029 = vsel %vm8015, %v7966, %v6948
  %v8030 = vsel %vm8015, %v7967, %v6950
  %v8031 = vsel %vm8015, %v7968, %v6952
  %v8032 = vsel %vm8015, %v7969, %v6954
  %v8033 = vsel %vm8015, %v7970, %v6956
  %v8034 = vsel %vm8015, %v7971, %v6958
  %v8035 = vsel %vm8015, %v7972, %v6960
  %v8036 = vsel %vm8015, %v7973, %v6962
  %v8037 = vsel %vm8015, %v7974, %v6964
  %v8038 = vsel %vm8015, %v7975, %v6966
  %v8039 = vsel %vm8015, %v7976, %v6968
  %v8040 = vsel %vm8015, %v7977, %v6970
  %v8041 = vsel %vm8015, %v7978, %v6972
  %v8042 = vsel %vm8015, %v7979, %v6974
  %v8043 = vsel %vm8015, %v7980, %v6976
  %v8044 = vsel %vm8015, %v7981, %v6978
  %v8045 = vsel %vm8015, %v7982, %v6980
  %v8046 = vsel %vm8015, %v7983, %v6982
  %v8047 = vsel %vm8015, %v7984, %v6984
  %v8048 = vsel %vm8015, %v7953, %v6986
  %v8049 = vsel %vm8015, %v7954, %v6988
  %v8050 = vsel %vm8015, %v7985, %v6990
  %v8051 = vsel %vm8015, %v7986, %v6992
  %v8052 = vsel %vm8015, %v7987, %v6994
  %v8053 = vsel %vm8015, %v7988, %v6996
  %v8054 = vsel %vm8015, %v7989, %v6998
  %v8055 = vsel %vm8015, %v7990, %v7000
  %v8056 = vsel %vm8015, %v7991, %v7002
  %v8057 = vsel %vm8015, %v7992, %v7004
  %v8058 = vsel %vm8015, %v7993, %v7006
  %v8059 = vsel %vm8015, %v7994, %v7008
  %v8060 = vsel %vm8015, %v7995, %v7010
  %v8061 = vsel %vm8015, %v7996, %v7012
  %v8062 = vsel %vm8015, %v7997, %v7014
  %v8063 = vsel %vm8015, %v7998, %v7016
  %v8064 = vsel %vm8015, %v7999, %v7018
  %v8065 = vsel %vm8015, %v8000, %v7020
  %v8066 = vsel %vm8015, %v8001, %v7022
  %v8067 = vsel %vm8015, %v8002, %v7024
  %v8068 = vsel %vm8015, %v8003, %v7026
  %v8069 = vsel %vm8015, %v8004, %v7028
  %v8070 = vsel %vm8015, %v8005, %v7030
  %v8071 = vsel %vm8015, %v8006, %v7032
  %v8072 = vsel %vm8015, %v8007, %v7034
  %v8073 = vsel %vm8015, %v8008, %v7036
  %v8074 = vsel %vm8015, %v8009, %v7038
  %v8075 = vsel %vm8015, %v8010, %v7040
  %v8076 = vsel %vm8015, %v8011, %v7042
  %v8077 = vsel %vm8015, %v8012, %v7044
  %v8078 = vsel %vm8015, %v8013, %v7046
  %v8079 = vsel %vm8015, %v8014, %v7048
  %vm8080 = vcmask 523264
  %v8081 = vsel %vm8080, %v8016, %v7126
  %v8082 = vsel %vm8080, %v8017, %v7128
  %v8083 = vsel %vm8080, %v8018, %v7130
  %v8084 = vsel %vm8080, %v8019, %v7132
  %v8085 = vsel %vm8080, %v8020, %v7134
  %v8086 = vsel %vm8080, %v8021, %v7136
  %v8087 = vsel %vm8080, %v8022, %v7138
  %v8088 = vsel %vm8080, %v8023, %v7140
  %v8089 = vsel %vm8080, %v8024, %v7142
  %v8090 = vsel %vm8080, %v8025, %v7144
  %v8091 = vsel %vm8080, %v8026, %v7146
  %v8092 = vsel %vm8080, %v8027, %v7148
  %v8093 = vsel %vm8080, %v8028, %v7150
  %v8094 = vsel %vm8080, %v8029, %v7152
  %v8095 = vsel %vm8080, %v8030, %v7154
  %v8096 = vsel %vm8080, %v8031, %v7156
  %v8097 = vsel %vm8080, %v8032, %v7158
  %v8098 = vsel %vm8080, %v8033, %v7160
  %v8099 = vsel %vm8080, %v8034, %v7162
  %v8100 = vsel %vm8080, %v8035, %v7164
  %v8101 = vsel %vm8080, %v8036, %v7166
  %v8102 = vsel %vm8080, %v8037, %v7168
  %v8103 = vsel %vm8080, %v8038, %v7170
  %v8104 = vsel %vm8080, %v8039, %v7172
  %v8105 = vsel %vm8080, %v8040, %v7174
  %v8106 = vsel %vm8080, %v8041, %v7176
  %v8107 = vsel %vm8080, %v8042, %v7178
  %v8108 = vsel %vm8080, %v8043, %v7180
  %v8109 = vsel %vm8080, %v8044, %v7182
  %v8110 = vsel %vm8080, %v8045, %v7184
  %v8111 = vsel %vm8080, %v8046, %v7186
  %v8112 = vsel %vm8080, %v8047, %v7188
  %v8113 = vsel %vm8080, %v8048, %v7190
  %v8114 = vsel %vm8080, %v8049, %v7192
  %v8115 = vsel %vm8080, %v8050, %v7194
  %v8116 = vsel %vm8080, %v8051, %v7196
  %v8117 = vsel %vm8080, %v8052, %v7198
  %v8118 = vsel %vm8080, %v8053, %v7200
  %v8119 = vsel %vm8080, %v8054, %v7202
  %v8120 = vsel %vm8080, %v8055, %v7204
  %v8121 = vsel %vm8080, %v8056, %v7206
  %v8122 = vsel %vm8080, %v8057, %v7208
  %v8123 = vsel %vm8080, %v8058, %v7210
  %v8124 = vsel %vm8080, %v8059, %v7212
  %v8125 = vsel %vm8080, %v8060, %v7214
  %v8126 = vsel %vm8080, %v8061, %v7216
  %v8127 = vsel %vm8080, %v8062, %v7218
  %v8128 = vsel %vm8080, %v8063, %v7220
  %v8129 = vsel %vm8080, %v8064, %v7222
  %v8130 = vsel %vm8080, %v8065, %v7224
  %v8131 = vsel %vm8080, %v8066, %v7226
  %v8132 = vsel %vm8080, %v8067, %v7228
  %v8133 = vsel %vm8080, %v8068, %v7230
  %v8134 = vsel %vm8080, %v8069, %v7232
  %v8135 = vsel %vm8080, %v8070, %v7234
  %v8136 = vsel %vm8080, %v8071, %v7236
  %v8137 = vsel %vm8080, %v8072, %v7238
  %v8138 = vsel %vm8080, %v8073, %v7240
  %v8139 = vsel %vm8080, %v8074, %v7242
  %v8140 = vsel %vm8080, %v8075, %v7244
  %v8141 = vsel %vm8080, %v8076, %v7246
  %v8142 = vsel %vm8080, %v8077, %v7248
  %v8143 = vsel %vm8080, %v8078, %v7250
  %v8144 = vsel %vm8080, %v8079, %v7252
  %vm8145 = vcmask 654336
  %v8146 = vsel %vm8145, %v8081, %v7328
  %v8147 = vsel %vm8145, %v8082, %v7330
  %v8148 = vsel %vm8145, %v8083, %v7332
  %v8149 = vsel %vm8145, %v8084, %v7334
  %v8150 = vsel %vm8145, %v8085, %v7336
  %v8151 = vsel %vm8145, %v8086, %v7338
  %v8152 = vsel %vm8145, %v8087, %v7340
  %v8153 = vsel %vm8145, %v8088, %v7342
  %v8154 = vsel %vm8145, %v8089, %v7344
  %v8155 = vsel %vm8145, %v8090, %v7346
  %v8156 = vsel %vm8145, %v8091, %v7348
  %v8157 = vsel %vm8145, %v8092, %v7350
  %v8158 = vsel %vm8145, %v8093, %v7352
  %v8159 = vsel %vm8145, %v8094, %v7354
  %v8160 = vsel %vm8145, %v8095, %v7356
  %v8161 = vsel %vm8145, %v8096, %v7358
  %v8162 = vsel %vm8145, %v8097, %v7360
  %v8163 = vsel %vm8145, %v8098, %v7362
  %v8164 = vsel %vm8145, %v8099, %v7364
  %v8165 = vsel %vm8145, %v8100, %v7366
  %v8166 = vsel %vm8145, %v8101, %v7368
  %v8167 = vsel %vm8145, %v8102, %v7370
  %v8168 = vsel %vm8145, %v8103, %v7372
  %v8169 = vsel %vm8145, %v8104, %v7374
  %v8170 = vsel %vm8145, %v8105, %v7376
  %v8171 = vsel %vm8145, %v8106, %v7378
  %v8172 = vsel %vm8145, %v8107, %v7380
  %v8173 = vsel %vm8145, %v8108, %v7382
  %v8174 = vsel %vm8145, %v8109, %v7384
  %v8175 = vsel %vm8145, %v8110, %v7386
  %v8176 = vsel %vm8145, %v8111, %v7388
  %v8177 = vsel %vm8145, %v8112, %v7390
  %v8178 = vsel %vm8145, %v8113, %v7392
  %v8179 = vsel %vm8145, %v8114, %v7394
  %v8180 = vsel %vm8145, %v8115, %v7396
  %v8181 = vsel %vm8145, %v8116, %v7398
  %v8182 = vsel %vm8145, %v8117, %v7400
  %v8183 = vsel %vm8145, %v8118, %v7402
  %v8184 = vsel %vm8145, %v8119, %v7404
  %v8185 = vsel %vm8145, %v8120, %v7406
  %v8186 = vsel %vm8145, %v8121, %v7408
  %v8187 = vsel %vm8145, %v8122, %v7410
  %v8188 = vsel %vm8145, %v8123, %v7412
  %v8189 = vsel %vm8145, %v8124, %v7414
  %v8190 = vsel %vm8145, %v8125, %v7416
  %v8191 = vsel %vm8145, %v8126, %v7418
  %v8192 = vsel %vm8145, %v8127, %v7420
  %v8193 = vsel %vm8145, %v8128, %v7422
  %v8194 = vsel %vm8145, %v8129, %v7424
  %v8195 = vsel %vm8145, %v8130, %v7426
  %v8196 = vsel %vm8145, %v8131, %v7428
  %v8197 = vsel %vm8145, %v8132, %v7430
  %v8198 = vsel %vm8145, %v8133, %v7432
  %v8199 = vsel %vm8145, %v8134, %v7434
  %v8200 = vsel %vm8145, %v8135, %v7436
  %v8201 = vsel %vm8145, %v8136, %v7438
  %v8202 = vsel %vm8145, %v8137, %v7440
  %v8203 = vsel %vm8145, %v8138, %v7442
  %v8204 = vsel %vm8145, %v8139, %v7444
  %v8205 = vsel %vm8145, %v8140, %v7446
  %v8206 = vsel %vm8145, %v8141, %v7448
  %v8207 = vsel %vm8145, %v8142, %v7450
  %v8208 = vsel %vm8145, %v8143, %v7452
  %v8209 = vsel %vm8145, %v8144, %v7454
  %vm8210 = vcmask 785408
  %v8211 = vsel %vm8210, %v8146, %v7520
  %v8212 = vsel %vm8210, %v8147, %v7522
  %v8213 = vsel %vm8210, %v8148, %v7524
  %v8214 = vsel %vm8210, %v8149, %v7526
  %v8215 = vsel %vm8210, %v8150, %v7528
  %v8216 = vsel %vm8210, %v8151, %v7530
  %v8217 = vsel %vm8210, %v8152, %v7532
  %v8218 = vsel %vm8210, %v8153, %v7534
  %v8219 = vsel %vm8210, %v8154, %v7536
  %v8220 = vsel %vm8210, %v8155, %v7538
  %v8221 = vsel %vm8210, %v8156, %v7540
  %v8222 = vsel %vm8210, %v8157, %v7542
  %v8223 = vsel %vm8210, %v8158, %v7544
  %v8224 = vsel %vm8210, %v8159, %v7546
  %v8225 = vsel %vm8210, %v8160, %v7548
  %v8226 = vsel %vm8210, %v8161, %v7550
  %v8227 = vsel %vm8210, %v8162, %v7552
  %v8228 = vsel %vm8210, %v8163, %v7554
  %v8229 = vsel %vm8210, %v8164, %v7556
  %v8230 = vsel %vm8210, %v8165, %v7558
  %v8231 = vsel %vm8210, %v8166, %v7560
  %v8232 = vsel %vm8210, %v8167, %v7562
  %v8233 = vsel %vm8210, %v8168, %v7564
  %v8234 = vsel %vm8210, %v8169, %v7566
  %v8235 = vsel %vm8210, %v8170, %v7568
  %v8236 = vsel %vm8210, %v8171, %v7570
  %v8237 = vsel %vm8210, %v8172, %v7572
  %v8238 = vsel %vm8210, %v8173, %v7574
  %v8239 = vsel %vm8210, %v8174, %v7576
  %v8240 = vsel %vm8210, %v8175, %v7578
  %v8241 = vsel %vm8210, %v8176, %v7580
  %v8242 = vsel %vm8210, %v8177, %v7582
  %v8243 = vsel %vm8210, %v8178, %v7584
  %v8244 = vsel %vm8210, %v8179, %v7586
  %v8245 = vsel %vm8210, %v8180, %v7588
  %v8246 = vsel %vm8210, %v8181, %v7590
  %v8247 = vsel %vm8210, %v8182, %v7592
  %v8248 = vsel %vm8210, %v8183, %v7594
  %v8249 = vsel %vm8210, %v8184, %v7596
  %v8250 = vsel %vm8210, %v8185, %v7598
  %v8251 = vsel %vm8210, %v8186, %v7600
  %v8252 = vsel %vm8210, %v8187, %v7602
  %v8253 = vsel %vm8210, %v8188, %v7604
  %v8254 = vsel %vm8210, %v8189, %v7606
  %v8255 = vsel %vm8210, %v8190, %v7608
  %v8256 = vsel %vm8210, %v8191, %v7610
  %v8257 = vsel %vm8210, %v8192, %v7612
  %v8258 = vsel %vm8210, %v8193, %v7614
  %v8259 = vsel %vm8210, %v8194, %v7616
  %v8260 = vsel %vm8210, %v8195, %v7618
  %v8261 = vsel %vm8210, %v8196, %v7620
  %v8262 = vsel %vm8210, %v8197, %v7622
  %v8263 = vsel %vm8210, %v8198, %v7624
  %v8264 = vsel %vm8210, %v8199, %v7626
  %v8265 = vsel %vm8210, %v8200, %v7628
  %v8266 = vsel %vm8210, %v8201, %v7630
  %v8267 = vsel %vm8210, %v8202, %v7632
  %v8268 = vsel %vm8210, %v8203, %v7634
  %v8269 = vsel %vm8210, %v8204, %v7636
  %v8270 = vsel %vm8210, %v8205, %v7638
  %v8271 = vsel %vm8210, %v8206, %v7640
  %v8272 = vsel %vm8210, %v8207, %v7642
  %v8273 = vsel %vm8210, %v8208, %v7580
  %v8274 = vsel %vm8210, %v8209, %v7582
  %vm8275 = vcmask 916480
  %v8276 = vsel %vm8275, %v8211, %v7706
  %v8277 = vsel %vm8275, %v8212, %v7708
  %v8278 = vsel %vm8275, %v8213, %v7710
  %v8279 = vsel %vm8275, %v8214, %v7712
  %v8280 = vsel %vm8275, %v8215, %v7714
  %v8281 = vsel %vm8275, %v8216, %v7716
  %v8282 = vsel %vm8275, %v8217, %v7718
  %v8283 = vsel %vm8275, %v8218, %v7720
  %v8284 = vsel %vm8275, %v8219, %v7722
  %v8285 = vsel %vm8275, %v8220, %v7724
  %v8286 = vsel %vm8275, %v8221, %v7726
  %v8287 = vsel %vm8275, %v8222, %v7728
  %v8288 = vsel %vm8275, %v8223, %v7730
  %v8289 = vsel %vm8275, %v8224, %v7732
  %v8290 = vsel %vm8275, %v8225, %v7734
  %v8291 = vsel %vm8275, %v8226, %v7736
  %v8292 = vsel %vm8275, %v8227, %v7738
  %v8293 = vsel %vm8275, %v8228, %v7740
  %v8294 = vsel %vm8275, %v8229, %v7742
  %v8295 = vsel %vm8275, %v8230, %v7744
  %v8296 = vsel %vm8275, %v8231, %v7746
  %v8297 = vsel %vm8275, %v8232, %v7748
  %v8298 = vsel %vm8275, %v8233, %v7750
  %v8299 = vsel %vm8275, %v8234, %v7752
  %v8300 = vsel %vm8275, %v8235, %v7754
  %v8301 = vsel %vm8275, %v8236, %v7756
  %v8302 = vsel %vm8275, %v8237, %v7758
  %v8303 = vsel %vm8275, %v8238, %v7760
  %v8304 = vsel %vm8275, %v8239, %v7762
  %v8305 = vsel %vm8275, %v8240, %v7764
  %v8306 = vsel %vm8275, %v8241, %v7766
  %v8307 = vsel %vm8275, %v8242, %v7768
  %v8308 = vsel %vm8275, %v8243, %v7770
  %v8309 = vsel %vm8275, %v8244, %v7772
  %v8310 = vsel %vm8275, %v8245, %v7774
  %v8311 = vsel %vm8275, %v8246, %v7776
  %v8312 = vsel %vm8275, %v8247, %v7778
  %v8313 = vsel %vm8275, %v8248, %v7780
  %v8314 = vsel %vm8275, %v8249, %v7782
  %v8315 = vsel %vm8275, %v8250, %v7784
  %v8316 = vsel %vm8275, %v8251, %v7786
  %v8317 = vsel %vm8275, %v8252, %v7788
  %v8318 = vsel %vm8275, %v8253, %v7790
  %v8319 = vsel %vm8275, %v8254, %v7792
  %v8320 = vsel %vm8275, %v8255, %v7794
  %v8321 = vsel %vm8275, %v8256, %v7796
  %v8322 = vsel %vm8275, %v8257, %v7798
  %v8323 = vsel %vm8275, %v8258, %v7800
  %v8324 = vsel %vm8275, %v8259, %v7802
  %v8325 = vsel %vm8275, %v8260, %v7804
  %v8326 = vsel %vm8275, %v8261, %v7806
  %v8327 = vsel %vm8275, %v8262, %v7808
  %v8328 = vsel %vm8275, %v8263, %v7810
  %v8329 = vsel %vm8275, %v8264, %v7812
  %v8330 = vsel %vm8275, %v8265, %v7814
  %v8331 = vsel %vm8275, %v8266, %v7816
  %v8332 = vsel %vm8275, %v8267, %v7818
  %v8333 = vsel %vm8275, %v8268, %v7820
  %v8334 = vsel %vm8275, %v8269, %v7822
  %v8335 = vsel %vm8275, %v8270, %v7824
  %v8336 = vsel %vm8275, %v8271, %v7826
  %v8337 = vsel %vm8275, %v8272, %v7828
  %v8338 = vsel %vm8275, %v8273, %v7766
  %v8339 = vsel %vm8275, %v8274, %v7768
  %v8341 = vlaneseq
  %v8342 = vshrl.u32 %v8341, 7
  %v8343 = vsub.s32 0, %v8342
  %v8344 = vrot.slane %v5874, %v8343
  %v8346 = vsel %vm3079, %v6596, 0
  %v8348 = vsel %vm3079, %v6598, 0
  %v8350 = vsel %vm3079, %v6601, 0
  %v8352 = vsel %vm3079, %v6603, 0
  %v8354 = vsel %vm3079, %v6606, 0
  %v8356 = vsel %vm3079, %v6608, 0
  %v8358 = vsel %vm3079, %v6611, 0
  %v8360 = vsel %vm3079, %v6613, 0
  %v8362 = vsel %vm3079, %v6616, 0
  %v8364 = vsel %vm3079, %v6618, 0
  %v8366 = vsel %vm3079, %v6621, 0
  %v8368 = vsel %vm3079, %v6623, 0
  %v8370 = vsel %vm3079, %v6626, 0
  %v8372 = vsel %vm3079, %v6628, 0
  %v8374 = vsel %vm3079, %v6631, 0
  %v8376 = vsel %vm3079, %v6633, 0
  %v8378 = vsel %vm3079, %v6636, 0
  %v8380 = vsel %vm3079, %v6638, 0
  %v8382 = vsel %vm3079, %v6641, 0
  %v8384 = vsel %vm3079, %v6643, 0
  %v8386 = vsel %vm3079, %v6646, 0
  %v8388 = vsel %vm3079, %v6648, 0
  %v8390 = vsel %vm3079, %v6651, 0
  %v8392 = vsel %vm3079, %v6653, 0
  %v8394 = vsel %vm3079, %v6656, 0
  %v8396 = vsel %vm3079, %v6658, 0
  %v8398 = vsel %vm3079, %v6661, 0
  %v8400 = vsel %vm3079, %v6663, 0
  %v8402 = vsel %vm3079, %v7319, 0
  %v8404 = vsel %vm3079, %v7321, 0
  %v8406 = vsel %vm3079, %v1392, 0
  %v8408 = vsel %vm3079, %v1394, 0
  %v8410 = vsel %vm3079, %v6671, 0
  %v8412 = vsel %vm3079, %v6673, 0
  %v8414 = vsel %vm3079, %v6676, 0
  %v8416 = vsel %vm3079, %v6678, 0
  %v8418 = vsel %vm3079, %v6681, 0
  %v8420 = vsel %vm3079, %v6683, 0
  %v8422 = vsel %vm3079, %v6686, 0
  %v8424 = vsel %vm3079, %v6688, 0
  %v8426 = vsel %vm3079, %v6691, 0
  %v8428 = vsel %vm3079, %v6693, 0
  %v8430 = vsel %vm3079, %v6696, 0
  %v8432 = vsel %vm3079, %v6698, 0
  %v8434 = vsel %vm3079, %v6701, 0
  %v8436 = vsel %vm3079, %v6703, 0
  %v8438 = vsel %vm3079, %v6706, 0
  %v8440 = vsel %vm3079, %v6708, 0
  %v8442 = vsel %vm3079, %v6711, 0
  %v8444 = vsel %vm3079, %v6713, 0
  %v8446 = vsel %vm3079, %v6716, 0
  %v8448 = vsel %vm3079, %v6718, 0
  %v8450 = vsel %vm3079, %v6721, 0
  %v8452 = vsel %vm3079, %v6723, 0
  %v8454 = vsel %vm3079, %v6726, 0
  %v8456 = vsel %vm3079, %v6728, 0
  %v8458 = vsel %vm3079, %v6731, 0
  %v8460 = vsel %vm3079, %v6733, 0
  %v8462 = vsel %vm3079, %v6736, 0
  %v8464 = vsel %vm3079, %v6738, 0
  %v8466 = vsel %vm3079, %v7324, 0
  %v8468 = vsel %vm3079, %v7326, 0
  %8470 = vmatprep.subr.mxu0 0.0
  %8471 = vmatpush1.msra.mxu0 %v5856
  %8472 = vmatprep.subr.mxu0 0.0
  %8473 = vmatpush1.msra.mxu0 %v5857
  %8474 = vmatprep.subr.mxu0 0.0
  %8475 = vmatpush1.msra.mxu0 %v5858
  %8476 = vmatprep.subr.mxu0 0.0
  %8477 = vmatpush1.msra.mxu0 %v5859
  %8478 = vmatprep.subr.mxu0 0.0
  %8479 = vmatpush1.msra.mxu0 %v5860
  %8480 = vmatprep.subr.mxu0 0.0
  %8481 = vmatpush1.msra.mxu0 %v5861
  %8482 = vmatprep.subr.mxu0 0.0
  %8483 = vmatpush1.msra.mxu0 %v5862
  %8484 = vmatprep.subr.mxu0 0.0
  %8485 = vmatpush1.msra.mxu0 %v5863
  %8486 = vmatprep.subr.mxu0 0.0
  %8487 = vmatpush1.msra.mxu0 %v5864
  %8488 = vmatprep.subr.mxu0 0.0
  %8489 = vmatpush1.msra.mxu0 %v5865
  %8490 = vmatprep.subr.mxu0 0.0
  %8491 = vmatpush1.msra.mxu0 %v5866
  %8492 = vmatprep.subr.mxu0 0.0
  %8493 = vmatpush1.msra.mxu0 %v5867
  %8494 = vmatprep.subr.mxu0 0.0
  %8495 = vmatpush1.msra.mxu0 %v5868
  %8496 = vmatprep.subr.mxu0 0.0
  %8497 = vmatpush1.msra.mxu0 %v5869
  %8498 = vmatprep.subr.mxu0 0.0
  %8499 = vmatpush1.msra.mxu0 %v5870
  %8500 = vmatprep.subr.mxu0 0.0
  %8501 = vmatpush1.msra.mxu0 %v5871
  %8502 = vmatprep.subr.mxu0 0.0
  %8503 = vmatpush1.msra.mxu0 %v5872
  %8504 = vmatprep.subr.mxu0 0.0
  %8505 = vmatpush1.msra.mxu0 %v5873
  %8506 = vmatprep.subr.mxu0 0.0
  %8507 = vmatpush1.msra.mxu0 0.0
  %8508 = vmatprep.subr.mxu0 0.0
  %8509 = vmatpush1.msra.mxu0 0.0
  %8510 = vmatprep.subr.mxu0 0.0
  %8511 = vmatpush1.msra.mxu0 0.0
  %8512 = vmatprep.subr.mxu0 0.0
  %8513 = vmatpush1.msra.mxu0 0.0
  %8514 = vmatprep.subr.mxu0 0.0
  %8515 = vmatpush1.msra.mxu0 0.0
  %8516 = vmatprep.subr.mxu0 0.0
  %8517 = vmatpush1.msra.mxu0 0.0
  %8518 = vmatprep.subr.mxu0 0.0
  %8519 = vmatpush1.msra.mxu0 0.0
  %8520 = vmatprep.subr.mxu0 0.0
  %8521 = vmatpush1.msra.mxu0 0.0
  %8522 = vmatprep.subr.mxu0 0.0
  %8523 = vmatpush1.msra.mxu0 0.0
  %8524 = vmatprep.subr.mxu0 0.0
  %8525 = vmatpush1.msra.mxu0 0.0
  %8526 = vmatprep.subr.mxu0 0.0
  %8527 = vmatpush1.msra.mxu0 0.0
  %8528 = vmatprep.subr.mxu0 0.0
  %8529 = vmatpush1.msra.mxu0 0.0
  %8530 = vmatprep.subr.mxu0 0.0
  %8531 = vmatpush1.msra.mxu0 0.0
  %8532 = vmatprep.subr.mxu0 0.0
  %8533 = vmatpush1.msra.mxu0 0.0
  %8534 = vmatprep.mubr.f32.mxu0 %v8346
  %8535 = vmatmul.mubr.f32.gmra.mrb[0].mxu0 %v8276
  %v8536 = vpop.f32.mrb[0].mxu0
  %v8537 = vadd.f32 %v8344, %v8536
  %v8538 = vpop.f32.mrb[0].mxu0
  %8539 = vmatprep.mubr.f32.mxu0 %v8348
  %8540 = vmatmul.mubr.f32.gmra.mrb[0].mxu0 %v8277
  %v8541 = vpop.f32.mrb[0].mxu0
  %v8542 = vadd.f32 %v8344, %v8541
  %v8543 = vpop.f32.mrb[0].mxu0
  %8544 = vmatprep.mubr.f32.mxu0 %v8350
  %8545 = vmatmul.mubr.f32.gmra.mrb[0].mxu0 %v8278
  %v8546 = vpop.f32.mrb[0].mxu0
  %v8547 = vadd.f32 %v8344, %v8546
  %v8548 = vpop.f32.mrb[0].mxu0
  %8549 = vmatprep.mubr.f32.mxu0 %v8352
  %8550 = vmatmul.mubr.f32.gmra.mrb[0].mxu0 %v8279
  %v8551 = vpop.f32.mrb[0].mxu0
  %v8552 = vadd.f32 %v8344, %v8551
  %v8553 = vpop.f32.mrb[0].mxu0
  %8554 = vmatprep.mubr.f32.mxu0 %v8354
  %8555 = vmatmul.mubr.f32.gmra.mrb[0].mxu0 %v8280
  %v8556 = vpop.f32.mrb[0].mxu0
  %v8557 = vadd.f32 %v8344, %v8556
  %v8558 = vpop.f32.mrb[0].mxu0
  %8559 = vmatprep.mubr.f32.mxu0 %v8356
  %8560 = vmatmul.mubr.f32.gmra.mrb[0].mxu0 %v8281
  %v8561 = vpop.f32.mrb[0].mxu0
  %v8562 = vadd.f32 %v8344, %v8561
  %v8563 = vpop.f32.mrb[0].mxu0
  %8564 = vmatprep.mubr.f32.mxu0 %v8358
  %8565 = vmatmul.mubr.f32.gmra.mrb[0].mxu0 %v8282
  %v8566 = vpop.f32.mrb[0].mxu0
  %v8567 = vadd.f32 %v8344, %v8566
  %v8568 = vpop.f32.mrb[0].mxu0
  %8569 = vmatprep.mubr.f32.mxu0 %v8360
  %8570 = vmatmul.mubr.f32.gmra.mrb[0].mxu0 %v8283
  %v8571 = vpop.f32.mrb[0].mxu0
  %v8572 = vadd.f32 %v8344, %v8571
  %v8573 = vpop.f32.mrb[0].mxu0
  %8574 = vmatprep.mubr.f32.mxu0 %v8362
  %8575 = vmatmul.mubr.f32.gmra.mrb[0].mxu0 %v8284
  %v8576 = vpop.f32.mrb[0].mxu0
  %v8577 = vadd.f32 %v8344, %v8576
  %v8578 = vpop.f32.mrb[0].mxu0
  %8579 = vmatprep.mubr.f32.mxu0 %v8364
  %8580 = vmatmul.mubr.f32.gmra.mrb[0].mxu0 %v8285
  %v8581 = vpop.f32.mrb[0].mxu0
  %v8582 = vadd.f32 %v8344, %v8581
  %v8583 = vpop.f32.mrb[0].mxu0
  %8584 = vmatprep.mubr.f32.mxu0 %v8366
  %8585 = vmatmul.mubr.f32.gmra.mrb[0].mxu0 %v8286
  %v8586 = vpop.f32.mrb[0].mxu0
  %v8587 = vadd.f32 %v8344, %v8586
  %v8588 = vpop.f32.mrb[0].mxu0
  %8589 = vmatprep.mubr.f32.mxu0 %v8368
  %8590 = vmatmul.mubr.f32.gmra.mrb[0].mxu0 %v8287
  %v8591 = vpop.f32.mrb[0].mxu0
  %v8592 = vadd.f32 %v8344, %v8591
  %v8593 = vpop.f32.mrb[0].mxu0
  %8594 = vmatprep.mubr.f32.mxu0 %v8370
  %8595 = vmatmul.mubr.f32.gmra.mrb[0].mxu0 %v8288
  %v8596 = vpop.f32.mrb[0].mxu0
  %v8597 = vadd.f32 %v8344, %v8596
  %v8598 = vpop.f32.mrb[0].mxu0
  %8599 = vmatprep.mubr.f32.mxu0 %v8372
  %8600 = vmatmul.mubr.f32.gmra.mrb[0].mxu0 %v8289
  %v8601 = vpop.f32.mrb[0].mxu0
  %v8602 = vadd.f32 %v8344, %v8601
  %v8603 = vpop.f32.mrb[0].mxu0
  %8604 = vmatprep.mubr.f32.mxu0 %v8374
  %8605 = vmatmul.mubr.f32.gmra.mrb[0].mxu0 %v8290
  %v8606 = vpop.f32.mrb[0].mxu0
  %v8607 = vadd.f32 %v8344, %v8606
  %v8608 = vpop.f32.mrb[0].mxu0
  %8609 = vmatprep.mubr.f32.mxu0 %v8376
  %8610 = vmatmul.mubr.f32.gmra.mrb[0].mxu0 %v8291
  %v8611 = vpop.f32.mrb[0].mxu0
  %v8612 = vadd.f32 %v8344, %v8611
  %v8613 = vpop.f32.mrb[0].mxu0
  %8614 = vmatprep.mubr.f32.mxu0 %v8378
  %8615 = vmatmul.mubr.f32.gmra.mrb[0].mxu0 %v8292
  %v8616 = vpop.f32.mrb[0].mxu0
  %v8617 = vadd.f32 %v8344, %v8616
  %v8618 = vpop.f32.mrb[0].mxu0
  %8619 = vmatprep.mubr.f32.mxu0 %v8380
  %8620 = vmatmul.mubr.f32.gmra.mrb[0].mxu0 %v8293
  %v8621 = vpop.f32.mrb[0].mxu0
  %v8622 = vadd.f32 %v8344, %v8621
  %v8623 = vpop.f32.mrb[0].mxu0
  %8624 = vmatprep.mubr.f32.mxu0 %v8382
  %8625 = vmatmul.mubr.f32.gmra.mrb[0].mxu0 %v8294
  %v8626 = vpop.f32.mrb[0].mxu0
  %v8627 = vadd.f32 %v8344, %v8626
  %v8628 = vpop.f32.mrb[0].mxu0
  %8629 = vmatprep.mubr.f32.mxu0 %v8384
  %8630 = vmatmul.mubr.f32.gmra.mrb[0].mxu0 %v8295
  %v8631 = vpop.f32.mrb[0].mxu0
  %v8632 = vadd.f32 %v8344, %v8631
  %v8633 = vpop.f32.mrb[0].mxu0
  %8634 = vmatprep.mubr.f32.mxu0 %v8386
  %8635 = vmatmul.mubr.f32.gmra.mrb[0].mxu0 %v8296
  %v8636 = vpop.f32.mrb[0].mxu0
  %v8637 = vadd.f32 %v8344, %v8636
  %v8638 = vpop.f32.mrb[0].mxu0
  %8639 = vmatprep.mubr.f32.mxu0 %v8388
  %8640 = vmatmul.mubr.f32.gmra.mrb[0].mxu0 %v8297
  %v8641 = vpop.f32.mrb[0].mxu0
  %v8642 = vadd.f32 %v8344, %v8641
  %v8643 = vpop.f32.mrb[0].mxu0
  %8644 = vmatprep.mubr.f32.mxu0 %v8390
  %8645 = vmatmul.mubr.f32.gmra.mrb[0].mxu0 %v8298
  %v8646 = vpop.f32.mrb[0].mxu0
  %v8647 = vadd.f32 %v8344, %v8646
  %v8648 = vpop.f32.mrb[0].mxu0
  %8649 = vmatprep.mubr.f32.mxu0 %v8392
  %8650 = vmatmul.mubr.f32.gmra.mrb[0].mxu0 %v8299
  %v8651 = vpop.f32.mrb[0].mxu0
  %v8652 = vadd.f32 %v8344, %v8651
  %v8653 = vpop.f32.mrb[0].mxu0
  %8654 = vmatprep.mubr.f32.mxu0 %v8394
  %8655 = vmatmul.mubr.f32.gmra.mrb[0].mxu0 %v8300
  %v8656 = vpop.f32.mrb[0].mxu0
  %v8657 = vadd.f32 %v8344, %v8656
  %v8658 = vpop.f32.mrb[0].mxu0
  %8659 = vmatprep.mubr.f32.mxu0 %v8396
  %8660 = vmatmul.mubr.f32.gmra.mrb[0].mxu0 %v8301
  %v8661 = vpop.f32.mrb[0].mxu0
  %v8662 = vadd.f32 %v8344, %v8661
  %v8663 = vpop.f32.mrb[0].mxu0
  %8664 = vmatprep.mubr.f32.mxu0 %v8398
  %8665 = vmatmul.mubr.f32.gmra.mrb[0].mxu0 %v8302
  %v8666 = vpop.f32.mrb[0].mxu0
  %v8667 = vadd.f32 %v8344, %v8666
  %v8668 = vpop.f32.mrb[0].mxu0
  %8669 = vmatprep.mubr.f32.mxu0 %v8400
  %8670 = vmatmul.mubr.f32.gmra.mrb[0].mxu0 %v8303
  %v8671 = vpop.f32.mrb[0].mxu0
  %v8672 = vadd.f32 %v8344, %v8671
  %v8673 = vpop.f32.mrb[0].mxu0
  %8674 = vmatprep.mubr.f32.mxu0 %v8402
  %8675 = vmatmul.mubr.f32.gmra.mrb[0].mxu0 %v8304
  %v8676 = vpop.f32.mrb[0].mxu0
  %v8677 = vadd.f32 %v8344, %v8676
  %v8678 = vpop.f32.mrb[0].mxu0
  %8679 = vmatprep.mubr.f32.mxu0 %v8404
  %8680 = vmatmul.mubr.f32.gmra.mrb[0].mxu0 %v8305
  %v8681 = vpop.f32.mrb[0].mxu0
  %v8682 = vadd.f32 %v8344, %v8681
  %v8683 = vpop.f32.mrb[0].mxu0
  %8684 = vmatprep.mubr.f32.mxu0 %v8406
  %8685 = vmatmul.mubr.f32.gmra.mrb[0].mxu0 %v8306
  %v8686 = vpop.f32.mrb[0].mxu0
  %v8687 = vadd.f32 %v8344, %v8686
  %v8688 = vpop.f32.mrb[0].mxu0
  %8689 = vmatprep.mubr.f32.mxu0 %v8408
  %8690 = vmatmul.mubr.f32.gmra.mrb[0].mxu0 %v8307
  %v8691 = vpop.f32.mrb[0].mxu0
  %v8692 = vadd.f32 %v8344, %v8691
  %v8693 = vpop.f32.mrb[0].mxu0
  %8694 = vmatprep.mubr.f32.mxu0 %v8410
  %8695 = vmatmul.mubr.f32.gmra.mrb[0].mxu0 %v8308
  %v8696 = vpop.f32.mrb[0].mxu0
  %v8697 = vadd.f32 %v8344, %v8696
  %v8698 = vpop.f32.mrb[0].mxu0
  %8699 = vmatprep.mubr.f32.mxu0 %v8412
  %8700 = vmatmul.mubr.f32.gmra.mrb[0].mxu0 %v8309
  %v8701 = vpop.f32.mrb[0].mxu0
  %v8702 = vadd.f32 %v8344, %v8701
  %v8703 = vpop.f32.mrb[0].mxu0
  %8704 = vmatprep.mubr.f32.mxu0 %v8414
  %8705 = vmatmul.mubr.f32.gmra.mrb[0].mxu0 %v8310
  %v8706 = vpop.f32.mrb[0].mxu0
  %v8707 = vadd.f32 %v8344, %v8706
  %v8708 = vpop.f32.mrb[0].mxu0
  %8709 = vmatprep.mubr.f32.mxu0 %v8416
  %8710 = vmatmul.mubr.f32.gmra.mrb[0].mxu0 %v8311
  %v8711 = vpop.f32.mrb[0].mxu0
  %v8712 = vadd.f32 %v8344, %v8711
  %v8713 = vpop.f32.mrb[0].mxu0
  %8714 = vmatprep.mubr.f32.mxu0 %v8418
  %8715 = vmatmul.mubr.f32.gmra.mrb[0].mxu0 %v8312
  %v8716 = vpop.f32.mrb[0].mxu0
  %v8717 = vadd.f32 %v8344, %v8716
  %v8718 = vpop.f32.mrb[0].mxu0
  %8719 = vmatprep.mubr.f32.mxu0 %v8420
  %8720 = vmatmul.mubr.f32.gmra.mrb[0].mxu0 %v8313
  %v8721 = vpop.f32.mrb[0].mxu0
  %v8722 = vadd.f32 %v8344, %v8721
  %v8723 = vpop.f32.mrb[0].mxu0
  %8724 = vmatprep.mubr.f32.mxu0 %v8422
  %8725 = vmatmul.mubr.f32.gmra.mrb[0].mxu0 %v8314
  %v8726 = vpop.f32.mrb[0].mxu0
  %v8727 = vadd.f32 %v8344, %v8726
  %v8728 = vpop.f32.mrb[0].mxu0
  %8729 = vmatprep.mubr.f32.mxu0 %v8424
  %8730 = vmatmul.mubr.f32.gmra.mrb[0].mxu0 %v8315
  %v8731 = vpop.f32.mrb[0].mxu0
  %v8732 = vadd.f32 %v8344, %v8731
  %v8733 = vpop.f32.mrb[0].mxu0
  %8734 = vmatprep.mubr.f32.mxu0 %v8426
  %8735 = vmatmul.mubr.f32.gmra.mrb[0].mxu0 %v8316
  %v8736 = vpop.f32.mrb[0].mxu0
  %v8737 = vadd.f32 %v8344, %v8736
  %v8738 = vpop.f32.mrb[0].mxu0
  %8739 = vmatprep.mubr.f32.mxu0 %v8428
  %8740 = vmatmul.mubr.f32.gmra.mrb[0].mxu0 %v8317
  %v8741 = vpop.f32.mrb[0].mxu0
  %v8742 = vadd.f32 %v8344, %v8741
  %v8743 = vpop.f32.mrb[0].mxu0
  %8744 = vmatprep.mubr.f32.mxu0 %v8430
  %8745 = vmatmul.mubr.f32.gmra.mrb[0].mxu0 %v8318
  %v8746 = vpop.f32.mrb[0].mxu0
  %v8747 = vadd.f32 %v8344, %v8746
  %v8748 = vpop.f32.mrb[0].mxu0
  %8749 = vmatprep.mubr.f32.mxu0 %v8432
  %8750 = vmatmul.mubr.f32.gmra.mrb[0].mxu0 %v8319
  %v8751 = vpop.f32.mrb[0].mxu0
  %v8752 = vadd.f32 %v8344, %v8751
  %v8753 = vpop.f32.mrb[0].mxu0
  %8754 = vmatprep.mubr.f32.mxu0 %v8434
  %8755 = vmatmul.mubr.f32.gmra.mrb[0].mxu0 %v8320
  %v8756 = vpop.f32.mrb[0].mxu0
  %v8757 = vadd.f32 %v8344, %v8756
  %v8758 = vpop.f32.mrb[0].mxu0
  %8759 = vmatprep.mubr.f32.mxu0 %v8436
  %8760 = vmatmul.mubr.f32.gmra.mrb[0].mxu0 %v8321
  %v8761 = vpop.f32.mrb[0].mxu0
  %v8762 = vadd.f32 %v8344, %v8761
  %v8763 = vpop.f32.mrb[0].mxu0
  %8764 = vmatprep.mubr.f32.mxu0 %v8438
  %8765 = vmatmul.mubr.f32.gmra.mrb[0].mxu0 %v8322
  %v8766 = vpop.f32.mrb[0].mxu0
  %v8767 = vadd.f32 %v8344, %v8766
  %v8768 = vpop.f32.mrb[0].mxu0
  %8769 = vmatprep.mubr.f32.mxu0 %v8440
  %8770 = vmatmul.mubr.f32.gmra.mrb[0].mxu0 %v8323
  %v8771 = vpop.f32.mrb[0].mxu0
  %v8772 = vadd.f32 %v8344, %v8771
  %v8773 = vpop.f32.mrb[0].mxu0
  %8774 = vmatprep.mubr.f32.mxu0 %v8442
  %8775 = vmatmul.mubr.f32.gmra.mrb[0].mxu0 %v8324
  %v8776 = vpop.f32.mrb[0].mxu0
  %v8777 = vadd.f32 %v8344, %v8776
  %v8778 = vpop.f32.mrb[0].mxu0
  %8779 = vmatprep.mubr.f32.mxu0 %v8444
  %8780 = vmatmul.mubr.f32.gmra.mrb[0].mxu0 %v8325
  %v8781 = vpop.f32.mrb[0].mxu0
  %v8782 = vadd.f32 %v8344, %v8781
  %v8783 = vpop.f32.mrb[0].mxu0
  %8784 = vmatprep.mubr.f32.mxu0 %v8446
  %8785 = vmatmul.mubr.f32.gmra.mrb[0].mxu0 %v8326
  %v8786 = vpop.f32.mrb[0].mxu0
  %v8787 = vadd.f32 %v8344, %v8786
  %v8788 = vpop.f32.mrb[0].mxu0
  %8789 = vmatprep.mubr.f32.mxu0 %v8448
  %8790 = vmatmul.mubr.f32.gmra.mrb[0].mxu0 %v8327
  %v8791 = vpop.f32.mrb[0].mxu0
  %v8792 = vadd.f32 %v8344, %v8791
  %v8793 = vpop.f32.mrb[0].mxu0
  %8794 = vmatprep.mubr.f32.mxu0 %v8450
  %8795 = vmatmul.mubr.f32.gmra.mrb[0].mxu0 %v8328
  %v8796 = vpop.f32.mrb[0].mxu0
  %v8797 = vadd.f32 %v8344, %v8796
  %v8798 = vpop.f32.mrb[0].mxu0
  %8799 = vmatprep.mubr.f32.mxu0 %v8452
  %8800 = vmatmul.mubr.f32.gmra.mrb[0].mxu0 %v8329
  %v8801 = vpop.f32.mrb[0].mxu0
  %v8802 = vadd.f32 %v8344, %v8801
  %v8803 = vpop.f32.mrb[0].mxu0
  %8804 = vmatprep.mubr.f32.mxu0 %v8454
  %8805 = vmatmul.mubr.f32.gmra.mrb[0].mxu0 %v8330
  %v8806 = vpop.f32.mrb[0].mxu0
  %v8807 = vadd.f32 %v8344, %v8806
  %v8808 = vpop.f32.mrb[0].mxu0
  %8809 = vmatprep.mubr.f32.mxu0 %v8456
  %8810 = vmatmul.mubr.f32.gmra.mrb[0].mxu0 %v8331
  %v8811 = vpop.f32.mrb[0].mxu0
  %v8812 = vadd.f32 %v8344, %v8811
  %v8813 = vpop.f32.mrb[0].mxu0
  %8814 = vmatprep.mubr.f32.mxu0 %v8458
  %8815 = vmatmul.mubr.f32.gmra.mrb[0].mxu0 %v8332
  %v8816 = vpop.f32.mrb[0].mxu0
  %v8817 = vadd.f32 %v8344, %v8816
  %v8818 = vpop.f32.mrb[0].mxu0
  %8819 = vmatprep.mubr.f32.mxu0 %v8460
  %8820 = vmatmul.mubr.f32.gmra.mrb[0].mxu0 %v8333
  %v8821 = vpop.f32.mrb[0].mxu0
  %v8822 = vadd.f32 %v8344, %v8821
  %v8823 = vpop.f32.mrb[0].mxu0
  %8824 = vmatprep.mubr.f32.mxu0 %v8462
  %8825 = vmatmul.mubr.f32.gmra.mrb[0].mxu0 %v8334
  %v8826 = vpop.f32.mrb[0].mxu0
  %v8827 = vadd.f32 %v8344, %v8826
  %v8828 = vpop.f32.mrb[0].mxu0
  %8829 = vmatprep.mubr.f32.mxu0 %v8464
  %8830 = vmatmul.mubr.f32.gmra.mrb[0].mxu0 %v8335
  %v8831 = vpop.f32.mrb[0].mxu0
  %v8832 = vadd.f32 %v8344, %v8831
  %v8833 = vpop.f32.mrb[0].mxu0
  %8834 = vmatprep.mubr.f32.mxu0 %v8466
  %8835 = vmatmul.mubr.f32.gmra.mrb[0].mxu0 %v8336
  %v8836 = vpop.f32.mrb[0].mxu0
  %v8837 = vadd.f32 %v8344, %v8836
  %v8838 = vpop.f32.mrb[0].mxu0
  %8839 = vmatprep.mubr.f32.mxu0 %v8468
  %8840 = vmatmul.mubr.f32.gmra.mrb[0].mxu0 %v8337
  %v8841 = vpop.f32.mrb[0].mxu0
  %v8842 = vadd.f32 %v8344, %v8841
  %v8843 = vpop.f32.mrb[0].mxu0
  %8844 = vmatprep.mubr.f32.mxu0 %v8406
  %8845 = vmatmul.mubr.f32.gmra.mrb[0].mxu0 %v8338
  %v8846 = vpop.f32.mrb[0].mxu0
  %v8847 = vadd.f32 %v8344, %v8846
  %v8848 = vpop.f32.mrb[0].mxu0
  %8849 = vmatprep.mubr.f32.mxu0 %v8408
  %8850 = vmatmul.mubr.f32.gmra.mrb[0].mxu0 %v8339
  %v8851 = vpop.f32.mrb[0].mxu0
  %v8852 = vadd.f32 %v8344, %v8851
  %v8853 = vpop.f32.mrb[0].mxu0
  %8854 = vdwg.mxu0
  %8855 = vst.msk [vmem:[%s13] sm:$0xff] %vm110, %v8537
  %8856 = vst.msk [vmem:[%s13 + $0x8] sm:$0xff] %vm110, %v8542
  %8857 = vst.msk [vmem:[%s13 + $0x10] sm:$0xff] %vm110, %v8547
  %8858 = vst.msk [vmem:[%s13 + $0x18] sm:$0xff] %vm110, %v8552
  %8859 = vst.msk [vmem:[%s13 + $0x20] sm:$0xff] %vm110, %v8557
  %8860 = vst.msk [vmem:[%s13 + $0x28] sm:$0xff] %vm110, %v8562
  %8861 = vst.msk [vmem:[%s13 + $0x30] sm:$0xff] %vm110, %v8567
  %8862 = vst.msk [vmem:[%s13 + $0x38] sm:$0xff] %vm110, %v8572
  %8863 = vst.msk [vmem:[%s13 + $0x40] sm:$0xff] %vm110, %v8577
  %8864 = vst.msk [vmem:[%s13 + $0x48] sm:$0xff] %vm110, %v8582
  %8865 = vst.msk [vmem:[%s13 + $0x50] sm:$0xff] %vm110, %v8587
  %8866 = vst.msk [vmem:[%s13 + $0x58] sm:$0xff] %vm110, %v8592
  %8867 = vst.msk [vmem:[%s13 + $0x60] sm:$0xff] %vm110, %v8597
  %8868 = vst.msk [vmem:[%s13 + $0x68] sm:$0xff] %vm110, %v8602
  %8869 = vst.msk [vmem:[%s13 + $0x70] sm:$0xff] %vm110, %v8607
  %8870 = vst.msk [vmem:[%s13 + $0x78] sm:$0xff] %vm110, %v8612
  %8871 = vst.msk [vmem:[%s13 + $0x80] sm:$0xff] %vm110, %v8617
  %8872 = vst.msk [vmem:[%s13 + $0x88] sm:$0xff] %vm110, %v8622
  %8873 = vst.msk [vmem:[%s13 + $0x90] sm:$0xff] %vm110, %v8627
  %8874 = vst.msk [vmem:[%s13 + $0x98] sm:$0xff] %vm110, %v8632
  %8875 = vst.msk [vmem:[%s13 + $0xa0] sm:$0xff] %vm110, %v8637
  %8876 = vst.msk [vmem:[%s13 + $0xa8] sm:$0xff] %vm110, %v8642
  %8877 = vst.msk [vmem:[%s13 + $0xb0] sm:$0xff] %vm110, %v8647
  %8878 = vst.msk [vmem:[%s13 + $0xb8] sm:$0xff] %vm110, %v8652
  %8879 = vst.msk [vmem:[%s13 + $0xc0] sm:$0xff] %vm110, %v8657
  %8880 = vst.msk [vmem:[%s13 + $0xc8] sm:$0xff] %vm110, %v8662
  %8881 = vst.msk [vmem:[%s13 + $0xd0] sm:$0xff] %vm110, %v8667
  %8882 = vst.msk [vmem:[%s13 + $0xd8] sm:$0xff] %vm110, %v8672
  %8883 = vst.msk [vmem:[%s13 + $0xe0] sm:$0xff] %vm110, %v8677
  %8884 = vst.msk [vmem:[%s13 + $0xe8] sm:$0xff] %vm110, %v8682
  %8885 = vst.msk [vmem:[%s13 + $0xf0] sm:$0xff] %vm110, %v8687
  %8886 = vst.msk [vmem:[%s13 + $0xf8] sm:$0xff] %vm110, %v8692
  %8887 = vst.msk [vmem:[%s13 + $0x100] sm:$0xff] %vm110, %v8697
  %8888 = vst.msk [vmem:[%s13 + $0x108] sm:$0xff] %vm110, %v8702
  %8889 = vst.msk [vmem:[%s13 + $0x110] sm:$0xff] %vm110, %v8707
  %8890 = vst.msk [vmem:[%s13 + $0x118] sm:$0xff] %vm110, %v8712
  %8891 = vst.msk [vmem:[%s13 + $0x120] sm:$0xff] %vm110, %v8717
  %8892 = vst.msk [vmem:[%s13 + $0x128] sm:$0xff] %vm110, %v8722
  %8893 = vst.msk [vmem:[%s13 + $0x130] sm:$0xff] %vm110, %v8727
  %8894 = vst.msk [vmem:[%s13 + $0x138] sm:$0xff] %vm110, %v8732
  %8895 = vst.msk [vmem:[%s13 + $0x140] sm:$0xff] %vm110, %v8737
  %8896 = vst.msk [vmem:[%s13 + $0x148] sm:$0xff] %vm110, %v8742
  %8897 = vst.msk [vmem:[%s13 + $0x150] sm:$0xff] %vm110, %v8747
  %8898 = vst.msk [vmem:[%s13 + $0x158] sm:$0xff] %vm110, %v8752
  %8899 = vst.msk [vmem:[%s13 + $0x160] sm:$0xff] %vm110, %v8757
  %8900 = vst.msk [vmem:[%s13 + $0x168] sm:$0xff] %vm110, %v8762
  %8901 = vst.msk [vmem:[%s13 + $0x170] sm:$0xff] %vm110, %v8767
  %8902 = vst.msk [vmem:[%s13 + $0x178] sm:$0xff] %vm110, %v8772
  %8903 = vst.msk [vmem:[%s13 + $0x180] sm:$0xff] %vm110, %v8777
  %8904 = vst.msk [vmem:[%s13 + $0x188] sm:$0xff] %vm110, %v8782
  %8905 = vst.msk [vmem:[%s13 + $0x190] sm:$0xff] %vm110, %v8787
  %8906 = vst.msk [vmem:[%s13 + $0x198] sm:$0xff] %vm110, %v8792
  %8907 = vst.msk [vmem:[%s13 + $0x1a0] sm:$0xff] %vm110, %v8797
  %8908 = vst.msk [vmem:[%s13 + $0x1a8] sm:$0xff] %vm110, %v8802
  %8909 = vst.msk [vmem:[%s13 + $0x1b0] sm:$0xff] %vm110, %v8807
  %8910 = vst.msk [vmem:[%s13 + $0x1b8] sm:$0xff] %vm110, %v8812
  %8911 = vst.msk [vmem:[%s13 + $0x1c0] sm:$0xff] %vm110, %v8817
  %8912 = vst.msk [vmem:[%s13 + $0x1c8] sm:$0xff] %vm110, %v8822
  %8913 = vst.msk [vmem:[%s13 + $0x1d0] sm:$0xff] %vm110, %v8827
  %8914 = vst.msk [vmem:[%s13 + $0x1d8] sm:$0xff] %vm110, %v8832
  %8915 = vst.msk [vmem:[%s13 + $0x1e0] sm:$0xff] %vm110, %v8837
  %8916 = vst.msk [vmem:[%s13 + $0x1e8] sm:$0xff] %vm110, %v8842
  %8917 = vst.msk [vmem:[%s13 + $0x1f0] sm:$0xff] %vm110, %v8847
  %8918 = vst.msk [vmem:[%s13 + $0x1f8] sm:$0xff] %vm110, %v8852
  // Predicated region
  $region54: #{norm_cnn_forward.1} parent=0 // pred_check
    _
  $region55: #{norm_cnn_forward.1} parent=0 // pred_check_branch
    %8920 = sbr.rel (0) target = $region57
  $region56: #{norm_cnn_forward.1} parent=0 // pred_region
    _
  $region57: #{norm_cnn_forward.1} parent=0 // pred_fallthru
    _
  // Predicated region
  $region58: #{norm_cnn_forward.1} parent=0 // pred_check
    _
  $region59: #{norm_cnn_forward.1} parent=0 // pred_check_branch
    %8922 = sbr.rel (0) target = $region61
  $region60: #{norm_cnn_forward.1} parent=0 // pred_region
    _
  $region61: #{norm_cnn_forward.1} parent=0 // pred_fallthru
    _

</llo_original>
